<compile_context>
chip_gen: v6e
topology: v6e:2x2x1
jax: 0.10.0
libtpu: 0.0.40
codegen_flags: <defaults>
</compile_context>

<pallas_src>
import math

import jax
import jax.numpy as jnp
from jax import lax
from jax.experimental import pallas as pl
from jax.experimental.pallas import tpu as pltpu


ACT_DIM = 6
ACT_PAD = 8          # act_dim zero-padded to a sublane-friendly 8 (exact math preserved)
ENC_DIM = 64
T_DIM = 128
HIDDEN = 512
IN_CAT = ACT_PAD + ENC_DIM + T_DIM   # 200: kernel-side concat width for fc1


# ----------------------------- fused forward kernel -----------------------------

def _fused_kernel(
    x_ref, temb_ref, act_ref, noise_ref, sac_ref, s1m_ref, msk_ref,
    e1w_ref, e1b_ref, e2w_ref, e2b_ref, e3w_ref, e3b_ref,
    pool_ref, lng_ref, lnb_ref,
    w1_ref, b1_ref, w2_ref, b2_ref, w3_ref, b3_ref,
    loss_ref):
    """One batch-tile of DiffusionPolicy.forward; weights stay VMEM-resident across tiles."""

    def silu(v):
        # exp + approx reciprocal go to the EUP slot; no VPU divide.
        return v * pl.reciprocal(1.0 + jnp.exp(-v), approx=True)

    def mm(a, w_ref):
        # bf16 operands on the MXU, f32 accumulation.
        return jnp.dot(a.astype(jnp.bfloat16), w_ref[...],
                       preferred_element_type=jnp.float32)

    # --- ImageEncoder: conv(k3,s2,p1)+SiLU x3 as lane-dense matmuls, avg-pool, LN ---
    h = silu(mm(x_ref[...], e1w_ref) + e1b_ref[...])          # (tb, 8*8*16)
    h = silu(mm(h, e2w_ref) + e2b_ref[...])                   # (tb, 4*4*32)
    h = silu(mm(h, e3w_ref) + e3b_ref[...])                   # (tb, 2*2*64)
    pooled = mm(h, pool_ref)                                  # AdaptiveAvgPool2d(1) -> (tb, 64)
    mu = jnp.mean(pooled, axis=-1, keepdims=True)
    var = jnp.mean((pooled - mu) ** 2, axis=-1, keepdims=True)
    cond = (pooled - mu) * lax.rsqrt(var + 1e-5) * lng_ref[...] + lnb_ref[...]

    # --- q_sample: x_t = sqrt_ac[t] * a0 + sqrt_1m_ac[t] * noise ---
    x_t = sac_ref[...] * act_ref[...] + s1m_ref[...] * noise_ref[...]   # (tb, ACT_PAD)

    # --- eps MLP: single fused fc1 over the in-VMEM concat [x_t | cond | t_emb] ---
    eps_in = jnp.concatenate([x_t, cond, temb_ref[...]], axis=-1)       # (tb, 200)
    h1 = silu(mm(eps_in, w1_ref) + b1_ref[...])
    h2 = silu(mm(h1, w2_ref) + b2_ref[...])
    eps = mm(h2, w3_ref) + b3_ref[...]                                  # (tb, ACT_PAD)

    # --- masked partial SSE for this tile (padded rows / padded act cols contribute 0) ---
    d = (eps - noise_ref[...]) * msk_ref[...]
    loss_ref[...] = jnp.sum(d * d, axis=(0, 1), keepdims=True)


def fused_forward(p, x_flat, t_emb, actions_p, noise_p, s_ac_b, s_1m_b, mask_b, tile_b):
    b_pad = x_flat.shape[0]
    num_tiles = b_pad // tile_b

    sample_inputs = (x_flat, t_emb, actions_p, noise_p, s_ac_b, s_1m_b, mask_b)
    weight_keys = ("enc1_w", "enc1_b", "enc2_w", "enc2_b", "enc3_w", "enc3_b",
                   "pool_w", "ln_g", "ln_b",
                   "fc1_w", "fc1_b", "fc2_w", "fc2_b", "fc3_w", "fc3_b")
    weights = tuple(p[k] for k in weight_keys)

    def sample_spec(a):
        # Per-sample data: one batch tile per grid step.
        return pl.BlockSpec((tile_b, a.shape[1]), lambda i: (i, 0))

    def weight_spec(w):
        # Constant block index: weights are DMA'd once and stay VMEM-resident for all tiles.
        return pl.BlockSpec(w.shape, lambda i: (0, 0))

    flops = 2 * b_pad * sum(int(p[k].shape[0]) * int(p[k].shape[1])
                            for k in ("enc1_w", "enc2_w", "enc3_w", "pool_w",
                                      "fc1_w", "fc2_w", "fc3_w"))
    weight_bytes = sum(int(w.size) * int(w.dtype.itemsize) for w in weights)
    sample_bytes = sum(int(a.size) * int(a.dtype.itemsize) for a in sample_inputs)
    transcendentals = b_pad * (1024 + 512 + 256 + 512 + 512)   # one exp per SiLU element

    partial = pl.pallas_call(
        _fused_kernel,
        out_shape=jax.ShapeDtypeStruct((num_tiles, 1), jnp.float32),
        grid=(num_tiles,),
        in_specs=[sample_spec(a) for a in sample_inputs]
                 + [weight_spec(w) for w in weights],
        out_specs=pl.BlockSpec((1, 1), lambda i: (i, 0)),
        compiler_params=pltpu.CompilerParams(
            dimension_semantics=("parallel",),           # v7x: tiles split across both TCs
            vmem_limit_bytes=32 * 1024 * 1024),
        cost_estimate=pl.CostEstimate(
            flops=flops, transcendentals=transcendentals,
            bytes_accessed=weight_bytes + sample_bytes + 4 * num_tiles),
    )(*sample_inputs, *weights)

    return jnp.sum(partial)          # sum of per-tile masked SSEs; normalized in the wrapper


# ------------------------- one-time parameter lowering --------------------------

def _conv_as_dense(w_hwio, H, W, stride=2, pad=1):
    """Exact dense-matrix equivalent of Conv2d(k,s,p) acting on flattened NHWC maps."""
    kh, kw, Cin, Cout = w_hwio.shape
    Ho = (H + 2 * pad - kh) // stride + 1
    Wo = (W + 2 * pad - kw) // stride + 1
    M = jnp.zeros((H * W * Cin, Ho * Wo * Cout), jnp.float32)
    OH, OW, CI, CO = jnp.meshgrid(jnp.arange(Ho), jnp.arange(Wo),
                                  jnp.arange(Cin), jnp.arange(Cout), indexing="ij")
    out_idx = ((OH * Wo + OW) * Cout + CO).reshape(-1)
    for ki in range(kh):
        for kj in range(kw):
            IH = stride * OH + ki - pad
            IW = stride * OW + kj - pad
            valid = (IH >= 0) & (IH < H) & (IW >= 0) & (IW < W)
            in_idx = ((jnp.clip(IH, 0, H - 1) * W
                       + jnp.clip(IW, 0, W - 1)) * Cin + CI).reshape(-1)
            vals = jnp.where(valid, w_hwio[ki, kj][None, None, :, :], 0.0).reshape(-1)
            M = M.at[in_idx, out_idx].add(vals)   # clipped-invalid taps carry value 0
    return M, Ho, Wo


def init_params(key, act_dim=ACT_DIM, enc_dim=ENC_DIM, hidden=HIDDEN, t_dim=T_DIM):
    ks = jax.random.split(key, 6)

    def w(k, shape, fan_in):
        return jax.random.normal(k, shape, jnp.float32) * (1.0 / math.sqrt(fan_in))

    in_dim = act_dim + enc_dim + t_dim
    return {
        "conv1_w": w(ks[0], (3, 3, 3, 16), 3 * 9),    "conv1_b": jnp.zeros((16,), jnp.float32),
        "conv2_w": w(ks[1], (3, 3, 16, 32), 16 * 9),  "conv2_b": jnp.zeros((32,), jnp.float32),
        "conv3_w": w(ks[2], (3, 3, 32, 64), 32 * 9),  "conv3_b": jnp.zeros((64,), jnp.float32),
        "ln_g": jnp.ones((enc_dim,), jnp.float32),    "ln_b": jnp.zeros((enc_dim,), jnp.float32),
        "fc1_w": w(ks[3], (in_dim, hidden), in_dim),  "fc1_b": jnp.zeros((hidden,), jnp.float32),
        "fc2_w": w(ks[4], (hidden, hidden), hidden),  "fc2_b": jnp.zeros((hidden,), jnp.float32),
        "fc3_w": w(ks[5], (hidden, act_dim), hidden), "fc3_b": jnp.zeros((act_dim,), jnp.float32),
    }


def prepare_params(params, H, W, act_dim=ACT_DIM, enc_dim=ENC_DIM):
    """One-time lowering into fused-kernel operands: convs -> dense flat-NHWC matmuls,
    avg-pool -> pooling matmul, fc1 fused into ONE matmul over [x_t(pad 8)|cond|t_emb],
    act-dim zero-padded to 8, matmul weights cast to bf16 (f32 accumulation in-kernel)."""
    bf16 = jnp.bfloat16
    e1, H1, W1 = _conv_as_dense(params["conv1_w"], H, W)
    e2, H2, W2 = _conv_as_dense(params["conv2_w"], H1, W1)
    e3, H3, W3 = _conv_as_dense(params["conv3_w"], H2, W2)
    n_spatial = H3 * W3

    # AdaptiveAvgPool2d(1) over the flattened (spatial, channel) conv3 output, as a matmul.
    pool = jnp.zeros((n_spatial * enc_dim, enc_dim), jnp.float32)
    pp, cc = jnp.meshgrid(jnp.arange(n_spatial), jnp.arange(enc_dim), indexing="ij")
    pool = pool.at[(pp * enc_dim + cc).reshape(-1), cc.reshape(-1)].set(1.0 / n_spatial)

    # fc1 over the in-kernel concat [x_t (padded to 8) | cond (64) | t_emb (128)].
    fc1_w = params["fc1_w"]
    fc1_full = jnp.zeros((IN_CAT, HIDDEN), jnp.float32)
    fc1_full = fc1_full.at[:act_dim].set(fc1_w[:act_dim])          # x_t rows (pad rows stay 0)
    fc1_full = fc1_full.at[ACT_PAD:].set(fc1_w[act_dim:])          # [cond | t_emb] rows

    w3 = jnp.zeros((HIDDEN, ACT_PAD), jnp.float32).at[:, :act_dim].set(params["fc3_w"])
    b3 = jnp.zeros((1, ACT_PAD), jnp.float32).at[0, :act_dim].set(params["fc3_b"])

    def bias_flat(b, n):           # per-channel conv bias tiled over output positions
        return jnp.tile(b, n)[None, :]

    return {
        "enc1_w": e1.astype(bf16), "enc1_b": bias_flat(params["conv1_b"], H1 * W1),
        "enc2_w": e2.astype(bf16), "enc2_b": bias_flat(params["conv2_b"], H2 * W2),
        "enc3_w": e3.astype(bf16), "enc3_b": bias_flat(params["conv3_b"], H3 * W3),
        "pool_w": pool.astype(bf16),
        "ln_g": params["ln_g"][None, :], "ln_b": params["ln_b"][None, :],
        "fc1_w": fc1_full.astype(bf16), "fc1_b": params["fc1_b"][None, :],
        "fc2_w": params["fc2_w"].astype(bf16), "fc2_b": params["fc2_b"][None, :],
        "fc3_w": w3.astype(bf16), "fc3_b": b3,
    }


# ----------------------------------- forward -----------------------------------

def get_timestep_embedding(t, dim):
    """Sinusoidal embedding matching the PyTorch reference (tiny elementwise glue)."""
    half = dim // 2
    freqs = jnp.exp(-math.log(10000.0) * jnp.arange(half, dtype=jnp.float32) / half)
    args = t.astype(jnp.float32)[:, None] * freqs[None, :]
    return jnp.concatenate([jnp.sin(args), jnp.cos(args)], axis=-1)


def _round_up(x, m):
    return (x + m - 1) // m * m


@jax.jit
def diffusion_policy_forward(prepared, buffers, obs_img_nchw, actions, t, noise):
    """obs_img: (B,3,H,W) NCHW, actions/noise: (B,act_dim), t: (B,) int. Scalar MSE loss."""
    B, act_dim = actions.shape
    # Glue feeding the single fused kernel: NCHW->NHWC flatten, t-embedding, diffusion-
    # buffer gathers, act-dim zero-pad to 8, batch pad to a sublane/MXU-friendly tile.
    x_flat = jnp.transpose(obs_img_nchw, (0, 2, 3, 1)).reshape(B, -1)
    t_emb = get_timestep_embedding(t, T_DIM)
    s_ac = buffers["sqrt_ac"][t][:, None]
    s_1m = buffers["sqrt_1m_ac"][t][:, None]

    # Raise matmul M: >=8 rows per tile (full f32 sublanes), up to 128 (MXU height).
    tile_b = 128 if B >= 128 else _round_up(B, 8)
    b_pad = _round_up(B, tile_b)

    def pad_rows(a):
        return jnp.pad(a, ((0, b_pad - B), (0, 0)))

    col_mask = (jnp.arange(ACT_PAD) < act_dim).astype(jnp.float32)[None, :]
    actions_p = pad_rows(jnp.pad(actions, ((0, 0), (0, ACT_PAD - act_dim))))
    noise_p = pad_rows(jnp.pad(noise, ((0, 0), (0, ACT_PAD - act_dim))))
    s_ac_b = pad_rows(jnp.broadcast_to(s_ac, (B, ACT_PAD)))
    s_1m_b = pad_rows(jnp.broadcast_to(s_1m, (B, ACT_PAD)))
    mask_b = pad_rows(jnp.broadcast_to(col_mask, (B, ACT_PAD)))   # real rows & real act cols
    x_flat = pad_rows(x_flat)
    t_emb = pad_rows(t_emb)

    sse = fused_forward(prepared, x_flat, t_emb, actions_p, noise_p,
                        s_ac_b, s_1m_b, mask_b, tile_b)
    return sse / (B * act_dim)        # padded rows/cols contributed exactly 0 to sse


if __name__ == "__main__":
    key = jax.random.PRNGKey(0)
    k_param, k_img, k_act, k_t, k_noise = jax.random.split(key, 5)

    n_steps = 1000
    B, H, W = 2, 16, 16

    params = init_params(k_param)
    prepared = prepare_params(params, H, W)      # one-time lowering, NOT per forward step

    betas = jnp.linspace(1e-4, 0.02, n_steps, dtype=jnp.float32)
    alphas = 1.0 - betas
    ac = jnp.cumprod(alphas)
    buffers = {"betas": betas, "sqrt_ac": jnp.sqrt(ac), "sqrt_1m_ac": jnp.sqrt(1.0 - ac)}

    obs_img = jax.random.normal(k_img, (B, 3, H, W), jnp.float32)
    actions = jax.random.normal(k_act, (B, ACT_DIM), jnp.float32)
    # forward() draws t ~ Uniform{0..n_steps-1} and noise ~ N(0,1); reproduced with JAX RNG.
    t = jax.random.randint(k_t, (B,), 0, n_steps)
    noise = jax.random.normal(k_noise, (B, ACT_DIM), jnp.float32)

    loss = diffusion_policy_forward(prepared, buffers, obs_img, actions, t, noise)
    jax.block_until_ready(loss)
    assert loss.shape == () and bool(jnp.isfinite(loss))
    print("KERNEL_OK")
</pallas_src>

<mosaic_0001>
module attributes {stable_mosaic.version = 11 : i64} {
  func.func @_fused_kernel(%arg0: i32, %arg1: memref<8x768xf32, #tpu.memory_space<vmem>>, %arg2: memref<8x128xf32, #tpu.memory_space<vmem>>, %arg3: memref<8x8xf32, #tpu.memory_space<vmem>>, %arg4: memref<8x8xf32, #tpu.memory_space<vmem>>, %arg5: memref<8x8xf32, #tpu.memory_space<vmem>>, %arg6: memref<8x8xf32, #tpu.memory_space<vmem>>, %arg7: memref<8x8xf32, #tpu.memory_space<vmem>>, %arg8: memref<768x1024xbf16, #tpu.memory_space<vmem>>, %arg9: memref<1x1024xf32, #tpu.memory_space<vmem>>, %arg10: memref<1024x512xbf16, #tpu.memory_space<vmem>>, %arg11: memref<1x512xf32, #tpu.memory_space<vmem>>, %arg12: memref<512x256xbf16, #tpu.memory_space<vmem>>, %arg13: memref<1x256xf32, #tpu.memory_space<vmem>>, %arg14: memref<256x64xbf16, #tpu.memory_space<vmem>>, %arg15: memref<1x64xf32, #tpu.memory_space<vmem>>, %arg16: memref<1x64xf32, #tpu.memory_space<vmem>>, %arg17: memref<200x512xbf16, #tpu.memory_space<vmem>>, %arg18: memref<1x512xf32, #tpu.memory_space<vmem>>, %arg19: memref<512x512xbf16, #tpu.memory_space<vmem>>, %arg20: memref<1x512xf32, #tpu.memory_space<vmem>>, %arg21: memref<512x8xbf16, #tpu.memory_space<vmem>>, %arg22: memref<1x8xf32, #tpu.memory_space<vmem>>, %arg23: memref<1x1xf32, #tpu.memory_space<vmem>>) attributes {dimension_semantics = [#tpu.dimension_semantics<parallel>], iteration_bounds = array<i64: 1>, scalar_prefetch = 0 : i64, scratch_operands = 0 : i64, tpu.core_type = #tpu.core_type<tc>, window_params = [{transform_indices = @transform_0, window_bounds = array<i64: 8, 768>}, {transform_indices = @transform_1, window_bounds = array<i64: 8, 128>}, {transform_indices = @transform_2, window_bounds = array<i64: 8, 8>}, {transform_indices = @transform_3, window_bounds = array<i64: 8, 8>}, {transform_indices = @transform_4, window_bounds = array<i64: 8, 8>}, {transform_indices = @transform_5, window_bounds = array<i64: 8, 8>}, {transform_indices = @transform_6, window_bounds = array<i64: 8, 8>}, {pipeline_mode = #tpu.pipeline_mode<synchronous>, transform_indices = @transform_7, window_bounds = array<i64: 768, 1024>}, {pipeline_mode = #tpu.pipeline_mode<synchronous>, transform_indices = @transform_8, window_bounds = array<i64: 1, 1024>}, {pipeline_mode = #tpu.pipeline_mode<synchronous>, transform_indices = @transform_9, window_bounds = array<i64: 1024, 512>}, {pipeline_mode = #tpu.pipeline_mode<synchronous>, transform_indices = @transform_10, window_bounds = array<i64: 1, 512>}, {pipeline_mode = #tpu.pipeline_mode<synchronous>, transform_indices = @transform_11, window_bounds = array<i64: 512, 256>}, {pipeline_mode = #tpu.pipeline_mode<synchronous>, transform_indices = @transform_12, window_bounds = array<i64: 1, 256>}, {pipeline_mode = #tpu.pipeline_mode<synchronous>, transform_indices = @transform_13, window_bounds = array<i64: 256, 64>}, {pipeline_mode = #tpu.pipeline_mode<synchronous>, transform_indices = @transform_14, window_bounds = array<i64: 1, 64>}, {pipeline_mode = #tpu.pipeline_mode<synchronous>, transform_indices = @transform_15, window_bounds = array<i64: 1, 64>}, {pipeline_mode = #tpu.pipeline_mode<synchronous>, transform_indices = @transform_16, window_bounds = array<i64: 200, 512>}, {pipeline_mode = #tpu.pipeline_mode<synchronous>, transform_indices = @transform_17, window_bounds = array<i64: 1, 512>}, {pipeline_mode = #tpu.pipeline_mode<synchronous>, transform_indices = @transform_18, window_bounds = array<i64: 512, 512>}, {pipeline_mode = #tpu.pipeline_mode<synchronous>, transform_indices = @transform_19, window_bounds = array<i64: 1, 512>}, {pipeline_mode = #tpu.pipeline_mode<synchronous>, transform_indices = @transform_20, window_bounds = array<i64: 512, 8>}, {pipeline_mode = #tpu.pipeline_mode<synchronous>, transform_indices = @transform_21, window_bounds = array<i64: 1, 8>}, {transform_indices = @transform_22, window_bounds = array<i64: 1, 1>}]} {
    %c0 = arith.constant 0 : index
    %c0_0 = arith.constant 0 : index
    %0 = vector.load %arg1[%c0, %c0_0] : memref<8x768xf32, #tpu.memory_space<vmem>>, vector<8x768xf32>
    %1 = arith.truncf %0 : vector<8x768xf32> to vector<8x768xbf16>
    %c0_1 = arith.constant 0 : index
    %c0_2 = arith.constant 0 : index
    %2 = vector.load %arg8[%c0_1, %c0_2] : memref<768x1024xbf16, #tpu.memory_space<vmem>>, vector<768x1024xbf16>
    %cst = arith.constant dense<0.000000e+00> : vector<8x1024xf32>
    %3 = tpu.matmul %1, %2, %cst {dimension_numbers = #tpu.dot_dimension_numbers<[1], [0], [0], [1], [0, 0, 1, 1], [], []>} : vector<8x768xbf16>, vector<768x1024xbf16>, vector<8x1024xf32> -> vector<8x1024xf32>
    %c0_3 = arith.constant 0 : index
    %c0_4 = arith.constant 0 : index
    %4 = vector.load %arg9[%c0_3, %c0_4] : memref<1x1024xf32, #tpu.memory_space<vmem>>, vector<1x1024xf32>
    %5 = vector.broadcast %4 : vector<1x1024xf32> to vector<8x1024xf32>
    %6 = arith.addf %3, %5 : vector<8x1024xf32>
    %cst_5 = arith.constant 0.000000e+00 : f32
    %7 = vector.broadcast %cst_5 : f32 to vector<8x1024xf32>
    %8 = arith.subf %7, %6 : vector<8x1024xf32>
    %9 = math.exp %8 : vector<8x1024xf32>
    %cst_6 = arith.constant 1.000000e+00 : f32
    %10 = vector.broadcast %cst_6 : f32 to vector<8x1024xf32>
    %11 = arith.addf %10, %9 : vector<8x1024xf32>
    %12 = tpu.reciprocal %11 {approx = true} : vector<8x1024xf32> -> vector<8x1024xf32>
    %13 = arith.mulf %6, %12 : vector<8x1024xf32>
    %14 = arith.truncf %13 : vector<8x1024xf32> to vector<8x1024xbf16>
    %c0_7 = arith.constant 0 : index
    %c0_8 = arith.constant 0 : index
    %15 = vector.load %arg10[%c0_7, %c0_8] : memref<1024x512xbf16, #tpu.memory_space<vmem>>, vector<1024x512xbf16>
    %cst_9 = arith.constant dense<0.000000e+00> : vector<8x512xf32>
    %16 = tpu.matmul %14, %15, %cst_9 {dimension_numbers = #tpu.dot_dimension_numbers<[1], [0], [0], [1], [0, 0, 1, 1], [], []>} : vector<8x1024xbf16>, vector<1024x512xbf16>, vector<8x512xf32> -> vector<8x512xf32>
    %c0_10 = arith.constant 0 : index
    %c0_11 = arith.constant 0 : index
    %17 = vector.load %arg11[%c0_10, %c0_11] : memref<1x512xf32, #tpu.memory_space<vmem>>, vector<1x512xf32>
    %18 = vector.broadcast %17 : vector<1x512xf32> to vector<8x512xf32>
    %19 = arith.addf %16, %18 : vector<8x512xf32>
    %cst_12 = arith.constant 0.000000e+00 : f32
    %20 = vector.broadcast %cst_12 : f32 to vector<8x512xf32>
    %21 = arith.subf %20, %19 : vector<8x512xf32>
    %22 = math.exp %21 : vector<8x512xf32>
    %cst_13 = arith.constant 1.000000e+00 : f32
    %23 = vector.broadcast %cst_13 : f32 to vector<8x512xf32>
    %24 = arith.addf %23, %22 : vector<8x512xf32>
    %25 = tpu.reciprocal %24 {approx = true} : vector<8x512xf32> -> vector<8x512xf32>
    %26 = arith.mulf %19, %25 : vector<8x512xf32>
    %27 = arith.truncf %26 : vector<8x512xf32> to vector<8x512xbf16>
    %c0_14 = arith.constant 0 : index
    %c0_15 = arith.constant 0 : index
    %28 = vector.load %arg12[%c0_14, %c0_15] : memref<512x256xbf16, #tpu.memory_space<vmem>>, vector<512x256xbf16>
    %cst_16 = arith.constant dense<0.000000e+00> : vector<8x256xf32>
    %29 = tpu.matmul %27, %28, %cst_16 {dimension_numbers = #tpu.dot_dimension_numbers<[1], [0], [0], [1], [0, 0, 1, 1], [], []>} : vector<8x512xbf16>, vector<512x256xbf16>, vector<8x256xf32> -> vector<8x256xf32>
    %c0_17 = arith.constant 0 : index
    %c0_18 = arith.constant 0 : index
    %30 = vector.load %arg13[%c0_17, %c0_18] : memref<1x256xf32, #tpu.memory_space<vmem>>, vector<1x256xf32>
    %31 = vector.broadcast %30 : vector<1x256xf32> to vector<8x256xf32>
    %32 = arith.addf %29, %31 : vector<8x256xf32>
    %cst_19 = arith.constant 0.000000e+00 : f32
    %33 = vector.broadcast %cst_19 : f32 to vector<8x256xf32>
    %34 = arith.subf %33, %32 : vector<8x256xf32>
    %35 = math.exp %34 : vector<8x256xf32>
    %cst_20 = arith.constant 1.000000e+00 : f32
    %36 = vector.broadcast %cst_20 : f32 to vector<8x256xf32>
    %37 = arith.addf %36, %35 : vector<8x256xf32>
    %38 = tpu.reciprocal %37 {approx = true} : vector<8x256xf32> -> vector<8x256xf32>
    %39 = arith.mulf %32, %38 : vector<8x256xf32>
    %40 = arith.truncf %39 : vector<8x256xf32> to vector<8x256xbf16>
    %c0_21 = arith.constant 0 : index
    %c0_22 = arith.constant 0 : index
    %41 = vector.load %arg14[%c0_21, %c0_22] : memref<256x64xbf16, #tpu.memory_space<vmem>>, vector<256x64xbf16>
    %cst_23 = arith.constant dense<0.000000e+00> : vector<8x64xf32>
    %42 = tpu.matmul %40, %41, %cst_23 {dimension_numbers = #tpu.dot_dimension_numbers<[1], [0], [0], [1], [0, 0, 1, 1], [], []>} : vector<8x256xbf16>, vector<256x64xbf16>, vector<8x64xf32> -> vector<8x64xf32>
    %cst_24 = arith.constant dense<0.000000e+00> : vector<8xf32>
    %43 = vector.multi_reduction <add>, %42, %cst_24 [1] : vector<8x64xf32> to vector<8xf32>
    %44 = vector.shape_cast %43 : vector<8xf32> to vector<8x1xf32>
    %cst_25 = arith.constant 6.400000e+01 : f32
    %45 = vector.broadcast %cst_25 : f32 to vector<8x1xf32>
    %46 = arith.divf %44, %45 : vector<8x1xf32>
    %47 = vector.broadcast %46 : vector<8x1xf32> to vector<8x64xf32>
    %48 = arith.subf %42, %47 : vector<8x64xf32>
    %49 = arith.mulf %48, %48 : vector<8x64xf32>
    %cst_26 = arith.constant dense<0.000000e+00> : vector<8xf32>
    %50 = vector.multi_reduction <add>, %49, %cst_26 [1] : vector<8x64xf32> to vector<8xf32>
    %51 = vector.shape_cast %50 : vector<8xf32> to vector<8x1xf32>
    %cst_27 = arith.constant 6.400000e+01 : f32
    %52 = vector.broadcast %cst_27 : f32 to vector<8x1xf32>
    %53 = arith.divf %51, %52 : vector<8x1xf32>
    %54 = vector.broadcast %46 : vector<8x1xf32> to vector<8x64xf32>
    %55 = arith.subf %42, %54 : vector<8x64xf32>
    %cst_28 = arith.constant 9.99999974E-6 : f32
    %56 = vector.broadcast %cst_28 : f32 to vector<8x1xf32>
    %57 = arith.addf %53, %56 : vector<8x1xf32>
    %58 = math.rsqrt %57 : vector<8x1xf32>
    %59 = vector.broadcast %58 : vector<8x1xf32> to vector<8x64xf32>
    %60 = arith.mulf %55, %59 : vector<8x64xf32>
    %c0_29 = arith.constant 0 : index
    %c0_30 = arith.constant 0 : index
    %61 = vector.load %arg15[%c0_29, %c0_30] : memref<1x64xf32, #tpu.memory_space<vmem>>, vector<1x64xf32>
    %62 = vector.broadcast %61 : vector<1x64xf32> to vector<8x64xf32>
    %63 = arith.mulf %60, %62 : vector<8x64xf32>
    %c0_31 = arith.constant 0 : index
    %c0_32 = arith.constant 0 : index
    %64 = vector.load %arg16[%c0_31, %c0_32] : memref<1x64xf32, #tpu.memory_space<vmem>>, vector<1x64xf32>
    %65 = vector.broadcast %64 : vector<1x64xf32> to vector<8x64xf32>
    %66 = arith.addf %63, %65 : vector<8x64xf32>
    %c0_33 = arith.constant 0 : index
    %c0_34 = arith.constant 0 : index
    %67 = vector.load %arg5[%c0_33, %c0_34] : memref<8x8xf32, #tpu.memory_space<vmem>>, vector<8x8xf32>
    %c0_35 = arith.constant 0 : index
    %c0_36 = arith.constant 0 : index
    %68 = vector.load %arg3[%c0_35, %c0_36] : memref<8x8xf32, #tpu.memory_space<vmem>>, vector<8x8xf32>
    %69 = arith.mulf %67, %68 : vector<8x8xf32>
    %c0_37 = arith.constant 0 : index
    %c0_38 = arith.constant 0 : index
    %70 = vector.load %arg6[%c0_37, %c0_38] : memref<8x8xf32, #tpu.memory_space<vmem>>, vector<8x8xf32>
    %c0_39 = arith.constant 0 : index
    %c0_40 = arith.constant 0 : index
    %71 = vector.load %arg4[%c0_39, %c0_40] : memref<8x8xf32, #tpu.memory_space<vmem>>, vector<8x8xf32>
    %72 = arith.mulf %70, %71 : vector<8x8xf32>
    %73 = arith.addf %69, %72 : vector<8x8xf32>
    %c0_41 = arith.constant 0 : index
    %c0_42 = arith.constant 0 : index
    %74 = vector.load %arg2[%c0_41, %c0_42] : memref<8x128xf32, #tpu.memory_space<vmem>>, vector<8x128xf32>
    %75 = tpu.concatenate %73, %66, %74 in 1 : vector<8x8xf32>, vector<8x64xf32>, vector<8x128xf32> -> vector<8x200xf32>
    %76 = arith.truncf %75 : vector<8x200xf32> to vector<8x200xbf16>
    %c0_43 = arith.constant 0 : index
    %c0_44 = arith.constant 0 : index
    %77 = vector.load %arg17[%c0_43, %c0_44] : memref<200x512xbf16, #tpu.memory_space<vmem>>, vector<200x512xbf16>
    %cst_45 = arith.constant dense<0.000000e+00> : vector<8x512xf32>
    %78 = tpu.matmul %76, %77, %cst_45 {dimension_numbers = #tpu.dot_dimension_numbers<[1], [0], [0], [1], [0, 0, 1, 1], [], []>} : vector<8x200xbf16>, vector<200x512xbf16>, vector<8x512xf32> -> vector<8x512xf32>
    %c0_46 = arith.constant 0 : index
    %c0_47 = arith.constant 0 : index
    %79 = vector.load %arg18[%c0_46, %c0_47] : memref<1x512xf32, #tpu.memory_space<vmem>>, vector<1x512xf32>
    %80 = vector.broadcast %79 : vector<1x512xf32> to vector<8x512xf32>
    %81 = arith.addf %78, %80 : vector<8x512xf32>
    %cst_48 = arith.constant 0.000000e+00 : f32
    %82 = vector.broadcast %cst_48 : f32 to vector<8x512xf32>
    %83 = arith.subf %82, %81 : vector<8x512xf32>
    %84 = math.exp %83 : vector<8x512xf32>
    %cst_49 = arith.constant 1.000000e+00 : f32
    %85 = vector.broadcast %cst_49 : f32 to vector<8x512xf32>
    %86 = arith.addf %85, %84 : vector<8x512xf32>
    %87 = tpu.reciprocal %86 {approx = true} : vector<8x512xf32> -> vector<8x512xf32>
    %88 = arith.mulf %81, %87 : vector<8x512xf32>
    %89 = arith.truncf %88 : vector<8x512xf32> to vector<8x512xbf16>
    %c0_50 = arith.constant 0 : index
    %c0_51 = arith.constant 0 : index
    %90 = vector.load %arg19[%c0_50, %c0_51] : memref<512x512xbf16, #tpu.memory_space<vmem>>, vector<512x512xbf16>
    %cst_52 = arith.constant dense<0.000000e+00> : vector<8x512xf32>
    %91 = tpu.matmul %89, %90, %cst_52 {dimension_numbers = #tpu.dot_dimension_numbers<[1], [0], [0], [1], [0, 0, 1, 1], [], []>} : vector<8x512xbf16>, vector<512x512xbf16>, vector<8x512xf32> -> vector<8x512xf32>
    %c0_53 = arith.constant 0 : index
    %c0_54 = arith.constant 0 : index
    %92 = vector.load %arg20[%c0_53, %c0_54] : memref<1x512xf32, #tpu.memory_space<vmem>>, vector<1x512xf32>
    %93 = vector.broadcast %92 : vector<1x512xf32> to vector<8x512xf32>
    %94 = arith.addf %91, %93 : vector<8x512xf32>
    %cst_55 = arith.constant 0.000000e+00 : f32
    %95 = vector.broadcast %cst_55 : f32 to vector<8x512xf32>
    %96 = arith.subf %95, %94 : vector<8x512xf32>
    %97 = math.exp %96 : vector<8x512xf32>
    %cst_56 = arith.constant 1.000000e+00 : f32
    %98 = vector.broadcast %cst_56 : f32 to vector<8x512xf32>
    %99 = arith.addf %98, %97 : vector<8x512xf32>
    %100 = tpu.reciprocal %99 {approx = true} : vector<8x512xf32> -> vector<8x512xf32>
    %101 = arith.mulf %94, %100 : vector<8x512xf32>
    %102 = arith.truncf %101 : vector<8x512xf32> to vector<8x512xbf16>
    %c0_57 = arith.constant 0 : index
    %c0_58 = arith.constant 0 : index
    %103 = vector.load %arg21[%c0_57, %c0_58] : memref<512x8xbf16, #tpu.memory_space<vmem>>, vector<512x8xbf16>
    %cst_59 = arith.constant dense<0.000000e+00> : vector<8x8xf32>
    %104 = tpu.matmul %102, %103, %cst_59 {dimension_numbers = #tpu.dot_dimension_numbers<[1], [0], [0], [1], [0, 0, 1, 1], [], []>} : vector<8x512xbf16>, vector<512x8xbf16>, vector<8x8xf32> -> vector<8x8xf32>
    %c0_60 = arith.constant 0 : index
    %c0_61 = arith.constant 0 : index
    %105 = vector.load %arg22[%c0_60, %c0_61] : memref<1x8xf32, #tpu.memory_space<vmem>>, vector<1x8xf32>
    %106 = vector.broadcast %105 : vector<1x8xf32> to vector<8x8xf32>
    %107 = arith.addf %104, %106 : vector<8x8xf32>
    %c0_62 = arith.constant 0 : index
    %c0_63 = arith.constant 0 : index
    %108 = vector.load %arg4[%c0_62, %c0_63] : memref<8x8xf32, #tpu.memory_space<vmem>>, vector<8x8xf32>
    %109 = arith.subf %107, %108 : vector<8x8xf32>
    %c0_64 = arith.constant 0 : index
    %c0_65 = arith.constant 0 : index
    %110 = vector.load %arg7[%c0_64, %c0_65] : memref<8x8xf32, #tpu.memory_space<vmem>>, vector<8x8xf32>
    %111 = arith.mulf %109, %110 : vector<8x8xf32>
    %112 = arith.mulf %111, %111 : vector<8x8xf32>
    %113 = vector.shape_cast %112 : vector<8x8xf32> to vector<1x8x8xf32>
    %cst_66 = arith.constant dense<0.000000e+00> : vector<1xf32>
    %114 = vector.multi_reduction <add>, %113, %cst_66 [1, 2] : vector<1x8x8xf32> to vector<1xf32>
    %115 = vector.shape_cast %114 : vector<1xf32> to vector<1x1x1xf32>
    %116 = vector.extract %115[0, 0, 0] : f32 from vector<1x1x1xf32>
    %117 = vector.broadcast %116 : f32 to vector<1x1xf32>
    %c0_67 = arith.constant 0 : index
    %c0_68 = arith.constant 0 : index
    %118 = vector.load %arg23[%c0_67, %c0_68] : memref<1x1xf32, #tpu.memory_space<vmem>>, vector<1x1xf32>
    tpu.vector_store %arg23[%c0_67, %c0_68], %117 {strides = array<i32>} : memref<1x1xf32, #tpu.memory_space<vmem>>, vector<1x1xf32>,
    return
  }
  func.func @transform_0(%arg0: i32) -> (i32, i32) {
    %c0_i32 = arith.constant 0 : i32
    %c0_i32_0 = arith.constant 0 : i32
    return %arg0, %c0_i32 : i32, i32
  }
  func.func @transform_1(%arg0: i32) -> (i32, i32) {
    %c0_i32 = arith.constant 0 : i32
    %c0_i32_0 = arith.constant 0 : i32
    return %arg0, %c0_i32 : i32, i32
  }
  func.func @transform_2(%arg0: i32) -> (i32, i32) {
    %c0_i32 = arith.constant 0 : i32
    %c0_i32_0 = arith.constant 0 : i32
    return %arg0, %c0_i32 : i32, i32
  }
  func.func @transform_3(%arg0: i32) -> (i32, i32) {
    %c0_i32 = arith.constant 0 : i32
    %c0_i32_0 = arith.constant 0 : i32
    return %arg0, %c0_i32 : i32, i32
  }
  func.func @transform_4(%arg0: i32) -> (i32, i32) {
    %c0_i32 = arith.constant 0 : i32
    %c0_i32_0 = arith.constant 0 : i32
    return %arg0, %c0_i32 : i32, i32
  }
  func.func @transform_5(%arg0: i32) -> (i32, i32) {
    %c0_i32 = arith.constant 0 : i32
    %c0_i32_0 = arith.constant 0 : i32
    return %arg0, %c0_i32 : i32, i32
  }
  func.func @transform_6(%arg0: i32) -> (i32, i32) {
    %c0_i32 = arith.constant 0 : i32
    %c0_i32_0 = arith.constant 0 : i32
    return %arg0, %c0_i32 : i32, i32
  }
  func.func @transform_7(%arg0: i32) -> (i32, i32) {
    %c0_i32 = arith.constant 0 : i32
    %c0_i32_0 = arith.constant 0 : i32
    %c0_i32_1 = arith.constant 0 : i32
    return %c0_i32, %c0_i32_0 : i32, i32
  }
  func.func @transform_8(%arg0: i32) -> (i32, i32) {
    %c0_i32 = arith.constant 0 : i32
    %c0_i32_0 = arith.constant 0 : i32
    %c0_i32_1 = arith.constant 0 : i32
    return %c0_i32, %c0_i32_0 : i32, i32
  }
  func.func @transform_9(%arg0: i32) -> (i32, i32) {
    %c0_i32 = arith.constant 0 : i32
    %c0_i32_0 = arith.constant 0 : i32
    %c0_i32_1 = arith.constant 0 : i32
    return %c0_i32, %c0_i32_0 : i32, i32
  }
  func.func @transform_10(%arg0: i32) -> (i32, i32) {
    %c0_i32 = arith.constant 0 : i32
    %c0_i32_0 = arith.constant 0 : i32
    %c0_i32_1 = arith.constant 0 : i32
    return %c0_i32, %c0_i32_0 : i32, i32
  }
  func.func @transform_11(%arg0: i32) -> (i32, i32) {
    %c0_i32 = arith.constant 0 : i32
    %c0_i32_0 = arith.constant 0 : i32
    %c0_i32_1 = arith.constant 0 : i32
    return %c0_i32, %c0_i32_0 : i32, i32
  }
  func.func @transform_12(%arg0: i32) -> (i32, i32) {
    %c0_i32 = arith.constant 0 : i32
    %c0_i32_0 = arith.constant 0 : i32
    %c0_i32_1 = arith.constant 0 : i32
    return %c0_i32, %c0_i32_0 : i32, i32
  }
  func.func @transform_13(%arg0: i32) -> (i32, i32) {
    %c0_i32 = arith.constant 0 : i32
    %c0_i32_0 = arith.constant 0 : i32
    %c0_i32_1 = arith.constant 0 : i32
    return %c0_i32, %c0_i32_0 : i32, i32
  }
  func.func @transform_14(%arg0: i32) -> (i32, i32) {
    %c0_i32 = arith.constant 0 : i32
    %c0_i32_0 = arith.constant 0 : i32
    %c0_i32_1 = arith.constant 0 : i32
    return %c0_i32, %c0_i32_0 : i32, i32
  }
  func.func @transform_15(%arg0: i32) -> (i32, i32) {
    %c0_i32 = arith.constant 0 : i32
    %c0_i32_0 = arith.constant 0 : i32
    %c0_i32_1 = arith.constant 0 : i32
    return %c0_i32, %c0_i32_0 : i32, i32
  }
  func.func @transform_16(%arg0: i32) -> (i32, i32) {
    %c0_i32 = arith.constant 0 : i32
    %c0_i32_0 = arith.constant 0 : i32
    %c0_i32_1 = arith.constant 0 : i32
    return %c0_i32, %c0_i32_0 : i32, i32
  }
  func.func @transform_17(%arg0: i32) -> (i32, i32) {
    %c0_i32 = arith.constant 0 : i32
    %c0_i32_0 = arith.constant 0 : i32
    %c0_i32_1 = arith.constant 0 : i32
    return %c0_i32, %c0_i32_0 : i32, i32
  }
  func.func @transform_18(%arg0: i32) -> (i32, i32) {
    %c0_i32 = arith.constant 0 : i32
    %c0_i32_0 = arith.constant 0 : i32
    %c0_i32_1 = arith.constant 0 : i32
    return %c0_i32, %c0_i32_0 : i32, i32
  }
  func.func @transform_19(%arg0: i32) -> (i32, i32) {
    %c0_i32 = arith.constant 0 : i32
    %c0_i32_0 = arith.constant 0 : i32
    %c0_i32_1 = arith.constant 0 : i32
    return %c0_i32, %c0_i32_0 : i32, i32
  }
  func.func @transform_20(%arg0: i32) -> (i32, i32) {
    %c0_i32 = arith.constant 0 : i32
    %c0_i32_0 = arith.constant 0 : i32
    %c0_i32_1 = arith.constant 0 : i32
    return %c0_i32, %c0_i32_0 : i32, i32
  }
  func.func @transform_21(%arg0: i32) -> (i32, i32) {
    %c0_i32 = arith.constant 0 : i32
    %c0_i32_0 = arith.constant 0 : i32
    %c0_i32_1 = arith.constant 0 : i32
    return %c0_i32, %c0_i32_0 : i32, i32
  }
  func.func @transform_22(%arg0: i32) -> (i32, i32) {
    %c0_i32 = arith.constant 0 : i32
    %c0_i32_0 = arith.constant 0 : i32
    return %arg0, %c0_i32 : i32, i32
  }
}

</mosaic_0001>

<llo_original>
// kernel: diffusion_policy_forward.1
$region0: #{diffusion_policy_forward.1}
  #allocation0 [shape = 'u32[]', space=smem, size = 0x4, offset = 0x4, fixed_abs, tag = 'smem constant byte address 0x4 - core index']
  #allocation1 [shape = 'u32[144,128]{1,0:T(1,128)}', space=vmem, size = 0x12000, scoped, tag = 'internal scratch']
  %s0 = inlined_call_operand.vmem [shape: f32[8,768], index: 0, kind: input, shape index: {}]
  %s1 = inlined_call_operand.vmem [shape: f32[8,128], index: 1, kind: input, shape index: {}]
  %s2 = inlined_call_operand.vmem [shape: f32[8,8], index: 2, kind: input, shape index: {}]
  %s3 = inlined_call_operand.vmem [shape: f32[8,8], index: 3, kind: input, shape index: {}]
  %s4 = inlined_call_operand.vmem [shape: f32[8,8], index: 4, kind: input, shape index: {}]
  %s5 = inlined_call_operand.vmem [shape: f32[8,8], index: 5, kind: input, shape index: {}]
  %s6 = inlined_call_operand.vmem [shape: f32[8,8], index: 6, kind: input, shape index: {}]
  %s7 = inlined_call_operand.vmem [shape: bf16[768,1024], index: 7, kind: input, shape index: {}]
  %s8 = inlined_call_operand.vmem [shape: f32[1,1024], index: 8, kind: input, shape index: {}]
  %s9 = inlined_call_operand.hbm [shape: bf16[1024,512], index: 9, kind: input, shape index: {}]
  %s10 = inlined_call_operand.vmem [shape: f32[1,512], index: 10, kind: input, shape index: {}]
  %s11 = inlined_call_operand.vmem [shape: bf16[512,256], index: 11, kind: input, shape index: {}]
  %s12 = inlined_call_operand.vmem [shape: f32[1,256], index: 12, kind: input, shape index: {}]
  %s13 = inlined_call_operand.vmem [shape: bf16[256,64], index: 13, kind: input, shape index: {}]
  %s14 = inlined_call_operand.vmem [shape: f32[1,64], index: 14, kind: input, shape index: {}]
  %s15 = inlined_call_operand.vmem [shape: f32[1,64], index: 15, kind: input, shape index: {}]
  %s16 = inlined_call_operand.hbm [shape: bf16[200,512], index: 16, kind: input, shape index: {}]
  %s17 = inlined_call_operand.vmem [shape: f32[1,512], index: 17, kind: input, shape index: {}]
  %s18 = inlined_call_operand.hbm [shape: bf16[512,512], index: 18, kind: input, shape index: {}]
  %s19 = inlined_call_operand.vmem [shape: f32[1,512], index: 19, kind: input, shape index: {}]
  %s20 = inlined_call_operand.vmem [shape: bf16[512,8], index: 20, kind: input, shape index: {}]
  %s21 = inlined_call_operand.vmem [shape: f32[1,8], index: 21, kind: input, shape index: {}]
  %s22 = inlined_call_operand.hbm [shape: f32[1,1], index: 22, kind: output, shape index: {}]
  %s23 = sld [smem:[#allocation0]]
  $region110: #{diffusion_policy_forward.1} parent=0
    _
  %s25 = ssub.s32 1, %s23
  %s26 = scalar_select 0, %s25, %s23
  $region1: #{diffusion_policy_forward.1} parent=0
    #allocation2 [shape = 'u8[1048576]{0}', space=vmem, size = 0x100000, scoped, tag = 'input window, operand 9, single buffered']
    #allocation3 [shape = 's32[1]{0}', space=sflag, size = 0x4, scoped, tag = 'scoped memory for diffusion_policy_forward.1']
    #allocation4 [shape = 's32[1]{0}', space=sflag, size = 0x4, scoped, tag = 'scoped memory for diffusion_policy_forward.1']
    #allocation5 [shape = 'u8[204800]{0}', space=vmem, size = 0x32000, scoped, tag = 'input window, operand 16, single buffered']
    #allocation6 [shape = 's32[1]{0}', space=sflag, size = 0x4, scoped, tag = 'scoped memory for diffusion_policy_forward.1']
    #allocation7 [shape = 'u8[524288]{0}', space=vmem, size = 0x80000, scoped, tag = 'input window, operand 18, single buffered']
    #allocation8 [shape = 'u8[512]{0}', space=vmem, size = 0x400, scoped, tag = 'output window, operand 0, single buffered']
    %27 = vsyncpa [#allocation3], 0
    %28 = vsyncpa [#allocation6], 0
    %29 = vsyncpa [#allocation4], 0
    // Predicated region
    $region2: #{diffusion_policy_forward.1} parent=1 // pred_check
      _
    $region3: #{diffusion_policy_forward.1} parent=1 // pred_check_branch
      %31 = sbr.rel (0) target = $region5
    $region4: #{diffusion_policy_forward.1} parent=1 // pred_region
      _
    $region5: #{diffusion_policy_forward.1} parent=1 // pred_fallthru
      _
    // Predicated region
    $region6: #{diffusion_policy_forward.1} parent=1 // pred_check
      _
    $region7: #{diffusion_policy_forward.1} parent=1 // pred_check_branch
      %33 = sbr.rel (0) target = $region9
    $region8: #{diffusion_policy_forward.1} parent=1 // pred_region
      _
    $region9: #{diffusion_policy_forward.1} parent=1 // pred_fallthru
      _
    // Predicated region
    $region10: #{diffusion_policy_forward.1} parent=1 // pred_check
      _
    $region11: #{diffusion_policy_forward.1} parent=1 // pred_check_branch
      %35 = sbr.rel (0) target = $region13
    $region12: #{diffusion_policy_forward.1} parent=1 // pred_region
      _
    $region13: #{diffusion_policy_forward.1} parent=1 // pred_fallthru
      _
    // Predicated region
    $region14: #{diffusion_policy_forward.1} parent=1 // pred_check
      _
    $region15: #{diffusion_policy_forward.1} parent=1 // pred_check_branch
      %37 = sbr.rel (0) target = $region17
    $region16: #{diffusion_policy_forward.1} parent=1 // pred_region
      _
    $region17: #{diffusion_policy_forward.1} parent=1 // pred_fallthru
      _
    // Predicated region
    $region18: #{diffusion_policy_forward.1} parent=1 // pred_check
      _
    $region19: #{diffusion_policy_forward.1} parent=1 // pred_check_branch
      %39 = sbr.rel (0) target = $region21
    $region20: #{diffusion_policy_forward.1} parent=1 // pred_region
      _
    $region21: #{diffusion_policy_forward.1} parent=1 // pred_fallthru
      _
    // Predicated region
    $region22: #{diffusion_policy_forward.1} parent=1 // pred_check
      _
    $region23: #{diffusion_policy_forward.1} parent=1 // pred_check_branch
      %41 = sbr.rel (0) target = $region25
    $region24: #{diffusion_policy_forward.1} parent=1 // pred_region
      _
    $region25: #{diffusion_policy_forward.1} parent=1 // pred_fallthru
      _
    // Predicated region
    $region26: #{diffusion_policy_forward.1} parent=1 // pred_check
      _
    $region27: #{diffusion_policy_forward.1} parent=1 // pred_check_branch
      %43 = sbr.rel (0) target = $region29
    $region28: #{diffusion_policy_forward.1} parent=1 // pred_region
      _
    $region29: #{diffusion_policy_forward.1} parent=1 // pred_fallthru
      _
    // Predicated region
    $region30: #{diffusion_policy_forward.1} parent=1 // pred_check
      _
    $region31: #{diffusion_policy_forward.1} parent=1 // pred_check_branch
      %45 = sbr.rel (0) target = $region33
    $region32: #{diffusion_policy_forward.1} parent=1 // pred_region
      _
    $region33: #{diffusion_policy_forward.1} parent=1 // pred_fallthru
      _
    // Predicated region
    $region34: #{diffusion_policy_forward.1} parent=1 // pred_check
      _
    $region35: #{diffusion_policy_forward.1} parent=1 // pred_check_branch
      %47 = sbr.rel (0) target = $region37
    $region36: #{diffusion_policy_forward.1} parent=1 // pred_region
      _
    $region37: #{diffusion_policy_forward.1} parent=1 // pred_fallthru
      _
    // Predicated region
    $region38: #{diffusion_policy_forward.1} parent=1 // pred_check
      _
    $region39: #{diffusion_policy_forward.1} parent=1 // pred_check_branch
      %49 = sbr.rel (0) target = $region41
    $region40: #{diffusion_policy_forward.1} parent=1 // pred_region
      %s51 = ssub.s32 32768, 32768
      %52 = vsyncadd [#allocation3], %s51
      %s53 = sshll.u32 [#allocation2], 4
      %s54 = int_to_ptr.vmem [resolvable:$true] %s53
      %59 = dma.hbm_to_vmem [thread:$0]  %s9, 32768, %s54, [#allocation3], 256, 256, 16
    $region41: #{diffusion_policy_forward.1} parent=1 // pred_fallthru
      _
    // Predicated region
    $region42: #{diffusion_policy_forward.1} parent=1 // pred_check
      _
    $region43: #{diffusion_policy_forward.1} parent=1 // pred_check_branch
      %61 = sbr.rel (0) target = $region45
    $region44: #{diffusion_policy_forward.1} parent=1 // pred_region
      _
    $region45: #{diffusion_policy_forward.1} parent=1 // pred_fallthru
      _
    // Predicated region
    $region46: #{diffusion_policy_forward.1} parent=1 // pred_check
      _
    $region47: #{diffusion_policy_forward.1} parent=1 // pred_check_branch
      %63 = sbr.rel (0) target = $region49
    $region48: #{diffusion_policy_forward.1} parent=1 // pred_region
      _
    $region49: #{diffusion_policy_forward.1} parent=1 // pred_fallthru
      _
    // Predicated region
    $region50: #{diffusion_policy_forward.1} parent=1 // pred_check
      _
    $region51: #{diffusion_policy_forward.1} parent=1 // pred_check_branch
      %65 = sbr.rel (0) target = $region53
    $region52: #{diffusion_policy_forward.1} parent=1 // pred_region
      _
    $region53: #{diffusion_policy_forward.1} parent=1 // pred_fallthru
      _
    // Predicated region
    $region54: #{diffusion_policy_forward.1} parent=1 // pred_check
      _
    $region55: #{diffusion_policy_forward.1} parent=1 // pred_check_branch
      %67 = sbr.rel (0) target = $region57
    $region56: #{diffusion_policy_forward.1} parent=1 // pred_region
      _
    $region57: #{diffusion_policy_forward.1} parent=1 // pred_fallthru
      _
    // Predicated region
    $region58: #{diffusion_policy_forward.1} parent=1 // pred_check
      _
    $region59: #{diffusion_policy_forward.1} parent=1 // pred_check_branch
      %69 = sbr.rel (0) target = $region61
    $region60: #{diffusion_policy_forward.1} parent=1 // pred_region
      _
    $region61: #{diffusion_policy_forward.1} parent=1 // pred_fallthru
      _
    // Predicated region
    $region62: #{diffusion_policy_forward.1} parent=1 // pred_check
      _
    $region63: #{diffusion_policy_forward.1} parent=1 // pred_check_branch
      %71 = sbr.rel (0) target = $region65
    $region64: #{diffusion_policy_forward.1} parent=1 // pred_region
      _
    $region65: #{diffusion_policy_forward.1} parent=1 // pred_fallthru
      _
    // Predicated region
    $region66: #{diffusion_policy_forward.1} parent=1 // pred_check
      _
    $region67: #{diffusion_policy_forward.1} parent=1 // pred_check_branch
      %73 = sbr.rel (0) target = $region69
    $region68: #{diffusion_policy_forward.1} parent=1 // pred_region
      %s75 = ssub.s32 6400, 6400
      %76 = vsyncadd [#allocation6], %s75
      %s77 = sshll.u32 [#allocation5], 4
      %s78 = int_to_ptr.vmem [resolvable:$true] %s77
      %83 = dma.hbm_to_vmem [thread:$0]  %s16, 6400, %s78, [#allocation6], 256, 256, 16
    $region69: #{diffusion_policy_forward.1} parent=1 // pred_fallthru
      _
    // Predicated region
    $region70: #{diffusion_policy_forward.1} parent=1 // pred_check
      _
    $region71: #{diffusion_policy_forward.1} parent=1 // pred_check_branch
      %85 = sbr.rel (0) target = $region73
    $region72: #{diffusion_policy_forward.1} parent=1 // pred_region
      _
    $region73: #{diffusion_policy_forward.1} parent=1 // pred_fallthru
      _
    // Predicated region
    $region74: #{diffusion_policy_forward.1} parent=1 // pred_check
      _
    $region75: #{diffusion_policy_forward.1} parent=1 // pred_check_branch
      %87 = sbr.rel (0) target = $region77
    $region76: #{diffusion_policy_forward.1} parent=1 // pred_region
      %s89 = ssub.s32 16384, 16384
      %90 = vsyncadd [#allocation6], %s89
      %s91 = sshll.u32 [#allocation7], 4
      %s92 = int_to_ptr.vmem [resolvable:$true] %s91
      %97 = dma.hbm_to_vmem [thread:$0]  %s18, 16384, %s92, [#allocation6], 256, 256, 16
    $region77: #{diffusion_policy_forward.1} parent=1 // pred_fallthru
      _
    // Predicated region
    $region78: #{diffusion_policy_forward.1} parent=1 // pred_check
      _
    $region79: #{diffusion_policy_forward.1} parent=1 // pred_check_branch
      %99 = sbr.rel (0) target = $region81
    $region80: #{diffusion_policy_forward.1} parent=1 // pred_region
      _
    $region81: #{diffusion_policy_forward.1} parent=1 // pred_fallthru
      _
    // Predicated region
    $region82: #{diffusion_policy_forward.1} parent=1 // pred_check
      _
    $region83: #{diffusion_policy_forward.1} parent=1 // pred_check_branch
      %101 = sbr.rel (0) target = $region85
    $region84: #{diffusion_policy_forward.1} parent=1 // pred_region
      _
    $region85: #{diffusion_policy_forward.1} parent=1 // pred_fallthru
      _
    // Predicated region
    $region86: #{diffusion_policy_forward.1} parent=1 // pred_check
      _
    $region87: #{diffusion_policy_forward.1} parent=1 // pred_check_branch
      %103 = sbr.rel (0) target = $region89
    $region88: #{diffusion_policy_forward.1} parent=1 // pred_region
      _
    $region89: #{diffusion_policy_forward.1} parent=1 // pred_fallthru
      _
    // Predicated region
    $region90: #{diffusion_policy_forward.1} parent=1 // pred_check
      _
    $region91: #{diffusion_policy_forward.1} parent=1 // pred_check_branch
      %105 = sbr.rel (0) target = $region93
    $region92: #{diffusion_policy_forward.1} parent=1 // pred_region
      %106 = dma.done [#allocation3], 32768
    $region93: #{diffusion_policy_forward.1} parent=1 // pred_fallthru
      _
    // Predicated region
    $region94: #{diffusion_policy_forward.1} parent=1 // pred_check
      _
    $region95: #{diffusion_policy_forward.1} parent=1 // pred_check_branch
      %108 = sbr.rel (0) target = $region97
    $region96: #{diffusion_policy_forward.1} parent=1 // pred_region
      %109 = dma.done [#allocation6], 6400
    $region97: #{diffusion_policy_forward.1} parent=1 // pred_fallthru
      _
    // Predicated region
    $region98: #{diffusion_policy_forward.1} parent=1 // pred_check
      _
    $region99: #{diffusion_policy_forward.1} parent=1 // pred_check_branch
      %111 = sbr.rel (0) target = $region101
    $region100: #{diffusion_policy_forward.1} parent=1 // pred_region
      %112 = dma.done [#allocation6], 16384
    $region101: #{diffusion_policy_forward.1} parent=1 // pred_fallthru
      _
    %v114 = vld [vmem:[%s0] sm:$0xff]
    %v115 = vld [vmem:[%s0 + $0x8] sm:$0xff]
    %v116 = vld [vmem:[%s0 + $0x10] sm:$0xff]
    %v117 = vld [vmem:[%s0 + $0x18] sm:$0xff]
    %v118 = vld [vmem:[%s0 + $0x20] sm:$0xff]
    %v119 = vld [vmem:[%s0 + $0x28] sm:$0xff]
    %v120 = vpack.c.bf16 %v114, %v114
    %v121 = vpack.c.bf16 %v115, %v115
    %v122 = vpack.c.bf16 %v116, %v116
    %v123 = vpack.c.bf16 %v117, %v117
    %v124 = vpack.c.bf16 %v118, %v118
    %v125 = vpack.c.bf16 %v119, %v119
    %v126 = vld [vmem:[%s7] sm:$0xff]
    %v127 = vld [vmem:[%s7 + $0x8] sm:$0xff]
    %v128 = vld [vmem:[%s7 + $0x10] sm:$0xff]
    %v129 = vld [vmem:[%s7 + $0x18] sm:$0xff]
    %v130 = vld [vmem:[%s7 + $0x20] sm:$0xff]
    %v131 = vld [vmem:[%s7 + $0x28] sm:$0xff]
    %v132 = vld [vmem:[%s7 + $0x30] sm:$0xff]
    %v133 = vld [vmem:[%s7 + $0x38] sm:$0xff]
    %v134 = vld [vmem:[%s7 + $0x40] sm:$0xff]
    %v135 = vld [vmem:[%s7 + $0x48] sm:$0xff]
    %v136 = vld [vmem:[%s7 + $0x50] sm:$0xff]
    %v137 = vld [vmem:[%s7 + $0x58] sm:$0xff]
    %v138 = vld [vmem:[%s7 + $0x60] sm:$0xff]
    %v139 = vld [vmem:[%s7 + $0x68] sm:$0xff]
    %v140 = vld [vmem:[%s7 + $0x70] sm:$0xff]
    %v141 = vld [vmem:[%s7 + $0x78] sm:$0xff]
    %v142 = vld [vmem:[%s7 + $0x80] sm:$0xff]
    %v143 = vld [vmem:[%s7 + $0x88] sm:$0xff]
    %v144 = vld [vmem:[%s7 + $0x90] sm:$0xff]
    %v145 = vld [vmem:[%s7 + $0x98] sm:$0xff]
    %v146 = vld [vmem:[%s7 + $0xa0] sm:$0xff]
    %v147 = vld [vmem:[%s7 + $0xa8] sm:$0xff]
    %v148 = vld [vmem:[%s7 + $0xb0] sm:$0xff]
    %v149 = vld [vmem:[%s7 + $0xb8] sm:$0xff]
    %v150 = vld [vmem:[%s7 + $0xc0] sm:$0xff]
    %v151 = vld [vmem:[%s7 + $0xc8] sm:$0xff]
    %v152 = vld [vmem:[%s7 + $0xd0] sm:$0xff]
    %v153 = vld [vmem:[%s7 + $0xd8] sm:$0xff]
    %v154 = vld [vmem:[%s7 + $0xe0] sm:$0xff]
    %v155 = vld [vmem:[%s7 + $0xe8] sm:$0xff]
    %v156 = vld [vmem:[%s7 + $0xf0] sm:$0xff]
    %v157 = vld [vmem:[%s7 + $0xf8] sm:$0xff]
    %v158 = vld [vmem:[%s7 + $0x100] sm:$0xff]
    %v159 = vld [vmem:[%s7 + $0x108] sm:$0xff]
    %v160 = vld [vmem:[%s7 + $0x110] sm:$0xff]
    %v161 = vld [vmem:[%s7 + $0x118] sm:$0xff]
    %v162 = vld [vmem:[%s7 + $0x120] sm:$0xff]
    %v163 = vld [vmem:[%s7 + $0x128] sm:$0xff]
    %v164 = vld [vmem:[%s7 + $0x130] sm:$0xff]
    %v165 = vld [vmem:[%s7 + $0x138] sm:$0xff]
    %v166 = vld [vmem:[%s7 + $0x140] sm:$0xff]
    %v167 = vld [vmem:[%s7 + $0x148] sm:$0xff]
    %v168 = vld [vmem:[%s7 + $0x150] sm:$0xff]
    %v169 = vld [vmem:[%s7 + $0x158] sm:$0xff]
    %v170 = vld [vmem:[%s7 + $0x160] sm:$0xff]
    %v171 = vld [vmem:[%s7 + $0x168] sm:$0xff]
    %v172 = vld [vmem:[%s7 + $0x170] sm:$0xff]
    %v173 = vld [vmem:[%s7 + $0x178] sm:$0xff]
    %v174 = vld [vmem:[%s7 + $0x180] sm:$0xff]
    %v175 = vld [vmem:[%s7 + $0x188] sm:$0xff]
    %v176 = vld [vmem:[%s7 + $0x190] sm:$0xff]
    %v177 = vld [vmem:[%s7 + $0x198] sm:$0xff]
    %v178 = vld [vmem:[%s7 + $0x1a0] sm:$0xff]
    %v179 = vld [vmem:[%s7 + $0x1a8] sm:$0xff]
    %v180 = vld [vmem:[%s7 + $0x1b0] sm:$0xff]
    %v181 = vld [vmem:[%s7 + $0x1b8] sm:$0xff]
    %v182 = vld [vmem:[%s7 + $0x1c0] sm:$0xff]
    %v183 = vld [vmem:[%s7 + $0x1c8] sm:$0xff]
    %v184 = vld [vmem:[%s7 + $0x1d0] sm:$0xff]
    %v185 = vld [vmem:[%s7 + $0x1d8] sm:$0xff]
    %v186 = vld [vmem:[%s7 + $0x1e0] sm:$0xff]
    %v187 = vld [vmem:[%s7 + $0x1e8] sm:$0xff]
    %v188 = vld [vmem:[%s7 + $0x1f0] sm:$0xff]
    %v189 = vld [vmem:[%s7 + $0x1f8] sm:$0xff]
    %v190 = vld [vmem:[%s7 + $0x200] sm:$0xff]
    %v191 = vld [vmem:[%s7 + $0x208] sm:$0xff]
    %v192 = vld [vmem:[%s7 + $0x210] sm:$0xff]
    %v193 = vld [vmem:[%s7 + $0x218] sm:$0xff]
    %v194 = vld [vmem:[%s7 + $0x220] sm:$0xff]
    %v195 = vld [vmem:[%s7 + $0x228] sm:$0xff]
    %v196 = vld [vmem:[%s7 + $0x230] sm:$0xff]
    %v197 = vld [vmem:[%s7 + $0x238] sm:$0xff]
    %v198 = vld [vmem:[%s7 + $0x240] sm:$0xff]
    %v199 = vld [vmem:[%s7 + $0x248] sm:$0xff]
    %v200 = vld [vmem:[%s7 + $0x250] sm:$0xff]
    %v201 = vld [vmem:[%s7 + $0x258] sm:$0xff]
    %v202 = vld [vmem:[%s7 + $0x260] sm:$0xff]
    %v203 = vld [vmem:[%s7 + $0x268] sm:$0xff]
    %v204 = vld [vmem:[%s7 + $0x270] sm:$0xff]
    %v205 = vld [vmem:[%s7 + $0x278] sm:$0xff]
    %v206 = vld [vmem:[%s7 + $0x280] sm:$0xff]
    %v207 = vld [vmem:[%s7 + $0x288] sm:$0xff]
    %v208 = vld [vmem:[%s7 + $0x290] sm:$0xff]
    %v209 = vld [vmem:[%s7 + $0x298] sm:$0xff]
    %v210 = vld [vmem:[%s7 + $0x2a0] sm:$0xff]
    %v211 = vld [vmem:[%s7 + $0x2a8] sm:$0xff]
    %v212 = vld [vmem:[%s7 + $0x2b0] sm:$0xff]
    %v213 = vld [vmem:[%s7 + $0x2b8] sm:$0xff]
    %v214 = vld [vmem:[%s7 + $0x2c0] sm:$0xff]
    %v215 = vld [vmem:[%s7 + $0x2c8] sm:$0xff]
    %v216 = vld [vmem:[%s7 + $0x2d0] sm:$0xff]
    %v217 = vld [vmem:[%s7 + $0x2d8] sm:$0xff]
    %v218 = vld [vmem:[%s7 + $0x2e0] sm:$0xff]
    %v219 = vld [vmem:[%s7 + $0x2e8] sm:$0xff]
    %v220 = vld [vmem:[%s7 + $0x2f0] sm:$0xff]
    %v221 = vld [vmem:[%s7 + $0x2f8] sm:$0xff]
    %v222 = vld [vmem:[%s7 + $0x300] sm:$0xff]
    %v223 = vld [vmem:[%s7 + $0x308] sm:$0xff]
    %v224 = vld [vmem:[%s7 + $0x310] sm:$0xff]
    %v225 = vld [vmem:[%s7 + $0x318] sm:$0xff]
    %v226 = vld [vmem:[%s7 + $0x320] sm:$0xff]
    %v227 = vld [vmem:[%s7 + $0x328] sm:$0xff]
    %v228 = vld [vmem:[%s7 + $0x330] sm:$0xff]
    %v229 = vld [vmem:[%s7 + $0x338] sm:$0xff]
    %v230 = vld [vmem:[%s7 + $0x340] sm:$0xff]
    %v231 = vld [vmem:[%s7 + $0x348] sm:$0xff]
    %v232 = vld [vmem:[%s7 + $0x350] sm:$0xff]
    %v233 = vld [vmem:[%s7 + $0x358] sm:$0xff]
    %v234 = vld [vmem:[%s7 + $0x360] sm:$0xff]
    %v235 = vld [vmem:[%s7 + $0x368] sm:$0xff]
    %v236 = vld [vmem:[%s7 + $0x370] sm:$0xff]
    %v237 = vld [vmem:[%s7 + $0x378] sm:$0xff]
    %v238 = vld [vmem:[%s7 + $0x380] sm:$0xff]
    %v239 = vld [vmem:[%s7 + $0x388] sm:$0xff]
    %v240 = vld [vmem:[%s7 + $0x390] sm:$0xff]
    %v241 = vld [vmem:[%s7 + $0x398] sm:$0xff]
    %v242 = vld [vmem:[%s7 + $0x3a0] sm:$0xff]
    %v243 = vld [vmem:[%s7 + $0x3a8] sm:$0xff]
    %v244 = vld [vmem:[%s7 + $0x3b0] sm:$0xff]
    %v245 = vld [vmem:[%s7 + $0x3b8] sm:$0xff]
    %v246 = vld [vmem:[%s7 + $0x3c0] sm:$0xff]
    %v247 = vld [vmem:[%s7 + $0x3c8] sm:$0xff]
    %v248 = vld [vmem:[%s7 + $0x3d0] sm:$0xff]
    %v249 = vld [vmem:[%s7 + $0x3d8] sm:$0xff]
    %v250 = vld [vmem:[%s7 + $0x3e0] sm:$0xff]
    %v251 = vld [vmem:[%s7 + $0x3e8] sm:$0xff]
    %v252 = vld [vmem:[%s7 + $0x3f0] sm:$0xff]
    %v253 = vld [vmem:[%s7 + $0x3f8] sm:$0xff]
    %v254 = vld [vmem:[%s7 + $0x400] sm:$0xff]
    %v255 = vld [vmem:[%s7 + $0x408] sm:$0xff]
    %v256 = vld [vmem:[%s7 + $0x410] sm:$0xff]
    %v257 = vld [vmem:[%s7 + $0x418] sm:$0xff]
    %v258 = vld [vmem:[%s7 + $0x420] sm:$0xff]
    %v259 = vld [vmem:[%s7 + $0x428] sm:$0xff]
    %v260 = vld [vmem:[%s7 + $0x430] sm:$0xff]
    %v261 = vld [vmem:[%s7 + $0x438] sm:$0xff]
    %v262 = vld [vmem:[%s7 + $0x440] sm:$0xff]
    %v263 = vld [vmem:[%s7 + $0x448] sm:$0xff]
    %v264 = vld [vmem:[%s7 + $0x450] sm:$0xff]
    %v265 = vld [vmem:[%s7 + $0x458] sm:$0xff]
    %v266 = vld [vmem:[%s7 + $0x460] sm:$0xff]
    %v267 = vld [vmem:[%s7 + $0x468] sm:$0xff]
    %v268 = vld [vmem:[%s7 + $0x470] sm:$0xff]
    %v269 = vld [vmem:[%s7 + $0x478] sm:$0xff]
    %v270 = vld [vmem:[%s7 + $0x480] sm:$0xff]
    %v271 = vld [vmem:[%s7 + $0x488] sm:$0xff]
    %v272 = vld [vmem:[%s7 + $0x490] sm:$0xff]
    %v273 = vld [vmem:[%s7 + $0x498] sm:$0xff]
    %v274 = vld [vmem:[%s7 + $0x4a0] sm:$0xff]
    %v275 = vld [vmem:[%s7 + $0x4a8] sm:$0xff]
    %v276 = vld [vmem:[%s7 + $0x4b0] sm:$0xff]
    %v277 = vld [vmem:[%s7 + $0x4b8] sm:$0xff]
    %v278 = vld [vmem:[%s7 + $0x4c0] sm:$0xff]
    %v279 = vld [vmem:[%s7 + $0x4c8] sm:$0xff]
    %v280 = vld [vmem:[%s7 + $0x4d0] sm:$0xff]
    %v281 = vld [vmem:[%s7 + $0x4d8] sm:$0xff]
    %v282 = vld [vmem:[%s7 + $0x4e0] sm:$0xff]
    %v283 = vld [vmem:[%s7 + $0x4e8] sm:$0xff]
    %v284 = vld [vmem:[%s7 + $0x4f0] sm:$0xff]
    %v285 = vld [vmem:[%s7 + $0x4f8] sm:$0xff]
    %v286 = vld [vmem:[%s7 + $0x500] sm:$0xff]
    %v287 = vld [vmem:[%s7 + $0x508] sm:$0xff]
    %v288 = vld [vmem:[%s7 + $0x510] sm:$0xff]
    %v289 = vld [vmem:[%s7 + $0x518] sm:$0xff]
    %v290 = vld [vmem:[%s7 + $0x520] sm:$0xff]
    %v291 = vld [vmem:[%s7 + $0x528] sm:$0xff]
    %v292 = vld [vmem:[%s7 + $0x530] sm:$0xff]
    %v293 = vld [vmem:[%s7 + $0x538] sm:$0xff]
    %v294 = vld [vmem:[%s7 + $0x540] sm:$0xff]
    %v295 = vld [vmem:[%s7 + $0x548] sm:$0xff]
    %v296 = vld [vmem:[%s7 + $0x550] sm:$0xff]
    %v297 = vld [vmem:[%s7 + $0x558] sm:$0xff]
    %v298 = vld [vmem:[%s7 + $0x560] sm:$0xff]
    %v299 = vld [vmem:[%s7 + $0x568] sm:$0xff]
    %v300 = vld [vmem:[%s7 + $0x570] sm:$0xff]
    %v301 = vld [vmem:[%s7 + $0x578] sm:$0xff]
    %v302 = vld [vmem:[%s7 + $0x580] sm:$0xff]
    %v303 = vld [vmem:[%s7 + $0x588] sm:$0xff]
    %v304 = vld [vmem:[%s7 + $0x590] sm:$0xff]
    %v305 = vld [vmem:[%s7 + $0x598] sm:$0xff]
    %v306 = vld [vmem:[%s7 + $0x5a0] sm:$0xff]
    %v307 = vld [vmem:[%s7 + $0x5a8] sm:$0xff]
    %v308 = vld [vmem:[%s7 + $0x5b0] sm:$0xff]
    %v309 = vld [vmem:[%s7 + $0x5b8] sm:$0xff]
    %v310 = vld [vmem:[%s7 + $0x5c0] sm:$0xff]
    %v311 = vld [vmem:[%s7 + $0x5c8] sm:$0xff]
    %v312 = vld [vmem:[%s7 + $0x5d0] sm:$0xff]
    %v313 = vld [vmem:[%s7 + $0x5d8] sm:$0xff]
    %v314 = vld [vmem:[%s7 + $0x5e0] sm:$0xff]
    %v315 = vld [vmem:[%s7 + $0x5e8] sm:$0xff]
    %v316 = vld [vmem:[%s7 + $0x5f0] sm:$0xff]
    %v317 = vld [vmem:[%s7 + $0x5f8] sm:$0xff]
    %v318 = vld [vmem:[%s7 + $0x600] sm:$0xff]
    %v319 = vld [vmem:[%s7 + $0x608] sm:$0xff]
    %v320 = vld [vmem:[%s7 + $0x610] sm:$0xff]
    %v321 = vld [vmem:[%s7 + $0x618] sm:$0xff]
    %v322 = vld [vmem:[%s7 + $0x620] sm:$0xff]
    %v323 = vld [vmem:[%s7 + $0x628] sm:$0xff]
    %v324 = vld [vmem:[%s7 + $0x630] sm:$0xff]
    %v325 = vld [vmem:[%s7 + $0x638] sm:$0xff]
    %v326 = vld [vmem:[%s7 + $0x640] sm:$0xff]
    %v327 = vld [vmem:[%s7 + $0x648] sm:$0xff]
    %v328 = vld [vmem:[%s7 + $0x650] sm:$0xff]
    %v329 = vld [vmem:[%s7 + $0x658] sm:$0xff]
    %v330 = vld [vmem:[%s7 + $0x660] sm:$0xff]
    %v331 = vld [vmem:[%s7 + $0x668] sm:$0xff]
    %v332 = vld [vmem:[%s7 + $0x670] sm:$0xff]
    %v333 = vld [vmem:[%s7 + $0x678] sm:$0xff]
    %v334 = vld [vmem:[%s7 + $0x680] sm:$0xff]
    %v335 = vld [vmem:[%s7 + $0x688] sm:$0xff]
    %v336 = vld [vmem:[%s7 + $0x690] sm:$0xff]
    %v337 = vld [vmem:[%s7 + $0x698] sm:$0xff]
    %v338 = vld [vmem:[%s7 + $0x6a0] sm:$0xff]
    %v339 = vld [vmem:[%s7 + $0x6a8] sm:$0xff]
    %v340 = vld [vmem:[%s7 + $0x6b0] sm:$0xff]
    %v341 = vld [vmem:[%s7 + $0x6b8] sm:$0xff]
    %v342 = vld [vmem:[%s7 + $0x6c0] sm:$0xff]
    %v343 = vld [vmem:[%s7 + $0x6c8] sm:$0xff]
    %v344 = vld [vmem:[%s7 + $0x6d0] sm:$0xff]
    %v345 = vld [vmem:[%s7 + $0x6d8] sm:$0xff]
    %v346 = vld [vmem:[%s7 + $0x6e0] sm:$0xff]
    %v347 = vld [vmem:[%s7 + $0x6e8] sm:$0xff]
    %v348 = vld [vmem:[%s7 + $0x6f0] sm:$0xff]
    %v349 = vld [vmem:[%s7 + $0x6f8] sm:$0xff]
    %v350 = vld [vmem:[%s7 + $0x700] sm:$0xff]
    %v351 = vld [vmem:[%s7 + $0x708] sm:$0xff]
    %v352 = vld [vmem:[%s7 + $0x710] sm:$0xff]
    %v353 = vld [vmem:[%s7 + $0x718] sm:$0xff]
    %v354 = vld [vmem:[%s7 + $0x720] sm:$0xff]
    %v355 = vld [vmem:[%s7 + $0x728] sm:$0xff]
    %v356 = vld [vmem:[%s7 + $0x730] sm:$0xff]
    %v357 = vld [vmem:[%s7 + $0x738] sm:$0xff]
    %v358 = vld [vmem:[%s7 + $0x740] sm:$0xff]
    %v359 = vld [vmem:[%s7 + $0x748] sm:$0xff]
    %v360 = vld [vmem:[%s7 + $0x750] sm:$0xff]
    %v361 = vld [vmem:[%s7 + $0x758] sm:$0xff]
    %v362 = vld [vmem:[%s7 + $0x760] sm:$0xff]
    %v363 = vld [vmem:[%s7 + $0x768] sm:$0xff]
    %v364 = vld [vmem:[%s7 + $0x770] sm:$0xff]
    %v365 = vld [vmem:[%s7 + $0x778] sm:$0xff]
    %v366 = vld [vmem:[%s7 + $0x780] sm:$0xff]
    %v367 = vld [vmem:[%s7 + $0x788] sm:$0xff]
    %v368 = vld [vmem:[%s7 + $0x790] sm:$0xff]
    %v369 = vld [vmem:[%s7 + $0x798] sm:$0xff]
    %v370 = vld [vmem:[%s7 + $0x7a0] sm:$0xff]
    %v371 = vld [vmem:[%s7 + $0x7a8] sm:$0xff]
    %v372 = vld [vmem:[%s7 + $0x7b0] sm:$0xff]
    %v373 = vld [vmem:[%s7 + $0x7b8] sm:$0xff]
    %v374 = vld [vmem:[%s7 + $0x7c0] sm:$0xff]
    %v375 = vld [vmem:[%s7 + $0x7c8] sm:$0xff]
    %v376 = vld [vmem:[%s7 + $0x7d0] sm:$0xff]
    %v377 = vld [vmem:[%s7 + $0x7d8] sm:$0xff]
    %v378 = vld [vmem:[%s7 + $0x7e0] sm:$0xff]
    %v379 = vld [vmem:[%s7 + $0x7e8] sm:$0xff]
    %v380 = vld [vmem:[%s7 + $0x7f0] sm:$0xff]
    %v381 = vld [vmem:[%s7 + $0x7f8] sm:$0xff]
    %v382 = vld [vmem:[%s7 + $0x800] sm:$0xff]
    %v383 = vld [vmem:[%s7 + $0x808] sm:$0xff]
    %v384 = vld [vmem:[%s7 + $0x810] sm:$0xff]
    %v385 = vld [vmem:[%s7 + $0x818] sm:$0xff]
    %v386 = vld [vmem:[%s7 + $0x820] sm:$0xff]
    %v387 = vld [vmem:[%s7 + $0x828] sm:$0xff]
    %v388 = vld [vmem:[%s7 + $0x830] sm:$0xff]
    %v389 = vld [vmem:[%s7 + $0x838] sm:$0xff]
    %v390 = vld [vmem:[%s7 + $0x840] sm:$0xff]
    %v391 = vld [vmem:[%s7 + $0x848] sm:$0xff]
    %v392 = vld [vmem:[%s7 + $0x850] sm:$0xff]
    %v393 = vld [vmem:[%s7 + $0x858] sm:$0xff]
    %v394 = vld [vmem:[%s7 + $0x860] sm:$0xff]
    %v395 = vld [vmem:[%s7 + $0x868] sm:$0xff]
    %v396 = vld [vmem:[%s7 + $0x870] sm:$0xff]
    %v397 = vld [vmem:[%s7 + $0x878] sm:$0xff]
    %v398 = vld [vmem:[%s7 + $0x880] sm:$0xff]
    %v399 = vld [vmem:[%s7 + $0x888] sm:$0xff]
    %v400 = vld [vmem:[%s7 + $0x890] sm:$0xff]
    %v401 = vld [vmem:[%s7 + $0x898] sm:$0xff]
    %v402 = vld [vmem:[%s7 + $0x8a0] sm:$0xff]
    %v403 = vld [vmem:[%s7 + $0x8a8] sm:$0xff]
    %v404 = vld [vmem:[%s7 + $0x8b0] sm:$0xff]
    %v405 = vld [vmem:[%s7 + $0x8b8] sm:$0xff]
    %v406 = vld [vmem:[%s7 + $0x8c0] sm:$0xff]
    %v407 = vld [vmem:[%s7 + $0x8c8] sm:$0xff]
    %v408 = vld [vmem:[%s7 + $0x8d0] sm:$0xff]
    %v409 = vld [vmem:[%s7 + $0x8d8] sm:$0xff]
    %v410 = vld [vmem:[%s7 + $0x8e0] sm:$0xff]
    %v411 = vld [vmem:[%s7 + $0x8e8] sm:$0xff]
    %v412 = vld [vmem:[%s7 + $0x8f0] sm:$0xff]
    %v413 = vld [vmem:[%s7 + $0x8f8] sm:$0xff]
    %v414 = vld [vmem:[%s7 + $0x900] sm:$0xff]
    %v415 = vld [vmem:[%s7 + $0x908] sm:$0xff]
    %v416 = vld [vmem:[%s7 + $0x910] sm:$0xff]
    %v417 = vld [vmem:[%s7 + $0x918] sm:$0xff]
    %v418 = vld [vmem:[%s7 + $0x920] sm:$0xff]
    %v419 = vld [vmem:[%s7 + $0x928] sm:$0xff]
    %v420 = vld [vmem:[%s7 + $0x930] sm:$0xff]
    %v421 = vld [vmem:[%s7 + $0x938] sm:$0xff]
    %v422 = vld [vmem:[%s7 + $0x940] sm:$0xff]
    %v423 = vld [vmem:[%s7 + $0x948] sm:$0xff]
    %v424 = vld [vmem:[%s7 + $0x950] sm:$0xff]
    %v425 = vld [vmem:[%s7 + $0x958] sm:$0xff]
    %v426 = vld [vmem:[%s7 + $0x960] sm:$0xff]
    %v427 = vld [vmem:[%s7 + $0x968] sm:$0xff]
    %v428 = vld [vmem:[%s7 + $0x970] sm:$0xff]
    %v429 = vld [vmem:[%s7 + $0x978] sm:$0xff]
    %v430 = vld [vmem:[%s7 + $0x980] sm:$0xff]
    %v431 = vld [vmem:[%s7 + $0x988] sm:$0xff]
    %v432 = vld [vmem:[%s7 + $0x990] sm:$0xff]
    %v433 = vld [vmem:[%s7 + $0x998] sm:$0xff]
    %v434 = vld [vmem:[%s7 + $0x9a0] sm:$0xff]
    %v435 = vld [vmem:[%s7 + $0x9a8] sm:$0xff]
    %v436 = vld [vmem:[%s7 + $0x9b0] sm:$0xff]
    %v437 = vld [vmem:[%s7 + $0x9b8] sm:$0xff]
    %v438 = vld [vmem:[%s7 + $0x9c0] sm:$0xff]
    %v439 = vld [vmem:[%s7 + $0x9c8] sm:$0xff]
    %v440 = vld [vmem:[%s7 + $0x9d0] sm:$0xff]
    %v441 = vld [vmem:[%s7 + $0x9d8] sm:$0xff]
    %v442 = vld [vmem:[%s7 + $0x9e0] sm:$0xff]
    %v443 = vld [vmem:[%s7 + $0x9e8] sm:$0xff]
    %v444 = vld [vmem:[%s7 + $0x9f0] sm:$0xff]
    %v445 = vld [vmem:[%s7 + $0x9f8] sm:$0xff]
    %v446 = vld [vmem:[%s7 + $0xa00] sm:$0xff]
    %v447 = vld [vmem:[%s7 + $0xa08] sm:$0xff]
    %v448 = vld [vmem:[%s7 + $0xa10] sm:$0xff]
    %v449 = vld [vmem:[%s7 + $0xa18] sm:$0xff]
    %v450 = vld [vmem:[%s7 + $0xa20] sm:$0xff]
    %v451 = vld [vmem:[%s7 + $0xa28] sm:$0xff]
    %v452 = vld [vmem:[%s7 + $0xa30] sm:$0xff]
    %v453 = vld [vmem:[%s7 + $0xa38] sm:$0xff]
    %v454 = vld [vmem:[%s7 + $0xa40] sm:$0xff]
    %v455 = vld [vmem:[%s7 + $0xa48] sm:$0xff]
    %v456 = vld [vmem:[%s7 + $0xa50] sm:$0xff]
    %v457 = vld [vmem:[%s7 + $0xa58] sm:$0xff]
    %v458 = vld [vmem:[%s7 + $0xa60] sm:$0xff]
    %v459 = vld [vmem:[%s7 + $0xa68] sm:$0xff]
    %v460 = vld [vmem:[%s7 + $0xa70] sm:$0xff]
    %v461 = vld [vmem:[%s7 + $0xa78] sm:$0xff]
    %v462 = vld [vmem:[%s7 + $0xa80] sm:$0xff]
    %v463 = vld [vmem:[%s7 + $0xa88] sm:$0xff]
    %v464 = vld [vmem:[%s7 + $0xa90] sm:$0xff]
    %v465 = vld [vmem:[%s7 + $0xa98] sm:$0xff]
    %v466 = vld [vmem:[%s7 + $0xaa0] sm:$0xff]
    %v467 = vld [vmem:[%s7 + $0xaa8] sm:$0xff]
    %v468 = vld [vmem:[%s7 + $0xab0] sm:$0xff]
    %v469 = vld [vmem:[%s7 + $0xab8] sm:$0xff]
    %v470 = vld [vmem:[%s7 + $0xac0] sm:$0xff]
    %v471 = vld [vmem:[%s7 + $0xac8] sm:$0xff]
    %v472 = vld [vmem:[%s7 + $0xad0] sm:$0xff]
    %v473 = vld [vmem:[%s7 + $0xad8] sm:$0xff]
    %v474 = vld [vmem:[%s7 + $0xae0] sm:$0xff]
    %v475 = vld [vmem:[%s7 + $0xae8] sm:$0xff]
    %v476 = vld [vmem:[%s7 + $0xaf0] sm:$0xff]
    %v477 = vld [vmem:[%s7 + $0xaf8] sm:$0xff]
    %v478 = vld [vmem:[%s7 + $0xb00] sm:$0xff]
    %v479 = vld [vmem:[%s7 + $0xb08] sm:$0xff]
    %v480 = vld [vmem:[%s7 + $0xb10] sm:$0xff]
    %v481 = vld [vmem:[%s7 + $0xb18] sm:$0xff]
    %v482 = vld [vmem:[%s7 + $0xb20] sm:$0xff]
    %v483 = vld [vmem:[%s7 + $0xb28] sm:$0xff]
    %v484 = vld [vmem:[%s7 + $0xb30] sm:$0xff]
    %v485 = vld [vmem:[%s7 + $0xb38] sm:$0xff]
    %v486 = vld [vmem:[%s7 + $0xb40] sm:$0xff]
    %v487 = vld [vmem:[%s7 + $0xb48] sm:$0xff]
    %v488 = vld [vmem:[%s7 + $0xb50] sm:$0xff]
    %v489 = vld [vmem:[%s7 + $0xb58] sm:$0xff]
    %v490 = vld [vmem:[%s7 + $0xb60] sm:$0xff]
    %v491 = vld [vmem:[%s7 + $0xb68] sm:$0xff]
    %v492 = vld [vmem:[%s7 + $0xb70] sm:$0xff]
    %v493 = vld [vmem:[%s7 + $0xb78] sm:$0xff]
    %v494 = vld [vmem:[%s7 + $0xb80] sm:$0xff]
    %v495 = vld [vmem:[%s7 + $0xb88] sm:$0xff]
    %v496 = vld [vmem:[%s7 + $0xb90] sm:$0xff]
    %v497 = vld [vmem:[%s7 + $0xb98] sm:$0xff]
    %v498 = vld [vmem:[%s7 + $0xba0] sm:$0xff]
    %v499 = vld [vmem:[%s7 + $0xba8] sm:$0xff]
    %v500 = vld [vmem:[%s7 + $0xbb0] sm:$0xff]
    %v501 = vld [vmem:[%s7 + $0xbb8] sm:$0xff]
    %v502 = vld [vmem:[%s7 + $0xbc0] sm:$0xff]
    %v503 = vld [vmem:[%s7 + $0xbc8] sm:$0xff]
    %v504 = vld [vmem:[%s7 + $0xbd0] sm:$0xff]
    %v505 = vld [vmem:[%s7 + $0xbd8] sm:$0xff]
    %v506 = vld [vmem:[%s7 + $0xbe0] sm:$0xff]
    %v507 = vld [vmem:[%s7 + $0xbe8] sm:$0xff]
    %v508 = vld [vmem:[%s7 + $0xbf0] sm:$0xff]
    %v509 = vld [vmem:[%s7 + $0xbf8] sm:$0xff]
    %v510 = vld [vmem:[%s8] sm:$0xff]
    %v512 = vlaneseq
    %v513 = vshrl.u32 %v512, 7
    %v514 = vsub.s32 0, %v513
    %v515 = vrot.slane %v510, %v514
    %v516 = vlaneseq
    %v517 = vshrl.u32 %v516, 7
    %v518 = vsub.s32 1, %v517
    %v519 = vrot.slane %v510, %v518
    %v520 = vlaneseq
    %v521 = vshrl.u32 %v520, 7
    %v522 = vsub.s32 2, %v521
    %v523 = vrot.slane %v510, %v522
    %v524 = vlaneseq
    %v525 = vshrl.u32 %v524, 7
    %v526 = vsub.s32 3, %v525
    %v527 = vrot.slane %v510, %v526
    %v528 = vlaneseq
    %v529 = vshrl.u32 %v528, 7
    %v530 = vsub.s32 4, %v529
    %v531 = vrot.slane %v510, %v530
    %v532 = vlaneseq
    %v533 = vshrl.u32 %v532, 7
    %v534 = vsub.s32 5, %v533
    %v535 = vrot.slane %v510, %v534
    %v536 = vlaneseq
    %v537 = vshrl.u32 %v536, 7
    %v538 = vsub.s32 6, %v537
    %v539 = vrot.slane %v510, %v538
    %v540 = vlaneseq
    %v541 = vshrl.u32 %v540, 7
    %v542 = vsub.s32 7, %v541
    %v543 = vrot.slane %v510, %v542
    %v936 = vunpack.c.l.b16 %v126
    %v937 = vunpack.c.h.b16 %v126
    %v938 = vunpack.c.l.b16 %v127
    %v939 = vunpack.c.h.b16 %v127
    %v940 = vunpack.c.l.b16 %v128
    %v941 = vunpack.c.h.b16 %v128
    %v942 = vunpack.c.l.b16 %v129
    %v943 = vunpack.c.h.b16 %v129
    %v944 = vunpack.c.l.b16 %v130
    %v945 = vunpack.c.h.b16 %v130
    %v946 = vunpack.c.l.b16 %v131
    %v947 = vunpack.c.h.b16 %v131
    %v948 = vunpack.c.l.b16 %v132
    %v949 = vunpack.c.h.b16 %v132
    %v950 = vunpack.c.l.b16 %v133
    %v951 = vunpack.c.h.b16 %v133
    %v952 = vunpack.c.l.b16 %v134
    %v953 = vunpack.c.h.b16 %v134
    %v954 = vunpack.c.l.b16 %v135
    %v955 = vunpack.c.h.b16 %v135
    %v956 = vunpack.c.l.b16 %v136
    %v957 = vunpack.c.h.b16 %v136
    %v958 = vunpack.c.l.b16 %v137
    %v959 = vunpack.c.h.b16 %v137
    %v960 = vunpack.c.l.b16 %v138
    %v961 = vunpack.c.h.b16 %v138
    %v962 = vunpack.c.l.b16 %v139
    %v963 = vunpack.c.h.b16 %v139
    %v964 = vunpack.c.l.b16 %v140
    %v965 = vunpack.c.h.b16 %v140
    %v966 = vunpack.c.l.b16 %v141
    %v967 = vunpack.c.h.b16 %v141
    %v968 = vunpack.c.l.b16 %v142
    %v969 = vunpack.c.h.b16 %v142
    %v970 = vunpack.c.l.b16 %v143
    %v971 = vunpack.c.h.b16 %v143
    %v972 = vunpack.c.l.b16 %v144
    %v973 = vunpack.c.h.b16 %v144
    %v974 = vunpack.c.l.b16 %v145
    %v975 = vunpack.c.h.b16 %v145
    %v976 = vunpack.c.l.b16 %v146
    %v977 = vunpack.c.h.b16 %v146
    %v978 = vunpack.c.l.b16 %v147
    %v979 = vunpack.c.h.b16 %v147
    %v980 = vunpack.c.l.b16 %v148
    %v981 = vunpack.c.h.b16 %v148
    %v982 = vunpack.c.l.b16 %v149
    %v983 = vunpack.c.h.b16 %v149
    %v984 = vunpack.c.l.b16 %v150
    %v985 = vunpack.c.h.b16 %v150
    %v986 = vunpack.c.l.b16 %v151
    %v987 = vunpack.c.h.b16 %v151
    %v988 = vunpack.c.l.b16 %v152
    %v989 = vunpack.c.h.b16 %v152
    %v990 = vunpack.c.l.b16 %v153
    %v991 = vunpack.c.h.b16 %v153
    %v992 = vunpack.c.l.b16 %v154
    %v993 = vunpack.c.h.b16 %v154
    %v994 = vunpack.c.l.b16 %v155
    %v995 = vunpack.c.h.b16 %v155
    %v996 = vunpack.c.l.b16 %v156
    %v997 = vunpack.c.h.b16 %v156
    %v998 = vunpack.c.l.b16 %v157
    %v999 = vunpack.c.h.b16 %v157
    %v1000 = vunpack.c.l.b16 %v158
    %v1001 = vunpack.c.h.b16 %v158
    %v1002 = vunpack.c.l.b16 %v159
    %v1003 = vunpack.c.h.b16 %v159
    %v1004 = vunpack.c.l.b16 %v160
    %v1005 = vunpack.c.h.b16 %v160
    %v1006 = vunpack.c.l.b16 %v161
    %v1007 = vunpack.c.h.b16 %v161
    %v1008 = vunpack.c.l.b16 %v162
    %v1009 = vunpack.c.h.b16 %v162
    %v1010 = vunpack.c.l.b16 %v163
    %v1011 = vunpack.c.h.b16 %v163
    %v1012 = vunpack.c.l.b16 %v164
    %v1013 = vunpack.c.h.b16 %v164
    %v1014 = vunpack.c.l.b16 %v165
    %v1015 = vunpack.c.h.b16 %v165
    %v1016 = vunpack.c.l.b16 %v166
    %v1017 = vunpack.c.h.b16 %v166
    %v1018 = vunpack.c.l.b16 %v167
    %v1019 = vunpack.c.h.b16 %v167
    %v1020 = vunpack.c.l.b16 %v168
    %v1021 = vunpack.c.h.b16 %v168
    %v1022 = vunpack.c.l.b16 %v169
    %v1023 = vunpack.c.h.b16 %v169
    %v1024 = vunpack.c.l.b16 %v170
    %v1025 = vunpack.c.h.b16 %v170
    %v1026 = vunpack.c.l.b16 %v171
    %v1027 = vunpack.c.h.b16 %v171
    %v1028 = vunpack.c.l.b16 %v172
    %v1029 = vunpack.c.h.b16 %v172
    %v1030 = vunpack.c.l.b16 %v173
    %v1031 = vunpack.c.h.b16 %v173
    %v1032 = vunpack.c.l.b16 %v174
    %v1033 = vunpack.c.h.b16 %v174
    %v1034 = vunpack.c.l.b16 %v175
    %v1035 = vunpack.c.h.b16 %v175
    %v1036 = vunpack.c.l.b16 %v176
    %v1037 = vunpack.c.h.b16 %v176
    %v1038 = vunpack.c.l.b16 %v177
    %v1039 = vunpack.c.h.b16 %v177
    %v1040 = vunpack.c.l.b16 %v178
    %v1041 = vunpack.c.h.b16 %v178
    %v1042 = vunpack.c.l.b16 %v179
    %v1043 = vunpack.c.h.b16 %v179
    %v1044 = vunpack.c.l.b16 %v180
    %v1045 = vunpack.c.h.b16 %v180
    %v1046 = vunpack.c.l.b16 %v181
    %v1047 = vunpack.c.h.b16 %v181
    %v1048 = vunpack.c.l.b16 %v182
    %v1049 = vunpack.c.h.b16 %v182
    %v1050 = vunpack.c.l.b16 %v183
    %v1051 = vunpack.c.h.b16 %v183
    %v1052 = vunpack.c.l.b16 %v184
    %v1053 = vunpack.c.h.b16 %v184
    %v1054 = vunpack.c.l.b16 %v185
    %v1055 = vunpack.c.h.b16 %v185
    %v1056 = vunpack.c.l.b16 %v186
    %v1057 = vunpack.c.h.b16 %v186
    %v1058 = vunpack.c.l.b16 %v187
    %v1059 = vunpack.c.h.b16 %v187
    %v1060 = vunpack.c.l.b16 %v188
    %v1061 = vunpack.c.h.b16 %v188
    %v1062 = vunpack.c.l.b16 %v189
    %v1063 = vunpack.c.h.b16 %v189
    %v1064 = vunpack.c.l.b16 %v190
    %v1065 = vunpack.c.h.b16 %v190
    %v1066 = vunpack.c.l.b16 %v191
    %v1067 = vunpack.c.h.b16 %v191
    %v1068 = vunpack.c.l.b16 %v192
    %v1069 = vunpack.c.h.b16 %v192
    %v1070 = vunpack.c.l.b16 %v193
    %v1071 = vunpack.c.h.b16 %v193
    %v1072 = vunpack.c.l.b16 %v194
    %v1073 = vunpack.c.h.b16 %v194
    %v1074 = vunpack.c.l.b16 %v195
    %v1075 = vunpack.c.h.b16 %v195
    %v1076 = vunpack.c.l.b16 %v196
    %v1077 = vunpack.c.h.b16 %v196
    %v1078 = vunpack.c.l.b16 %v197
    %v1079 = vunpack.c.h.b16 %v197
    %v1080 = vunpack.c.l.b16 %v198
    %v1081 = vunpack.c.h.b16 %v198
    %v1082 = vunpack.c.l.b16 %v199
    %v1083 = vunpack.c.h.b16 %v199
    %v1084 = vunpack.c.l.b16 %v200
    %v1085 = vunpack.c.h.b16 %v200
    %v1086 = vunpack.c.l.b16 %v201
    %v1087 = vunpack.c.h.b16 %v201
    %v1088 = vunpack.c.l.b16 %v202
    %v1089 = vunpack.c.h.b16 %v202
    %v1090 = vunpack.c.l.b16 %v203
    %v1091 = vunpack.c.h.b16 %v203
    %v1092 = vunpack.c.l.b16 %v204
    %v1093 = vunpack.c.h.b16 %v204
    %v1094 = vunpack.c.l.b16 %v205
    %v1095 = vunpack.c.h.b16 %v205
    %v1096 = vunpack.c.l.b16 %v206
    %v1097 = vunpack.c.h.b16 %v206
    %v1098 = vunpack.c.l.b16 %v207
    %v1099 = vunpack.c.h.b16 %v207
    %v1100 = vunpack.c.l.b16 %v208
    %v1101 = vunpack.c.h.b16 %v208
    %v1102 = vunpack.c.l.b16 %v209
    %v1103 = vunpack.c.h.b16 %v209
    %v1104 = vunpack.c.l.b16 %v210
    %v1105 = vunpack.c.h.b16 %v210
    %v1106 = vunpack.c.l.b16 %v211
    %v1107 = vunpack.c.h.b16 %v211
    %v1108 = vunpack.c.l.b16 %v212
    %v1109 = vunpack.c.h.b16 %v212
    %v1110 = vunpack.c.l.b16 %v213
    %v1111 = vunpack.c.h.b16 %v213
    %v1112 = vunpack.c.l.b16 %v214
    %v1113 = vunpack.c.h.b16 %v214
    %v1114 = vunpack.c.l.b16 %v215
    %v1115 = vunpack.c.h.b16 %v215
    %v1116 = vunpack.c.l.b16 %v216
    %v1117 = vunpack.c.h.b16 %v216
    %v1118 = vunpack.c.l.b16 %v217
    %v1119 = vunpack.c.h.b16 %v217
    %v1120 = vunpack.c.l.b16 %v218
    %v1121 = vunpack.c.h.b16 %v218
    %v1122 = vunpack.c.l.b16 %v219
    %v1123 = vunpack.c.h.b16 %v219
    %v1124 = vunpack.c.l.b16 %v220
    %v1125 = vunpack.c.h.b16 %v220
    %v1126 = vunpack.c.l.b16 %v221
    %v1127 = vunpack.c.h.b16 %v221
    %v1128 = vunpack.c.l.b16 %v222
    %v1129 = vunpack.c.h.b16 %v222
    %v1130 = vunpack.c.l.b16 %v223
    %v1131 = vunpack.c.h.b16 %v223
    %v1132 = vunpack.c.l.b16 %v224
    %v1133 = vunpack.c.h.b16 %v224
    %v1134 = vunpack.c.l.b16 %v225
    %v1135 = vunpack.c.h.b16 %v225
    %v1136 = vunpack.c.l.b16 %v226
    %v1137 = vunpack.c.h.b16 %v226
    %v1138 = vunpack.c.l.b16 %v227
    %v1139 = vunpack.c.h.b16 %v227
    %v1140 = vunpack.c.l.b16 %v228
    %v1141 = vunpack.c.h.b16 %v228
    %v1142 = vunpack.c.l.b16 %v229
    %v1143 = vunpack.c.h.b16 %v229
    %v1144 = vunpack.c.l.b16 %v230
    %v1145 = vunpack.c.h.b16 %v230
    %v1146 = vunpack.c.l.b16 %v231
    %v1147 = vunpack.c.h.b16 %v231
    %v1148 = vunpack.c.l.b16 %v232
    %v1149 = vunpack.c.h.b16 %v232
    %v1150 = vunpack.c.l.b16 %v233
    %v1151 = vunpack.c.h.b16 %v233
    %v1152 = vunpack.c.l.b16 %v234
    %v1153 = vunpack.c.h.b16 %v234
    %v1154 = vunpack.c.l.b16 %v235
    %v1155 = vunpack.c.h.b16 %v235
    %v1156 = vunpack.c.l.b16 %v236
    %v1157 = vunpack.c.h.b16 %v236
    %v1158 = vunpack.c.l.b16 %v237
    %v1159 = vunpack.c.h.b16 %v237
    %v1160 = vunpack.c.l.b16 %v238
    %v1161 = vunpack.c.h.b16 %v238
    %v1162 = vunpack.c.l.b16 %v239
    %v1163 = vunpack.c.h.b16 %v239
    %v1164 = vunpack.c.l.b16 %v240
    %v1165 = vunpack.c.h.b16 %v240
    %v1166 = vunpack.c.l.b16 %v241
    %v1167 = vunpack.c.h.b16 %v241
    %v1168 = vunpack.c.l.b16 %v242
    %v1169 = vunpack.c.h.b16 %v242
    %v1170 = vunpack.c.l.b16 %v243
    %v1171 = vunpack.c.h.b16 %v243
    %v1172 = vunpack.c.l.b16 %v244
    %v1173 = vunpack.c.h.b16 %v244
    %v1174 = vunpack.c.l.b16 %v245
    %v1175 = vunpack.c.h.b16 %v245
    %v1176 = vunpack.c.l.b16 %v246
    %v1177 = vunpack.c.h.b16 %v246
    %v1178 = vunpack.c.l.b16 %v247
    %v1179 = vunpack.c.h.b16 %v247
    %v1180 = vunpack.c.l.b16 %v248
    %v1181 = vunpack.c.h.b16 %v248
    %v1182 = vunpack.c.l.b16 %v249
    %v1183 = vunpack.c.h.b16 %v249
    %v1184 = vunpack.c.l.b16 %v250
    %v1185 = vunpack.c.h.b16 %v250
    %v1186 = vunpack.c.l.b16 %v251
    %v1187 = vunpack.c.h.b16 %v251
    %v1188 = vunpack.c.l.b16 %v252
    %v1189 = vunpack.c.h.b16 %v252
    %v1190 = vunpack.c.l.b16 %v253
    %v1191 = vunpack.c.h.b16 %v253
    %v1192 = vunpack.c.l.b16 %v254
    %v1193 = vunpack.c.h.b16 %v254
    %v1194 = vunpack.c.l.b16 %v255
    %v1195 = vunpack.c.h.b16 %v255
    %v1196 = vunpack.c.l.b16 %v256
    %v1197 = vunpack.c.h.b16 %v256
    %v1198 = vunpack.c.l.b16 %v257
    %v1199 = vunpack.c.h.b16 %v257
    %v1200 = vunpack.c.l.b16 %v258
    %v1201 = vunpack.c.h.b16 %v258
    %v1202 = vunpack.c.l.b16 %v259
    %v1203 = vunpack.c.h.b16 %v259
    %v1204 = vunpack.c.l.b16 %v260
    %v1205 = vunpack.c.h.b16 %v260
    %v1206 = vunpack.c.l.b16 %v261
    %v1207 = vunpack.c.h.b16 %v261
    %v1208 = vunpack.c.l.b16 %v262
    %v1209 = vunpack.c.h.b16 %v262
    %v1210 = vunpack.c.l.b16 %v263
    %v1211 = vunpack.c.h.b16 %v263
    %v1212 = vunpack.c.l.b16 %v264
    %v1213 = vunpack.c.h.b16 %v264
    %v1214 = vunpack.c.l.b16 %v265
    %v1215 = vunpack.c.h.b16 %v265
    %v1216 = vunpack.c.l.b16 %v266
    %v1217 = vunpack.c.h.b16 %v266
    %v1218 = vunpack.c.l.b16 %v267
    %v1219 = vunpack.c.h.b16 %v267
    %v1220 = vunpack.c.l.b16 %v268
    %v1221 = vunpack.c.h.b16 %v268
    %v1222 = vunpack.c.l.b16 %v269
    %v1223 = vunpack.c.h.b16 %v269
    %v1224 = vunpack.c.l.b16 %v270
    %v1225 = vunpack.c.h.b16 %v270
    %v1226 = vunpack.c.l.b16 %v271
    %v1227 = vunpack.c.h.b16 %v271
    %v1228 = vunpack.c.l.b16 %v272
    %v1229 = vunpack.c.h.b16 %v272
    %v1230 = vunpack.c.l.b16 %v273
    %v1231 = vunpack.c.h.b16 %v273
    %v1232 = vunpack.c.l.b16 %v274
    %v1233 = vunpack.c.h.b16 %v274
    %v1234 = vunpack.c.l.b16 %v275
    %v1235 = vunpack.c.h.b16 %v275
    %v1236 = vunpack.c.l.b16 %v276
    %v1237 = vunpack.c.h.b16 %v276
    %v1238 = vunpack.c.l.b16 %v277
    %v1239 = vunpack.c.h.b16 %v277
    %v1240 = vunpack.c.l.b16 %v278
    %v1241 = vunpack.c.h.b16 %v278
    %v1242 = vunpack.c.l.b16 %v279
    %v1243 = vunpack.c.h.b16 %v279
    %v1244 = vunpack.c.l.b16 %v280
    %v1245 = vunpack.c.h.b16 %v280
    %v1246 = vunpack.c.l.b16 %v281
    %v1247 = vunpack.c.h.b16 %v281
    %v1248 = vunpack.c.l.b16 %v282
    %v1249 = vunpack.c.h.b16 %v282
    %v1250 = vunpack.c.l.b16 %v283
    %v1251 = vunpack.c.h.b16 %v283
    %v1252 = vunpack.c.l.b16 %v284
    %v1253 = vunpack.c.h.b16 %v284
    %v1254 = vunpack.c.l.b16 %v285
    %v1255 = vunpack.c.h.b16 %v285
    %v1256 = vunpack.c.l.b16 %v286
    %v1257 = vunpack.c.h.b16 %v286
    %v1258 = vunpack.c.l.b16 %v287
    %v1259 = vunpack.c.h.b16 %v287
    %v1260 = vunpack.c.l.b16 %v288
    %v1261 = vunpack.c.h.b16 %v288
    %v1262 = vunpack.c.l.b16 %v289
    %v1263 = vunpack.c.h.b16 %v289
    %v1264 = vunpack.c.l.b16 %v290
    %v1265 = vunpack.c.h.b16 %v290
    %v1266 = vunpack.c.l.b16 %v291
    %v1267 = vunpack.c.h.b16 %v291
    %v1268 = vunpack.c.l.b16 %v292
    %v1269 = vunpack.c.h.b16 %v292
    %v1270 = vunpack.c.l.b16 %v293
    %v1271 = vunpack.c.h.b16 %v293
    %v1272 = vunpack.c.l.b16 %v294
    %v1273 = vunpack.c.h.b16 %v294
    %v1274 = vunpack.c.l.b16 %v295
    %v1275 = vunpack.c.h.b16 %v295
    %v1276 = vunpack.c.l.b16 %v296
    %v1277 = vunpack.c.h.b16 %v296
    %v1278 = vunpack.c.l.b16 %v297
    %v1279 = vunpack.c.h.b16 %v297
    %v1280 = vunpack.c.l.b16 %v298
    %v1281 = vunpack.c.h.b16 %v298
    %v1282 = vunpack.c.l.b16 %v299
    %v1283 = vunpack.c.h.b16 %v299
    %v1284 = vunpack.c.l.b16 %v300
    %v1285 = vunpack.c.h.b16 %v300
    %v1286 = vunpack.c.l.b16 %v301
    %v1287 = vunpack.c.h.b16 %v301
    %v1288 = vunpack.c.l.b16 %v302
    %v1289 = vunpack.c.h.b16 %v302
    %v1290 = vunpack.c.l.b16 %v303
    %v1291 = vunpack.c.h.b16 %v303
    %v1292 = vunpack.c.l.b16 %v304
    %v1293 = vunpack.c.h.b16 %v304
    %v1294 = vunpack.c.l.b16 %v305
    %v1295 = vunpack.c.h.b16 %v305
    %v1296 = vunpack.c.l.b16 %v306
    %v1297 = vunpack.c.h.b16 %v306
    %v1298 = vunpack.c.l.b16 %v307
    %v1299 = vunpack.c.h.b16 %v307
    %v1300 = vunpack.c.l.b16 %v308
    %v1301 = vunpack.c.h.b16 %v308
    %v1302 = vunpack.c.l.b16 %v309
    %v1303 = vunpack.c.h.b16 %v309
    %v1304 = vunpack.c.l.b16 %v310
    %v1305 = vunpack.c.h.b16 %v310
    %v1306 = vunpack.c.l.b16 %v311
    %v1307 = vunpack.c.h.b16 %v311
    %v1308 = vunpack.c.l.b16 %v312
    %v1309 = vunpack.c.h.b16 %v312
    %v1310 = vunpack.c.l.b16 %v313
    %v1311 = vunpack.c.h.b16 %v313
    %v1312 = vunpack.c.l.b16 %v314
    %v1313 = vunpack.c.h.b16 %v314
    %v1314 = vunpack.c.l.b16 %v315
    %v1315 = vunpack.c.h.b16 %v315
    %v1316 = vunpack.c.l.b16 %v316
    %v1317 = vunpack.c.h.b16 %v316
    %v1318 = vunpack.c.l.b16 %v317
    %v1319 = vunpack.c.h.b16 %v317
    %v1320 = vunpack.c.l.b16 %v318
    %v1321 = vunpack.c.h.b16 %v318
    %v1322 = vunpack.c.l.b16 %v319
    %v1323 = vunpack.c.h.b16 %v319
    %v1324 = vunpack.c.l.b16 %v320
    %v1325 = vunpack.c.h.b16 %v320
    %v1326 = vunpack.c.l.b16 %v321
    %v1327 = vunpack.c.h.b16 %v321
    %v1328 = vunpack.c.l.b16 %v322
    %v1329 = vunpack.c.h.b16 %v322
    %v1330 = vunpack.c.l.b16 %v323
    %v1331 = vunpack.c.h.b16 %v323
    %v1332 = vunpack.c.l.b16 %v324
    %v1333 = vunpack.c.h.b16 %v324
    %v1334 = vunpack.c.l.b16 %v325
    %v1335 = vunpack.c.h.b16 %v325
    %v1336 = vunpack.c.l.b16 %v326
    %v1337 = vunpack.c.h.b16 %v326
    %v1338 = vunpack.c.l.b16 %v327
    %v1339 = vunpack.c.h.b16 %v327
    %v1340 = vunpack.c.l.b16 %v328
    %v1341 = vunpack.c.h.b16 %v328
    %v1342 = vunpack.c.l.b16 %v329
    %v1343 = vunpack.c.h.b16 %v329
    %v1344 = vunpack.c.l.b16 %v330
    %v1345 = vunpack.c.h.b16 %v330
    %v1346 = vunpack.c.l.b16 %v331
    %v1347 = vunpack.c.h.b16 %v331
    %v1348 = vunpack.c.l.b16 %v332
    %v1349 = vunpack.c.h.b16 %v332
    %v1350 = vunpack.c.l.b16 %v333
    %v1351 = vunpack.c.h.b16 %v333
    %v1352 = vunpack.c.l.b16 %v334
    %v1353 = vunpack.c.h.b16 %v334
    %v1354 = vunpack.c.l.b16 %v335
    %v1355 = vunpack.c.h.b16 %v335
    %v1356 = vunpack.c.l.b16 %v336
    %v1357 = vunpack.c.h.b16 %v336
    %v1358 = vunpack.c.l.b16 %v337
    %v1359 = vunpack.c.h.b16 %v337
    %v1360 = vunpack.c.l.b16 %v338
    %v1361 = vunpack.c.h.b16 %v338
    %v1362 = vunpack.c.l.b16 %v339
    %v1363 = vunpack.c.h.b16 %v339
    %v1364 = vunpack.c.l.b16 %v340
    %v1365 = vunpack.c.h.b16 %v340
    %v1366 = vunpack.c.l.b16 %v341
    %v1367 = vunpack.c.h.b16 %v341
    %v1368 = vunpack.c.l.b16 %v342
    %v1369 = vunpack.c.h.b16 %v342
    %v1370 = vunpack.c.l.b16 %v343
    %v1371 = vunpack.c.h.b16 %v343
    %v1372 = vunpack.c.l.b16 %v344
    %v1373 = vunpack.c.h.b16 %v344
    %v1374 = vunpack.c.l.b16 %v345
    %v1375 = vunpack.c.h.b16 %v345
    %v1376 = vunpack.c.l.b16 %v346
    %v1377 = vunpack.c.h.b16 %v346
    %v1378 = vunpack.c.l.b16 %v347
    %v1379 = vunpack.c.h.b16 %v347
    %v1380 = vunpack.c.l.b16 %v348
    %v1381 = vunpack.c.h.b16 %v348
    %v1382 = vunpack.c.l.b16 %v349
    %v1383 = vunpack.c.h.b16 %v349
    %v1384 = vunpack.c.l.b16 %v350
    %v1385 = vunpack.c.h.b16 %v350
    %v1386 = vunpack.c.l.b16 %v351
    %v1387 = vunpack.c.h.b16 %v351
    %v1388 = vunpack.c.l.b16 %v352
    %v1389 = vunpack.c.h.b16 %v352
    %v1390 = vunpack.c.l.b16 %v353
    %v1391 = vunpack.c.h.b16 %v353
    %v1392 = vunpack.c.l.b16 %v354
    %v1393 = vunpack.c.h.b16 %v354
    %v1394 = vunpack.c.l.b16 %v355
    %v1395 = vunpack.c.h.b16 %v355
    %v1396 = vunpack.c.l.b16 %v356
    %v1397 = vunpack.c.h.b16 %v356
    %v1398 = vunpack.c.l.b16 %v357
    %v1399 = vunpack.c.h.b16 %v357
    %v1400 = vunpack.c.l.b16 %v358
    %v1401 = vunpack.c.h.b16 %v358
    %v1402 = vunpack.c.l.b16 %v359
    %v1403 = vunpack.c.h.b16 %v359
    %v1404 = vunpack.c.l.b16 %v360
    %v1405 = vunpack.c.h.b16 %v360
    %v1406 = vunpack.c.l.b16 %v361
    %v1407 = vunpack.c.h.b16 %v361
    %v1408 = vunpack.c.l.b16 %v362
    %v1409 = vunpack.c.h.b16 %v362
    %v1410 = vunpack.c.l.b16 %v363
    %v1411 = vunpack.c.h.b16 %v363
    %v1412 = vunpack.c.l.b16 %v364
    %v1413 = vunpack.c.h.b16 %v364
    %v1414 = vunpack.c.l.b16 %v365
    %v1415 = vunpack.c.h.b16 %v365
    %v1416 = vunpack.c.l.b16 %v366
    %v1417 = vunpack.c.h.b16 %v366
    %v1418 = vunpack.c.l.b16 %v367
    %v1419 = vunpack.c.h.b16 %v367
    %v1420 = vunpack.c.l.b16 %v368
    %v1421 = vunpack.c.h.b16 %v368
    %v1422 = vunpack.c.l.b16 %v369
    %v1423 = vunpack.c.h.b16 %v369
    %v1424 = vunpack.c.l.b16 %v370
    %v1425 = vunpack.c.h.b16 %v370
    %v1426 = vunpack.c.l.b16 %v371
    %v1427 = vunpack.c.h.b16 %v371
    %v1428 = vunpack.c.l.b16 %v372
    %v1429 = vunpack.c.h.b16 %v372
    %v1430 = vunpack.c.l.b16 %v373
    %v1431 = vunpack.c.h.b16 %v373
    %v1432 = vunpack.c.l.b16 %v374
    %v1433 = vunpack.c.h.b16 %v374
    %v1434 = vunpack.c.l.b16 %v375
    %v1435 = vunpack.c.h.b16 %v375
    %v1436 = vunpack.c.l.b16 %v376
    %v1437 = vunpack.c.h.b16 %v376
    %v1438 = vunpack.c.l.b16 %v377
    %v1439 = vunpack.c.h.b16 %v377
    %v1440 = vunpack.c.l.b16 %v378
    %v1441 = vunpack.c.h.b16 %v378
    %v1442 = vunpack.c.l.b16 %v379
    %v1443 = vunpack.c.h.b16 %v379
    %v1444 = vunpack.c.l.b16 %v380
    %v1445 = vunpack.c.h.b16 %v380
    %v1446 = vunpack.c.l.b16 %v381
    %v1447 = vunpack.c.h.b16 %v381
    %v1448 = vunpack.c.l.b16 %v382
    %v1449 = vunpack.c.h.b16 %v382
    %v1450 = vunpack.c.l.b16 %v383
    %v1451 = vunpack.c.h.b16 %v383
    %v1452 = vunpack.c.l.b16 %v384
    %v1453 = vunpack.c.h.b16 %v384
    %v1454 = vunpack.c.l.b16 %v385
    %v1455 = vunpack.c.h.b16 %v385
    %v1456 = vunpack.c.l.b16 %v386
    %v1457 = vunpack.c.h.b16 %v386
    %v1458 = vunpack.c.l.b16 %v387
    %v1459 = vunpack.c.h.b16 %v387
    %v1460 = vunpack.c.l.b16 %v388
    %v1461 = vunpack.c.h.b16 %v388
    %v1462 = vunpack.c.l.b16 %v389
    %v1463 = vunpack.c.h.b16 %v389
    %v1464 = vunpack.c.l.b16 %v390
    %v1465 = vunpack.c.h.b16 %v390
    %v1466 = vunpack.c.l.b16 %v391
    %v1467 = vunpack.c.h.b16 %v391
    %v1468 = vunpack.c.l.b16 %v392
    %v1469 = vunpack.c.h.b16 %v392
    %v1470 = vunpack.c.l.b16 %v393
    %v1471 = vunpack.c.h.b16 %v393
    %v1472 = vunpack.c.l.b16 %v394
    %v1473 = vunpack.c.h.b16 %v394
    %v1474 = vunpack.c.l.b16 %v395
    %v1475 = vunpack.c.h.b16 %v395
    %v1476 = vunpack.c.l.b16 %v396
    %v1477 = vunpack.c.h.b16 %v396
    %v1478 = vunpack.c.l.b16 %v397
    %v1479 = vunpack.c.h.b16 %v397
    %v1480 = vunpack.c.l.b16 %v398
    %v1481 = vunpack.c.h.b16 %v398
    %v1482 = vunpack.c.l.b16 %v399
    %v1483 = vunpack.c.h.b16 %v399
    %v1484 = vunpack.c.l.b16 %v400
    %v1485 = vunpack.c.h.b16 %v400
    %v1486 = vunpack.c.l.b16 %v401
    %v1487 = vunpack.c.h.b16 %v401
    %v1488 = vunpack.c.l.b16 %v402
    %v1489 = vunpack.c.h.b16 %v402
    %v1490 = vunpack.c.l.b16 %v403
    %v1491 = vunpack.c.h.b16 %v403
    %v1492 = vunpack.c.l.b16 %v404
    %v1493 = vunpack.c.h.b16 %v404
    %v1494 = vunpack.c.l.b16 %v405
    %v1495 = vunpack.c.h.b16 %v405
    %v1496 = vunpack.c.l.b16 %v406
    %v1497 = vunpack.c.h.b16 %v406
    %v1498 = vunpack.c.l.b16 %v407
    %v1499 = vunpack.c.h.b16 %v407
    %v1500 = vunpack.c.l.b16 %v408
    %v1501 = vunpack.c.h.b16 %v408
    %v1502 = vunpack.c.l.b16 %v409
    %v1503 = vunpack.c.h.b16 %v409
    %v1504 = vunpack.c.l.b16 %v410
    %v1505 = vunpack.c.h.b16 %v410
    %v1506 = vunpack.c.l.b16 %v411
    %v1507 = vunpack.c.h.b16 %v411
    %v1508 = vunpack.c.l.b16 %v412
    %v1509 = vunpack.c.h.b16 %v412
    %v1510 = vunpack.c.l.b16 %v413
    %v1511 = vunpack.c.h.b16 %v413
    %v1512 = vunpack.c.l.b16 %v414
    %v1513 = vunpack.c.h.b16 %v414
    %v1514 = vunpack.c.l.b16 %v415
    %v1515 = vunpack.c.h.b16 %v415
    %v1516 = vunpack.c.l.b16 %v416
    %v1517 = vunpack.c.h.b16 %v416
    %v1518 = vunpack.c.l.b16 %v417
    %v1519 = vunpack.c.h.b16 %v417
    %v1520 = vunpack.c.l.b16 %v418
    %v1521 = vunpack.c.h.b16 %v418
    %v1522 = vunpack.c.l.b16 %v419
    %v1523 = vunpack.c.h.b16 %v419
    %v1524 = vunpack.c.l.b16 %v420
    %v1525 = vunpack.c.h.b16 %v420
    %v1526 = vunpack.c.l.b16 %v421
    %v1527 = vunpack.c.h.b16 %v421
    %v1528 = vunpack.c.l.b16 %v422
    %v1529 = vunpack.c.h.b16 %v422
    %v1530 = vunpack.c.l.b16 %v423
    %v1531 = vunpack.c.h.b16 %v423
    %v1532 = vunpack.c.l.b16 %v424
    %v1533 = vunpack.c.h.b16 %v424
    %v1534 = vunpack.c.l.b16 %v425
    %v1535 = vunpack.c.h.b16 %v425
    %v1536 = vunpack.c.l.b16 %v426
    %v1537 = vunpack.c.h.b16 %v426
    %v1538 = vunpack.c.l.b16 %v427
    %v1539 = vunpack.c.h.b16 %v427
    %v1540 = vunpack.c.l.b16 %v428
    %v1541 = vunpack.c.h.b16 %v428
    %v1542 = vunpack.c.l.b16 %v429
    %v1543 = vunpack.c.h.b16 %v429
    %v1544 = vunpack.c.l.b16 %v430
    %v1545 = vunpack.c.h.b16 %v430
    %v1546 = vunpack.c.l.b16 %v431
    %v1547 = vunpack.c.h.b16 %v431
    %v1548 = vunpack.c.l.b16 %v432
    %v1549 = vunpack.c.h.b16 %v432
    %v1550 = vunpack.c.l.b16 %v433
    %v1551 = vunpack.c.h.b16 %v433
    %v1552 = vunpack.c.l.b16 %v434
    %v1553 = vunpack.c.h.b16 %v434
    %v1554 = vunpack.c.l.b16 %v435
    %v1555 = vunpack.c.h.b16 %v435
    %v1556 = vunpack.c.l.b16 %v436
    %v1557 = vunpack.c.h.b16 %v436
    %v1558 = vunpack.c.l.b16 %v437
    %v1559 = vunpack.c.h.b16 %v437
    %v1560 = vunpack.c.l.b16 %v438
    %v1561 = vunpack.c.h.b16 %v438
    %v1562 = vunpack.c.l.b16 %v439
    %v1563 = vunpack.c.h.b16 %v439
    %v1564 = vunpack.c.l.b16 %v440
    %v1565 = vunpack.c.h.b16 %v440
    %v1566 = vunpack.c.l.b16 %v441
    %v1567 = vunpack.c.h.b16 %v441
    %v1568 = vunpack.c.l.b16 %v442
    %v1569 = vunpack.c.h.b16 %v442
    %v1570 = vunpack.c.l.b16 %v443
    %v1571 = vunpack.c.h.b16 %v443
    %v1572 = vunpack.c.l.b16 %v444
    %v1573 = vunpack.c.h.b16 %v444
    %v1574 = vunpack.c.l.b16 %v445
    %v1575 = vunpack.c.h.b16 %v445
    %v1576 = vunpack.c.l.b16 %v446
    %v1577 = vunpack.c.h.b16 %v446
    %v1578 = vunpack.c.l.b16 %v447
    %v1579 = vunpack.c.h.b16 %v447
    %v1580 = vunpack.c.l.b16 %v448
    %v1581 = vunpack.c.h.b16 %v448
    %v1582 = vunpack.c.l.b16 %v449
    %v1583 = vunpack.c.h.b16 %v449
    %v1584 = vunpack.c.l.b16 %v450
    %v1585 = vunpack.c.h.b16 %v450
    %v1586 = vunpack.c.l.b16 %v451
    %v1587 = vunpack.c.h.b16 %v451
    %v1588 = vunpack.c.l.b16 %v452
    %v1589 = vunpack.c.h.b16 %v452
    %v1590 = vunpack.c.l.b16 %v453
    %v1591 = vunpack.c.h.b16 %v453
    %v1592 = vunpack.c.l.b16 %v454
    %v1593 = vunpack.c.h.b16 %v454
    %v1594 = vunpack.c.l.b16 %v455
    %v1595 = vunpack.c.h.b16 %v455
    %v1596 = vunpack.c.l.b16 %v456
    %v1597 = vunpack.c.h.b16 %v456
    %v1598 = vunpack.c.l.b16 %v457
    %v1599 = vunpack.c.h.b16 %v457
    %v1600 = vunpack.c.l.b16 %v458
    %v1601 = vunpack.c.h.b16 %v458
    %v1602 = vunpack.c.l.b16 %v459
    %v1603 = vunpack.c.h.b16 %v459
    %v1604 = vunpack.c.l.b16 %v460
    %v1605 = vunpack.c.h.b16 %v460
    %v1606 = vunpack.c.l.b16 %v461
    %v1607 = vunpack.c.h.b16 %v461
    %v1608 = vunpack.c.l.b16 %v462
    %v1609 = vunpack.c.h.b16 %v462
    %v1610 = vunpack.c.l.b16 %v463
    %v1611 = vunpack.c.h.b16 %v463
    %v1612 = vunpack.c.l.b16 %v464
    %v1613 = vunpack.c.h.b16 %v464
    %v1614 = vunpack.c.l.b16 %v465
    %v1615 = vunpack.c.h.b16 %v465
    %v1616 = vunpack.c.l.b16 %v466
    %v1617 = vunpack.c.h.b16 %v466
    %v1618 = vunpack.c.l.b16 %v467
    %v1619 = vunpack.c.h.b16 %v467
    %v1620 = vunpack.c.l.b16 %v468
    %v1621 = vunpack.c.h.b16 %v468
    %v1622 = vunpack.c.l.b16 %v469
    %v1623 = vunpack.c.h.b16 %v469
    %v1624 = vunpack.c.l.b16 %v470
    %v1625 = vunpack.c.h.b16 %v470
    %v1626 = vunpack.c.l.b16 %v471
    %v1627 = vunpack.c.h.b16 %v471
    %v1628 = vunpack.c.l.b16 %v472
    %v1629 = vunpack.c.h.b16 %v472
    %v1630 = vunpack.c.l.b16 %v473
    %v1631 = vunpack.c.h.b16 %v473
    %v1632 = vunpack.c.l.b16 %v474
    %v1633 = vunpack.c.h.b16 %v474
    %v1634 = vunpack.c.l.b16 %v475
    %v1635 = vunpack.c.h.b16 %v475
    %v1636 = vunpack.c.l.b16 %v476
    %v1637 = vunpack.c.h.b16 %v476
    %v1638 = vunpack.c.l.b16 %v477
    %v1639 = vunpack.c.h.b16 %v477
    %v1640 = vunpack.c.l.b16 %v478
    %v1641 = vunpack.c.h.b16 %v478
    %v1642 = vunpack.c.l.b16 %v479
    %v1643 = vunpack.c.h.b16 %v479
    %v1644 = vunpack.c.l.b16 %v480
    %v1645 = vunpack.c.h.b16 %v480
    %v1646 = vunpack.c.l.b16 %v481
    %v1647 = vunpack.c.h.b16 %v481
    %v1648 = vunpack.c.l.b16 %v482
    %v1649 = vunpack.c.h.b16 %v482
    %v1650 = vunpack.c.l.b16 %v483
    %v1651 = vunpack.c.h.b16 %v483
    %v1652 = vunpack.c.l.b16 %v484
    %v1653 = vunpack.c.h.b16 %v484
    %v1654 = vunpack.c.l.b16 %v485
    %v1655 = vunpack.c.h.b16 %v485
    %v1656 = vunpack.c.l.b16 %v486
    %v1657 = vunpack.c.h.b16 %v486
    %v1658 = vunpack.c.l.b16 %v487
    %v1659 = vunpack.c.h.b16 %v487
    %v1660 = vunpack.c.l.b16 %v488
    %v1661 = vunpack.c.h.b16 %v488
    %v1662 = vunpack.c.l.b16 %v489
    %v1663 = vunpack.c.h.b16 %v489
    %v1664 = vunpack.c.l.b16 %v490
    %v1665 = vunpack.c.h.b16 %v490
    %v1666 = vunpack.c.l.b16 %v491
    %v1667 = vunpack.c.h.b16 %v491
    %v1668 = vunpack.c.l.b16 %v492
    %v1669 = vunpack.c.h.b16 %v492
    %v1670 = vunpack.c.l.b16 %v493
    %v1671 = vunpack.c.h.b16 %v493
    %v1672 = vunpack.c.l.b16 %v494
    %v1673 = vunpack.c.h.b16 %v494
    %v1674 = vunpack.c.l.b16 %v495
    %v1675 = vunpack.c.h.b16 %v495
    %v1676 = vunpack.c.l.b16 %v496
    %v1677 = vunpack.c.h.b16 %v496
    %v1678 = vunpack.c.l.b16 %v497
    %v1679 = vunpack.c.h.b16 %v497
    %v1680 = vunpack.c.l.b16 %v498
    %v1681 = vunpack.c.h.b16 %v498
    %v1682 = vunpack.c.l.b16 %v499
    %v1683 = vunpack.c.h.b16 %v499
    %v1684 = vunpack.c.l.b16 %v500
    %v1685 = vunpack.c.h.b16 %v500
    %v1686 = vunpack.c.l.b16 %v501
    %v1687 = vunpack.c.h.b16 %v501
    %v1688 = vunpack.c.l.b16 %v502
    %v1689 = vunpack.c.h.b16 %v502
    %v1690 = vunpack.c.l.b16 %v503
    %v1691 = vunpack.c.h.b16 %v503
    %v1692 = vunpack.c.l.b16 %v504
    %v1693 = vunpack.c.h.b16 %v504
    %v1694 = vunpack.c.l.b16 %v505
    %v1695 = vunpack.c.h.b16 %v505
    %v1696 = vunpack.c.l.b16 %v506
    %v1697 = vunpack.c.h.b16 %v506
    %v1698 = vunpack.c.l.b16 %v507
    %v1699 = vunpack.c.h.b16 %v507
    %v1700 = vunpack.c.l.b16 %v508
    %v1701 = vunpack.c.h.b16 %v508
    %v1702 = vunpack.c.l.b16 %v509
    %v1703 = vunpack.c.h.b16 %v509
    %v1704 = vpack.c.b16 %v944, %v936
    %v1705 = vpack.c.b16 %v945, %v937
    %v1706 = vpack.c.b16 %v946, %v938
    %v1707 = vpack.c.b16 %v947, %v939
    %v1708 = vpack.c.b16 %v948, %v940
    %v1709 = vpack.c.b16 %v949, %v941
    %v1710 = vpack.c.b16 %v950, %v942
    %v1711 = vpack.c.b16 %v951, %v943
    %v1712 = vpack.c.b16 %v960, %v952
    %v1713 = vpack.c.b16 %v961, %v953
    %v1714 = vpack.c.b16 %v962, %v954
    %v1715 = vpack.c.b16 %v963, %v955
    %v1716 = vpack.c.b16 %v964, %v956
    %v1717 = vpack.c.b16 %v965, %v957
    %v1718 = vpack.c.b16 %v966, %v958
    %v1719 = vpack.c.b16 %v967, %v959
    %v1720 = vpack.c.b16 %v976, %v968
    %v1721 = vpack.c.b16 %v977, %v969
    %v1722 = vpack.c.b16 %v978, %v970
    %v1723 = vpack.c.b16 %v979, %v971
    %v1724 = vpack.c.b16 %v980, %v972
    %v1725 = vpack.c.b16 %v981, %v973
    %v1726 = vpack.c.b16 %v982, %v974
    %v1727 = vpack.c.b16 %v983, %v975
    %v1728 = vpack.c.b16 %v992, %v984
    %v1729 = vpack.c.b16 %v993, %v985
    %v1730 = vpack.c.b16 %v994, %v986
    %v1731 = vpack.c.b16 %v995, %v987
    %v1732 = vpack.c.b16 %v996, %v988
    %v1733 = vpack.c.b16 %v997, %v989
    %v1734 = vpack.c.b16 %v998, %v990
    %v1735 = vpack.c.b16 %v999, %v991
    %v1736 = vpack.c.b16 %v1008, %v1000
    %v1737 = vpack.c.b16 %v1009, %v1001
    %v1738 = vpack.c.b16 %v1010, %v1002
    %v1739 = vpack.c.b16 %v1011, %v1003
    %v1740 = vpack.c.b16 %v1012, %v1004
    %v1741 = vpack.c.b16 %v1013, %v1005
    %v1742 = vpack.c.b16 %v1014, %v1006
    %v1743 = vpack.c.b16 %v1015, %v1007
    %v1744 = vpack.c.b16 %v1024, %v1016
    %v1745 = vpack.c.b16 %v1025, %v1017
    %v1746 = vpack.c.b16 %v1026, %v1018
    %v1747 = vpack.c.b16 %v1027, %v1019
    %v1748 = vpack.c.b16 %v1028, %v1020
    %v1749 = vpack.c.b16 %v1029, %v1021
    %v1750 = vpack.c.b16 %v1030, %v1022
    %v1751 = vpack.c.b16 %v1031, %v1023
    %v1752 = vpack.c.b16 %v1040, %v1032
    %v1753 = vpack.c.b16 %v1041, %v1033
    %v1754 = vpack.c.b16 %v1042, %v1034
    %v1755 = vpack.c.b16 %v1043, %v1035
    %v1756 = vpack.c.b16 %v1044, %v1036
    %v1757 = vpack.c.b16 %v1045, %v1037
    %v1758 = vpack.c.b16 %v1046, %v1038
    %v1759 = vpack.c.b16 %v1047, %v1039
    %v1760 = vpack.c.b16 %v1056, %v1048
    %v1761 = vpack.c.b16 %v1057, %v1049
    %v1762 = vpack.c.b16 %v1058, %v1050
    %v1763 = vpack.c.b16 %v1059, %v1051
    %v1764 = vpack.c.b16 %v1060, %v1052
    %v1765 = vpack.c.b16 %v1061, %v1053
    %v1766 = vpack.c.b16 %v1062, %v1054
    %v1767 = vpack.c.b16 %v1063, %v1055
    %v1768 = vpack.c.b16 %v1072, %v1064
    %v1769 = vpack.c.b16 %v1073, %v1065
    %v1770 = vpack.c.b16 %v1074, %v1066
    %v1771 = vpack.c.b16 %v1075, %v1067
    %v1772 = vpack.c.b16 %v1076, %v1068
    %v1773 = vpack.c.b16 %v1077, %v1069
    %v1774 = vpack.c.b16 %v1078, %v1070
    %v1775 = vpack.c.b16 %v1079, %v1071
    %v1776 = vpack.c.b16 %v1088, %v1080
    %v1777 = vpack.c.b16 %v1089, %v1081
    %v1778 = vpack.c.b16 %v1090, %v1082
    %v1779 = vpack.c.b16 %v1091, %v1083
    %v1780 = vpack.c.b16 %v1092, %v1084
    %v1781 = vpack.c.b16 %v1093, %v1085
    %v1782 = vpack.c.b16 %v1094, %v1086
    %v1783 = vpack.c.b16 %v1095, %v1087
    %v1784 = vpack.c.b16 %v1104, %v1096
    %v1785 = vpack.c.b16 %v1105, %v1097
    %v1786 = vpack.c.b16 %v1106, %v1098
    %v1787 = vpack.c.b16 %v1107, %v1099
    %v1788 = vpack.c.b16 %v1108, %v1100
    %v1789 = vpack.c.b16 %v1109, %v1101
    %v1790 = vpack.c.b16 %v1110, %v1102
    %v1791 = vpack.c.b16 %v1111, %v1103
    %v1792 = vpack.c.b16 %v1120, %v1112
    %v1793 = vpack.c.b16 %v1121, %v1113
    %v1794 = vpack.c.b16 %v1122, %v1114
    %v1795 = vpack.c.b16 %v1123, %v1115
    %v1796 = vpack.c.b16 %v1124, %v1116
    %v1797 = vpack.c.b16 %v1125, %v1117
    %v1798 = vpack.c.b16 %v1126, %v1118
    %v1799 = vpack.c.b16 %v1127, %v1119
    %v1800 = vpack.c.b16 %v1136, %v1128
    %v1801 = vpack.c.b16 %v1137, %v1129
    %v1802 = vpack.c.b16 %v1138, %v1130
    %v1803 = vpack.c.b16 %v1139, %v1131
    %v1804 = vpack.c.b16 %v1140, %v1132
    %v1805 = vpack.c.b16 %v1141, %v1133
    %v1806 = vpack.c.b16 %v1142, %v1134
    %v1807 = vpack.c.b16 %v1143, %v1135
    %v1808 = vpack.c.b16 %v1152, %v1144
    %v1809 = vpack.c.b16 %v1153, %v1145
    %v1810 = vpack.c.b16 %v1154, %v1146
    %v1811 = vpack.c.b16 %v1155, %v1147
    %v1812 = vpack.c.b16 %v1156, %v1148
    %v1813 = vpack.c.b16 %v1157, %v1149
    %v1814 = vpack.c.b16 %v1158, %v1150
    %v1815 = vpack.c.b16 %v1159, %v1151
    %v1816 = vpack.c.b16 %v1168, %v1160
    %v1817 = vpack.c.b16 %v1169, %v1161
    %v1818 = vpack.c.b16 %v1170, %v1162
    %v1819 = vpack.c.b16 %v1171, %v1163
    %v1820 = vpack.c.b16 %v1172, %v1164
    %v1821 = vpack.c.b16 %v1173, %v1165
    %v1822 = vpack.c.b16 %v1174, %v1166
    %v1823 = vpack.c.b16 %v1175, %v1167
    %v1824 = vpack.c.b16 %v1184, %v1176
    %v1825 = vpack.c.b16 %v1185, %v1177
    %v1826 = vpack.c.b16 %v1186, %v1178
    %v1827 = vpack.c.b16 %v1187, %v1179
    %v1828 = vpack.c.b16 %v1188, %v1180
    %v1829 = vpack.c.b16 %v1189, %v1181
    %v1830 = vpack.c.b16 %v1190, %v1182
    %v1831 = vpack.c.b16 %v1191, %v1183
    %v1832 = vpack.c.b16 %v1200, %v1192
    %v1833 = vpack.c.b16 %v1201, %v1193
    %v1834 = vpack.c.b16 %v1202, %v1194
    %v1835 = vpack.c.b16 %v1203, %v1195
    %v1836 = vpack.c.b16 %v1204, %v1196
    %v1837 = vpack.c.b16 %v1205, %v1197
    %v1838 = vpack.c.b16 %v1206, %v1198
    %v1839 = vpack.c.b16 %v1207, %v1199
    %v1840 = vpack.c.b16 %v1216, %v1208
    %v1841 = vpack.c.b16 %v1217, %v1209
    %v1842 = vpack.c.b16 %v1218, %v1210
    %v1843 = vpack.c.b16 %v1219, %v1211
    %v1844 = vpack.c.b16 %v1220, %v1212
    %v1845 = vpack.c.b16 %v1221, %v1213
    %v1846 = vpack.c.b16 %v1222, %v1214
    %v1847 = vpack.c.b16 %v1223, %v1215
    %v1848 = vpack.c.b16 %v1232, %v1224
    %v1849 = vpack.c.b16 %v1233, %v1225
    %v1850 = vpack.c.b16 %v1234, %v1226
    %v1851 = vpack.c.b16 %v1235, %v1227
    %v1852 = vpack.c.b16 %v1236, %v1228
    %v1853 = vpack.c.b16 %v1237, %v1229
    %v1854 = vpack.c.b16 %v1238, %v1230
    %v1855 = vpack.c.b16 %v1239, %v1231
    %v1856 = vpack.c.b16 %v1248, %v1240
    %v1857 = vpack.c.b16 %v1249, %v1241
    %v1858 = vpack.c.b16 %v1250, %v1242
    %v1859 = vpack.c.b16 %v1251, %v1243
    %v1860 = vpack.c.b16 %v1252, %v1244
    %v1861 = vpack.c.b16 %v1253, %v1245
    %v1862 = vpack.c.b16 %v1254, %v1246
    %v1863 = vpack.c.b16 %v1255, %v1247
    %v1864 = vpack.c.b16 %v1264, %v1256
    %v1865 = vpack.c.b16 %v1265, %v1257
    %v1866 = vpack.c.b16 %v1266, %v1258
    %v1867 = vpack.c.b16 %v1267, %v1259
    %v1868 = vpack.c.b16 %v1268, %v1260
    %v1869 = vpack.c.b16 %v1269, %v1261
    %v1870 = vpack.c.b16 %v1270, %v1262
    %v1871 = vpack.c.b16 %v1271, %v1263
    %v1872 = vpack.c.b16 %v1280, %v1272
    %v1873 = vpack.c.b16 %v1281, %v1273
    %v1874 = vpack.c.b16 %v1282, %v1274
    %v1875 = vpack.c.b16 %v1283, %v1275
    %v1876 = vpack.c.b16 %v1284, %v1276
    %v1877 = vpack.c.b16 %v1285, %v1277
    %v1878 = vpack.c.b16 %v1286, %v1278
    %v1879 = vpack.c.b16 %v1287, %v1279
    %v1880 = vpack.c.b16 %v1296, %v1288
    %v1881 = vpack.c.b16 %v1297, %v1289
    %v1882 = vpack.c.b16 %v1298, %v1290
    %v1883 = vpack.c.b16 %v1299, %v1291
    %v1884 = vpack.c.b16 %v1300, %v1292
    %v1885 = vpack.c.b16 %v1301, %v1293
    %v1886 = vpack.c.b16 %v1302, %v1294
    %v1887 = vpack.c.b16 %v1303, %v1295
    %v1888 = vpack.c.b16 %v1312, %v1304
    %v1889 = vpack.c.b16 %v1313, %v1305
    %v1890 = vpack.c.b16 %v1314, %v1306
    %v1891 = vpack.c.b16 %v1315, %v1307
    %v1892 = vpack.c.b16 %v1316, %v1308
    %v1893 = vpack.c.b16 %v1317, %v1309
    %v1894 = vpack.c.b16 %v1318, %v1310
    %v1895 = vpack.c.b16 %v1319, %v1311
    %v1896 = vpack.c.b16 %v1328, %v1320
    %v1897 = vpack.c.b16 %v1329, %v1321
    %v1898 = vpack.c.b16 %v1330, %v1322
    %v1899 = vpack.c.b16 %v1331, %v1323
    %v1900 = vpack.c.b16 %v1332, %v1324
    %v1901 = vpack.c.b16 %v1333, %v1325
    %v1902 = vpack.c.b16 %v1334, %v1326
    %v1903 = vpack.c.b16 %v1335, %v1327
    %v1904 = vpack.c.b16 %v1344, %v1336
    %v1905 = vpack.c.b16 %v1345, %v1337
    %v1906 = vpack.c.b16 %v1346, %v1338
    %v1907 = vpack.c.b16 %v1347, %v1339
    %v1908 = vpack.c.b16 %v1348, %v1340
    %v1909 = vpack.c.b16 %v1349, %v1341
    %v1910 = vpack.c.b16 %v1350, %v1342
    %v1911 = vpack.c.b16 %v1351, %v1343
    %v1912 = vpack.c.b16 %v1360, %v1352
    %v1913 = vpack.c.b16 %v1361, %v1353
    %v1914 = vpack.c.b16 %v1362, %v1354
    %v1915 = vpack.c.b16 %v1363, %v1355
    %v1916 = vpack.c.b16 %v1364, %v1356
    %v1917 = vpack.c.b16 %v1365, %v1357
    %v1918 = vpack.c.b16 %v1366, %v1358
    %v1919 = vpack.c.b16 %v1367, %v1359
    %v1920 = vpack.c.b16 %v1376, %v1368
    %v1921 = vpack.c.b16 %v1377, %v1369
    %v1922 = vpack.c.b16 %v1378, %v1370
    %v1923 = vpack.c.b16 %v1379, %v1371
    %v1924 = vpack.c.b16 %v1380, %v1372
    %v1925 = vpack.c.b16 %v1381, %v1373
    %v1926 = vpack.c.b16 %v1382, %v1374
    %v1927 = vpack.c.b16 %v1383, %v1375
    %v1928 = vpack.c.b16 %v1392, %v1384
    %v1929 = vpack.c.b16 %v1393, %v1385
    %v1930 = vpack.c.b16 %v1394, %v1386
    %v1931 = vpack.c.b16 %v1395, %v1387
    %v1932 = vpack.c.b16 %v1396, %v1388
    %v1933 = vpack.c.b16 %v1397, %v1389
    %v1934 = vpack.c.b16 %v1398, %v1390
    %v1935 = vpack.c.b16 %v1399, %v1391
    %v1936 = vpack.c.b16 %v1408, %v1400
    %v1937 = vpack.c.b16 %v1409, %v1401
    %v1938 = vpack.c.b16 %v1410, %v1402
    %v1939 = vpack.c.b16 %v1411, %v1403
    %v1940 = vpack.c.b16 %v1412, %v1404
    %v1941 = vpack.c.b16 %v1413, %v1405
    %v1942 = vpack.c.b16 %v1414, %v1406
    %v1943 = vpack.c.b16 %v1415, %v1407
    %v1944 = vpack.c.b16 %v1424, %v1416
    %v1945 = vpack.c.b16 %v1425, %v1417
    %v1946 = vpack.c.b16 %v1426, %v1418
    %v1947 = vpack.c.b16 %v1427, %v1419
    %v1948 = vpack.c.b16 %v1428, %v1420
    %v1949 = vpack.c.b16 %v1429, %v1421
    %v1950 = vpack.c.b16 %v1430, %v1422
    %v1951 = vpack.c.b16 %v1431, %v1423
    %v1952 = vpack.c.b16 %v1440, %v1432
    %v1953 = vpack.c.b16 %v1441, %v1433
    %v1954 = vpack.c.b16 %v1442, %v1434
    %v1955 = vpack.c.b16 %v1443, %v1435
    %v1956 = vpack.c.b16 %v1444, %v1436
    %v1957 = vpack.c.b16 %v1445, %v1437
    %v1958 = vpack.c.b16 %v1446, %v1438
    %v1959 = vpack.c.b16 %v1447, %v1439
    %v1960 = vpack.c.b16 %v1456, %v1448
    %v1961 = vpack.c.b16 %v1457, %v1449
    %v1962 = vpack.c.b16 %v1458, %v1450
    %v1963 = vpack.c.b16 %v1459, %v1451
    %v1964 = vpack.c.b16 %v1460, %v1452
    %v1965 = vpack.c.b16 %v1461, %v1453
    %v1966 = vpack.c.b16 %v1462, %v1454
    %v1967 = vpack.c.b16 %v1463, %v1455
    %v1968 = vpack.c.b16 %v1472, %v1464
    %v1969 = vpack.c.b16 %v1473, %v1465
    %v1970 = vpack.c.b16 %v1474, %v1466
    %v1971 = vpack.c.b16 %v1475, %v1467
    %v1972 = vpack.c.b16 %v1476, %v1468
    %v1973 = vpack.c.b16 %v1477, %v1469
    %v1974 = vpack.c.b16 %v1478, %v1470
    %v1975 = vpack.c.b16 %v1479, %v1471
    %v1976 = vpack.c.b16 %v1488, %v1480
    %v1977 = vpack.c.b16 %v1489, %v1481
    %v1978 = vpack.c.b16 %v1490, %v1482
    %v1979 = vpack.c.b16 %v1491, %v1483
    %v1980 = vpack.c.b16 %v1492, %v1484
    %v1981 = vpack.c.b16 %v1493, %v1485
    %v1982 = vpack.c.b16 %v1494, %v1486
    %v1983 = vpack.c.b16 %v1495, %v1487
    %v1984 = vpack.c.b16 %v1504, %v1496
    %v1985 = vpack.c.b16 %v1505, %v1497
    %v1986 = vpack.c.b16 %v1506, %v1498
    %v1987 = vpack.c.b16 %v1507, %v1499
    %v1988 = vpack.c.b16 %v1508, %v1500
    %v1989 = vpack.c.b16 %v1509, %v1501
    %v1990 = vpack.c.b16 %v1510, %v1502
    %v1991 = vpack.c.b16 %v1511, %v1503
    %v1992 = vpack.c.b16 %v1520, %v1512
    %v1993 = vpack.c.b16 %v1521, %v1513
    %v1994 = vpack.c.b16 %v1522, %v1514
    %v1995 = vpack.c.b16 %v1523, %v1515
    %v1996 = vpack.c.b16 %v1524, %v1516
    %v1997 = vpack.c.b16 %v1525, %v1517
    %v1998 = vpack.c.b16 %v1526, %v1518
    %v1999 = vpack.c.b16 %v1527, %v1519
    %v2000 = vpack.c.b16 %v1536, %v1528
    %v2001 = vpack.c.b16 %v1537, %v1529
    %v2002 = vpack.c.b16 %v1538, %v1530
    %v2003 = vpack.c.b16 %v1539, %v1531
    %v2004 = vpack.c.b16 %v1540, %v1532
    %v2005 = vpack.c.b16 %v1541, %v1533
    %v2006 = vpack.c.b16 %v1542, %v1534
    %v2007 = vpack.c.b16 %v1543, %v1535
    %v2008 = vpack.c.b16 %v1552, %v1544
    %v2009 = vpack.c.b16 %v1553, %v1545
    %v2010 = vpack.c.b16 %v1554, %v1546
    %v2011 = vpack.c.b16 %v1555, %v1547
    %v2012 = vpack.c.b16 %v1556, %v1548
    %v2013 = vpack.c.b16 %v1557, %v1549
    %v2014 = vpack.c.b16 %v1558, %v1550
    %v2015 = vpack.c.b16 %v1559, %v1551
    %v2016 = vpack.c.b16 %v1568, %v1560
    %v2017 = vpack.c.b16 %v1569, %v1561
    %v2018 = vpack.c.b16 %v1570, %v1562
    %v2019 = vpack.c.b16 %v1571, %v1563
    %v2020 = vpack.c.b16 %v1572, %v1564
    %v2021 = vpack.c.b16 %v1573, %v1565
    %v2022 = vpack.c.b16 %v1574, %v1566
    %v2023 = vpack.c.b16 %v1575, %v1567
    %v2024 = vpack.c.b16 %v1584, %v1576
    %v2025 = vpack.c.b16 %v1585, %v1577
    %v2026 = vpack.c.b16 %v1586, %v1578
    %v2027 = vpack.c.b16 %v1587, %v1579
    %v2028 = vpack.c.b16 %v1588, %v1580
    %v2029 = vpack.c.b16 %v1589, %v1581
    %v2030 = vpack.c.b16 %v1590, %v1582
    %v2031 = vpack.c.b16 %v1591, %v1583
    %v2032 = vpack.c.b16 %v1600, %v1592
    %v2033 = vpack.c.b16 %v1601, %v1593
    %v2034 = vpack.c.b16 %v1602, %v1594
    %v2035 = vpack.c.b16 %v1603, %v1595
    %v2036 = vpack.c.b16 %v1604, %v1596
    %v2037 = vpack.c.b16 %v1605, %v1597
    %v2038 = vpack.c.b16 %v1606, %v1598
    %v2039 = vpack.c.b16 %v1607, %v1599
    %v2040 = vpack.c.b16 %v1616, %v1608
    %v2041 = vpack.c.b16 %v1617, %v1609
    %v2042 = vpack.c.b16 %v1618, %v1610
    %v2043 = vpack.c.b16 %v1619, %v1611
    %v2044 = vpack.c.b16 %v1620, %v1612
    %v2045 = vpack.c.b16 %v1621, %v1613
    %v2046 = vpack.c.b16 %v1622, %v1614
    %v2047 = vpack.c.b16 %v1623, %v1615
    %v2048 = vpack.c.b16 %v1632, %v1624
    %v2049 = vpack.c.b16 %v1633, %v1625
    %v2050 = vpack.c.b16 %v1634, %v1626
    %v2051 = vpack.c.b16 %v1635, %v1627
    %v2052 = vpack.c.b16 %v1636, %v1628
    %v2053 = vpack.c.b16 %v1637, %v1629
    %v2054 = vpack.c.b16 %v1638, %v1630
    %v2055 = vpack.c.b16 %v1639, %v1631
    %v2056 = vpack.c.b16 %v1648, %v1640
    %v2057 = vpack.c.b16 %v1649, %v1641
    %v2058 = vpack.c.b16 %v1650, %v1642
    %v2059 = vpack.c.b16 %v1651, %v1643
    %v2060 = vpack.c.b16 %v1652, %v1644
    %v2061 = vpack.c.b16 %v1653, %v1645
    %v2062 = vpack.c.b16 %v1654, %v1646
    %v2063 = vpack.c.b16 %v1655, %v1647
    %v2064 = vpack.c.b16 %v1664, %v1656
    %v2065 = vpack.c.b16 %v1665, %v1657
    %v2066 = vpack.c.b16 %v1666, %v1658
    %v2067 = vpack.c.b16 %v1667, %v1659
    %v2068 = vpack.c.b16 %v1668, %v1660
    %v2069 = vpack.c.b16 %v1669, %v1661
    %v2070 = vpack.c.b16 %v1670, %v1662
    %v2071 = vpack.c.b16 %v1671, %v1663
    %v2072 = vpack.c.b16 %v1680, %v1672
    %v2073 = vpack.c.b16 %v1681, %v1673
    %v2074 = vpack.c.b16 %v1682, %v1674
    %v2075 = vpack.c.b16 %v1683, %v1675
    %v2076 = vpack.c.b16 %v1684, %v1676
    %v2077 = vpack.c.b16 %v1685, %v1677
    %v2078 = vpack.c.b16 %v1686, %v1678
    %v2079 = vpack.c.b16 %v1687, %v1679
    %v2080 = vpack.c.b16 %v1696, %v1688
    %v2081 = vpack.c.b16 %v1697, %v1689
    %v2082 = vpack.c.b16 %v1698, %v1690
    %v2083 = vpack.c.b16 %v1699, %v1691
    %v2084 = vpack.c.b16 %v1700, %v1692
    %v2085 = vpack.c.b16 %v1701, %v1693
    %v2086 = vpack.c.b16 %v1702, %v1694
    %v2087 = vpack.c.b16 %v1703, %v1695
    %2472 = vmatprep.subr.bf16.mxu0 %v1761
    %2473 = vmatpush1.bf16.msra.mxu0 %v1760
    %2474 = vmatprep.subr.bf16.mxu0 %v1753
    %2475 = vmatpush1.bf16.msra.mxu0 %v1752
    %2476 = vmatprep.subr.bf16.mxu0 %v1745
    %2477 = vmatpush1.bf16.msra.mxu0 %v1744
    %2478 = vmatprep.subr.bf16.mxu0 %v1737
    %2479 = vmatpush1.bf16.msra.mxu0 %v1736
    %2480 = vmatprep.subr.bf16.mxu0 %v1729
    %2481 = vmatpush1.bf16.msra.mxu0 %v1728
    %2482 = vmatprep.subr.bf16.mxu0 %v1721
    %2483 = vmatpush1.bf16.msra.mxu0 %v1720
    %2484 = vmatprep.subr.bf16.mxu0 %v1713
    %2485 = vmatpush1.bf16.msra.mxu0 %v1712
    %2486 = vmatprep.subr.bf16.mxu0 %v1705
    %2487 = vmatpush1.bf16.msra.mxu0 %v1704
    %2488 = vmatprep.subr.bf16.mxu0 %v1825
    %2489 = vmatpush2.bf16.msra.mxu0 %v1824
    %2490 = vmatprep.subr.bf16.mxu0 %v1817
    %2491 = vmatpush2.bf16.msra.mxu0 %v1816
    %2492 = vmatprep.subr.bf16.mxu0 %v1809
    %2493 = vmatpush2.bf16.msra.mxu0 %v1808
    %2494 = vmatprep.subr.bf16.mxu0 %v1801
    %2495 = vmatpush2.bf16.msra.mxu0 %v1800
    %2496 = vmatprep.subr.bf16.mxu0 %v1793
    %2497 = vmatpush2.bf16.msra.mxu0 %v1792
    %2498 = vmatprep.subr.bf16.mxu0 %v1785
    %2499 = vmatpush2.bf16.msra.mxu0 %v1784
    %2500 = vmatprep.subr.bf16.mxu0 %v1777
    %2501 = vmatpush2.bf16.msra.mxu0 %v1776
    %2502 = vmatprep.subr.bf16.mxu0 %v1769
    %2503 = vmatpush2.bf16.msra.mxu0 %v1768
    %2504 = vmatprep.mubr.bf16.mxu0 %v121
    %2505 = vmatmul.mubr.bf16.gmra.mxu0 %v120
    %v2506 = vpop.f32.mrf.mxu0
    %v2507 = vadd.f32 %v515, %v2506
    %v2508 = vpop.f32.mrf.mxu0
    %v2509 = vadd.f32 %v519, %v2508
    %v2510 = vpop.f32.mrf.mxu0
    %v2511 = vpop.f32.mrf.mxu0
    %2512 = vdwg.mxu0
    %2513 = vmatprep.subr.bf16.mxu0 %v1889
    %2514 = vmatpush1.bf16.msra.mxu0 %v1888
    %2515 = vmatprep.subr.bf16.mxu0 %v1881
    %2516 = vmatpush1.bf16.msra.mxu0 %v1880
    %2517 = vmatprep.subr.bf16.mxu0 %v1873
    %2518 = vmatpush1.bf16.msra.mxu0 %v1872
    %2519 = vmatprep.subr.bf16.mxu0 %v1865
    %2520 = vmatpush1.bf16.msra.mxu0 %v1864
    %2521 = vmatprep.subr.bf16.mxu0 %v1857
    %2522 = vmatpush1.bf16.msra.mxu0 %v1856
    %2523 = vmatprep.subr.bf16.mxu0 %v1849
    %2524 = vmatpush1.bf16.msra.mxu0 %v1848
    %2525 = vmatprep.subr.bf16.mxu0 %v1841
    %2526 = vmatpush1.bf16.msra.mxu0 %v1840
    %2527 = vmatprep.subr.bf16.mxu0 %v1833
    %2528 = vmatpush1.bf16.msra.mxu0 %v1832
    %2529 = vmatprep.subr.bf16.mxu0 %v1953
    %2530 = vmatpush2.bf16.msra.mxu0 %v1952
    %2531 = vmatprep.subr.bf16.mxu0 %v1945
    %2532 = vmatpush2.bf16.msra.mxu0 %v1944
    %2533 = vmatprep.subr.bf16.mxu0 %v1937
    %2534 = vmatpush2.bf16.msra.mxu0 %v1936
    %2535 = vmatprep.subr.bf16.mxu0 %v1929
    %2536 = vmatpush2.bf16.msra.mxu0 %v1928
    %2537 = vmatprep.subr.bf16.mxu0 %v1921
    %2538 = vmatpush2.bf16.msra.mxu0 %v1920
    %2539 = vmatprep.subr.bf16.mxu0 %v1913
    %2540 = vmatpush2.bf16.msra.mxu0 %v1912
    %2541 = vmatprep.subr.bf16.mxu0 %v1905
    %2542 = vmatpush2.bf16.msra.mxu0 %v1904
    %2543 = vmatprep.subr.bf16.mxu0 %v1897
    %2544 = vmatpush2.bf16.msra.mxu0 %v1896
    %2545 = vmatprep.mubr.bf16.mxu0 %v123
    %2546 = vmatmul.mubr.bf16.gmra.mxu0 %v122
    %v2547 = vpop.f32.mrf.mxu0
    %v2548 = vadd.f32 %v2507, %v2547
    %v2549 = vpop.f32.mrf.mxu0
    %v2550 = vadd.f32 %v2509, %v2549
    %v2551 = vpop.f32.mrf.mxu0
    %v2552 = vpop.f32.mrf.mxu0
    %2553 = vdwg.mxu0
    %2554 = vmatprep.subr.bf16.mxu0 %v2017
    %2555 = vmatpush1.bf16.msra.mxu0 %v2016
    %2556 = vmatprep.subr.bf16.mxu0 %v2009
    %2557 = vmatpush1.bf16.msra.mxu0 %v2008
    %2558 = vmatprep.subr.bf16.mxu0 %v2001
    %2559 = vmatpush1.bf16.msra.mxu0 %v2000
    %2560 = vmatprep.subr.bf16.mxu0 %v1993
    %2561 = vmatpush1.bf16.msra.mxu0 %v1992
    %2562 = vmatprep.subr.bf16.mxu0 %v1985
    %2563 = vmatpush1.bf16.msra.mxu0 %v1984
    %2564 = vmatprep.subr.bf16.mxu0 %v1977
    %2565 = vmatpush1.bf16.msra.mxu0 %v1976
    %2566 = vmatprep.subr.bf16.mxu0 %v1969
    %2567 = vmatpush1.bf16.msra.mxu0 %v1968
    %2568 = vmatprep.subr.bf16.mxu0 %v1961
    %2569 = vmatpush1.bf16.msra.mxu0 %v1960
    %2570 = vmatprep.subr.bf16.mxu0 %v2081
    %2571 = vmatpush2.bf16.msra.mxu0 %v2080
    %2572 = vmatprep.subr.bf16.mxu0 %v2073
    %2573 = vmatpush2.bf16.msra.mxu0 %v2072
    %2574 = vmatprep.subr.bf16.mxu0 %v2065
    %2575 = vmatpush2.bf16.msra.mxu0 %v2064
    %2576 = vmatprep.subr.bf16.mxu0 %v2057
    %2577 = vmatpush2.bf16.msra.mxu0 %v2056
    %2578 = vmatprep.subr.bf16.mxu0 %v2049
    %2579 = vmatpush2.bf16.msra.mxu0 %v2048
    %2580 = vmatprep.subr.bf16.mxu0 %v2041
    %2581 = vmatpush2.bf16.msra.mxu0 %v2040
    %2582 = vmatprep.subr.bf16.mxu0 %v2033
    %2583 = vmatpush2.bf16.msra.mxu0 %v2032
    %2584 = vmatprep.subr.bf16.mxu0 %v2025
    %2585 = vmatpush2.bf16.msra.mxu0 %v2024
    %2586 = vmatprep.mubr.bf16.mxu0 %v125
    %2587 = vmatmul.mubr.bf16.gmra.mxu0 %v124
    %v2588 = vpop.f32.mrf.mxu0
    %v2589 = vadd.f32 %v2548, %v2588
    %v2590 = vpop.f32.mrf.mxu0
    %v2591 = vadd.f32 %v2550, %v2590
    %v2592 = vpop.f32.mrf.mxu0
    %v2593 = vpop.f32.mrf.mxu0
    %2594 = vdwg.mxu0
    %2595 = vmatprep.subr.bf16.mxu0 %v1763
    %2596 = vmatpush1.bf16.msra.mxu0 %v1762
    %2597 = vmatprep.subr.bf16.mxu0 %v1755
    %2598 = vmatpush1.bf16.msra.mxu0 %v1754
    %2599 = vmatprep.subr.bf16.mxu0 %v1747
    %2600 = vmatpush1.bf16.msra.mxu0 %v1746
    %2601 = vmatprep.subr.bf16.mxu0 %v1739
    %2602 = vmatpush1.bf16.msra.mxu0 %v1738
    %2603 = vmatprep.subr.bf16.mxu0 %v1731
    %2604 = vmatpush1.bf16.msra.mxu0 %v1730
    %2605 = vmatprep.subr.bf16.mxu0 %v1723
    %2606 = vmatpush1.bf16.msra.mxu0 %v1722
    %2607 = vmatprep.subr.bf16.mxu0 %v1715
    %2608 = vmatpush1.bf16.msra.mxu0 %v1714
    %2609 = vmatprep.subr.bf16.mxu0 %v1707
    %2610 = vmatpush1.bf16.msra.mxu0 %v1706
    %2611 = vmatprep.subr.bf16.mxu0 %v1827
    %2612 = vmatpush2.bf16.msra.mxu0 %v1826
    %2613 = vmatprep.subr.bf16.mxu0 %v1819
    %2614 = vmatpush2.bf16.msra.mxu0 %v1818
    %2615 = vmatprep.subr.bf16.mxu0 %v1811
    %2616 = vmatpush2.bf16.msra.mxu0 %v1810
    %2617 = vmatprep.subr.bf16.mxu0 %v1803
    %2618 = vmatpush2.bf16.msra.mxu0 %v1802
    %2619 = vmatprep.subr.bf16.mxu0 %v1795
    %2620 = vmatpush2.bf16.msra.mxu0 %v1794
    %2621 = vmatprep.subr.bf16.mxu0 %v1787
    %2622 = vmatpush2.bf16.msra.mxu0 %v1786
    %2623 = vmatprep.subr.bf16.mxu0 %v1779
    %2624 = vmatpush2.bf16.msra.mxu0 %v1778
    %2625 = vmatprep.subr.bf16.mxu0 %v1771
    %2626 = vmatpush2.bf16.msra.mxu0 %v1770
    %2627 = vmatprep.mubr.bf16.mxu0 %v121
    %2628 = vmatmul.mubr.bf16.gmra.mxu0 %v120
    %v2629 = vpop.f32.mrf.mxu0
    %v2630 = vadd.f32 %v523, %v2629
    %v2631 = vpop.f32.mrf.mxu0
    %v2632 = vadd.f32 %v527, %v2631
    %v2633 = vpop.f32.mrf.mxu0
    %v2634 = vpop.f32.mrf.mxu0
    %2635 = vdwg.mxu0
    %2636 = vmatprep.subr.bf16.mxu0 %v1891
    %2637 = vmatpush1.bf16.msra.mxu0 %v1890
    %2638 = vmatprep.subr.bf16.mxu0 %v1883
    %2639 = vmatpush1.bf16.msra.mxu0 %v1882
    %2640 = vmatprep.subr.bf16.mxu0 %v1875
    %2641 = vmatpush1.bf16.msra.mxu0 %v1874
    %2642 = vmatprep.subr.bf16.mxu0 %v1867
    %2643 = vmatpush1.bf16.msra.mxu0 %v1866
    %2644 = vmatprep.subr.bf16.mxu0 %v1859
    %2645 = vmatpush1.bf16.msra.mxu0 %v1858
    %2646 = vmatprep.subr.bf16.mxu0 %v1851
    %2647 = vmatpush1.bf16.msra.mxu0 %v1850
    %2648 = vmatprep.subr.bf16.mxu0 %v1843
    %2649 = vmatpush1.bf16.msra.mxu0 %v1842
    %2650 = vmatprep.subr.bf16.mxu0 %v1835
    %2651 = vmatpush1.bf16.msra.mxu0 %v1834
    %2652 = vmatprep.subr.bf16.mxu0 %v1955
    %2653 = vmatpush2.bf16.msra.mxu0 %v1954
    %2654 = vmatprep.subr.bf16.mxu0 %v1947
    %2655 = vmatpush2.bf16.msra.mxu0 %v1946
    %2656 = vmatprep.subr.bf16.mxu0 %v1939
    %2657 = vmatpush2.bf16.msra.mxu0 %v1938
    %2658 = vmatprep.subr.bf16.mxu0 %v1931
    %2659 = vmatpush2.bf16.msra.mxu0 %v1930
    %2660 = vmatprep.subr.bf16.mxu0 %v1923
    %2661 = vmatpush2.bf16.msra.mxu0 %v1922
    %2662 = vmatprep.subr.bf16.mxu0 %v1915
    %2663 = vmatpush2.bf16.msra.mxu0 %v1914
    %2664 = vmatprep.subr.bf16.mxu0 %v1907
    %2665 = vmatpush2.bf16.msra.mxu0 %v1906
    %2666 = vmatprep.subr.bf16.mxu0 %v1899
    %2667 = vmatpush2.bf16.msra.mxu0 %v1898
    %2668 = vmatprep.mubr.bf16.mxu0 %v123
    %2669 = vmatmul.mubr.bf16.gmra.mxu0 %v122
    %v2670 = vpop.f32.mrf.mxu0
    %v2671 = vadd.f32 %v2630, %v2670
    %v2672 = vpop.f32.mrf.mxu0
    %v2673 = vadd.f32 %v2632, %v2672
    %v2674 = vpop.f32.mrf.mxu0
    %v2675 = vpop.f32.mrf.mxu0
    %2676 = vdwg.mxu0
    %2677 = vmatprep.subr.bf16.mxu0 %v2019
    %2678 = vmatpush1.bf16.msra.mxu0 %v2018
    %2679 = vmatprep.subr.bf16.mxu0 %v2011
    %2680 = vmatpush1.bf16.msra.mxu0 %v2010
    %2681 = vmatprep.subr.bf16.mxu0 %v2003
    %2682 = vmatpush1.bf16.msra.mxu0 %v2002
    %2683 = vmatprep.subr.bf16.mxu0 %v1995
    %2684 = vmatpush1.bf16.msra.mxu0 %v1994
    %2685 = vmatprep.subr.bf16.mxu0 %v1987
    %2686 = vmatpush1.bf16.msra.mxu0 %v1986
    %2687 = vmatprep.subr.bf16.mxu0 %v1979
    %2688 = vmatpush1.bf16.msra.mxu0 %v1978
    %2689 = vmatprep.subr.bf16.mxu0 %v1971
    %2690 = vmatpush1.bf16.msra.mxu0 %v1970
    %2691 = vmatprep.subr.bf16.mxu0 %v1963
    %2692 = vmatpush1.bf16.msra.mxu0 %v1962
    %2693 = vmatprep.subr.bf16.mxu0 %v2083
    %2694 = vmatpush2.bf16.msra.mxu0 %v2082
    %2695 = vmatprep.subr.bf16.mxu0 %v2075
    %2696 = vmatpush2.bf16.msra.mxu0 %v2074
    %2697 = vmatprep.subr.bf16.mxu0 %v2067
    %2698 = vmatpush2.bf16.msra.mxu0 %v2066
    %2699 = vmatprep.subr.bf16.mxu0 %v2059
    %2700 = vmatpush2.bf16.msra.mxu0 %v2058
    %2701 = vmatprep.subr.bf16.mxu0 %v2051
    %2702 = vmatpush2.bf16.msra.mxu0 %v2050
    %2703 = vmatprep.subr.bf16.mxu0 %v2043
    %2704 = vmatpush2.bf16.msra.mxu0 %v2042
    %2705 = vmatprep.subr.bf16.mxu0 %v2035
    %2706 = vmatpush2.bf16.msra.mxu0 %v2034
    %2707 = vmatprep.subr.bf16.mxu0 %v2027
    %2708 = vmatpush2.bf16.msra.mxu0 %v2026
    %2709 = vmatprep.mubr.bf16.mxu0 %v125
    %2710 = vmatmul.mubr.bf16.gmra.mxu0 %v124
    %v2711 = vpop.f32.mrf.mxu0
    %v2712 = vadd.f32 %v2671, %v2711
    %v2713 = vpop.f32.mrf.mxu0
    %v2714 = vadd.f32 %v2673, %v2713
    %v2715 = vpop.f32.mrf.mxu0
    %v2716 = vpop.f32.mrf.mxu0
    %2717 = vdwg.mxu0
    %2718 = vmatprep.subr.bf16.mxu0 %v1765
    %2719 = vmatpush1.bf16.msra.mxu0 %v1764
    %2720 = vmatprep.subr.bf16.mxu0 %v1757
    %2721 = vmatpush1.bf16.msra.mxu0 %v1756
    %2722 = vmatprep.subr.bf16.mxu0 %v1749
    %2723 = vmatpush1.bf16.msra.mxu0 %v1748
    %2724 = vmatprep.subr.bf16.mxu0 %v1741
    %2725 = vmatpush1.bf16.msra.mxu0 %v1740
    %2726 = vmatprep.subr.bf16.mxu0 %v1733
    %2727 = vmatpush1.bf16.msra.mxu0 %v1732
    %2728 = vmatprep.subr.bf16.mxu0 %v1725
    %2729 = vmatpush1.bf16.msra.mxu0 %v1724
    %2730 = vmatprep.subr.bf16.mxu0 %v1717
    %2731 = vmatpush1.bf16.msra.mxu0 %v1716
    %2732 = vmatprep.subr.bf16.mxu0 %v1709
    %2733 = vmatpush1.bf16.msra.mxu0 %v1708
    %2734 = vmatprep.subr.bf16.mxu0 %v1829
    %2735 = vmatpush2.bf16.msra.mxu0 %v1828
    %2736 = vmatprep.subr.bf16.mxu0 %v1821
    %2737 = vmatpush2.bf16.msra.mxu0 %v1820
    %2738 = vmatprep.subr.bf16.mxu0 %v1813
    %2739 = vmatpush2.bf16.msra.mxu0 %v1812
    %2740 = vmatprep.subr.bf16.mxu0 %v1805
    %2741 = vmatpush2.bf16.msra.mxu0 %v1804
    %2742 = vmatprep.subr.bf16.mxu0 %v1797
    %2743 = vmatpush2.bf16.msra.mxu0 %v1796
    %2744 = vmatprep.subr.bf16.mxu0 %v1789
    %2745 = vmatpush2.bf16.msra.mxu0 %v1788
    %2746 = vmatprep.subr.bf16.mxu0 %v1781
    %2747 = vmatpush2.bf16.msra.mxu0 %v1780
    %2748 = vmatprep.subr.bf16.mxu0 %v1773
    %2749 = vmatpush2.bf16.msra.mxu0 %v1772
    %2750 = vmatprep.mubr.bf16.mxu0 %v121
    %2751 = vmatmul.mubr.bf16.gmra.mxu0 %v120
    %v2752 = vpop.f32.mrf.mxu0
    %v2753 = vadd.f32 %v531, %v2752
    %v2754 = vpop.f32.mrf.mxu0
    %v2755 = vadd.f32 %v535, %v2754
    %v2756 = vpop.f32.mrf.mxu0
    %v2757 = vpop.f32.mrf.mxu0
    %2758 = vdwg.mxu0
    %2759 = vmatprep.subr.bf16.mxu0 %v1893
    %2760 = vmatpush1.bf16.msra.mxu0 %v1892
    %2761 = vmatprep.subr.bf16.mxu0 %v1885
    %2762 = vmatpush1.bf16.msra.mxu0 %v1884
    %2763 = vmatprep.subr.bf16.mxu0 %v1877
    %2764 = vmatpush1.bf16.msra.mxu0 %v1876
    %2765 = vmatprep.subr.bf16.mxu0 %v1869
    %2766 = vmatpush1.bf16.msra.mxu0 %v1868
    %2767 = vmatprep.subr.bf16.mxu0 %v1861
    %2768 = vmatpush1.bf16.msra.mxu0 %v1860
    %2769 = vmatprep.subr.bf16.mxu0 %v1853
    %2770 = vmatpush1.bf16.msra.mxu0 %v1852
    %2771 = vmatprep.subr.bf16.mxu0 %v1845
    %2772 = vmatpush1.bf16.msra.mxu0 %v1844
    %2773 = vmatprep.subr.bf16.mxu0 %v1837
    %2774 = vmatpush1.bf16.msra.mxu0 %v1836
    %2775 = vmatprep.subr.bf16.mxu0 %v1957
    %2776 = vmatpush2.bf16.msra.mxu0 %v1956
    %2777 = vmatprep.subr.bf16.mxu0 %v1949
    %2778 = vmatpush2.bf16.msra.mxu0 %v1948
    %2779 = vmatprep.subr.bf16.mxu0 %v1941
    %2780 = vmatpush2.bf16.msra.mxu0 %v1940
    %2781 = vmatprep.subr.bf16.mxu0 %v1933
    %2782 = vmatpush2.bf16.msra.mxu0 %v1932
    %2783 = vmatprep.subr.bf16.mxu0 %v1925
    %2784 = vmatpush2.bf16.msra.mxu0 %v1924
    %2785 = vmatprep.subr.bf16.mxu0 %v1917
    %2786 = vmatpush2.bf16.msra.mxu0 %v1916
    %2787 = vmatprep.subr.bf16.mxu0 %v1909
    %2788 = vmatpush2.bf16.msra.mxu0 %v1908
    %2789 = vmatprep.subr.bf16.mxu0 %v1901
    %2790 = vmatpush2.bf16.msra.mxu0 %v1900
    %2791 = vmatprep.mubr.bf16.mxu0 %v123
    %2792 = vmatmul.mubr.bf16.gmra.mxu0 %v122
    %v2793 = vpop.f32.mrf.mxu0
    %v2794 = vadd.f32 %v2753, %v2793
    %v2795 = vpop.f32.mrf.mxu0
    %v2796 = vadd.f32 %v2755, %v2795
    %v2797 = vpop.f32.mrf.mxu0
    %v2798 = vpop.f32.mrf.mxu0
    %2799 = vdwg.mxu0
    %2800 = vmatprep.subr.bf16.mxu0 %v2021
    %2801 = vmatpush1.bf16.msra.mxu0 %v2020
    %2802 = vmatprep.subr.bf16.mxu0 %v2013
    %2803 = vmatpush1.bf16.msra.mxu0 %v2012
    %2804 = vmatprep.subr.bf16.mxu0 %v2005
    %2805 = vmatpush1.bf16.msra.mxu0 %v2004
    %2806 = vmatprep.subr.bf16.mxu0 %v1997
    %2807 = vmatpush1.bf16.msra.mxu0 %v1996
    %2808 = vmatprep.subr.bf16.mxu0 %v1989
    %2809 = vmatpush1.bf16.msra.mxu0 %v1988
    %2810 = vmatprep.subr.bf16.mxu0 %v1981
    %2811 = vmatpush1.bf16.msra.mxu0 %v1980
    %2812 = vmatprep.subr.bf16.mxu0 %v1973
    %2813 = vmatpush1.bf16.msra.mxu0 %v1972
    %2814 = vmatprep.subr.bf16.mxu0 %v1965
    %2815 = vmatpush1.bf16.msra.mxu0 %v1964
    %2816 = vmatprep.subr.bf16.mxu0 %v2085
    %2817 = vmatpush2.bf16.msra.mxu0 %v2084
    %2818 = vmatprep.subr.bf16.mxu0 %v2077
    %2819 = vmatpush2.bf16.msra.mxu0 %v2076
    %2820 = vmatprep.subr.bf16.mxu0 %v2069
    %2821 = vmatpush2.bf16.msra.mxu0 %v2068
    %2822 = vmatprep.subr.bf16.mxu0 %v2061
    %2823 = vmatpush2.bf16.msra.mxu0 %v2060
    %2824 = vmatprep.subr.bf16.mxu0 %v2053
    %2825 = vmatpush2.bf16.msra.mxu0 %v2052
    %2826 = vmatprep.subr.bf16.mxu0 %v2045
    %2827 = vmatpush2.bf16.msra.mxu0 %v2044
    %2828 = vmatprep.subr.bf16.mxu0 %v2037
    %2829 = vmatpush2.bf16.msra.mxu0 %v2036
    %2830 = vmatprep.subr.bf16.mxu0 %v2029
    %2831 = vmatpush2.bf16.msra.mxu0 %v2028
    %2832 = vmatprep.mubr.bf16.mxu0 %v125
    %2833 = vmatmul.mubr.bf16.gmra.mxu0 %v124
    %v2834 = vpop.f32.mrf.mxu0
    %v2835 = vadd.f32 %v2794, %v2834
    %v2836 = vpop.f32.mrf.mxu0
    %v2837 = vadd.f32 %v2796, %v2836
    %v2838 = vpop.f32.mrf.mxu0
    %v2839 = vpop.f32.mrf.mxu0
    %2840 = vdwg.mxu0
    %2841 = vmatprep.subr.bf16.mxu0 %v1767
    %2842 = vmatpush1.bf16.msra.mxu0 %v1766
    %2843 = vmatprep.subr.bf16.mxu0 %v1759
    %2844 = vmatpush1.bf16.msra.mxu0 %v1758
    %2845 = vmatprep.subr.bf16.mxu0 %v1751
    %2846 = vmatpush1.bf16.msra.mxu0 %v1750
    %2847 = vmatprep.subr.bf16.mxu0 %v1743
    %2848 = vmatpush1.bf16.msra.mxu0 %v1742
    %2849 = vmatprep.subr.bf16.mxu0 %v1735
    %2850 = vmatpush1.bf16.msra.mxu0 %v1734
    %2851 = vmatprep.subr.bf16.mxu0 %v1727
    %2852 = vmatpush1.bf16.msra.mxu0 %v1726
    %2853 = vmatprep.subr.bf16.mxu0 %v1719
    %2854 = vmatpush1.bf16.msra.mxu0 %v1718
    %2855 = vmatprep.subr.bf16.mxu0 %v1711
    %2856 = vmatpush1.bf16.msra.mxu0 %v1710
    %2857 = vmatprep.subr.bf16.mxu0 %v1831
    %2858 = vmatpush2.bf16.msra.mxu0 %v1830
    %2859 = vmatprep.subr.bf16.mxu0 %v1823
    %2860 = vmatpush2.bf16.msra.mxu0 %v1822
    %2861 = vmatprep.subr.bf16.mxu0 %v1815
    %2862 = vmatpush2.bf16.msra.mxu0 %v1814
    %2863 = vmatprep.subr.bf16.mxu0 %v1807
    %2864 = vmatpush2.bf16.msra.mxu0 %v1806
    %2865 = vmatprep.subr.bf16.mxu0 %v1799
    %2866 = vmatpush2.bf16.msra.mxu0 %v1798
    %2867 = vmatprep.subr.bf16.mxu0 %v1791
    %2868 = vmatpush2.bf16.msra.mxu0 %v1790
    %2869 = vmatprep.subr.bf16.mxu0 %v1783
    %2870 = vmatpush2.bf16.msra.mxu0 %v1782
    %2871 = vmatprep.subr.bf16.mxu0 %v1775
    %2872 = vmatpush2.bf16.msra.mxu0 %v1774
    %2873 = vmatprep.mubr.bf16.mxu0 %v121
    %2874 = vmatmul.mubr.bf16.gmra.mxu0 %v120
    %v2875 = vpop.f32.mrf.mxu0
    %v2876 = vadd.f32 %v539, %v2875
    %v2877 = vpop.f32.mrf.mxu0
    %v2878 = vadd.f32 %v543, %v2877
    %v2879 = vpop.f32.mrf.mxu0
    %v2880 = vpop.f32.mrf.mxu0
    %2881 = vdwg.mxu0
    %2882 = vmatprep.subr.bf16.mxu0 %v1895
    %2883 = vmatpush1.bf16.msra.mxu0 %v1894
    %2884 = vmatprep.subr.bf16.mxu0 %v1887
    %2885 = vmatpush1.bf16.msra.mxu0 %v1886
    %2886 = vmatprep.subr.bf16.mxu0 %v1879
    %2887 = vmatpush1.bf16.msra.mxu0 %v1878
    %2888 = vmatprep.subr.bf16.mxu0 %v1871
    %2889 = vmatpush1.bf16.msra.mxu0 %v1870
    %2890 = vmatprep.subr.bf16.mxu0 %v1863
    %2891 = vmatpush1.bf16.msra.mxu0 %v1862
    %2892 = vmatprep.subr.bf16.mxu0 %v1855
    %2893 = vmatpush1.bf16.msra.mxu0 %v1854
    %2894 = vmatprep.subr.bf16.mxu0 %v1847
    %2895 = vmatpush1.bf16.msra.mxu0 %v1846
    %2896 = vmatprep.subr.bf16.mxu0 %v1839
    %2897 = vmatpush1.bf16.msra.mxu0 %v1838
    %2898 = vmatprep.subr.bf16.mxu0 %v1959
    %2899 = vmatpush2.bf16.msra.mxu0 %v1958
    %2900 = vmatprep.subr.bf16.mxu0 %v1951
    %2901 = vmatpush2.bf16.msra.mxu0 %v1950
    %2902 = vmatprep.subr.bf16.mxu0 %v1943
    %2903 = vmatpush2.bf16.msra.mxu0 %v1942
    %2904 = vmatprep.subr.bf16.mxu0 %v1935
    %2905 = vmatpush2.bf16.msra.mxu0 %v1934
    %2906 = vmatprep.subr.bf16.mxu0 %v1927
    %2907 = vmatpush2.bf16.msra.mxu0 %v1926
    %2908 = vmatprep.subr.bf16.mxu0 %v1919
    %2909 = vmatpush2.bf16.msra.mxu0 %v1918
    %2910 = vmatprep.subr.bf16.mxu0 %v1911
    %2911 = vmatpush2.bf16.msra.mxu0 %v1910
    %2912 = vmatprep.subr.bf16.mxu0 %v1903
    %2913 = vmatpush2.bf16.msra.mxu0 %v1902
    %2914 = vmatprep.mubr.bf16.mxu0 %v123
    %2915 = vmatmul.mubr.bf16.gmra.mxu0 %v122
    %v2916 = vpop.f32.mrf.mxu0
    %v2917 = vadd.f32 %v2876, %v2916
    %v2918 = vpop.f32.mrf.mxu0
    %v2919 = vadd.f32 %v2878, %v2918
    %v2920 = vpop.f32.mrf.mxu0
    %v2921 = vpop.f32.mrf.mxu0
    %2922 = vdwg.mxu0
    %2923 = vmatprep.subr.bf16.mxu0 %v2023
    %2924 = vmatpush1.bf16.msra.mxu0 %v2022
    %2925 = vmatprep.subr.bf16.mxu0 %v2015
    %2926 = vmatpush1.bf16.msra.mxu0 %v2014
    %2927 = vmatprep.subr.bf16.mxu0 %v2007
    %2928 = vmatpush1.bf16.msra.mxu0 %v2006
    %2929 = vmatprep.subr.bf16.mxu0 %v1999
    %2930 = vmatpush1.bf16.msra.mxu0 %v1998
    %2931 = vmatprep.subr.bf16.mxu0 %v1991
    %2932 = vmatpush1.bf16.msra.mxu0 %v1990
    %2933 = vmatprep.subr.bf16.mxu0 %v1983
    %2934 = vmatpush1.bf16.msra.mxu0 %v1982
    %2935 = vmatprep.subr.bf16.mxu0 %v1975
    %2936 = vmatpush1.bf16.msra.mxu0 %v1974
    %2937 = vmatprep.subr.bf16.mxu0 %v1967
    %2938 = vmatpush1.bf16.msra.mxu0 %v1966
    %2939 = vmatprep.subr.bf16.mxu0 %v2087
    %2940 = vmatpush2.bf16.msra.mxu0 %v2086
    %2941 = vmatprep.subr.bf16.mxu0 %v2079
    %2942 = vmatpush2.bf16.msra.mxu0 %v2078
    %2943 = vmatprep.subr.bf16.mxu0 %v2071
    %2944 = vmatpush2.bf16.msra.mxu0 %v2070
    %2945 = vmatprep.subr.bf16.mxu0 %v2063
    %2946 = vmatpush2.bf16.msra.mxu0 %v2062
    %2947 = vmatprep.subr.bf16.mxu0 %v2055
    %2948 = vmatpush2.bf16.msra.mxu0 %v2054
    %2949 = vmatprep.subr.bf16.mxu0 %v2047
    %2950 = vmatpush2.bf16.msra.mxu0 %v2046
    %2951 = vmatprep.subr.bf16.mxu0 %v2039
    %2952 = vmatpush2.bf16.msra.mxu0 %v2038
    %2953 = vmatprep.subr.bf16.mxu0 %v2031
    %2954 = vmatpush2.bf16.msra.mxu0 %v2030
    %2955 = vmatprep.mubr.bf16.mxu0 %v125
    %2956 = vmatmul.mubr.bf16.gmra.mxu0 %v124
    %v2957 = vpop.f32.mrf.mxu0
    %v2958 = vadd.f32 %v2917, %v2957
    %v2959 = vpop.f32.mrf.mxu0
    %v2960 = vadd.f32 %v2919, %v2959
    %v2961 = vpop.f32.mrf.mxu0
    %v2962 = vpop.f32.mrf.mxu0
    %2963 = vdwg.mxu0
    %v2964 = vsub.f32 0.0, %v2589
    %v2965 = vsub.f32 0.0, %v2591
    %v2966 = vsub.f32 0.0, %v2712
    %v2967 = vsub.f32 0.0, %v2714
    %v2968 = vsub.f32 0.0, %v2835
    %v2969 = vsub.f32 0.0, %v2837
    %v2970 = vsub.f32 0.0, %v2958
    %v2971 = vsub.f32 0.0, %v2960
    %v2972 = vmul.f32 %v2964, 1.442695
    %v2973 = vpow.pop %v2972
    %v2974 = vmul.f32 %v2965, 1.442695
    %v2975 = vpow.pop %v2974
    %v2976 = vmul.f32 %v2966, 1.442695
    %v2977 = vpow.pop %v2976
    %v2978 = vmul.f32 %v2967, 1.442695
    %v2979 = vpow.pop %v2978
    %v2980 = vmul.f32 %v2968, 1.442695
    %v2981 = vpow.pop %v2980
    %v2982 = vmul.f32 %v2969, 1.442695
    %v2983 = vpow.pop %v2982
    %v2984 = vmul.f32 %v2970, 1.442695
    %v2985 = vpow.pop %v2984
    %v2986 = vmul.f32 %v2971, 1.442695
    %v2987 = vpow.pop %v2986
    %v2988 = vadd.f32 %v2973, 1.0
    %v2989 = vadd.f32 %v2975, 1.0
    %v2990 = vadd.f32 %v2977, 1.0
    %v2991 = vadd.f32 %v2979, 1.0
    %v2992 = vadd.f32 %v2981, 1.0
    %v2993 = vadd.f32 %v2983, 1.0
    %v2994 = vadd.f32 %v2985, 1.0
    %v2995 = vadd.f32 %v2987, 1.0
    %v2996 = vrcp.pop %v2988
    %v2997 = vrcp.pop %v2989
    %v2998 = vrcp.pop %v2990
    %v2999 = vrcp.pop %v2991
    %v3000 = vrcp.pop %v2992
    %v3001 = vrcp.pop %v2993
    %v3002 = vrcp.pop %v2994
    %v3003 = vrcp.pop %v2995
    %v3004 = vmul.f32 %v2589, %v2996
    %v3005 = vmul.f32 %v2591, %v2997
    %v3006 = vmul.f32 %v2712, %v2998
    %v3007 = vmul.f32 %v2714, %v2999
    %v3008 = vmul.f32 %v2835, %v3000
    %v3009 = vmul.f32 %v2837, %v3001
    %v3010 = vmul.f32 %v2958, %v3002
    %v3011 = vmul.f32 %v2960, %v3003
    %v3012 = vpack.c.bf16 %v3004, %v3004
    %v3013 = vpack.c.bf16 %v3005, %v3005
    %v3014 = vpack.c.bf16 %v3006, %v3006
    %v3015 = vpack.c.bf16 %v3007, %v3007
    %v3016 = vpack.c.bf16 %v3008, %v3008
    %v3017 = vpack.c.bf16 %v3009, %v3009
    %v3018 = vpack.c.bf16 %v3010, %v3010
    %v3019 = vpack.c.bf16 %v3011, %v3011
    %v3020 = vld [vmem:[#allocation2] sm:$0xff]
    %v3021 = vld [vmem:[#allocation2 + $0x8] sm:$0xff]
    %v3022 = vld [vmem:[#allocation2 + $0x10] sm:$0xff]
    %v3023 = vld [vmem:[#allocation2 + $0x18] sm:$0xff]
    %v3024 = vld [vmem:[#allocation2 + $0x20] sm:$0xff]
    %v3025 = vld [vmem:[#allocation2 + $0x28] sm:$0xff]
    %v3026 = vld [vmem:[#allocation2 + $0x30] sm:$0xff]
    %v3027 = vld [vmem:[#allocation2 + $0x38] sm:$0xff]
    %v3028 = vld [vmem:[#allocation2 + $0x40] sm:$0xff]
    %v3029 = vld [vmem:[#allocation2 + $0x48] sm:$0xff]
    %v3030 = vld [vmem:[#allocation2 + $0x50] sm:$0xff]
    %v3031 = vld [vmem:[#allocation2 + $0x58] sm:$0xff]
    %v3032 = vld [vmem:[#allocation2 + $0x60] sm:$0xff]
    %v3033 = vld [vmem:[#allocation2 + $0x68] sm:$0xff]
    %v3034 = vld [vmem:[#allocation2 + $0x70] sm:$0xff]
    %v3035 = vld [vmem:[#allocation2 + $0x78] sm:$0xff]
    %v3036 = vld [vmem:[#allocation2 + $0x80] sm:$0xff]
    %v3037 = vld [vmem:[#allocation2 + $0x88] sm:$0xff]
    %v3038 = vld [vmem:[#allocation2 + $0x90] sm:$0xff]
    %v3039 = vld [vmem:[#allocation2 + $0x98] sm:$0xff]
    %v3040 = vld [vmem:[#allocation2 + $0xa0] sm:$0xff]
    %v3041 = vld [vmem:[#allocation2 + $0xa8] sm:$0xff]
    %v3042 = vld [vmem:[#allocation2 + $0xb0] sm:$0xff]
    %v3043 = vld [vmem:[#allocation2 + $0xb8] sm:$0xff]
    %v3044 = vld [vmem:[#allocation2 + $0xc0] sm:$0xff]
    %v3045 = vld [vmem:[#allocation2 + $0xc8] sm:$0xff]
    %v3046 = vld [vmem:[#allocation2 + $0xd0] sm:$0xff]
    %v3047 = vld [vmem:[#allocation2 + $0xd8] sm:$0xff]
    %v3048 = vld [vmem:[#allocation2 + $0xe0] sm:$0xff]
    %v3049 = vld [vmem:[#allocation2 + $0xe8] sm:$0xff]
    %v3050 = vld [vmem:[#allocation2 + $0xf0] sm:$0xff]
    %v3051 = vld [vmem:[#allocation2 + $0xf8] sm:$0xff]
    %v3052 = vld [vmem:[#allocation2 + $0x100] sm:$0xff]
    %v3053 = vld [vmem:[#allocation2 + $0x108] sm:$0xff]
    %v3054 = vld [vmem:[#allocation2 + $0x110] sm:$0xff]
    %v3055 = vld [vmem:[#allocation2 + $0x118] sm:$0xff]
    %v3056 = vld [vmem:[#allocation2 + $0x120] sm:$0xff]
    %v3057 = vld [vmem:[#allocation2 + $0x128] sm:$0xff]
    %v3058 = vld [vmem:[#allocation2 + $0x130] sm:$0xff]
    %v3059 = vld [vmem:[#allocation2 + $0x138] sm:$0xff]
    %v3060 = vld [vmem:[#allocation2 + $0x140] sm:$0xff]
    %v3061 = vld [vmem:[#allocation2 + $0x148] sm:$0xff]
    %v3062 = vld [vmem:[#allocation2 + $0x150] sm:$0xff]
    %v3063 = vld [vmem:[#allocation2 + $0x158] sm:$0xff]
    %v3064 = vld [vmem:[#allocation2 + $0x160] sm:$0xff]
    %v3065 = vld [vmem:[#allocation2 + $0x168] sm:$0xff]
    %v3066 = vld [vmem:[#allocation2 + $0x170] sm:$0xff]
    %v3067 = vld [vmem:[#allocation2 + $0x178] sm:$0xff]
    %v3068 = vld [vmem:[#allocation2 + $0x180] sm:$0xff]
    %v3069 = vld [vmem:[#allocation2 + $0x188] sm:$0xff]
    %v3070 = vld [vmem:[#allocation2 + $0x190] sm:$0xff]
    %v3071 = vld [vmem:[#allocation2 + $0x198] sm:$0xff]
    %v3072 = vld [vmem:[#allocation2 + $0x1a0] sm:$0xff]
    %v3073 = vld [vmem:[#allocation2 + $0x1a8] sm:$0xff]
    %v3074 = vld [vmem:[#allocation2 + $0x1b0] sm:$0xff]
    %v3075 = vld [vmem:[#allocation2 + $0x1b8] sm:$0xff]
    %v3076 = vld [vmem:[#allocation2 + $0x1c0] sm:$0xff]
    %v3077 = vld [vmem:[#allocation2 + $0x1c8] sm:$0xff]
    %v3078 = vld [vmem:[#allocation2 + $0x1d0] sm:$0xff]
    %v3079 = vld [vmem:[#allocation2 + $0x1d8] sm:$0xff]
    %v3080 = vld [vmem:[#allocation2 + $0x1e0] sm:$0xff]
    %v3081 = vld [vmem:[#allocation2 + $0x1e8] sm:$0xff]
    %v3082 = vld [vmem:[#allocation2 + $0x1f0] sm:$0xff]
    %v3083 = vld [vmem:[#allocation2 + $0x1f8] sm:$0xff]
    %v3084 = vld [vmem:[#allocation2 + $0x200] sm:$0xff]
    %v3085 = vld [vmem:[#allocation2 + $0x208] sm:$0xff]
    %v3086 = vld [vmem:[#allocation2 + $0x210] sm:$0xff]
    %v3087 = vld [vmem:[#allocation2 + $0x218] sm:$0xff]
    %v3088 = vld [vmem:[#allocation2 + $0x220] sm:$0xff]
    %v3089 = vld [vmem:[#allocation2 + $0x228] sm:$0xff]
    %v3090 = vld [vmem:[#allocation2 + $0x230] sm:$0xff]
    %v3091 = vld [vmem:[#allocation2 + $0x238] sm:$0xff]
    %v3092 = vld [vmem:[#allocation2 + $0x240] sm:$0xff]
    %v3093 = vld [vmem:[#allocation2 + $0x248] sm:$0xff]
    %v3094 = vld [vmem:[#allocation2 + $0x250] sm:$0xff]
    %v3095 = vld [vmem:[#allocation2 + $0x258] sm:$0xff]
    %v3096 = vld [vmem:[#allocation2 + $0x260] sm:$0xff]
    %v3097 = vld [vmem:[#allocation2 + $0x268] sm:$0xff]
    %v3098 = vld [vmem:[#allocation2 + $0x270] sm:$0xff]
    %v3099 = vld [vmem:[#allocation2 + $0x278] sm:$0xff]
    %v3100 = vld [vmem:[#allocation2 + $0x280] sm:$0xff]
    %v3101 = vld [vmem:[#allocation2 + $0x288] sm:$0xff]
    %v3102 = vld [vmem:[#allocation2 + $0x290] sm:$0xff]
    %v3103 = vld [vmem:[#allocation2 + $0x298] sm:$0xff]
    %v3104 = vld [vmem:[#allocation2 + $0x2a0] sm:$0xff]
    %v3105 = vld [vmem:[#allocation2 + $0x2a8] sm:$0xff]
    %v3106 = vld [vmem:[#allocation2 + $0x2b0] sm:$0xff]
    %v3107 = vld [vmem:[#allocation2 + $0x2b8] sm:$0xff]
    %v3108 = vld [vmem:[#allocation2 + $0x2c0] sm:$0xff]
    %v3109 = vld [vmem:[#allocation2 + $0x2c8] sm:$0xff]
    %v3110 = vld [vmem:[#allocation2 + $0x2d0] sm:$0xff]
    %v3111 = vld [vmem:[#allocation2 + $0x2d8] sm:$0xff]
    %v3112 = vld [vmem:[#allocation2 + $0x2e0] sm:$0xff]
    %v3113 = vld [vmem:[#allocation2 + $0x2e8] sm:$0xff]
    %v3114 = vld [vmem:[#allocation2 + $0x2f0] sm:$0xff]
    %v3115 = vld [vmem:[#allocation2 + $0x2f8] sm:$0xff]
    %v3116 = vld [vmem:[#allocation2 + $0x300] sm:$0xff]
    %v3117 = vld [vmem:[#allocation2 + $0x308] sm:$0xff]
    %v3118 = vld [vmem:[#allocation2 + $0x310] sm:$0xff]
    %v3119 = vld [vmem:[#allocation2 + $0x318] sm:$0xff]
    %v3120 = vld [vmem:[#allocation2 + $0x320] sm:$0xff]
    %v3121 = vld [vmem:[#allocation2 + $0x328] sm:$0xff]
    %v3122 = vld [vmem:[#allocation2 + $0x330] sm:$0xff]
    %v3123 = vld [vmem:[#allocation2 + $0x338] sm:$0xff]
    %v3124 = vld [vmem:[#allocation2 + $0x340] sm:$0xff]
    %v3125 = vld [vmem:[#allocation2 + $0x348] sm:$0xff]
    %v3126 = vld [vmem:[#allocation2 + $0x350] sm:$0xff]
    %v3127 = vld [vmem:[#allocation2 + $0x358] sm:$0xff]
    %v3128 = vld [vmem:[#allocation2 + $0x360] sm:$0xff]
    %v3129 = vld [vmem:[#allocation2 + $0x368] sm:$0xff]
    %v3130 = vld [vmem:[#allocation2 + $0x370] sm:$0xff]
    %v3131 = vld [vmem:[#allocation2 + $0x378] sm:$0xff]
    %v3132 = vld [vmem:[#allocation2 + $0x380] sm:$0xff]
    %v3133 = vld [vmem:[#allocation2 + $0x388] sm:$0xff]
    %v3134 = vld [vmem:[#allocation2 + $0x390] sm:$0xff]
    %v3135 = vld [vmem:[#allocation2 + $0x398] sm:$0xff]
    %v3136 = vld [vmem:[#allocation2 + $0x3a0] sm:$0xff]
    %v3137 = vld [vmem:[#allocation2 + $0x3a8] sm:$0xff]
    %v3138 = vld [vmem:[#allocation2 + $0x3b0] sm:$0xff]
    %v3139 = vld [vmem:[#allocation2 + $0x3b8] sm:$0xff]
    %v3140 = vld [vmem:[#allocation2 + $0x3c0] sm:$0xff]
    %v3141 = vld [vmem:[#allocation2 + $0x3c8] sm:$0xff]
    %v3142 = vld [vmem:[#allocation2 + $0x3d0] sm:$0xff]
    %v3143 = vld [vmem:[#allocation2 + $0x3d8] sm:$0xff]
    %v3144 = vld [vmem:[#allocation2 + $0x3e0] sm:$0xff]
    %v3145 = vld [vmem:[#allocation2 + $0x3e8] sm:$0xff]
    %v3146 = vld [vmem:[#allocation2 + $0x3f0] sm:$0xff]
    %v3147 = vld [vmem:[#allocation2 + $0x3f8] sm:$0xff]
    %v3148 = vld [vmem:[#allocation2 + $0x400] sm:$0xff]
    %v3149 = vld [vmem:[#allocation2 + $0x408] sm:$0xff]
    %v3150 = vld [vmem:[#allocation2 + $0x410] sm:$0xff]
    %v3151 = vld [vmem:[#allocation2 + $0x418] sm:$0xff]
    %v3152 = vld [vmem:[#allocation2 + $0x420] sm:$0xff]
    %v3153 = vld [vmem:[#allocation2 + $0x428] sm:$0xff]
    %v3154 = vld [vmem:[#allocation2 + $0x430] sm:$0xff]
    %v3155 = vld [vmem:[#allocation2 + $0x438] sm:$0xff]
    %v3156 = vld [vmem:[#allocation2 + $0x440] sm:$0xff]
    %v3157 = vld [vmem:[#allocation2 + $0x448] sm:$0xff]
    %v3158 = vld [vmem:[#allocation2 + $0x450] sm:$0xff]
    %v3159 = vld [vmem:[#allocation2 + $0x458] sm:$0xff]
    %v3160 = vld [vmem:[#allocation2 + $0x460] sm:$0xff]
    %v3161 = vld [vmem:[#allocation2 + $0x468] sm:$0xff]
    %v3162 = vld [vmem:[#allocation2 + $0x470] sm:$0xff]
    %v3163 = vld [vmem:[#allocation2 + $0x478] sm:$0xff]
    %v3164 = vld [vmem:[#allocation2 + $0x480] sm:$0xff]
    %v3165 = vld [vmem:[#allocation2 + $0x488] sm:$0xff]
    %v3166 = vld [vmem:[#allocation2 + $0x490] sm:$0xff]
    %v3167 = vld [vmem:[#allocation2 + $0x498] sm:$0xff]
    %v3168 = vld [vmem:[#allocation2 + $0x4a0] sm:$0xff]
    %v3169 = vld [vmem:[#allocation2 + $0x4a8] sm:$0xff]
    %v3170 = vld [vmem:[#allocation2 + $0x4b0] sm:$0xff]
    %v3171 = vld [vmem:[#allocation2 + $0x4b8] sm:$0xff]
    %v3172 = vld [vmem:[#allocation2 + $0x4c0] sm:$0xff]
    %v3173 = vld [vmem:[#allocation2 + $0x4c8] sm:$0xff]
    %v3174 = vld [vmem:[#allocation2 + $0x4d0] sm:$0xff]
    %v3175 = vld [vmem:[#allocation2 + $0x4d8] sm:$0xff]
    %v3176 = vld [vmem:[#allocation2 + $0x4e0] sm:$0xff]
    %v3177 = vld [vmem:[#allocation2 + $0x4e8] sm:$0xff]
    %v3178 = vld [vmem:[#allocation2 + $0x4f0] sm:$0xff]
    %v3179 = vld [vmem:[#allocation2 + $0x4f8] sm:$0xff]
    %v3180 = vld [vmem:[#allocation2 + $0x500] sm:$0xff]
    %v3181 = vld [vmem:[#allocation2 + $0x508] sm:$0xff]
    %v3182 = vld [vmem:[#allocation2 + $0x510] sm:$0xff]
    %v3183 = vld [vmem:[#allocation2 + $0x518] sm:$0xff]
    %v3184 = vld [vmem:[#allocation2 + $0x520] sm:$0xff]
    %v3185 = vld [vmem:[#allocation2 + $0x528] sm:$0xff]
    %v3186 = vld [vmem:[#allocation2 + $0x530] sm:$0xff]
    %v3187 = vld [vmem:[#allocation2 + $0x538] sm:$0xff]
    %v3188 = vld [vmem:[#allocation2 + $0x540] sm:$0xff]
    %v3189 = vld [vmem:[#allocation2 + $0x548] sm:$0xff]
    %v3190 = vld [vmem:[#allocation2 + $0x550] sm:$0xff]
    %v3191 = vld [vmem:[#allocation2 + $0x558] sm:$0xff]
    %v3192 = vld [vmem:[#allocation2 + $0x560] sm:$0xff]
    %v3193 = vld [vmem:[#allocation2 + $0x568] sm:$0xff]
    %v3194 = vld [vmem:[#allocation2 + $0x570] sm:$0xff]
    %v3195 = vld [vmem:[#allocation2 + $0x578] sm:$0xff]
    %v3196 = vld [vmem:[#allocation2 + $0x580] sm:$0xff]
    %v3197 = vld [vmem:[#allocation2 + $0x588] sm:$0xff]
    %v3198 = vld [vmem:[#allocation2 + $0x590] sm:$0xff]
    %v3199 = vld [vmem:[#allocation2 + $0x598] sm:$0xff]
    %v3200 = vld [vmem:[#allocation2 + $0x5a0] sm:$0xff]
    %v3201 = vld [vmem:[#allocation2 + $0x5a8] sm:$0xff]
    %v3202 = vld [vmem:[#allocation2 + $0x5b0] sm:$0xff]
    %v3203 = vld [vmem:[#allocation2 + $0x5b8] sm:$0xff]
    %v3204 = vld [vmem:[#allocation2 + $0x5c0] sm:$0xff]
    %v3205 = vld [vmem:[#allocation2 + $0x5c8] sm:$0xff]
    %v3206 = vld [vmem:[#allocation2 + $0x5d0] sm:$0xff]
    %v3207 = vld [vmem:[#allocation2 + $0x5d8] sm:$0xff]
    %v3208 = vld [vmem:[#allocation2 + $0x5e0] sm:$0xff]
    %v3209 = vld [vmem:[#allocation2 + $0x5e8] sm:$0xff]
    %v3210 = vld [vmem:[#allocation2 + $0x5f0] sm:$0xff]
    %v3211 = vld [vmem:[#allocation2 + $0x5f8] sm:$0xff]
    %v3212 = vld [vmem:[#allocation2 + $0x600] sm:$0xff]
    %v3213 = vld [vmem:[#allocation2 + $0x608] sm:$0xff]
    %v3214 = vld [vmem:[#allocation2 + $0x610] sm:$0xff]
    %v3215 = vld [vmem:[#allocation2 + $0x618] sm:$0xff]
    %v3216 = vld [vmem:[#allocation2 + $0x620] sm:$0xff]
    %v3217 = vld [vmem:[#allocation2 + $0x628] sm:$0xff]
    %v3218 = vld [vmem:[#allocation2 + $0x630] sm:$0xff]
    %v3219 = vld [vmem:[#allocation2 + $0x638] sm:$0xff]
    %v3220 = vld [vmem:[#allocation2 + $0x640] sm:$0xff]
    %v3221 = vld [vmem:[#allocation2 + $0x648] sm:$0xff]
    %v3222 = vld [vmem:[#allocation2 + $0x650] sm:$0xff]
    %v3223 = vld [vmem:[#allocation2 + $0x658] sm:$0xff]
    %v3224 = vld [vmem:[#allocation2 + $0x660] sm:$0xff]
    %v3225 = vld [vmem:[#allocation2 + $0x668] sm:$0xff]
    %v3226 = vld [vmem:[#allocation2 + $0x670] sm:$0xff]
    %v3227 = vld [vmem:[#allocation2 + $0x678] sm:$0xff]
    %v3228 = vld [vmem:[#allocation2 + $0x680] sm:$0xff]
    %v3229 = vld [vmem:[#allocation2 + $0x688] sm:$0xff]
    %v3230 = vld [vmem:[#allocation2 + $0x690] sm:$0xff]
    %v3231 = vld [vmem:[#allocation2 + $0x698] sm:$0xff]
    %v3232 = vld [vmem:[#allocation2 + $0x6a0] sm:$0xff]
    %v3233 = vld [vmem:[#allocation2 + $0x6a8] sm:$0xff]
    %v3234 = vld [vmem:[#allocation2 + $0x6b0] sm:$0xff]
    %v3235 = vld [vmem:[#allocation2 + $0x6b8] sm:$0xff]
    %v3236 = vld [vmem:[#allocation2 + $0x6c0] sm:$0xff]
    %v3237 = vld [vmem:[#allocation2 + $0x6c8] sm:$0xff]
    %v3238 = vld [vmem:[#allocation2 + $0x6d0] sm:$0xff]
    %v3239 = vld [vmem:[#allocation2 + $0x6d8] sm:$0xff]
    %v3240 = vld [vmem:[#allocation2 + $0x6e0] sm:$0xff]
    %v3241 = vld [vmem:[#allocation2 + $0x6e8] sm:$0xff]
    %v3242 = vld [vmem:[#allocation2 + $0x6f0] sm:$0xff]
    %v3243 = vld [vmem:[#allocation2 + $0x6f8] sm:$0xff]
    %v3244 = vld [vmem:[#allocation2 + $0x700] sm:$0xff]
    %v3245 = vld [vmem:[#allocation2 + $0x708] sm:$0xff]
    %v3246 = vld [vmem:[#allocation2 + $0x710] sm:$0xff]
    %v3247 = vld [vmem:[#allocation2 + $0x718] sm:$0xff]
    %v3248 = vld [vmem:[#allocation2 + $0x720] sm:$0xff]
    %v3249 = vld [vmem:[#allocation2 + $0x728] sm:$0xff]
    %v3250 = vld [vmem:[#allocation2 + $0x730] sm:$0xff]
    %v3251 = vld [vmem:[#allocation2 + $0x738] sm:$0xff]
    %v3252 = vld [vmem:[#allocation2 + $0x740] sm:$0xff]
    %v3253 = vld [vmem:[#allocation2 + $0x748] sm:$0xff]
    %v3254 = vld [vmem:[#allocation2 + $0x750] sm:$0xff]
    %v3255 = vld [vmem:[#allocation2 + $0x758] sm:$0xff]
    %v3256 = vld [vmem:[#allocation2 + $0x760] sm:$0xff]
    %v3257 = vld [vmem:[#allocation2 + $0x768] sm:$0xff]
    %v3258 = vld [vmem:[#allocation2 + $0x770] sm:$0xff]
    %v3259 = vld [vmem:[#allocation2 + $0x778] sm:$0xff]
    %v3260 = vld [vmem:[#allocation2 + $0x780] sm:$0xff]
    %v3261 = vld [vmem:[#allocation2 + $0x788] sm:$0xff]
    %v3262 = vld [vmem:[#allocation2 + $0x790] sm:$0xff]
    %v3263 = vld [vmem:[#allocation2 + $0x798] sm:$0xff]
    %v3264 = vld [vmem:[#allocation2 + $0x7a0] sm:$0xff]
    %v3265 = vld [vmem:[#allocation2 + $0x7a8] sm:$0xff]
    %v3266 = vld [vmem:[#allocation2 + $0x7b0] sm:$0xff]
    %v3267 = vld [vmem:[#allocation2 + $0x7b8] sm:$0xff]
    %v3268 = vld [vmem:[#allocation2 + $0x7c0] sm:$0xff]
    %v3269 = vld [vmem:[#allocation2 + $0x7c8] sm:$0xff]
    %v3270 = vld [vmem:[#allocation2 + $0x7d0] sm:$0xff]
    %v3271 = vld [vmem:[#allocation2 + $0x7d8] sm:$0xff]
    %v3272 = vld [vmem:[#allocation2 + $0x7e0] sm:$0xff]
    %v3273 = vld [vmem:[#allocation2 + $0x7e8] sm:$0xff]
    %v3274 = vld [vmem:[#allocation2 + $0x7f0] sm:$0xff]
    %v3275 = vld [vmem:[#allocation2 + $0x7f8] sm:$0xff]
    %v3276 = vld [vmem:[%s10] sm:$0xf]
    %v3278 = vlaneseq
    %v3279 = vshrl.u32 %v3278, 7
    %v3280 = vsub.s32 0, %v3279
    %v3281 = vrot.slane %v3276, %v3280
    %v3282 = vlaneseq
    %v3283 = vshrl.u32 %v3282, 7
    %v3284 = vsub.s32 1, %v3283
    %v3285 = vrot.slane %v3276, %v3284
    %v3286 = vlaneseq
    %v3287 = vshrl.u32 %v3286, 7
    %v3288 = vsub.s32 2, %v3287
    %v3289 = vrot.slane %v3276, %v3288
    %v3290 = vlaneseq
    %v3291 = vshrl.u32 %v3290, 7
    %v3292 = vsub.s32 3, %v3291
    %v3293 = vrot.slane %v3276, %v3292
    %v3554 = vunpack.c.l.b16 %v3020
    %v3555 = vunpack.c.h.b16 %v3020
    %v3556 = vunpack.c.l.b16 %v3021
    %v3557 = vunpack.c.h.b16 %v3021
    %v3558 = vunpack.c.l.b16 %v3022
    %v3559 = vunpack.c.h.b16 %v3022
    %v3560 = vunpack.c.l.b16 %v3023
    %v3561 = vunpack.c.h.b16 %v3023
    %v3562 = vunpack.c.l.b16 %v3024
    %v3563 = vunpack.c.h.b16 %v3024
    %v3564 = vunpack.c.l.b16 %v3025
    %v3565 = vunpack.c.h.b16 %v3025
    %v3566 = vunpack.c.l.b16 %v3026
    %v3567 = vunpack.c.h.b16 %v3026
    %v3568 = vunpack.c.l.b16 %v3027
    %v3569 = vunpack.c.h.b16 %v3027
    %v3570 = vunpack.c.l.b16 %v3028
    %v3571 = vunpack.c.h.b16 %v3028
    %v3572 = vunpack.c.l.b16 %v3029
    %v3573 = vunpack.c.h.b16 %v3029
    %v3574 = vunpack.c.l.b16 %v3030
    %v3575 = vunpack.c.h.b16 %v3030
    %v3576 = vunpack.c.l.b16 %v3031
    %v3577 = vunpack.c.h.b16 %v3031
    %v3578 = vunpack.c.l.b16 %v3032
    %v3579 = vunpack.c.h.b16 %v3032
    %v3580 = vunpack.c.l.b16 %v3033
    %v3581 = vunpack.c.h.b16 %v3033
    %v3582 = vunpack.c.l.b16 %v3034
    %v3583 = vunpack.c.h.b16 %v3034
    %v3584 = vunpack.c.l.b16 %v3035
    %v3585 = vunpack.c.h.b16 %v3035
    %v3586 = vunpack.c.l.b16 %v3036
    %v3587 = vunpack.c.h.b16 %v3036
    %v3588 = vunpack.c.l.b16 %v3037
    %v3589 = vunpack.c.h.b16 %v3037
    %v3590 = vunpack.c.l.b16 %v3038
    %v3591 = vunpack.c.h.b16 %v3038
    %v3592 = vunpack.c.l.b16 %v3039
    %v3593 = vunpack.c.h.b16 %v3039
    %v3594 = vunpack.c.l.b16 %v3040
    %v3595 = vunpack.c.h.b16 %v3040
    %v3596 = vunpack.c.l.b16 %v3041
    %v3597 = vunpack.c.h.b16 %v3041
    %v3598 = vunpack.c.l.b16 %v3042
    %v3599 = vunpack.c.h.b16 %v3042
    %v3600 = vunpack.c.l.b16 %v3043
    %v3601 = vunpack.c.h.b16 %v3043
    %v3602 = vunpack.c.l.b16 %v3044
    %v3603 = vunpack.c.h.b16 %v3044
    %v3604 = vunpack.c.l.b16 %v3045
    %v3605 = vunpack.c.h.b16 %v3045
    %v3606 = vunpack.c.l.b16 %v3046
    %v3607 = vunpack.c.h.b16 %v3046
    %v3608 = vunpack.c.l.b16 %v3047
    %v3609 = vunpack.c.h.b16 %v3047
    %v3610 = vunpack.c.l.b16 %v3048
    %v3611 = vunpack.c.h.b16 %v3048
    %v3612 = vunpack.c.l.b16 %v3049
    %v3613 = vunpack.c.h.b16 %v3049
    %v3614 = vunpack.c.l.b16 %v3050
    %v3615 = vunpack.c.h.b16 %v3050
    %v3616 = vunpack.c.l.b16 %v3051
    %v3617 = vunpack.c.h.b16 %v3051
    %v3618 = vunpack.c.l.b16 %v3052
    %v3619 = vunpack.c.h.b16 %v3052
    %v3620 = vunpack.c.l.b16 %v3053
    %v3621 = vunpack.c.h.b16 %v3053
    %v3622 = vunpack.c.l.b16 %v3054
    %v3623 = vunpack.c.h.b16 %v3054
    %v3624 = vunpack.c.l.b16 %v3055
    %v3625 = vunpack.c.h.b16 %v3055
    %v3626 = vunpack.c.l.b16 %v3056
    %v3627 = vunpack.c.h.b16 %v3056
    %v3628 = vunpack.c.l.b16 %v3057
    %v3629 = vunpack.c.h.b16 %v3057
    %v3630 = vunpack.c.l.b16 %v3058
    %v3631 = vunpack.c.h.b16 %v3058
    %v3632 = vunpack.c.l.b16 %v3059
    %v3633 = vunpack.c.h.b16 %v3059
    %v3634 = vunpack.c.l.b16 %v3060
    %v3635 = vunpack.c.h.b16 %v3060
    %v3636 = vunpack.c.l.b16 %v3061
    %v3637 = vunpack.c.h.b16 %v3061
    %v3638 = vunpack.c.l.b16 %v3062
    %v3639 = vunpack.c.h.b16 %v3062
    %v3640 = vunpack.c.l.b16 %v3063
    %v3641 = vunpack.c.h.b16 %v3063
    %v3642 = vunpack.c.l.b16 %v3064
    %v3643 = vunpack.c.h.b16 %v3064
    %v3644 = vunpack.c.l.b16 %v3065
    %v3645 = vunpack.c.h.b16 %v3065
    %v3646 = vunpack.c.l.b16 %v3066
    %v3647 = vunpack.c.h.b16 %v3066
    %v3648 = vunpack.c.l.b16 %v3067
    %v3649 = vunpack.c.h.b16 %v3067
    %v3650 = vunpack.c.l.b16 %v3068
    %v3651 = vunpack.c.h.b16 %v3068
    %v3652 = vunpack.c.l.b16 %v3069
    %v3653 = vunpack.c.h.b16 %v3069
    %v3654 = vunpack.c.l.b16 %v3070
    %v3655 = vunpack.c.h.b16 %v3070
    %v3656 = vunpack.c.l.b16 %v3071
    %v3657 = vunpack.c.h.b16 %v3071
    %v3658 = vunpack.c.l.b16 %v3072
    %v3659 = vunpack.c.h.b16 %v3072
    %v3660 = vunpack.c.l.b16 %v3073
    %v3661 = vunpack.c.h.b16 %v3073
    %v3662 = vunpack.c.l.b16 %v3074
    %v3663 = vunpack.c.h.b16 %v3074
    %v3664 = vunpack.c.l.b16 %v3075
    %v3665 = vunpack.c.h.b16 %v3075
    %v3666 = vunpack.c.l.b16 %v3076
    %v3667 = vunpack.c.h.b16 %v3076
    %v3668 = vunpack.c.l.b16 %v3077
    %v3669 = vunpack.c.h.b16 %v3077
    %v3670 = vunpack.c.l.b16 %v3078
    %v3671 = vunpack.c.h.b16 %v3078
    %v3672 = vunpack.c.l.b16 %v3079
    %v3673 = vunpack.c.h.b16 %v3079
    %v3674 = vunpack.c.l.b16 %v3080
    %v3675 = vunpack.c.h.b16 %v3080
    %v3676 = vunpack.c.l.b16 %v3081
    %v3677 = vunpack.c.h.b16 %v3081
    %v3678 = vunpack.c.l.b16 %v3082
    %v3679 = vunpack.c.h.b16 %v3082
    %v3680 = vunpack.c.l.b16 %v3083
    %v3681 = vunpack.c.h.b16 %v3083
    %v3682 = vunpack.c.l.b16 %v3084
    %v3683 = vunpack.c.h.b16 %v3084
    %v3684 = vunpack.c.l.b16 %v3085
    %v3685 = vunpack.c.h.b16 %v3085
    %v3686 = vunpack.c.l.b16 %v3086
    %v3687 = vunpack.c.h.b16 %v3086
    %v3688 = vunpack.c.l.b16 %v3087
    %v3689 = vunpack.c.h.b16 %v3087
    %v3690 = vunpack.c.l.b16 %v3088
    %v3691 = vunpack.c.h.b16 %v3088
    %v3692 = vunpack.c.l.b16 %v3089
    %v3693 = vunpack.c.h.b16 %v3089
    %v3694 = vunpack.c.l.b16 %v3090
    %v3695 = vunpack.c.h.b16 %v3090
    %v3696 = vunpack.c.l.b16 %v3091
    %v3697 = vunpack.c.h.b16 %v3091
    %v3698 = vunpack.c.l.b16 %v3092
    %v3699 = vunpack.c.h.b16 %v3092
    %v3700 = vunpack.c.l.b16 %v3093
    %v3701 = vunpack.c.h.b16 %v3093
    %v3702 = vunpack.c.l.b16 %v3094
    %v3703 = vunpack.c.h.b16 %v3094
    %v3704 = vunpack.c.l.b16 %v3095
    %v3705 = vunpack.c.h.b16 %v3095
    %v3706 = vunpack.c.l.b16 %v3096
    %v3707 = vunpack.c.h.b16 %v3096
    %v3708 = vunpack.c.l.b16 %v3097
    %v3709 = vunpack.c.h.b16 %v3097
    %v3710 = vunpack.c.l.b16 %v3098
    %v3711 = vunpack.c.h.b16 %v3098
    %v3712 = vunpack.c.l.b16 %v3099
    %v3713 = vunpack.c.h.b16 %v3099
    %v3714 = vunpack.c.l.b16 %v3100
    %v3715 = vunpack.c.h.b16 %v3100
    %v3716 = vunpack.c.l.b16 %v3101
    %v3717 = vunpack.c.h.b16 %v3101
    %v3718 = vunpack.c.l.b16 %v3102
    %v3719 = vunpack.c.h.b16 %v3102
    %v3720 = vunpack.c.l.b16 %v3103
    %v3721 = vunpack.c.h.b16 %v3103
    %v3722 = vunpack.c.l.b16 %v3104
    %v3723 = vunpack.c.h.b16 %v3104
    %v3724 = vunpack.c.l.b16 %v3105
    %v3725 = vunpack.c.h.b16 %v3105
    %v3726 = vunpack.c.l.b16 %v3106
    %v3727 = vunpack.c.h.b16 %v3106
    %v3728 = vunpack.c.l.b16 %v3107
    %v3729 = vunpack.c.h.b16 %v3107
    %v3730 = vunpack.c.l.b16 %v3108
    %v3731 = vunpack.c.h.b16 %v3108
    %v3732 = vunpack.c.l.b16 %v3109
    %v3733 = vunpack.c.h.b16 %v3109
    %v3734 = vunpack.c.l.b16 %v3110
    %v3735 = vunpack.c.h.b16 %v3110
    %v3736 = vunpack.c.l.b16 %v3111
    %v3737 = vunpack.c.h.b16 %v3111
    %v3738 = vunpack.c.l.b16 %v3112
    %v3739 = vunpack.c.h.b16 %v3112
    %v3740 = vunpack.c.l.b16 %v3113
    %v3741 = vunpack.c.h.b16 %v3113
    %v3742 = vunpack.c.l.b16 %v3114
    %v3743 = vunpack.c.h.b16 %v3114
    %v3744 = vunpack.c.l.b16 %v3115
    %v3745 = vunpack.c.h.b16 %v3115
    %v3746 = vunpack.c.l.b16 %v3116
    %v3747 = vunpack.c.h.b16 %v3116
    %v3748 = vunpack.c.l.b16 %v3117
    %v3749 = vunpack.c.h.b16 %v3117
    %v3750 = vunpack.c.l.b16 %v3118
    %v3751 = vunpack.c.h.b16 %v3118
    %v3752 = vunpack.c.l.b16 %v3119
    %v3753 = vunpack.c.h.b16 %v3119
    %v3754 = vunpack.c.l.b16 %v3120
    %v3755 = vunpack.c.h.b16 %v3120
    %v3756 = vunpack.c.l.b16 %v3121
    %v3757 = vunpack.c.h.b16 %v3121
    %v3758 = vunpack.c.l.b16 %v3122
    %v3759 = vunpack.c.h.b16 %v3122
    %v3760 = vunpack.c.l.b16 %v3123
    %v3761 = vunpack.c.h.b16 %v3123
    %v3762 = vunpack.c.l.b16 %v3124
    %v3763 = vunpack.c.h.b16 %v3124
    %v3764 = vunpack.c.l.b16 %v3125
    %v3765 = vunpack.c.h.b16 %v3125
    %v3766 = vunpack.c.l.b16 %v3126
    %v3767 = vunpack.c.h.b16 %v3126
    %v3768 = vunpack.c.l.b16 %v3127
    %v3769 = vunpack.c.h.b16 %v3127
    %v3770 = vunpack.c.l.b16 %v3128
    %v3771 = vunpack.c.h.b16 %v3128
    %v3772 = vunpack.c.l.b16 %v3129
    %v3773 = vunpack.c.h.b16 %v3129
    %v3774 = vunpack.c.l.b16 %v3130
    %v3775 = vunpack.c.h.b16 %v3130
    %v3776 = vunpack.c.l.b16 %v3131
    %v3777 = vunpack.c.h.b16 %v3131
    %v3778 = vunpack.c.l.b16 %v3132
    %v3779 = vunpack.c.h.b16 %v3132
    %v3780 = vunpack.c.l.b16 %v3133
    %v3781 = vunpack.c.h.b16 %v3133
    %v3782 = vunpack.c.l.b16 %v3134
    %v3783 = vunpack.c.h.b16 %v3134
    %v3784 = vunpack.c.l.b16 %v3135
    %v3785 = vunpack.c.h.b16 %v3135
    %v3786 = vunpack.c.l.b16 %v3136
    %v3787 = vunpack.c.h.b16 %v3136
    %v3788 = vunpack.c.l.b16 %v3137
    %v3789 = vunpack.c.h.b16 %v3137
    %v3790 = vunpack.c.l.b16 %v3138
    %v3791 = vunpack.c.h.b16 %v3138
    %v3792 = vunpack.c.l.b16 %v3139
    %v3793 = vunpack.c.h.b16 %v3139
    %v3794 = vunpack.c.l.b16 %v3140
    %v3795 = vunpack.c.h.b16 %v3140
    %v3796 = vunpack.c.l.b16 %v3141
    %v3797 = vunpack.c.h.b16 %v3141
    %v3798 = vunpack.c.l.b16 %v3142
    %v3799 = vunpack.c.h.b16 %v3142
    %v3800 = vunpack.c.l.b16 %v3143
    %v3801 = vunpack.c.h.b16 %v3143
    %v3802 = vunpack.c.l.b16 %v3144
    %v3803 = vunpack.c.h.b16 %v3144
    %v3804 = vunpack.c.l.b16 %v3145
    %v3805 = vunpack.c.h.b16 %v3145
    %v3806 = vunpack.c.l.b16 %v3146
    %v3807 = vunpack.c.h.b16 %v3146
    %v3808 = vunpack.c.l.b16 %v3147
    %v3809 = vunpack.c.h.b16 %v3147
    %v3810 = vunpack.c.l.b16 %v3148
    %v3811 = vunpack.c.h.b16 %v3148
    %v3812 = vunpack.c.l.b16 %v3149
    %v3813 = vunpack.c.h.b16 %v3149
    %v3814 = vunpack.c.l.b16 %v3150
    %v3815 = vunpack.c.h.b16 %v3150
    %v3816 = vunpack.c.l.b16 %v3151
    %v3817 = vunpack.c.h.b16 %v3151
    %v3818 = vunpack.c.l.b16 %v3152
    %v3819 = vunpack.c.h.b16 %v3152
    %v3820 = vunpack.c.l.b16 %v3153
    %v3821 = vunpack.c.h.b16 %v3153
    %v3822 = vunpack.c.l.b16 %v3154
    %v3823 = vunpack.c.h.b16 %v3154
    %v3824 = vunpack.c.l.b16 %v3155
    %v3825 = vunpack.c.h.b16 %v3155
    %v3826 = vunpack.c.l.b16 %v3156
    %v3827 = vunpack.c.h.b16 %v3156
    %v3828 = vunpack.c.l.b16 %v3157
    %v3829 = vunpack.c.h.b16 %v3157
    %v3830 = vunpack.c.l.b16 %v3158
    %v3831 = vunpack.c.h.b16 %v3158
    %v3832 = vunpack.c.l.b16 %v3159
    %v3833 = vunpack.c.h.b16 %v3159
    %v3834 = vunpack.c.l.b16 %v3160
    %v3835 = vunpack.c.h.b16 %v3160
    %v3836 = vunpack.c.l.b16 %v3161
    %v3837 = vunpack.c.h.b16 %v3161
    %v3838 = vunpack.c.l.b16 %v3162
    %v3839 = vunpack.c.h.b16 %v3162
    %v3840 = vunpack.c.l.b16 %v3163
    %v3841 = vunpack.c.h.b16 %v3163
    %v3842 = vunpack.c.l.b16 %v3164
    %v3843 = vunpack.c.h.b16 %v3164
    %v3844 = vunpack.c.l.b16 %v3165
    %v3845 = vunpack.c.h.b16 %v3165
    %v3846 = vunpack.c.l.b16 %v3166
    %v3847 = vunpack.c.h.b16 %v3166
    %v3848 = vunpack.c.l.b16 %v3167
    %v3849 = vunpack.c.h.b16 %v3167
    %v3850 = vunpack.c.l.b16 %v3168
    %v3851 = vunpack.c.h.b16 %v3168
    %v3852 = vunpack.c.l.b16 %v3169
    %v3853 = vunpack.c.h.b16 %v3169
    %v3854 = vunpack.c.l.b16 %v3170
    %v3855 = vunpack.c.h.b16 %v3170
    %v3856 = vunpack.c.l.b16 %v3171
    %v3857 = vunpack.c.h.b16 %v3171
    %v3858 = vunpack.c.l.b16 %v3172
    %v3859 = vunpack.c.h.b16 %v3172
    %v3860 = vunpack.c.l.b16 %v3173
    %v3861 = vunpack.c.h.b16 %v3173
    %v3862 = vunpack.c.l.b16 %v3174
    %v3863 = vunpack.c.h.b16 %v3174
    %v3864 = vunpack.c.l.b16 %v3175
    %v3865 = vunpack.c.h.b16 %v3175
    %v3866 = vunpack.c.l.b16 %v3176
    %v3867 = vunpack.c.h.b16 %v3176
    %v3868 = vunpack.c.l.b16 %v3177
    %v3869 = vunpack.c.h.b16 %v3177
    %v3870 = vunpack.c.l.b16 %v3178
    %v3871 = vunpack.c.h.b16 %v3178
    %v3872 = vunpack.c.l.b16 %v3179
    %v3873 = vunpack.c.h.b16 %v3179
    %v3874 = vunpack.c.l.b16 %v3180
    %v3875 = vunpack.c.h.b16 %v3180
    %v3876 = vunpack.c.l.b16 %v3181
    %v3877 = vunpack.c.h.b16 %v3181
    %v3878 = vunpack.c.l.b16 %v3182
    %v3879 = vunpack.c.h.b16 %v3182
    %v3880 = vunpack.c.l.b16 %v3183
    %v3881 = vunpack.c.h.b16 %v3183
    %v3882 = vunpack.c.l.b16 %v3184
    %v3883 = vunpack.c.h.b16 %v3184
    %v3884 = vunpack.c.l.b16 %v3185
    %v3885 = vunpack.c.h.b16 %v3185
    %v3886 = vunpack.c.l.b16 %v3186
    %v3887 = vunpack.c.h.b16 %v3186
    %v3888 = vunpack.c.l.b16 %v3187
    %v3889 = vunpack.c.h.b16 %v3187
    %v3890 = vunpack.c.l.b16 %v3188
    %v3891 = vunpack.c.h.b16 %v3188
    %v3892 = vunpack.c.l.b16 %v3189
    %v3893 = vunpack.c.h.b16 %v3189
    %v3894 = vunpack.c.l.b16 %v3190
    %v3895 = vunpack.c.h.b16 %v3190
    %v3896 = vunpack.c.l.b16 %v3191
    %v3897 = vunpack.c.h.b16 %v3191
    %v3898 = vunpack.c.l.b16 %v3192
    %v3899 = vunpack.c.h.b16 %v3192
    %v3900 = vunpack.c.l.b16 %v3193
    %v3901 = vunpack.c.h.b16 %v3193
    %v3902 = vunpack.c.l.b16 %v3194
    %v3903 = vunpack.c.h.b16 %v3194
    %v3904 = vunpack.c.l.b16 %v3195
    %v3905 = vunpack.c.h.b16 %v3195
    %v3906 = vunpack.c.l.b16 %v3196
    %v3907 = vunpack.c.h.b16 %v3196
    %v3908 = vunpack.c.l.b16 %v3197
    %v3909 = vunpack.c.h.b16 %v3197
    %v3910 = vunpack.c.l.b16 %v3198
    %v3911 = vunpack.c.h.b16 %v3198
    %v3912 = vunpack.c.l.b16 %v3199
    %v3913 = vunpack.c.h.b16 %v3199
    %v3914 = vunpack.c.l.b16 %v3200
    %v3915 = vunpack.c.h.b16 %v3200
    %v3916 = vunpack.c.l.b16 %v3201
    %v3917 = vunpack.c.h.b16 %v3201
    %v3918 = vunpack.c.l.b16 %v3202
    %v3919 = vunpack.c.h.b16 %v3202
    %v3920 = vunpack.c.l.b16 %v3203
    %v3921 = vunpack.c.h.b16 %v3203
    %v3922 = vunpack.c.l.b16 %v3204
    %v3923 = vunpack.c.h.b16 %v3204
    %v3924 = vunpack.c.l.b16 %v3205
    %v3925 = vunpack.c.h.b16 %v3205
    %v3926 = vunpack.c.l.b16 %v3206
    %v3927 = vunpack.c.h.b16 %v3206
    %v3928 = vunpack.c.l.b16 %v3207
    %v3929 = vunpack.c.h.b16 %v3207
    %v3930 = vunpack.c.l.b16 %v3208
    %v3931 = vunpack.c.h.b16 %v3208
    %v3932 = vunpack.c.l.b16 %v3209
    %v3933 = vunpack.c.h.b16 %v3209
    %v3934 = vunpack.c.l.b16 %v3210
    %v3935 = vunpack.c.h.b16 %v3210
    %v3936 = vunpack.c.l.b16 %v3211
    %v3937 = vunpack.c.h.b16 %v3211
    %v3938 = vunpack.c.l.b16 %v3212
    %v3939 = vunpack.c.h.b16 %v3212
    %v3940 = vunpack.c.l.b16 %v3213
    %v3941 = vunpack.c.h.b16 %v3213
    %v3942 = vunpack.c.l.b16 %v3214
    %v3943 = vunpack.c.h.b16 %v3214
    %v3944 = vunpack.c.l.b16 %v3215
    %v3945 = vunpack.c.h.b16 %v3215
    %v3946 = vunpack.c.l.b16 %v3216
    %v3947 = vunpack.c.h.b16 %v3216
    %v3948 = vunpack.c.l.b16 %v3217
    %v3949 = vunpack.c.h.b16 %v3217
    %v3950 = vunpack.c.l.b16 %v3218
    %v3951 = vunpack.c.h.b16 %v3218
    %v3952 = vunpack.c.l.b16 %v3219
    %v3953 = vunpack.c.h.b16 %v3219
    %v3954 = vunpack.c.l.b16 %v3220
    %v3955 = vunpack.c.h.b16 %v3220
    %v3956 = vunpack.c.l.b16 %v3221
    %v3957 = vunpack.c.h.b16 %v3221
    %v3958 = vunpack.c.l.b16 %v3222
    %v3959 = vunpack.c.h.b16 %v3222
    %v3960 = vunpack.c.l.b16 %v3223
    %v3961 = vunpack.c.h.b16 %v3223
    %v3962 = vunpack.c.l.b16 %v3224
    %v3963 = vunpack.c.h.b16 %v3224
    %v3964 = vunpack.c.l.b16 %v3225
    %v3965 = vunpack.c.h.b16 %v3225
    %v3966 = vunpack.c.l.b16 %v3226
    %v3967 = vunpack.c.h.b16 %v3226
    %v3968 = vunpack.c.l.b16 %v3227
    %v3969 = vunpack.c.h.b16 %v3227
    %v3970 = vunpack.c.l.b16 %v3228
    %v3971 = vunpack.c.h.b16 %v3228
    %v3972 = vunpack.c.l.b16 %v3229
    %v3973 = vunpack.c.h.b16 %v3229
    %v3974 = vunpack.c.l.b16 %v3230
    %v3975 = vunpack.c.h.b16 %v3230
    %v3976 = vunpack.c.l.b16 %v3231
    %v3977 = vunpack.c.h.b16 %v3231
    %v3978 = vunpack.c.l.b16 %v3232
    %v3979 = vunpack.c.h.b16 %v3232
    %v3980 = vunpack.c.l.b16 %v3233
    %v3981 = vunpack.c.h.b16 %v3233
    %v3982 = vunpack.c.l.b16 %v3234
    %v3983 = vunpack.c.h.b16 %v3234
    %v3984 = vunpack.c.l.b16 %v3235
    %v3985 = vunpack.c.h.b16 %v3235
    %v3986 = vunpack.c.l.b16 %v3236
    %v3987 = vunpack.c.h.b16 %v3236
    %v3988 = vunpack.c.l.b16 %v3237
    %v3989 = vunpack.c.h.b16 %v3237
    %v3990 = vunpack.c.l.b16 %v3238
    %v3991 = vunpack.c.h.b16 %v3238
    %v3992 = vunpack.c.l.b16 %v3239
    %v3993 = vunpack.c.h.b16 %v3239
    %v3994 = vunpack.c.l.b16 %v3240
    %v3995 = vunpack.c.h.b16 %v3240
    %v3996 = vunpack.c.l.b16 %v3241
    %v3997 = vunpack.c.h.b16 %v3241
    %v3998 = vunpack.c.l.b16 %v3242
    %v3999 = vunpack.c.h.b16 %v3242
    %v4000 = vunpack.c.l.b16 %v3243
    %v4001 = vunpack.c.h.b16 %v3243
    %v4002 = vunpack.c.l.b16 %v3244
    %v4003 = vunpack.c.h.b16 %v3244
    %v4004 = vunpack.c.l.b16 %v3245
    %v4005 = vunpack.c.h.b16 %v3245
    %v4006 = vunpack.c.l.b16 %v3246
    %v4007 = vunpack.c.h.b16 %v3246
    %v4008 = vunpack.c.l.b16 %v3247
    %v4009 = vunpack.c.h.b16 %v3247
    %v4010 = vunpack.c.l.b16 %v3248
    %v4011 = vunpack.c.h.b16 %v3248
    %v4012 = vunpack.c.l.b16 %v3249
    %v4013 = vunpack.c.h.b16 %v3249
    %v4014 = vunpack.c.l.b16 %v3250
    %v4015 = vunpack.c.h.b16 %v3250
    %v4016 = vunpack.c.l.b16 %v3251
    %v4017 = vunpack.c.h.b16 %v3251
    %v4018 = vunpack.c.l.b16 %v3252
    %v4019 = vunpack.c.h.b16 %v3252
    %v4020 = vunpack.c.l.b16 %v3253
    %v4021 = vunpack.c.h.b16 %v3253
    %v4022 = vunpack.c.l.b16 %v3254
    %v4023 = vunpack.c.h.b16 %v3254
    %v4024 = vunpack.c.l.b16 %v3255
    %v4025 = vunpack.c.h.b16 %v3255
    %v4026 = vunpack.c.l.b16 %v3256
    %v4027 = vunpack.c.h.b16 %v3256
    %v4028 = vunpack.c.l.b16 %v3257
    %v4029 = vunpack.c.h.b16 %v3257
    %v4030 = vunpack.c.l.b16 %v3258
    %v4031 = vunpack.c.h.b16 %v3258
    %v4032 = vunpack.c.l.b16 %v3259
    %v4033 = vunpack.c.h.b16 %v3259
    %v4034 = vunpack.c.l.b16 %v3260
    %v4035 = vunpack.c.h.b16 %v3260
    %v4036 = vunpack.c.l.b16 %v3261
    %v4037 = vunpack.c.h.b16 %v3261
    %v4038 = vunpack.c.l.b16 %v3262
    %v4039 = vunpack.c.h.b16 %v3262
    %v4040 = vunpack.c.l.b16 %v3263
    %v4041 = vunpack.c.h.b16 %v3263
    %v4042 = vunpack.c.l.b16 %v3264
    %v4043 = vunpack.c.h.b16 %v3264
    %v4044 = vunpack.c.l.b16 %v3265
    %v4045 = vunpack.c.h.b16 %v3265
    %v4046 = vunpack.c.l.b16 %v3266
    %v4047 = vunpack.c.h.b16 %v3266
    %v4048 = vunpack.c.l.b16 %v3267
    %v4049 = vunpack.c.h.b16 %v3267
    %v4050 = vunpack.c.l.b16 %v3268
    %v4051 = vunpack.c.h.b16 %v3268
    %v4052 = vunpack.c.l.b16 %v3269
    %v4053 = vunpack.c.h.b16 %v3269
    %v4054 = vunpack.c.l.b16 %v3270
    %v4055 = vunpack.c.h.b16 %v3270
    %v4056 = vunpack.c.l.b16 %v3271
    %v4057 = vunpack.c.h.b16 %v3271
    %v4058 = vunpack.c.l.b16 %v3272
    %v4059 = vunpack.c.h.b16 %v3272
    %v4060 = vunpack.c.l.b16 %v3273
    %v4061 = vunpack.c.h.b16 %v3273
    %v4062 = vunpack.c.l.b16 %v3274
    %v4063 = vunpack.c.h.b16 %v3274
    %v4064 = vunpack.c.l.b16 %v3275
    %v4065 = vunpack.c.h.b16 %v3275
    %v4066 = vpack.c.b16 %v3558, %v3554
    %v4067 = vpack.c.b16 %v3559, %v3555
    %v4068 = vpack.c.b16 %v3560, %v3556
    %v4069 = vpack.c.b16 %v3561, %v3557
    %v4070 = vpack.c.b16 %v3566, %v3562
    %v4071 = vpack.c.b16 %v3567, %v3563
    %v4072 = vpack.c.b16 %v3568, %v3564
    %v4073 = vpack.c.b16 %v3569, %v3565
    %v4074 = vpack.c.b16 %v3574, %v3570
    %v4075 = vpack.c.b16 %v3575, %v3571
    %v4076 = vpack.c.b16 %v3576, %v3572
    %v4077 = vpack.c.b16 %v3577, %v3573
    %v4078 = vpack.c.b16 %v3582, %v3578
    %v4079 = vpack.c.b16 %v3583, %v3579
    %v4080 = vpack.c.b16 %v3584, %v3580
    %v4081 = vpack.c.b16 %v3585, %v3581
    %v4082 = vpack.c.b16 %v3590, %v3586
    %v4083 = vpack.c.b16 %v3591, %v3587
    %v4084 = vpack.c.b16 %v3592, %v3588
    %v4085 = vpack.c.b16 %v3593, %v3589
    %v4086 = vpack.c.b16 %v3598, %v3594
    %v4087 = vpack.c.b16 %v3599, %v3595
    %v4088 = vpack.c.b16 %v3600, %v3596
    %v4089 = vpack.c.b16 %v3601, %v3597
    %v4090 = vpack.c.b16 %v3606, %v3602
    %v4091 = vpack.c.b16 %v3607, %v3603
    %v4092 = vpack.c.b16 %v3608, %v3604
    %v4093 = vpack.c.b16 %v3609, %v3605
    %v4094 = vpack.c.b16 %v3614, %v3610
    %v4095 = vpack.c.b16 %v3615, %v3611
    %v4096 = vpack.c.b16 %v3616, %v3612
    %v4097 = vpack.c.b16 %v3617, %v3613
    %v4098 = vpack.c.b16 %v3622, %v3618
    %v4099 = vpack.c.b16 %v3623, %v3619
    %v4100 = vpack.c.b16 %v3624, %v3620
    %v4101 = vpack.c.b16 %v3625, %v3621
    %v4102 = vpack.c.b16 %v3630, %v3626
    %v4103 = vpack.c.b16 %v3631, %v3627
    %v4104 = vpack.c.b16 %v3632, %v3628
    %v4105 = vpack.c.b16 %v3633, %v3629
    %v4106 = vpack.c.b16 %v3638, %v3634
    %v4107 = vpack.c.b16 %v3639, %v3635
    %v4108 = vpack.c.b16 %v3640, %v3636
    %v4109 = vpack.c.b16 %v3641, %v3637
    %v4110 = vpack.c.b16 %v3646, %v3642
    %v4111 = vpack.c.b16 %v3647, %v3643
    %v4112 = vpack.c.b16 %v3648, %v3644
    %v4113 = vpack.c.b16 %v3649, %v3645
    %v4114 = vpack.c.b16 %v3654, %v3650
    %v4115 = vpack.c.b16 %v3655, %v3651
    %v4116 = vpack.c.b16 %v3656, %v3652
    %v4117 = vpack.c.b16 %v3657, %v3653
    %v4118 = vpack.c.b16 %v3662, %v3658
    %v4119 = vpack.c.b16 %v3663, %v3659
    %v4120 = vpack.c.b16 %v3664, %v3660
    %v4121 = vpack.c.b16 %v3665, %v3661
    %v4122 = vpack.c.b16 %v3670, %v3666
    %v4123 = vpack.c.b16 %v3671, %v3667
    %v4124 = vpack.c.b16 %v3672, %v3668
    %v4125 = vpack.c.b16 %v3673, %v3669
    %v4126 = vpack.c.b16 %v3678, %v3674
    %v4127 = vpack.c.b16 %v3679, %v3675
    %v4128 = vpack.c.b16 %v3680, %v3676
    %v4129 = vpack.c.b16 %v3681, %v3677
    %v4130 = vpack.c.b16 %v3686, %v3682
    %v4131 = vpack.c.b16 %v3687, %v3683
    %v4132 = vpack.c.b16 %v3688, %v3684
    %v4133 = vpack.c.b16 %v3689, %v3685
    %v4134 = vpack.c.b16 %v3694, %v3690
    %v4135 = vpack.c.b16 %v3695, %v3691
    %v4136 = vpack.c.b16 %v3696, %v3692
    %v4137 = vpack.c.b16 %v3697, %v3693
    %v4138 = vpack.c.b16 %v3702, %v3698
    %v4139 = vpack.c.b16 %v3703, %v3699
    %v4140 = vpack.c.b16 %v3704, %v3700
    %v4141 = vpack.c.b16 %v3705, %v3701
    %v4142 = vpack.c.b16 %v3710, %v3706
    %v4143 = vpack.c.b16 %v3711, %v3707
    %v4144 = vpack.c.b16 %v3712, %v3708
    %v4145 = vpack.c.b16 %v3713, %v3709
    %v4146 = vpack.c.b16 %v3718, %v3714
    %v4147 = vpack.c.b16 %v3719, %v3715
    %v4148 = vpack.c.b16 %v3720, %v3716
    %v4149 = vpack.c.b16 %v3721, %v3717
    %v4150 = vpack.c.b16 %v3726, %v3722
    %v4151 = vpack.c.b16 %v3727, %v3723
    %v4152 = vpack.c.b16 %v3728, %v3724
    %v4153 = vpack.c.b16 %v3729, %v3725
    %v4154 = vpack.c.b16 %v3734, %v3730
    %v4155 = vpack.c.b16 %v3735, %v3731
    %v4156 = vpack.c.b16 %v3736, %v3732
    %v4157 = vpack.c.b16 %v3737, %v3733
    %v4158 = vpack.c.b16 %v3742, %v3738
    %v4159 = vpack.c.b16 %v3743, %v3739
    %v4160 = vpack.c.b16 %v3744, %v3740
    %v4161 = vpack.c.b16 %v3745, %v3741
    %v4162 = vpack.c.b16 %v3750, %v3746
    %v4163 = vpack.c.b16 %v3751, %v3747
    %v4164 = vpack.c.b16 %v3752, %v3748
    %v4165 = vpack.c.b16 %v3753, %v3749
    %v4166 = vpack.c.b16 %v3758, %v3754
    %v4167 = vpack.c.b16 %v3759, %v3755
    %v4168 = vpack.c.b16 %v3760, %v3756
    %v4169 = vpack.c.b16 %v3761, %v3757
    %v4170 = vpack.c.b16 %v3766, %v3762
    %v4171 = vpack.c.b16 %v3767, %v3763
    %v4172 = vpack.c.b16 %v3768, %v3764
    %v4173 = vpack.c.b16 %v3769, %v3765
    %v4174 = vpack.c.b16 %v3774, %v3770
    %v4175 = vpack.c.b16 %v3775, %v3771
    %v4176 = vpack.c.b16 %v3776, %v3772
    %v4177 = vpack.c.b16 %v3777, %v3773
    %v4178 = vpack.c.b16 %v3782, %v3778
    %v4179 = vpack.c.b16 %v3783, %v3779
    %v4180 = vpack.c.b16 %v3784, %v3780
    %v4181 = vpack.c.b16 %v3785, %v3781
    %v4182 = vpack.c.b16 %v3790, %v3786
    %v4183 = vpack.c.b16 %v3791, %v3787
    %v4184 = vpack.c.b16 %v3792, %v3788
    %v4185 = vpack.c.b16 %v3793, %v3789
    %v4186 = vpack.c.b16 %v3798, %v3794
    %v4187 = vpack.c.b16 %v3799, %v3795
    %v4188 = vpack.c.b16 %v3800, %v3796
    %v4189 = vpack.c.b16 %v3801, %v3797
    %v4190 = vpack.c.b16 %v3806, %v3802
    %v4191 = vpack.c.b16 %v3807, %v3803
    %v4192 = vpack.c.b16 %v3808, %v3804
    %v4193 = vpack.c.b16 %v3809, %v3805
    %v4194 = vpack.c.b16 %v3814, %v3810
    %v4195 = vpack.c.b16 %v3815, %v3811
    %v4196 = vpack.c.b16 %v3816, %v3812
    %v4197 = vpack.c.b16 %v3817, %v3813
    %v4198 = vpack.c.b16 %v3822, %v3818
    %v4199 = vpack.c.b16 %v3823, %v3819
    %v4200 = vpack.c.b16 %v3824, %v3820
    %v4201 = vpack.c.b16 %v3825, %v3821
    %v4202 = vpack.c.b16 %v3830, %v3826
    %v4203 = vpack.c.b16 %v3831, %v3827
    %v4204 = vpack.c.b16 %v3832, %v3828
    %v4205 = vpack.c.b16 %v3833, %v3829
    %v4206 = vpack.c.b16 %v3838, %v3834
    %v4207 = vpack.c.b16 %v3839, %v3835
    %v4208 = vpack.c.b16 %v3840, %v3836
    %v4209 = vpack.c.b16 %v3841, %v3837
    %v4210 = vpack.c.b16 %v3846, %v3842
    %v4211 = vpack.c.b16 %v3847, %v3843
    %v4212 = vpack.c.b16 %v3848, %v3844
    %v4213 = vpack.c.b16 %v3849, %v3845
    %v4214 = vpack.c.b16 %v3854, %v3850
    %v4215 = vpack.c.b16 %v3855, %v3851
    %v4216 = vpack.c.b16 %v3856, %v3852
    %v4217 = vpack.c.b16 %v3857, %v3853
    %v4218 = vpack.c.b16 %v3862, %v3858
    %v4219 = vpack.c.b16 %v3863, %v3859
    %v4220 = vpack.c.b16 %v3864, %v3860
    %v4221 = vpack.c.b16 %v3865, %v3861
    %v4222 = vpack.c.b16 %v3870, %v3866
    %v4223 = vpack.c.b16 %v3871, %v3867
    %v4224 = vpack.c.b16 %v3872, %v3868
    %v4225 = vpack.c.b16 %v3873, %v3869
    %v4226 = vpack.c.b16 %v3878, %v3874
    %v4227 = vpack.c.b16 %v3879, %v3875
    %v4228 = vpack.c.b16 %v3880, %v3876
    %v4229 = vpack.c.b16 %v3881, %v3877
    %v4230 = vpack.c.b16 %v3886, %v3882
    %v4231 = vpack.c.b16 %v3887, %v3883
    %v4232 = vpack.c.b16 %v3888, %v3884
    %v4233 = vpack.c.b16 %v3889, %v3885
    %v4234 = vpack.c.b16 %v3894, %v3890
    %v4235 = vpack.c.b16 %v3895, %v3891
    %v4236 = vpack.c.b16 %v3896, %v3892
    %v4237 = vpack.c.b16 %v3897, %v3893
    %v4238 = vpack.c.b16 %v3902, %v3898
    %v4239 = vpack.c.b16 %v3903, %v3899
    %v4240 = vpack.c.b16 %v3904, %v3900
    %v4241 = vpack.c.b16 %v3905, %v3901
    %v4242 = vpack.c.b16 %v3910, %v3906
    %v4243 = vpack.c.b16 %v3911, %v3907
    %v4244 = vpack.c.b16 %v3912, %v3908
    %v4245 = vpack.c.b16 %v3913, %v3909
    %v4246 = vpack.c.b16 %v3918, %v3914
    %v4247 = vpack.c.b16 %v3919, %v3915
    %v4248 = vpack.c.b16 %v3920, %v3916
    %v4249 = vpack.c.b16 %v3921, %v3917
    %v4250 = vpack.c.b16 %v3926, %v3922
    %v4251 = vpack.c.b16 %v3927, %v3923
    %v4252 = vpack.c.b16 %v3928, %v3924
    %v4253 = vpack.c.b16 %v3929, %v3925
    %v4254 = vpack.c.b16 %v3934, %v3930
    %v4255 = vpack.c.b16 %v3935, %v3931
    %v4256 = vpack.c.b16 %v3936, %v3932
    %v4257 = vpack.c.b16 %v3937, %v3933
    %v4258 = vpack.c.b16 %v3942, %v3938
    %v4259 = vpack.c.b16 %v3943, %v3939
    %v4260 = vpack.c.b16 %v3944, %v3940
    %v4261 = vpack.c.b16 %v3945, %v3941
    %v4262 = vpack.c.b16 %v3950, %v3946
    %v4263 = vpack.c.b16 %v3951, %v3947
    %v4264 = vpack.c.b16 %v3952, %v3948
    %v4265 = vpack.c.b16 %v3953, %v3949
    %v4266 = vpack.c.b16 %v3958, %v3954
    %v4267 = vpack.c.b16 %v3959, %v3955
    %v4268 = vpack.c.b16 %v3960, %v3956
    %v4269 = vpack.c.b16 %v3961, %v3957
    %v4270 = vpack.c.b16 %v3966, %v3962
    %v4271 = vpack.c.b16 %v3967, %v3963
    %v4272 = vpack.c.b16 %v3968, %v3964
    %v4273 = vpack.c.b16 %v3969, %v3965
    %v4274 = vpack.c.b16 %v3974, %v3970
    %v4275 = vpack.c.b16 %v3975, %v3971
    %v4276 = vpack.c.b16 %v3976, %v3972
    %v4277 = vpack.c.b16 %v3977, %v3973
    %v4278 = vpack.c.b16 %v3982, %v3978
    %v4279 = vpack.c.b16 %v3983, %v3979
    %v4280 = vpack.c.b16 %v3984, %v3980
    %v4281 = vpack.c.b16 %v3985, %v3981
    %v4282 = vpack.c.b16 %v3990, %v3986
    %v4283 = vpack.c.b16 %v3991, %v3987
    %v4284 = vpack.c.b16 %v3992, %v3988
    %v4285 = vpack.c.b16 %v3993, %v3989
    %v4286 = vpack.c.b16 %v3998, %v3994
    %v4287 = vpack.c.b16 %v3999, %v3995
    %v4288 = vpack.c.b16 %v4000, %v3996
    %v4289 = vpack.c.b16 %v4001, %v3997
    %v4290 = vpack.c.b16 %v4006, %v4002
    %v4291 = vpack.c.b16 %v4007, %v4003
    %v4292 = vpack.c.b16 %v4008, %v4004
    %v4293 = vpack.c.b16 %v4009, %v4005
    %v4294 = vpack.c.b16 %v4014, %v4010
    %v4295 = vpack.c.b16 %v4015, %v4011
    %v4296 = vpack.c.b16 %v4016, %v4012
    %v4297 = vpack.c.b16 %v4017, %v4013
    %v4298 = vpack.c.b16 %v4022, %v4018
    %v4299 = vpack.c.b16 %v4023, %v4019
    %v4300 = vpack.c.b16 %v4024, %v4020
    %v4301 = vpack.c.b16 %v4025, %v4021
    %v4302 = vpack.c.b16 %v4030, %v4026
    %v4303 = vpack.c.b16 %v4031, %v4027
    %v4304 = vpack.c.b16 %v4032, %v4028
    %v4305 = vpack.c.b16 %v4033, %v4029
    %v4306 = vpack.c.b16 %v4038, %v4034
    %v4307 = vpack.c.b16 %v4039, %v4035
    %v4308 = vpack.c.b16 %v4040, %v4036
    %v4309 = vpack.c.b16 %v4041, %v4037
    %v4310 = vpack.c.b16 %v4046, %v4042
    %v4311 = vpack.c.b16 %v4047, %v4043
    %v4312 = vpack.c.b16 %v4048, %v4044
    %v4313 = vpack.c.b16 %v4049, %v4045
    %v4314 = vpack.c.b16 %v4054, %v4050
    %v4315 = vpack.c.b16 %v4055, %v4051
    %v4316 = vpack.c.b16 %v4056, %v4052
    %v4317 = vpack.c.b16 %v4057, %v4053
    %v4318 = vpack.c.b16 %v4062, %v4058
    %v4319 = vpack.c.b16 %v4063, %v4059
    %v4320 = vpack.c.b16 %v4064, %v4060
    %v4321 = vpack.c.b16 %v4065, %v4061
    %4578 = vmatprep.subr.bf16.mxu0 %v4095
    %4579 = vmatpush1.bf16.msra.mxu0 %v4094
    %4580 = vmatprep.subr.bf16.mxu0 %v4091
    %4581 = vmatpush1.bf16.msra.mxu0 %v4090
    %4582 = vmatprep.subr.bf16.mxu0 %v4087
    %4583 = vmatpush1.bf16.msra.mxu0 %v4086
    %4584 = vmatprep.subr.bf16.mxu0 %v4083
    %4585 = vmatpush1.bf16.msra.mxu0 %v4082
    %4586 = vmatprep.subr.bf16.mxu0 %v4079
    %4587 = vmatpush1.bf16.msra.mxu0 %v4078
    %4588 = vmatprep.subr.bf16.mxu0 %v4075
    %4589 = vmatpush1.bf16.msra.mxu0 %v4074
    %4590 = vmatprep.subr.bf16.mxu0 %v4071
    %4591 = vmatpush1.bf16.msra.mxu0 %v4070
    %4592 = vmatprep.subr.bf16.mxu0 %v4067
    %4593 = vmatpush1.bf16.msra.mxu0 %v4066
    %4594 = vmatprep.subr.bf16.mxu0 %v4127
    %4595 = vmatpush2.bf16.msra.mxu0 %v4126
    %4596 = vmatprep.subr.bf16.mxu0 %v4123
    %4597 = vmatpush2.bf16.msra.mxu0 %v4122
    %4598 = vmatprep.subr.bf16.mxu0 %v4119
    %4599 = vmatpush2.bf16.msra.mxu0 %v4118
    %4600 = vmatprep.subr.bf16.mxu0 %v4115
    %4601 = vmatpush2.bf16.msra.mxu0 %v4114
    %4602 = vmatprep.subr.bf16.mxu0 %v4111
    %4603 = vmatpush2.bf16.msra.mxu0 %v4110
    %4604 = vmatprep.subr.bf16.mxu0 %v4107
    %4605 = vmatpush2.bf16.msra.mxu0 %v4106
    %4606 = vmatprep.subr.bf16.mxu0 %v4103
    %4607 = vmatpush2.bf16.msra.mxu0 %v4102
    %4608 = vmatprep.subr.bf16.mxu0 %v4099
    %4609 = vmatpush2.bf16.msra.mxu0 %v4098
    %4610 = vmatprep.mubr.bf16.mxu0 %v3013
    %4611 = vmatmul.mubr.bf16.gmra.mxu0 %v3012
    %v4612 = vpop.f32.mrf.mxu0
    %v4613 = vadd.f32 %v3281, %v4612
    %v4614 = vpop.f32.mrf.mxu0
    %v4615 = vadd.f32 %v3285, %v4614
    %v4616 = vpop.f32.mrf.mxu0
    %v4617 = vpop.f32.mrf.mxu0
    %4618 = vdwg.mxu0
    %4619 = vmatprep.subr.bf16.mxu0 %v4159
    %4620 = vmatpush1.bf16.msra.mxu0 %v4158
    %4621 = vmatprep.subr.bf16.mxu0 %v4155
    %4622 = vmatpush1.bf16.msra.mxu0 %v4154
    %4623 = vmatprep.subr.bf16.mxu0 %v4151
    %4624 = vmatpush1.bf16.msra.mxu0 %v4150
    %4625 = vmatprep.subr.bf16.mxu0 %v4147
    %4626 = vmatpush1.bf16.msra.mxu0 %v4146
    %4627 = vmatprep.subr.bf16.mxu0 %v4143
    %4628 = vmatpush1.bf16.msra.mxu0 %v4142
    %4629 = vmatprep.subr.bf16.mxu0 %v4139
    %4630 = vmatpush1.bf16.msra.mxu0 %v4138
    %4631 = vmatprep.subr.bf16.mxu0 %v4135
    %4632 = vmatpush1.bf16.msra.mxu0 %v4134
    %4633 = vmatprep.subr.bf16.mxu0 %v4131
    %4634 = vmatpush1.bf16.msra.mxu0 %v4130
    %4635 = vmatprep.subr.bf16.mxu0 %v4191
    %4636 = vmatpush2.bf16.msra.mxu0 %v4190
    %4637 = vmatprep.subr.bf16.mxu0 %v4187
    %4638 = vmatpush2.bf16.msra.mxu0 %v4186
    %4639 = vmatprep.subr.bf16.mxu0 %v4183
    %4640 = vmatpush2.bf16.msra.mxu0 %v4182
    %4641 = vmatprep.subr.bf16.mxu0 %v4179
    %4642 = vmatpush2.bf16.msra.mxu0 %v4178
    %4643 = vmatprep.subr.bf16.mxu0 %v4175
    %4644 = vmatpush2.bf16.msra.mxu0 %v4174
    %4645 = vmatprep.subr.bf16.mxu0 %v4171
    %4646 = vmatpush2.bf16.msra.mxu0 %v4170
    %4647 = vmatprep.subr.bf16.mxu0 %v4167
    %4648 = vmatpush2.bf16.msra.mxu0 %v4166
    %4649 = vmatprep.subr.bf16.mxu0 %v4163
    %4650 = vmatpush2.bf16.msra.mxu0 %v4162
    %4651 = vmatprep.mubr.bf16.mxu0 %v3015
    %4652 = vmatmul.mubr.bf16.gmra.mxu0 %v3014
    %v4653 = vpop.f32.mrf.mxu0
    %v4654 = vadd.f32 %v4613, %v4653
    %v4655 = vpop.f32.mrf.mxu0
    %v4656 = vadd.f32 %v4615, %v4655
    %v4657 = vpop.f32.mrf.mxu0
    %v4658 = vpop.f32.mrf.mxu0
    %4659 = vdwg.mxu0
    %4660 = vmatprep.subr.bf16.mxu0 %v4223
    %4661 = vmatpush1.bf16.msra.mxu0 %v4222
    %4662 = vmatprep.subr.bf16.mxu0 %v4219
    %4663 = vmatpush1.bf16.msra.mxu0 %v4218
    %4664 = vmatprep.subr.bf16.mxu0 %v4215
    %4665 = vmatpush1.bf16.msra.mxu0 %v4214
    %4666 = vmatprep.subr.bf16.mxu0 %v4211
    %4667 = vmatpush1.bf16.msra.mxu0 %v4210
    %4668 = vmatprep.subr.bf16.mxu0 %v4207
    %4669 = vmatpush1.bf16.msra.mxu0 %v4206
    %4670 = vmatprep.subr.bf16.mxu0 %v4203
    %4671 = vmatpush1.bf16.msra.mxu0 %v4202
    %4672 = vmatprep.subr.bf16.mxu0 %v4199
    %4673 = vmatpush1.bf16.msra.mxu0 %v4198
    %4674 = vmatprep.subr.bf16.mxu0 %v4195
    %4675 = vmatpush1.bf16.msra.mxu0 %v4194
    %4676 = vmatprep.subr.bf16.mxu0 %v4255
    %4677 = vmatpush2.bf16.msra.mxu0 %v4254
    %4678 = vmatprep.subr.bf16.mxu0 %v4251
    %4679 = vmatpush2.bf16.msra.mxu0 %v4250
    %4680 = vmatprep.subr.bf16.mxu0 %v4247
    %4681 = vmatpush2.bf16.msra.mxu0 %v4246
    %4682 = vmatprep.subr.bf16.mxu0 %v4243
    %4683 = vmatpush2.bf16.msra.mxu0 %v4242
    %4684 = vmatprep.subr.bf16.mxu0 %v4239
    %4685 = vmatpush2.bf16.msra.mxu0 %v4238
    %4686 = vmatprep.subr.bf16.mxu0 %v4235
    %4687 = vmatpush2.bf16.msra.mxu0 %v4234
    %4688 = vmatprep.subr.bf16.mxu0 %v4231
    %4689 = vmatpush2.bf16.msra.mxu0 %v4230
    %4690 = vmatprep.subr.bf16.mxu0 %v4227
    %4691 = vmatpush2.bf16.msra.mxu0 %v4226
    %4692 = vmatprep.mubr.bf16.mxu0 %v3017
    %4693 = vmatmul.mubr.bf16.gmra.mxu0 %v3016
    %v4694 = vpop.f32.mrf.mxu0
    %v4695 = vadd.f32 %v4654, %v4694
    %v4696 = vpop.f32.mrf.mxu0
    %v4697 = vadd.f32 %v4656, %v4696
    %v4698 = vpop.f32.mrf.mxu0
    %v4699 = vpop.f32.mrf.mxu0
    %4700 = vdwg.mxu0
    %4701 = vmatprep.subr.bf16.mxu0 %v4287
    %4702 = vmatpush1.bf16.msra.mxu0 %v4286
    %4703 = vmatprep.subr.bf16.mxu0 %v4283
    %4704 = vmatpush1.bf16.msra.mxu0 %v4282
    %4705 = vmatprep.subr.bf16.mxu0 %v4279
    %4706 = vmatpush1.bf16.msra.mxu0 %v4278
    %4707 = vmatprep.subr.bf16.mxu0 %v4275
    %4708 = vmatpush1.bf16.msra.mxu0 %v4274
    %4709 = vmatprep.subr.bf16.mxu0 %v4271
    %4710 = vmatpush1.bf16.msra.mxu0 %v4270
    %4711 = vmatprep.subr.bf16.mxu0 %v4267
    %4712 = vmatpush1.bf16.msra.mxu0 %v4266
    %4713 = vmatprep.subr.bf16.mxu0 %v4263
    %4714 = vmatpush1.bf16.msra.mxu0 %v4262
    %4715 = vmatprep.subr.bf16.mxu0 %v4259
    %4716 = vmatpush1.bf16.msra.mxu0 %v4258
    %4717 = vmatprep.subr.bf16.mxu0 %v4319
    %4718 = vmatpush2.bf16.msra.mxu0 %v4318
    %4719 = vmatprep.subr.bf16.mxu0 %v4315
    %4720 = vmatpush2.bf16.msra.mxu0 %v4314
    %4721 = vmatprep.subr.bf16.mxu0 %v4311
    %4722 = vmatpush2.bf16.msra.mxu0 %v4310
    %4723 = vmatprep.subr.bf16.mxu0 %v4307
    %4724 = vmatpush2.bf16.msra.mxu0 %v4306
    %4725 = vmatprep.subr.bf16.mxu0 %v4303
    %4726 = vmatpush2.bf16.msra.mxu0 %v4302
    %4727 = vmatprep.subr.bf16.mxu0 %v4299
    %4728 = vmatpush2.bf16.msra.mxu0 %v4298
    %4729 = vmatprep.subr.bf16.mxu0 %v4295
    %4730 = vmatpush2.bf16.msra.mxu0 %v4294
    %4731 = vmatprep.subr.bf16.mxu0 %v4291
    %4732 = vmatpush2.bf16.msra.mxu0 %v4290
    %4733 = vmatprep.mubr.bf16.mxu0 %v3019
    %4734 = vmatmul.mubr.bf16.gmra.mxu0 %v3018
    %v4735 = vpop.f32.mrf.mxu0
    %v4736 = vadd.f32 %v4695, %v4735
    %v4737 = vpop.f32.mrf.mxu0
    %v4738 = vadd.f32 %v4697, %v4737
    %v4739 = vpop.f32.mrf.mxu0
    %v4740 = vpop.f32.mrf.mxu0
    %4741 = vdwg.mxu0
    %4742 = vmatprep.subr.bf16.mxu0 %v4097
    %4743 = vmatpush1.bf16.msra.mxu0 %v4096
    %4744 = vmatprep.subr.bf16.mxu0 %v4093
    %4745 = vmatpush1.bf16.msra.mxu0 %v4092
    %4746 = vmatprep.subr.bf16.mxu0 %v4089
    %4747 = vmatpush1.bf16.msra.mxu0 %v4088
    %4748 = vmatprep.subr.bf16.mxu0 %v4085
    %4749 = vmatpush1.bf16.msra.mxu0 %v4084
    %4750 = vmatprep.subr.bf16.mxu0 %v4081
    %4751 = vmatpush1.bf16.msra.mxu0 %v4080
    %4752 = vmatprep.subr.bf16.mxu0 %v4077
    %4753 = vmatpush1.bf16.msra.mxu0 %v4076
    %4754 = vmatprep.subr.bf16.mxu0 %v4073
    %4755 = vmatpush1.bf16.msra.mxu0 %v4072
    %4756 = vmatprep.subr.bf16.mxu0 %v4069
    %4757 = vmatpush1.bf16.msra.mxu0 %v4068
    %4758 = vmatprep.subr.bf16.mxu0 %v4129
    %4759 = vmatpush2.bf16.msra.mxu0 %v4128
    %4760 = vmatprep.subr.bf16.mxu0 %v4125
    %4761 = vmatpush2.bf16.msra.mxu0 %v4124
    %4762 = vmatprep.subr.bf16.mxu0 %v4121
    %4763 = vmatpush2.bf16.msra.mxu0 %v4120
    %4764 = vmatprep.subr.bf16.mxu0 %v4117
    %4765 = vmatpush2.bf16.msra.mxu0 %v4116
    %4766 = vmatprep.subr.bf16.mxu0 %v4113
    %4767 = vmatpush2.bf16.msra.mxu0 %v4112
    %4768 = vmatprep.subr.bf16.mxu0 %v4109
    %4769 = vmatpush2.bf16.msra.mxu0 %v4108
    %4770 = vmatprep.subr.bf16.mxu0 %v4105
    %4771 = vmatpush2.bf16.msra.mxu0 %v4104
    %4772 = vmatprep.subr.bf16.mxu0 %v4101
    %4773 = vmatpush2.bf16.msra.mxu0 %v4100
    %4774 = vmatprep.mubr.bf16.mxu0 %v3013
    %4775 = vmatmul.mubr.bf16.gmra.mxu0 %v3012
    %v4776 = vpop.f32.mrf.mxu0
    %v4777 = vadd.f32 %v3289, %v4776
    %v4778 = vpop.f32.mrf.mxu0
    %v4779 = vadd.f32 %v3293, %v4778
    %v4780 = vpop.f32.mrf.mxu0
    %v4781 = vpop.f32.mrf.mxu0
    %4782 = vdwg.mxu0
    %4783 = vmatprep.subr.bf16.mxu0 %v4161
    %4784 = vmatpush1.bf16.msra.mxu0 %v4160
    %4785 = vmatprep.subr.bf16.mxu0 %v4157
    %4786 = vmatpush1.bf16.msra.mxu0 %v4156
    %4787 = vmatprep.subr.bf16.mxu0 %v4153
    %4788 = vmatpush1.bf16.msra.mxu0 %v4152
    %4789 = vmatprep.subr.bf16.mxu0 %v4149
    %4790 = vmatpush1.bf16.msra.mxu0 %v4148
    %4791 = vmatprep.subr.bf16.mxu0 %v4145
    %4792 = vmatpush1.bf16.msra.mxu0 %v4144
    %4793 = vmatprep.subr.bf16.mxu0 %v4141
    %4794 = vmatpush1.bf16.msra.mxu0 %v4140
    %4795 = vmatprep.subr.bf16.mxu0 %v4137
    %4796 = vmatpush1.bf16.msra.mxu0 %v4136
    %4797 = vmatprep.subr.bf16.mxu0 %v4133
    %4798 = vmatpush1.bf16.msra.mxu0 %v4132
    %4799 = vmatprep.subr.bf16.mxu0 %v4193
    %4800 = vmatpush2.bf16.msra.mxu0 %v4192
    %4801 = vmatprep.subr.bf16.mxu0 %v4189
    %4802 = vmatpush2.bf16.msra.mxu0 %v4188
    %4803 = vmatprep.subr.bf16.mxu0 %v4185
    %4804 = vmatpush2.bf16.msra.mxu0 %v4184
    %4805 = vmatprep.subr.bf16.mxu0 %v4181
    %4806 = vmatpush2.bf16.msra.mxu0 %v4180
    %4807 = vmatprep.subr.bf16.mxu0 %v4177
    %4808 = vmatpush2.bf16.msra.mxu0 %v4176
    %4809 = vmatprep.subr.bf16.mxu0 %v4173
    %4810 = vmatpush2.bf16.msra.mxu0 %v4172
    %4811 = vmatprep.subr.bf16.mxu0 %v4169
    %4812 = vmatpush2.bf16.msra.mxu0 %v4168
    %4813 = vmatprep.subr.bf16.mxu0 %v4165
    %4814 = vmatpush2.bf16.msra.mxu0 %v4164
    %4815 = vmatprep.mubr.bf16.mxu0 %v3015
    %4816 = vmatmul.mubr.bf16.gmra.mxu0 %v3014
    %v4817 = vpop.f32.mrf.mxu0
    %v4818 = vadd.f32 %v4777, %v4817
    %v4819 = vpop.f32.mrf.mxu0
    %v4820 = vadd.f32 %v4779, %v4819
    %v4821 = vpop.f32.mrf.mxu0
    %v4822 = vpop.f32.mrf.mxu0
    %4823 = vdwg.mxu0
    %4824 = vmatprep.subr.bf16.mxu0 %v4225
    %4825 = vmatpush1.bf16.msra.mxu0 %v4224
    %4826 = vmatprep.subr.bf16.mxu0 %v4221
    %4827 = vmatpush1.bf16.msra.mxu0 %v4220
    %4828 = vmatprep.subr.bf16.mxu0 %v4217
    %4829 = vmatpush1.bf16.msra.mxu0 %v4216
    %4830 = vmatprep.subr.bf16.mxu0 %v4213
    %4831 = vmatpush1.bf16.msra.mxu0 %v4212
    %4832 = vmatprep.subr.bf16.mxu0 %v4209
    %4833 = vmatpush1.bf16.msra.mxu0 %v4208
    %4834 = vmatprep.subr.bf16.mxu0 %v4205
    %4835 = vmatpush1.bf16.msra.mxu0 %v4204
    %4836 = vmatprep.subr.bf16.mxu0 %v4201
    %4837 = vmatpush1.bf16.msra.mxu0 %v4200
    %4838 = vmatprep.subr.bf16.mxu0 %v4197
    %4839 = vmatpush1.bf16.msra.mxu0 %v4196
    %4840 = vmatprep.subr.bf16.mxu0 %v4257
    %4841 = vmatpush2.bf16.msra.mxu0 %v4256
    %4842 = vmatprep.subr.bf16.mxu0 %v4253
    %4843 = vmatpush2.bf16.msra.mxu0 %v4252
    %4844 = vmatprep.subr.bf16.mxu0 %v4249
    %4845 = vmatpush2.bf16.msra.mxu0 %v4248
    %4846 = vmatprep.subr.bf16.mxu0 %v4245
    %4847 = vmatpush2.bf16.msra.mxu0 %v4244
    %4848 = vmatprep.subr.bf16.mxu0 %v4241
    %4849 = vmatpush2.bf16.msra.mxu0 %v4240
    %4850 = vmatprep.subr.bf16.mxu0 %v4237
    %4851 = vmatpush2.bf16.msra.mxu0 %v4236
    %4852 = vmatprep.subr.bf16.mxu0 %v4233
    %4853 = vmatpush2.bf16.msra.mxu0 %v4232
    %4854 = vmatprep.subr.bf16.mxu0 %v4229
    %4855 = vmatpush2.bf16.msra.mxu0 %v4228
    %4856 = vmatprep.mubr.bf16.mxu0 %v3017
    %4857 = vmatmul.mubr.bf16.gmra.mxu0 %v3016
    %v4858 = vpop.f32.mrf.mxu0
    %v4859 = vadd.f32 %v4818, %v4858
    %v4860 = vpop.f32.mrf.mxu0
    %v4861 = vadd.f32 %v4820, %v4860
    %v4862 = vpop.f32.mrf.mxu0
    %v4863 = vpop.f32.mrf.mxu0
    %4864 = vdwg.mxu0
    %4865 = vmatprep.subr.bf16.mxu0 %v4289
    %4866 = vmatpush1.bf16.msra.mxu0 %v4288
    %4867 = vmatprep.subr.bf16.mxu0 %v4285
    %4868 = vmatpush1.bf16.msra.mxu0 %v4284
    %4869 = vmatprep.subr.bf16.mxu0 %v4281
    %4870 = vmatpush1.bf16.msra.mxu0 %v4280
    %4871 = vmatprep.subr.bf16.mxu0 %v4277
    %4872 = vmatpush1.bf16.msra.mxu0 %v4276
    %4873 = vmatprep.subr.bf16.mxu0 %v4273
    %4874 = vmatpush1.bf16.msra.mxu0 %v4272
    %4875 = vmatprep.subr.bf16.mxu0 %v4269
    %4876 = vmatpush1.bf16.msra.mxu0 %v4268
    %4877 = vmatprep.subr.bf16.mxu0 %v4265
    %4878 = vmatpush1.bf16.msra.mxu0 %v4264
    %4879 = vmatprep.subr.bf16.mxu0 %v4261
    %4880 = vmatpush1.bf16.msra.mxu0 %v4260
    %4881 = vmatprep.subr.bf16.mxu0 %v4321
    %4882 = vmatpush2.bf16.msra.mxu0 %v4320
    %4883 = vmatprep.subr.bf16.mxu0 %v4317
    %4884 = vmatpush2.bf16.msra.mxu0 %v4316
    %4885 = vmatprep.subr.bf16.mxu0 %v4313
    %4886 = vmatpush2.bf16.msra.mxu0 %v4312
    %4887 = vmatprep.subr.bf16.mxu0 %v4309
    %4888 = vmatpush2.bf16.msra.mxu0 %v4308
    %4889 = vmatprep.subr.bf16.mxu0 %v4305
    %4890 = vmatpush2.bf16.msra.mxu0 %v4304
    %4891 = vmatprep.subr.bf16.mxu0 %v4301
    %4892 = vmatpush2.bf16.msra.mxu0 %v4300
    %4893 = vmatprep.subr.bf16.mxu0 %v4297
    %4894 = vmatpush2.bf16.msra.mxu0 %v4296
    %4895 = vmatprep.subr.bf16.mxu0 %v4293
    %4896 = vmatpush2.bf16.msra.mxu0 %v4292
    %4897 = vmatprep.mubr.bf16.mxu0 %v3019
    %4898 = vmatmul.mubr.bf16.gmra.mxu0 %v3018
    %v4899 = vpop.f32.mrf.mxu0
    %v4900 = vadd.f32 %v4859, %v4899
    %v4901 = vpop.f32.mrf.mxu0
    %v4902 = vadd.f32 %v4861, %v4901
    %v4903 = vpop.f32.mrf.mxu0
    %v4904 = vpop.f32.mrf.mxu0
    %4905 = vdwg.mxu0
    %v4906 = vsub.f32 0.0, %v4736
    %v4907 = vsub.f32 0.0, %v4738
    %v4908 = vsub.f32 0.0, %v4900
    %v4909 = vsub.f32 0.0, %v4902
    %v4910 = vmul.f32 %v4906, 1.442695
    %v4911 = vpow.pop %v4910
    %v4912 = vmul.f32 %v4907, 1.442695
    %v4913 = vpow.pop %v4912
    %v4914 = vmul.f32 %v4908, 1.442695
    %v4915 = vpow.pop %v4914
    %v4916 = vmul.f32 %v4909, 1.442695
    %v4917 = vpow.pop %v4916
    %v4918 = vadd.f32 %v4911, 1.0
    %v4919 = vadd.f32 %v4913, 1.0
    %v4920 = vadd.f32 %v4915, 1.0
    %v4921 = vadd.f32 %v4917, 1.0
    %v4922 = vrcp.pop %v4918
    %v4923 = vrcp.pop %v4919
    %v4924 = vrcp.pop %v4920
    %v4925 = vrcp.pop %v4921
    %v4926 = vmul.f32 %v4736, %v4922
    %v4927 = vmul.f32 %v4738, %v4923
    %v4928 = vmul.f32 %v4900, %v4924
    %v4929 = vmul.f32 %v4902, %v4925
    %v4930 = vpack.c.bf16 %v4926, %v4926
    %v4931 = vpack.c.bf16 %v4927, %v4927
    %v4932 = vpack.c.bf16 %v4928, %v4928
    %v4933 = vpack.c.bf16 %v4929, %v4929
    %v4934 = vld [vmem:[%s11] sm:$0xff]
    %v4935 = vld [vmem:[%s11 + $0x8] sm:$0xff]
    %v4936 = vld [vmem:[%s11 + $0x10] sm:$0xff]
    %v4937 = vld [vmem:[%s11 + $0x18] sm:$0xff]
    %v4938 = vld [vmem:[%s11 + $0x20] sm:$0xff]
    %v4939 = vld [vmem:[%s11 + $0x28] sm:$0xff]
    %v4940 = vld [vmem:[%s11 + $0x30] sm:$0xff]
    %v4941 = vld [vmem:[%s11 + $0x38] sm:$0xff]
    %v4942 = vld [vmem:[%s11 + $0x40] sm:$0xff]
    %v4943 = vld [vmem:[%s11 + $0x48] sm:$0xff]
    %v4944 = vld [vmem:[%s11 + $0x50] sm:$0xff]
    %v4945 = vld [vmem:[%s11 + $0x58] sm:$0xff]
    %v4946 = vld [vmem:[%s11 + $0x60] sm:$0xff]
    %v4947 = vld [vmem:[%s11 + $0x68] sm:$0xff]
    %v4948 = vld [vmem:[%s11 + $0x70] sm:$0xff]
    %v4949 = vld [vmem:[%s11 + $0x78] sm:$0xff]
    %v4950 = vld [vmem:[%s11 + $0x80] sm:$0xff]
    %v4951 = vld [vmem:[%s11 + $0x88] sm:$0xff]
    %v4952 = vld [vmem:[%s11 + $0x90] sm:$0xff]
    %v4953 = vld [vmem:[%s11 + $0x98] sm:$0xff]
    %v4954 = vld [vmem:[%s11 + $0xa0] sm:$0xff]
    %v4955 = vld [vmem:[%s11 + $0xa8] sm:$0xff]
    %v4956 = vld [vmem:[%s11 + $0xb0] sm:$0xff]
    %v4957 = vld [vmem:[%s11 + $0xb8] sm:$0xff]
    %v4958 = vld [vmem:[%s11 + $0xc0] sm:$0xff]
    %v4959 = vld [vmem:[%s11 + $0xc8] sm:$0xff]
    %v4960 = vld [vmem:[%s11 + $0xd0] sm:$0xff]
    %v4961 = vld [vmem:[%s11 + $0xd8] sm:$0xff]
    %v4962 = vld [vmem:[%s11 + $0xe0] sm:$0xff]
    %v4963 = vld [vmem:[%s11 + $0xe8] sm:$0xff]
    %v4964 = vld [vmem:[%s11 + $0xf0] sm:$0xff]
    %v4965 = vld [vmem:[%s11 + $0xf8] sm:$0xff]
    %v4966 = vld [vmem:[%s11 + $0x100] sm:$0xff]
    %v4967 = vld [vmem:[%s11 + $0x108] sm:$0xff]
    %v4968 = vld [vmem:[%s11 + $0x110] sm:$0xff]
    %v4969 = vld [vmem:[%s11 + $0x118] sm:$0xff]
    %v4970 = vld [vmem:[%s11 + $0x120] sm:$0xff]
    %v4971 = vld [vmem:[%s11 + $0x128] sm:$0xff]
    %v4972 = vld [vmem:[%s11 + $0x130] sm:$0xff]
    %v4973 = vld [vmem:[%s11 + $0x138] sm:$0xff]
    %v4974 = vld [vmem:[%s11 + $0x140] sm:$0xff]
    %v4975 = vld [vmem:[%s11 + $0x148] sm:$0xff]
    %v4976 = vld [vmem:[%s11 + $0x150] sm:$0xff]
    %v4977 = vld [vmem:[%s11 + $0x158] sm:$0xff]
    %v4978 = vld [vmem:[%s11 + $0x160] sm:$0xff]
    %v4979 = vld [vmem:[%s11 + $0x168] sm:$0xff]
    %v4980 = vld [vmem:[%s11 + $0x170] sm:$0xff]
    %v4981 = vld [vmem:[%s11 + $0x178] sm:$0xff]
    %v4982 = vld [vmem:[%s11 + $0x180] sm:$0xff]
    %v4983 = vld [vmem:[%s11 + $0x188] sm:$0xff]
    %v4984 = vld [vmem:[%s11 + $0x190] sm:$0xff]
    %v4985 = vld [vmem:[%s11 + $0x198] sm:$0xff]
    %v4986 = vld [vmem:[%s11 + $0x1a0] sm:$0xff]
    %v4987 = vld [vmem:[%s11 + $0x1a8] sm:$0xff]
    %v4988 = vld [vmem:[%s11 + $0x1b0] sm:$0xff]
    %v4989 = vld [vmem:[%s11 + $0x1b8] sm:$0xff]
    %v4990 = vld [vmem:[%s11 + $0x1c0] sm:$0xff]
    %v4991 = vld [vmem:[%s11 + $0x1c8] sm:$0xff]
    %v4992 = vld [vmem:[%s11 + $0x1d0] sm:$0xff]
    %v4993 = vld [vmem:[%s11 + $0x1d8] sm:$0xff]
    %v4994 = vld [vmem:[%s11 + $0x1e0] sm:$0xff]
    %v4995 = vld [vmem:[%s11 + $0x1e8] sm:$0xff]
    %v4996 = vld [vmem:[%s11 + $0x1f0] sm:$0xff]
    %v4997 = vld [vmem:[%s11 + $0x1f8] sm:$0xff]
    %v4998 = vld [vmem:[%s12] sm:$0x3]
    %v5000 = vlaneseq
    %v5001 = vshrl.u32 %v5000, 7
    %v5002 = vsub.s32 0, %v5001
    %v5003 = vrot.slane %v4998, %v5002
    %v5004 = vlaneseq
    %v5005 = vshrl.u32 %v5004, 7
    %v5006 = vsub.s32 1, %v5005
    %v5007 = vrot.slane %v4998, %v5006
    %v5074 = vunpack.c.l.b16 %v4934
    %v5075 = vunpack.c.h.b16 %v4934
    %v5076 = vunpack.c.l.b16 %v4935
    %v5077 = vunpack.c.h.b16 %v4935
    %v5078 = vunpack.c.l.b16 %v4936
    %v5079 = vunpack.c.h.b16 %v4936
    %v5080 = vunpack.c.l.b16 %v4937
    %v5081 = vunpack.c.h.b16 %v4937
    %v5082 = vunpack.c.l.b16 %v4938
    %v5083 = vunpack.c.h.b16 %v4938
    %v5084 = vunpack.c.l.b16 %v4939
    %v5085 = vunpack.c.h.b16 %v4939
    %v5086 = vunpack.c.l.b16 %v4940
    %v5087 = vunpack.c.h.b16 %v4940
    %v5088 = vunpack.c.l.b16 %v4941
    %v5089 = vunpack.c.h.b16 %v4941
    %v5090 = vunpack.c.l.b16 %v4942
    %v5091 = vunpack.c.h.b16 %v4942
    %v5092 = vunpack.c.l.b16 %v4943
    %v5093 = vunpack.c.h.b16 %v4943
    %v5094 = vunpack.c.l.b16 %v4944
    %v5095 = vunpack.c.h.b16 %v4944
    %v5096 = vunpack.c.l.b16 %v4945
    %v5097 = vunpack.c.h.b16 %v4945
    %v5098 = vunpack.c.l.b16 %v4946
    %v5099 = vunpack.c.h.b16 %v4946
    %v5100 = vunpack.c.l.b16 %v4947
    %v5101 = vunpack.c.h.b16 %v4947
    %v5102 = vunpack.c.l.b16 %v4948
    %v5103 = vunpack.c.h.b16 %v4948
    %v5104 = vunpack.c.l.b16 %v4949
    %v5105 = vunpack.c.h.b16 %v4949
    %v5106 = vunpack.c.l.b16 %v4950
    %v5107 = vunpack.c.h.b16 %v4950
    %v5108 = vunpack.c.l.b16 %v4951
    %v5109 = vunpack.c.h.b16 %v4951
    %v5110 = vunpack.c.l.b16 %v4952
    %v5111 = vunpack.c.h.b16 %v4952
    %v5112 = vunpack.c.l.b16 %v4953
    %v5113 = vunpack.c.h.b16 %v4953
    %v5114 = vunpack.c.l.b16 %v4954
    %v5115 = vunpack.c.h.b16 %v4954
    %v5116 = vunpack.c.l.b16 %v4955
    %v5117 = vunpack.c.h.b16 %v4955
    %v5118 = vunpack.c.l.b16 %v4956
    %v5119 = vunpack.c.h.b16 %v4956
    %v5120 = vunpack.c.l.b16 %v4957
    %v5121 = vunpack.c.h.b16 %v4957
    %v5122 = vunpack.c.l.b16 %v4958
    %v5123 = vunpack.c.h.b16 %v4958
    %v5124 = vunpack.c.l.b16 %v4959
    %v5125 = vunpack.c.h.b16 %v4959
    %v5126 = vunpack.c.l.b16 %v4960
    %v5127 = vunpack.c.h.b16 %v4960
    %v5128 = vunpack.c.l.b16 %v4961
    %v5129 = vunpack.c.h.b16 %v4961
    %v5130 = vunpack.c.l.b16 %v4962
    %v5131 = vunpack.c.h.b16 %v4962
    %v5132 = vunpack.c.l.b16 %v4963
    %v5133 = vunpack.c.h.b16 %v4963
    %v5134 = vunpack.c.l.b16 %v4964
    %v5135 = vunpack.c.h.b16 %v4964
    %v5136 = vunpack.c.l.b16 %v4965
    %v5137 = vunpack.c.h.b16 %v4965
    %v5138 = vunpack.c.l.b16 %v4966
    %v5139 = vunpack.c.h.b16 %v4966
    %v5140 = vunpack.c.l.b16 %v4967
    %v5141 = vunpack.c.h.b16 %v4967
    %v5142 = vunpack.c.l.b16 %v4968
    %v5143 = vunpack.c.h.b16 %v4968
    %v5144 = vunpack.c.l.b16 %v4969
    %v5145 = vunpack.c.h.b16 %v4969
    %v5146 = vunpack.c.l.b16 %v4970
    %v5147 = vunpack.c.h.b16 %v4970
    %v5148 = vunpack.c.l.b16 %v4971
    %v5149 = vunpack.c.h.b16 %v4971
    %v5150 = vunpack.c.l.b16 %v4972
    %v5151 = vunpack.c.h.b16 %v4972
    %v5152 = vunpack.c.l.b16 %v4973
    %v5153 = vunpack.c.h.b16 %v4973
    %v5154 = vunpack.c.l.b16 %v4974
    %v5155 = vunpack.c.h.b16 %v4974
    %v5156 = vunpack.c.l.b16 %v4975
    %v5157 = vunpack.c.h.b16 %v4975
    %v5158 = vunpack.c.l.b16 %v4976
    %v5159 = vunpack.c.h.b16 %v4976
    %v5160 = vunpack.c.l.b16 %v4977
    %v5161 = vunpack.c.h.b16 %v4977
    %v5162 = vunpack.c.l.b16 %v4978
    %v5163 = vunpack.c.h.b16 %v4978
    %v5164 = vunpack.c.l.b16 %v4979
    %v5165 = vunpack.c.h.b16 %v4979
    %v5166 = vunpack.c.l.b16 %v4980
    %v5167 = vunpack.c.h.b16 %v4980
    %v5168 = vunpack.c.l.b16 %v4981
    %v5169 = vunpack.c.h.b16 %v4981
    %v5170 = vunpack.c.l.b16 %v4982
    %v5171 = vunpack.c.h.b16 %v4982
    %v5172 = vunpack.c.l.b16 %v4983
    %v5173 = vunpack.c.h.b16 %v4983
    %v5174 = vunpack.c.l.b16 %v4984
    %v5175 = vunpack.c.h.b16 %v4984
    %v5176 = vunpack.c.l.b16 %v4985
    %v5177 = vunpack.c.h.b16 %v4985
    %v5178 = vunpack.c.l.b16 %v4986
    %v5179 = vunpack.c.h.b16 %v4986
    %v5180 = vunpack.c.l.b16 %v4987
    %v5181 = vunpack.c.h.b16 %v4987
    %v5182 = vunpack.c.l.b16 %v4988
    %v5183 = vunpack.c.h.b16 %v4988
    %v5184 = vunpack.c.l.b16 %v4989
    %v5185 = vunpack.c.h.b16 %v4989
    %v5186 = vunpack.c.l.b16 %v4990
    %v5187 = vunpack.c.h.b16 %v4990
    %v5188 = vunpack.c.l.b16 %v4991
    %v5189 = vunpack.c.h.b16 %v4991
    %v5190 = vunpack.c.l.b16 %v4992
    %v5191 = vunpack.c.h.b16 %v4992
    %v5192 = vunpack.c.l.b16 %v4993
    %v5193 = vunpack.c.h.b16 %v4993
    %v5194 = vunpack.c.l.b16 %v4994
    %v5195 = vunpack.c.h.b16 %v4994
    %v5196 = vunpack.c.l.b16 %v4995
    %v5197 = vunpack.c.h.b16 %v4995
    %v5198 = vunpack.c.l.b16 %v4996
    %v5199 = vunpack.c.h.b16 %v4996
    %v5200 = vunpack.c.l.b16 %v4997
    %v5201 = vunpack.c.h.b16 %v4997
    %v5202 = vpack.c.b16 %v5076, %v5074
    %v5203 = vpack.c.b16 %v5077, %v5075
    %v5204 = vpack.c.b16 %v5080, %v5078
    %v5205 = vpack.c.b16 %v5081, %v5079
    %v5206 = vpack.c.b16 %v5084, %v5082
    %v5207 = vpack.c.b16 %v5085, %v5083
    %v5208 = vpack.c.b16 %v5088, %v5086
    %v5209 = vpack.c.b16 %v5089, %v5087
    %v5210 = vpack.c.b16 %v5092, %v5090
    %v5211 = vpack.c.b16 %v5093, %v5091
    %v5212 = vpack.c.b16 %v5096, %v5094
    %v5213 = vpack.c.b16 %v5097, %v5095
    %v5214 = vpack.c.b16 %v5100, %v5098
    %v5215 = vpack.c.b16 %v5101, %v5099
    %v5216 = vpack.c.b16 %v5104, %v5102
    %v5217 = vpack.c.b16 %v5105, %v5103
    %v5218 = vpack.c.b16 %v5108, %v5106
    %v5219 = vpack.c.b16 %v5109, %v5107
    %v5220 = vpack.c.b16 %v5112, %v5110
    %v5221 = vpack.c.b16 %v5113, %v5111
    %v5222 = vpack.c.b16 %v5116, %v5114
    %v5223 = vpack.c.b16 %v5117, %v5115
    %v5224 = vpack.c.b16 %v5120, %v5118
    %v5225 = vpack.c.b16 %v5121, %v5119
    %v5226 = vpack.c.b16 %v5124, %v5122
    %v5227 = vpack.c.b16 %v5125, %v5123
    %v5228 = vpack.c.b16 %v5128, %v5126
    %v5229 = vpack.c.b16 %v5129, %v5127
    %v5230 = vpack.c.b16 %v5132, %v5130
    %v5231 = vpack.c.b16 %v5133, %v5131
    %v5232 = vpack.c.b16 %v5136, %v5134
    %v5233 = vpack.c.b16 %v5137, %v5135
    %v5234 = vpack.c.b16 %v5140, %v5138
    %v5235 = vpack.c.b16 %v5141, %v5139
    %v5236 = vpack.c.b16 %v5144, %v5142
    %v5237 = vpack.c.b16 %v5145, %v5143
    %v5238 = vpack.c.b16 %v5148, %v5146
    %v5239 = vpack.c.b16 %v5149, %v5147
    %v5240 = vpack.c.b16 %v5152, %v5150
    %v5241 = vpack.c.b16 %v5153, %v5151
    %v5242 = vpack.c.b16 %v5156, %v5154
    %v5243 = vpack.c.b16 %v5157, %v5155
    %v5244 = vpack.c.b16 %v5160, %v5158
    %v5245 = vpack.c.b16 %v5161, %v5159
    %v5246 = vpack.c.b16 %v5164, %v5162
    %v5247 = vpack.c.b16 %v5165, %v5163
    %v5248 = vpack.c.b16 %v5168, %v5166
    %v5249 = vpack.c.b16 %v5169, %v5167
    %v5250 = vpack.c.b16 %v5172, %v5170
    %v5251 = vpack.c.b16 %v5173, %v5171
    %v5252 = vpack.c.b16 %v5176, %v5174
    %v5253 = vpack.c.b16 %v5177, %v5175
    %v5254 = vpack.c.b16 %v5180, %v5178
    %v5255 = vpack.c.b16 %v5181, %v5179
    %v5256 = vpack.c.b16 %v5184, %v5182
    %v5257 = vpack.c.b16 %v5185, %v5183
    %v5258 = vpack.c.b16 %v5188, %v5186
    %v5259 = vpack.c.b16 %v5189, %v5187
    %v5260 = vpack.c.b16 %v5192, %v5190
    %v5261 = vpack.c.b16 %v5193, %v5191
    %v5262 = vpack.c.b16 %v5196, %v5194
    %v5263 = vpack.c.b16 %v5197, %v5195
    %v5264 = vpack.c.b16 %v5200, %v5198
    %v5265 = vpack.c.b16 %v5201, %v5199
    %5330 = vmatprep.subr.bf16.mxu0 %v5217
    %5331 = vmatpush1.bf16.msra.mxu0 %v5216
    %5332 = vmatprep.subr.bf16.mxu0 %v5215
    %5333 = vmatpush1.bf16.msra.mxu0 %v5214
    %5334 = vmatprep.subr.bf16.mxu0 %v5213
    %5335 = vmatpush1.bf16.msra.mxu0 %v5212
    %5336 = vmatprep.subr.bf16.mxu0 %v5211
    %5337 = vmatpush1.bf16.msra.mxu0 %v5210
    %5338 = vmatprep.subr.bf16.mxu0 %v5209
    %5339 = vmatpush1.bf16.msra.mxu0 %v5208
    %5340 = vmatprep.subr.bf16.mxu0 %v5207
    %5341 = vmatpush1.bf16.msra.mxu0 %v5206
    %5342 = vmatprep.subr.bf16.mxu0 %v5205
    %5343 = vmatpush1.bf16.msra.mxu0 %v5204
    %5344 = vmatprep.subr.bf16.mxu0 %v5203
    %5345 = vmatpush1.bf16.msra.mxu0 %v5202
    %5346 = vmatprep.subr.bf16.mxu0 %v5233
    %5347 = vmatpush2.bf16.msra.mxu0 %v5232
    %5348 = vmatprep.subr.bf16.mxu0 %v5231
    %5349 = vmatpush2.bf16.msra.mxu0 %v5230
    %5350 = vmatprep.subr.bf16.mxu0 %v5229
    %5351 = vmatpush2.bf16.msra.mxu0 %v5228
    %5352 = vmatprep.subr.bf16.mxu0 %v5227
    %5353 = vmatpush2.bf16.msra.mxu0 %v5226
    %5354 = vmatprep.subr.bf16.mxu0 %v5225
    %5355 = vmatpush2.bf16.msra.mxu0 %v5224
    %5356 = vmatprep.subr.bf16.mxu0 %v5223
    %5357 = vmatpush2.bf16.msra.mxu0 %v5222
    %5358 = vmatprep.subr.bf16.mxu0 %v5221
    %5359 = vmatpush2.bf16.msra.mxu0 %v5220
    %5360 = vmatprep.subr.bf16.mxu0 %v5219
    %5361 = vmatpush2.bf16.msra.mxu0 %v5218
    %5362 = vmatprep.mubr.bf16.mxu0 %v4931
    %5363 = vmatmul.mubr.bf16.gmra.mxu0 %v4930
    %v5364 = vpop.f32.mrf.mxu0
    %v5365 = vadd.f32 %v5003, %v5364
    %v5366 = vpop.f32.mrf.mxu0
    %v5367 = vadd.f32 %v5007, %v5366
    %v5368 = vpop.f32.mrf.mxu0
    %v5369 = vpop.f32.mrf.mxu0
    %5370 = vdwg.mxu0
    %5371 = vmatprep.subr.bf16.mxu0 %v5249
    %5372 = vmatpush1.bf16.msra.mxu0 %v5248
    %5373 = vmatprep.subr.bf16.mxu0 %v5247
    %5374 = vmatpush1.bf16.msra.mxu0 %v5246
    %5375 = vmatprep.subr.bf16.mxu0 %v5245
    %5376 = vmatpush1.bf16.msra.mxu0 %v5244
    %5377 = vmatprep.subr.bf16.mxu0 %v5243
    %5378 = vmatpush1.bf16.msra.mxu0 %v5242
    %5379 = vmatprep.subr.bf16.mxu0 %v5241
    %5380 = vmatpush1.bf16.msra.mxu0 %v5240
    %5381 = vmatprep.subr.bf16.mxu0 %v5239
    %5382 = vmatpush1.bf16.msra.mxu0 %v5238
    %5383 = vmatprep.subr.bf16.mxu0 %v5237
    %5384 = vmatpush1.bf16.msra.mxu0 %v5236
    %5385 = vmatprep.subr.bf16.mxu0 %v5235
    %5386 = vmatpush1.bf16.msra.mxu0 %v5234
    %5387 = vmatprep.subr.bf16.mxu0 %v5265
    %5388 = vmatpush2.bf16.msra.mxu0 %v5264
    %5389 = vmatprep.subr.bf16.mxu0 %v5263
    %5390 = vmatpush2.bf16.msra.mxu0 %v5262
    %5391 = vmatprep.subr.bf16.mxu0 %v5261
    %5392 = vmatpush2.bf16.msra.mxu0 %v5260
    %5393 = vmatprep.subr.bf16.mxu0 %v5259
    %5394 = vmatpush2.bf16.msra.mxu0 %v5258
    %5395 = vmatprep.subr.bf16.mxu0 %v5257
    %5396 = vmatpush2.bf16.msra.mxu0 %v5256
    %5397 = vmatprep.subr.bf16.mxu0 %v5255
    %5398 = vmatpush2.bf16.msra.mxu0 %v5254
    %5399 = vmatprep.subr.bf16.mxu0 %v5253
    %5400 = vmatpush2.bf16.msra.mxu0 %v5252
    %5401 = vmatprep.subr.bf16.mxu0 %v5251
    %5402 = vmatpush2.bf16.msra.mxu0 %v5250
    %5403 = vmatprep.mubr.bf16.mxu0 %v4933
    %5404 = vmatmul.mubr.bf16.gmra.mxu0 %v4932
    %v5405 = vpop.f32.mrf.mxu0
    %v5406 = vadd.f32 %v5365, %v5405
    %v5407 = vpop.f32.mrf.mxu0
    %v5408 = vadd.f32 %v5367, %v5407
    %v5409 = vpop.f32.mrf.mxu0
    %v5410 = vpop.f32.mrf.mxu0
    %5411 = vdwg.mxu0
    %v5412 = vsub.f32 0.0, %v5406
    %v5413 = vsub.f32 0.0, %v5408
    %v5414 = vmul.f32 %v5412, 1.442695
    %v5415 = vpow.pop %v5414
    %v5416 = vmul.f32 %v5413, 1.442695
    %v5417 = vpow.pop %v5416
    %v5418 = vadd.f32 %v5415, 1.0
    %v5419 = vadd.f32 %v5417, 1.0
    %v5420 = vrcp.pop %v5418
    %v5421 = vrcp.pop %v5419
    %v5422 = vmul.f32 %v5406, %v5420
    %v5423 = vmul.f32 %v5408, %v5421
    %v5424 = vpack.c.bf16 %v5422, %v5422
    %v5425 = vpack.c.bf16 %v5423, %v5423
    %v5426 = vld [vmem:[%s13] sm:$0xf]
    %v5427 = vld [vmem:[%s13 + $0x4] sm:$0xf]
    %v5428 = vld [vmem:[%s13 + $0x8] sm:$0xf]
    %v5429 = vld [vmem:[%s13 + $0xc] sm:$0xf]
    %v5430 = vld [vmem:[%s13 + $0x10] sm:$0xf]
    %v5431 = vld [vmem:[%s13 + $0x14] sm:$0xf]
    %v5432 = vld [vmem:[%s13 + $0x18] sm:$0xf]
    %v5433 = vld [vmem:[%s13 + $0x1c] sm:$0xf]
    %v5434 = vld [vmem:[%s13 + $0x20] sm:$0xf]
    %v5435 = vld [vmem:[%s13 + $0x24] sm:$0xf]
    %v5436 = vld [vmem:[%s13 + $0x28] sm:$0xf]
    %v5437 = vld [vmem:[%s13 + $0x2c] sm:$0xf]
    %v5438 = vld [vmem:[%s13 + $0x30] sm:$0xf]
    %v5439 = vld [vmem:[%s13 + $0x34] sm:$0xf]
    %v5440 = vld [vmem:[%s13 + $0x38] sm:$0xf]
    %v5441 = vld [vmem:[%s13 + $0x3c] sm:$0xf]
    %v5442 = vld [vmem:[%s13 + $0x40] sm:$0xf]
    %v5443 = vld [vmem:[%s13 + $0x44] sm:$0xf]
    %v5444 = vld [vmem:[%s13 + $0x48] sm:$0xf]
    %v5445 = vld [vmem:[%s13 + $0x4c] sm:$0xf]
    %v5446 = vld [vmem:[%s13 + $0x50] sm:$0xf]
    %v5447 = vld [vmem:[%s13 + $0x54] sm:$0xf]
    %v5448 = vld [vmem:[%s13 + $0x58] sm:$0xf]
    %v5449 = vld [vmem:[%s13 + $0x5c] sm:$0xf]
    %v5450 = vld [vmem:[%s13 + $0x60] sm:$0xf]
    %v5451 = vld [vmem:[%s13 + $0x64] sm:$0xf]
    %v5452 = vld [vmem:[%s13 + $0x68] sm:$0xf]
    %v5453 = vld [vmem:[%s13 + $0x6c] sm:$0xf]
    %v5454 = vld [vmem:[%s13 + $0x70] sm:$0xf]
    %v5455 = vld [vmem:[%s13 + $0x74] sm:$0xf]
    %v5456 = vld [vmem:[%s13 + $0x78] sm:$0xf]
    %v5457 = vld [vmem:[%s13 + $0x7c] sm:$0xf]
    %v5490 = vunpack.c.l.b16 %v5426
    %v5491 = vunpack.c.l.b16 %v5427
    %v5492 = vunpack.c.l.b16 %v5428
    %v5493 = vunpack.c.l.b16 %v5429
    %v5494 = vunpack.c.l.b16 %v5430
    %v5495 = vunpack.c.l.b16 %v5431
    %v5496 = vunpack.c.l.b16 %v5432
    %v5497 = vunpack.c.l.b16 %v5433
    %v5498 = vunpack.c.l.b16 %v5434
    %v5499 = vunpack.c.l.b16 %v5435
    %v5500 = vunpack.c.l.b16 %v5436
    %v5501 = vunpack.c.l.b16 %v5437
    %v5502 = vunpack.c.l.b16 %v5438
    %v5503 = vunpack.c.l.b16 %v5439
    %v5504 = vunpack.c.l.b16 %v5440
    %v5505 = vunpack.c.l.b16 %v5441
    %v5506 = vunpack.c.l.b16 %v5442
    %v5507 = vunpack.c.l.b16 %v5443
    %v5508 = vunpack.c.l.b16 %v5444
    %v5509 = vunpack.c.l.b16 %v5445
    %v5510 = vunpack.c.l.b16 %v5446
    %v5511 = vunpack.c.l.b16 %v5447
    %v5512 = vunpack.c.l.b16 %v5448
    %v5513 = vunpack.c.l.b16 %v5449
    %v5514 = vunpack.c.l.b16 %v5450
    %v5515 = vunpack.c.l.b16 %v5451
    %v5516 = vunpack.c.l.b16 %v5452
    %v5517 = vunpack.c.l.b16 %v5453
    %v5518 = vunpack.c.l.b16 %v5454
    %v5519 = vunpack.c.l.b16 %v5455
    %v5520 = vunpack.c.l.b16 %v5456
    %v5521 = vunpack.c.l.b16 %v5457
    %v5522 = vpack.c.b16 %v5491, %v5490
    %v5523 = vpack.c.b16 %v5493, %v5492
    %v5524 = vpack.c.b16 %v5495, %v5494
    %v5525 = vpack.c.b16 %v5497, %v5496
    %v5526 = vpack.c.b16 %v5499, %v5498
    %v5527 = vpack.c.b16 %v5501, %v5500
    %v5528 = vpack.c.b16 %v5503, %v5502
    %v5529 = vpack.c.b16 %v5505, %v5504
    %v5530 = vpack.c.b16 %v5507, %v5506
    %v5531 = vpack.c.b16 %v5509, %v5508
    %v5532 = vpack.c.b16 %v5511, %v5510
    %v5533 = vpack.c.b16 %v5513, %v5512
    %v5534 = vpack.c.b16 %v5515, %v5514
    %v5535 = vpack.c.b16 %v5517, %v5516
    %v5536 = vpack.c.b16 %v5519, %v5518
    %v5537 = vpack.c.b16 %v5521, %v5520
    %5554 = vmatprep.subr.bf16.mxu0 0
    %5555 = vmatpush1.bf16.msra.mxu0 %v5529
    %5556 = vmatprep.subr.bf16.mxu0 0
    %5557 = vmatpush1.bf16.msra.mxu0 %v5528
    %5558 = vmatprep.subr.bf16.mxu0 0
    %5559 = vmatpush1.bf16.msra.mxu0 %v5527
    %5560 = vmatprep.subr.bf16.mxu0 0
    %5561 = vmatpush1.bf16.msra.mxu0 %v5526
    %5562 = vmatprep.subr.bf16.mxu0 0
    %5563 = vmatpush1.bf16.msra.mxu0 %v5525
    %5564 = vmatprep.subr.bf16.mxu0 0
    %5565 = vmatpush1.bf16.msra.mxu0 %v5524
    %5566 = vmatprep.subr.bf16.mxu0 0
    %5567 = vmatpush1.bf16.msra.mxu0 %v5523
    %5568 = vmatprep.subr.bf16.mxu0 0
    %5569 = vmatpush1.bf16.msra.mxu0 %v5522
    %5570 = vmatprep.subr.bf16.mxu0 0
    %5571 = vmatpush2.bf16.msra.mxu0 %v5537
    %5572 = vmatprep.subr.bf16.mxu0 0
    %5573 = vmatpush2.bf16.msra.mxu0 %v5536
    %5574 = vmatprep.subr.bf16.mxu0 0
    %5575 = vmatpush2.bf16.msra.mxu0 %v5535
    %5576 = vmatprep.subr.bf16.mxu0 0
    %5577 = vmatpush2.bf16.msra.mxu0 %v5534
    %5578 = vmatprep.subr.bf16.mxu0 0
    %5579 = vmatpush2.bf16.msra.mxu0 %v5533
    %5580 = vmatprep.subr.bf16.mxu0 0
    %5581 = vmatpush2.bf16.msra.mxu0 %v5532
    %5582 = vmatprep.subr.bf16.mxu0 0
    %5583 = vmatpush2.bf16.msra.mxu0 %v5531
    %5584 = vmatprep.subr.bf16.mxu0 0
    %5585 = vmatpush2.bf16.msra.mxu0 %v5530
    %5586 = vmatprep.mubr.bf16.mxu0 %v5425
    %5587 = vmatmul.mubr.bf16.gmra.mxu0 %v5424
    %v5588 = vpop.f32.mrf.mxu0
    %v5589 = vadd.f32 0.0, %v5588
    %v5590 = vpop.f32.mrf.mxu0
    %v5591 = vpop.f32.mrf.mxu0
    %v5592 = vpop.f32.mrf.mxu0
    %5593 = vdwg.mxu0
    %vm5594 = vcmask 523264
    %v5595 = vsel %vm5594, %v5589, 0.0
    %5596 = vadd.xlane.f32.xlu0 %v5595
    %v5597 = vpop.xlane.xlu0 %5596
    %v5598 = vrcp.pop 64.0
    %v5599 = vmul.f32 %v5597, %v5598
    %v5600 = vsub.f32 %v5589, %v5599
    %v5601 = vmul.f32 %v5600, %v5600
    %v5602 = vsel %vm5594, %v5601, 0.0
    %5603 = vadd.xlane.f32.xlu0 %v5602
    %v5604 = vpop.xlane.xlu0 %5603
    %v5605 = vmul.f32 %v5604, %v5598
    %v5606 = vadd.f32 %v5605, 1e-05
    %v5607 = vrsqrt.pop %v5606
    %v5608 = vmul.f32 %v5600, %v5607
    %v5609 = vld [vmem:[%s14] sm:$0x1]
    %v5611 = vlaneseq
    %v5612 = vshrl.u32 %v5611, 7
    %v5613 = vsub.s32 0, %v5612
    %v5614 = vrot.slane %v5609, %v5613
    %v5616 = vmul.f32 %v5608, %v5614
    %v5617 = vld [vmem:[%s15] sm:$0x1]
    %v5619 = vlaneseq
    %v5620 = vshrl.u32 %v5619, 7
    %v5621 = vsub.s32 0, %v5620
    %v5622 = vrot.slane %v5617, %v5621
    %v5624 = vadd.f32 %v5616, %v5622
    %v5625 = vld [vmem:[%s4] sm:$0xff]
    %v5626 = vld [vmem:[%s2] sm:$0xff]
    %v5627 = vmul.f32 %v5625, %v5626
    %v5628 = vld [vmem:[%s5] sm:$0xff]
    %v5629 = vld [vmem:[%s3] sm:$0xff]
    %v5630 = vmul.f32 %v5628, %v5629
    %v5631 = vadd.f32 %v5627, %v5630
    %v5632 = vld [vmem:[%s1] sm:$0xff]
    %5634 = vrot.lane.b32.xlu0 %v5624, 8
    %v5635 = vpop.permute.xlu0 %5634
    %5638 = vrot.lane.b32.xlu0 %v5632, 72
    %v5639 = vpop.permute.xlu0 %5638
    %vm5641 = vcmask 64512
    %v5642 = vsel %vm5641, %v5631, %v5635
    %vm5643 = vcmask 588800
    %v5644 = vsel %vm5643, %v5642, %v5639
    %v5645 = vpack.c.bf16 %v5644, %v5644
    %v5646 = vpack.c.bf16 %v5639, %v5639
    %v5647 = vld [vmem:[#allocation5] sm:$0xff]
    %v5648 = vld [vmem:[#allocation5 + $0x8] sm:$0xff]
    %v5649 = vld [vmem:[#allocation5 + $0x10] sm:$0xff]
    %v5650 = vld [vmem:[#allocation5 + $0x18] sm:$0xff]
    %v5651 = vld [vmem:[#allocation5 + $0x20] sm:$0xff]
    %v5652 = vld [vmem:[#allocation5 + $0x28] sm:$0xff]
    %v5653 = vld [vmem:[#allocation5 + $0x30] sm:$0xff]
    %v5654 = vld [vmem:[#allocation5 + $0x38] sm:$0xff]
    %v5655 = vld [vmem:[#allocation5 + $0x40] sm:$0xff]
    %v5656 = vld [vmem:[#allocation5 + $0x48] sm:$0xff]
    %v5657 = vld [vmem:[#allocation5 + $0x50] sm:$0xff]
    %v5658 = vld [vmem:[#allocation5 + $0x58] sm:$0xff]
    %v5659 = vld [vmem:[#allocation5 + $0x60] sm:$0xff]
    %v5660 = vld [vmem:[#allocation5 + $0x68] sm:$0xff]
    %v5661 = vld [vmem:[#allocation5 + $0x70] sm:$0xff]
    %v5662 = vld [vmem:[#allocation5 + $0x78] sm:$0xff]
    %v5663 = vld [vmem:[#allocation5 + $0x80] sm:$0xff]
    %v5664 = vld [vmem:[#allocation5 + $0x88] sm:$0xff]
    %v5665 = vld [vmem:[#allocation5 + $0x90] sm:$0xff]
    %v5666 = vld [vmem:[#allocation5 + $0x98] sm:$0xff]
    %v5667 = vld [vmem:[#allocation5 + $0xa0] sm:$0xff]
    %v5668 = vld [vmem:[#allocation5 + $0xa8] sm:$0xff]
    %v5669 = vld [vmem:[#allocation5 + $0xb0] sm:$0xff]
    %v5670 = vld [vmem:[#allocation5 + $0xb8] sm:$0xff]
    %v5671 = vld [vmem:[#allocation5 + $0xc0] sm:$0xff]
    %v5672 = vld [vmem:[#allocation5 + $0xc8] sm:$0xff]
    %v5673 = vld [vmem:[#allocation5 + $0xd0] sm:$0xff]
    %v5674 = vld [vmem:[#allocation5 + $0xd8] sm:$0xff]
    %v5675 = vld [vmem:[#allocation5 + $0xe0] sm:$0xff]
    %v5676 = vld [vmem:[#allocation5 + $0xe8] sm:$0xff]
    %v5677 = vld [vmem:[#allocation5 + $0xf0] sm:$0xff]
    %v5678 = vld [vmem:[#allocation5 + $0xf8] sm:$0xff]
    %v5679 = vld [vmem:[#allocation5 + $0x100] sm:$0xff]
    %v5680 = vld [vmem:[#allocation5 + $0x108] sm:$0xff]
    %v5681 = vld [vmem:[#allocation5 + $0x110] sm:$0xff]
    %v5682 = vld [vmem:[#allocation5 + $0x118] sm:$0xff]
    %v5683 = vld [vmem:[#allocation5 + $0x120] sm:$0xff]
    %v5684 = vld [vmem:[#allocation5 + $0x128] sm:$0xff]
    %v5685 = vld [vmem:[#allocation5 + $0x130] sm:$0xff]
    %v5686 = vld [vmem:[#allocation5 + $0x138] sm:$0xff]
    %v5687 = vld [vmem:[#allocation5 + $0x140] sm:$0xff]
    %v5688 = vld [vmem:[#allocation5 + $0x148] sm:$0xff]
    %v5689 = vld [vmem:[#allocation5 + $0x150] sm:$0xff]
    %v5690 = vld [vmem:[#allocation5 + $0x158] sm:$0xff]
    %v5691 = vld [vmem:[#allocation5 + $0x160] sm:$0xff]
    %v5692 = vld [vmem:[#allocation5 + $0x168] sm:$0xff]
    %v5693 = vld [vmem:[#allocation5 + $0x170] sm:$0xff]
    %v5694 = vld [vmem:[#allocation5 + $0x178] sm:$0xff]
    %v5695 = vld [vmem:[#allocation5 + $0x180] sm:$0xff]
    %v5696 = vld [vmem:[#allocation5 + $0x188] sm:$0xff]
    %v5697 = vld [vmem:[%s17] sm:$0xf]
    %v5699 = vlaneseq
    %v5700 = vshrl.u32 %v5699, 7
    %v5701 = vsub.s32 0, %v5700
    %v5702 = vrot.slane %v5697, %v5701
    %v5703 = vlaneseq
    %v5704 = vshrl.u32 %v5703, 7
    %v5705 = vsub.s32 1, %v5704
    %v5706 = vrot.slane %v5697, %v5705
    %v5707 = vlaneseq
    %v5708 = vshrl.u32 %v5707, 7
    %v5709 = vsub.s32 2, %v5708
    %v5710 = vrot.slane %v5697, %v5709
    %v5711 = vlaneseq
    %v5712 = vshrl.u32 %v5711, 7
    %v5713 = vsub.s32 3, %v5712
    %v5714 = vrot.slane %v5697, %v5713
    %v5769 = vunpack.c.l.b16 %v5647
    %v5770 = vunpack.c.h.b16 %v5647
    %v5771 = vunpack.c.l.b16 %v5648
    %v5772 = vunpack.c.h.b16 %v5648
    %v5773 = vunpack.c.l.b16 %v5649
    %v5774 = vunpack.c.h.b16 %v5649
    %v5775 = vunpack.c.l.b16 %v5650
    %v5776 = vunpack.c.h.b16 %v5650
    %v5777 = vunpack.c.l.b16 %v5651
    %v5778 = vunpack.c.h.b16 %v5651
    %v5779 = vunpack.c.l.b16 %v5652
    %v5780 = vunpack.c.h.b16 %v5652
    %v5781 = vunpack.c.l.b16 %v5653
    %v5782 = vunpack.c.h.b16 %v5653
    %v5783 = vunpack.c.l.b16 %v5654
    %v5784 = vunpack.c.h.b16 %v5654
    %v5785 = vunpack.c.l.b16 %v5655
    %v5786 = vunpack.c.h.b16 %v5655
    %v5787 = vunpack.c.l.b16 %v5656
    %v5788 = vunpack.c.h.b16 %v5656
    %v5789 = vunpack.c.l.b16 %v5657
    %v5790 = vunpack.c.h.b16 %v5657
    %v5791 = vunpack.c.l.b16 %v5658
    %v5792 = vunpack.c.h.b16 %v5658
    %v5793 = vunpack.c.l.b16 %v5659
    %v5794 = vunpack.c.h.b16 %v5659
    %v5795 = vunpack.c.l.b16 %v5660
    %v5796 = vunpack.c.h.b16 %v5660
    %v5797 = vunpack.c.l.b16 %v5661
    %v5798 = vunpack.c.h.b16 %v5661
    %v5799 = vunpack.c.l.b16 %v5662
    %v5800 = vunpack.c.h.b16 %v5662
    %v5801 = vunpack.c.l.b16 %v5663
    %v5802 = vunpack.c.h.b16 %v5663
    %v5803 = vunpack.c.l.b16 %v5664
    %v5804 = vunpack.c.h.b16 %v5664
    %v5805 = vunpack.c.l.b16 %v5665
    %v5806 = vunpack.c.h.b16 %v5665
    %v5807 = vunpack.c.l.b16 %v5666
    %v5808 = vunpack.c.h.b16 %v5666
    %v5809 = vunpack.c.l.b16 %v5667
    %v5810 = vunpack.c.h.b16 %v5667
    %v5811 = vunpack.c.l.b16 %v5668
    %v5812 = vunpack.c.h.b16 %v5668
    %v5813 = vunpack.c.l.b16 %v5669
    %v5814 = vunpack.c.h.b16 %v5669
    %v5815 = vunpack.c.l.b16 %v5670
    %v5816 = vunpack.c.h.b16 %v5670
    %v5817 = vunpack.c.l.b16 %v5671
    %v5818 = vunpack.c.h.b16 %v5671
    %v5819 = vunpack.c.l.b16 %v5672
    %v5820 = vunpack.c.h.b16 %v5672
    %v5821 = vunpack.c.l.b16 %v5673
    %v5822 = vunpack.c.h.b16 %v5673
    %v5823 = vunpack.c.l.b16 %v5674
    %v5824 = vunpack.c.h.b16 %v5674
    %v5825 = vunpack.c.l.b16 %v5675
    %v5826 = vunpack.c.h.b16 %v5675
    %v5827 = vunpack.c.l.b16 %v5676
    %v5828 = vunpack.c.h.b16 %v5676
    %v5829 = vunpack.c.l.b16 %v5677
    %v5830 = vunpack.c.h.b16 %v5677
    %v5831 = vunpack.c.l.b16 %v5678
    %v5832 = vunpack.c.h.b16 %v5678
    %v5833 = vunpack.c.l.b16 %v5679
    %v5834 = vunpack.c.h.b16 %v5679
    %v5835 = vunpack.c.l.b16 %v5680
    %v5836 = vunpack.c.h.b16 %v5680
    %v5837 = vunpack.c.l.b16 %v5681
    %v5838 = vunpack.c.h.b16 %v5681
    %v5839 = vunpack.c.l.b16 %v5682
    %v5840 = vunpack.c.h.b16 %v5682
    %v5841 = vunpack.c.l.b16 %v5683
    %v5842 = vunpack.c.h.b16 %v5683
    %v5843 = vunpack.c.l.b16 %v5684
    %v5844 = vunpack.c.h.b16 %v5684
    %v5845 = vunpack.c.l.b16 %v5685
    %v5846 = vunpack.c.h.b16 %v5685
    %v5847 = vunpack.c.l.b16 %v5686
    %v5848 = vunpack.c.h.b16 %v5686
    %v5849 = vunpack.c.l.b16 %v5687
    %v5850 = vunpack.c.h.b16 %v5687
    %v5851 = vunpack.c.l.b16 %v5688
    %v5852 = vunpack.c.h.b16 %v5688
    %v5853 = vunpack.c.l.b16 %v5689
    %v5854 = vunpack.c.h.b16 %v5689
    %v5855 = vunpack.c.l.b16 %v5690
    %v5856 = vunpack.c.h.b16 %v5690
    %v5857 = vunpack.c.l.b16 %v5691
    %v5858 = vunpack.c.h.b16 %v5691
    %v5859 = vunpack.c.l.b16 %v5692
    %v5860 = vunpack.c.h.b16 %v5692
    %v5861 = vunpack.c.l.b16 %v5693
    %v5862 = vunpack.c.h.b16 %v5693
    %v5863 = vunpack.c.l.b16 %v5694
    %v5864 = vunpack.c.h.b16 %v5694
    %v5865 = vunpack.c.l.b16 %v5695
    %v5866 = vunpack.c.h.b16 %v5695
    %v5867 = vunpack.c.l.b16 %v5696
    %v5868 = vunpack.c.h.b16 %v5696
    %v5869 = vpack.c.b16 %v5773, %v5769
    %v5870 = vpack.c.b16 %v5774, %v5770
    %v5871 = vpack.c.b16 %v5775, %v5771
    %v5872 = vpack.c.b16 %v5776, %v5772
    %v5873 = vpack.c.b16 %v5781, %v5777
    %v5874 = vpack.c.b16 %v5782, %v5778
    %v5875 = vpack.c.b16 %v5783, %v5779
    %v5876 = vpack.c.b16 %v5784, %v5780
    %v5877 = vpack.c.b16 %v5789, %v5785
    %v5878 = vpack.c.b16 %v5790, %v5786
    %v5879 = vpack.c.b16 %v5791, %v5787
    %v5880 = vpack.c.b16 %v5792, %v5788
    %v5881 = vpack.c.b16 %v5797, %v5793
    %v5882 = vpack.c.b16 %v5798, %v5794
    %v5883 = vpack.c.b16 %v5799, %v5795
    %v5884 = vpack.c.b16 %v5800, %v5796
    %v5885 = vpack.c.b16 %v5805, %v5801
    %v5886 = vpack.c.b16 %v5806, %v5802
    %v5887 = vpack.c.b16 %v5807, %v5803
    %v5888 = vpack.c.b16 %v5808, %v5804
    %v5889 = vpack.c.b16 %v5813, %v5809
    %v5890 = vpack.c.b16 %v5814, %v5810
    %v5891 = vpack.c.b16 %v5815, %v5811
    %v5892 = vpack.c.b16 %v5816, %v5812
    %v5893 = vpack.c.b16 %v5821, %v5817
    %v5894 = vpack.c.b16 %v5822, %v5818
    %v5895 = vpack.c.b16 %v5823, %v5819
    %v5896 = vpack.c.b16 %v5824, %v5820
    %v5897 = vpack.c.b16 %v5829, %v5825
    %v5898 = vpack.c.b16 %v5830, %v5826
    %v5899 = vpack.c.b16 %v5831, %v5827
    %v5900 = vpack.c.b16 %v5832, %v5828
    %v5901 = vpack.c.b16 %v5837, %v5833
    %v5902 = vpack.c.b16 %v5838, %v5834
    %v5903 = vpack.c.b16 %v5839, %v5835
    %v5904 = vpack.c.b16 %v5840, %v5836
    %v5905 = vpack.c.b16 %v5845, %v5841
    %v5906 = vpack.c.b16 %v5846, %v5842
    %v5907 = vpack.c.b16 %v5847, %v5843
    %v5908 = vpack.c.b16 %v5848, %v5844
    %v5909 = vpack.c.b16 %v5853, %v5849
    %v5910 = vpack.c.b16 %v5854, %v5850
    %v5911 = vpack.c.b16 %v5855, %v5851
    %v5912 = vpack.c.b16 %v5856, %v5852
    %v5913 = vpack.c.b16 %v5861, %v5857
    %v5914 = vpack.c.b16 %v5862, %v5858
    %v5915 = vpack.c.b16 %v5863, %v5859
    %v5916 = vpack.c.b16 %v5864, %v5860
    %v5917 = vpack.c.b16 %v5865, %v5865
    %v5918 = vpack.c.b16 %v5866, %v5866
    %v5919 = vpack.c.b16 %v5867, %v5867
    %v5920 = vpack.c.b16 %v5868, %v5868
    %v5970 = vsel %vm5643, %v5646, 0
    %vm5972 = vcmask 1043456
    %v5974 = vsel %vm5972, %v5917, 0
    %v5977 = vsel %vm5972, %v5918, 0
    %v5980 = vsel %vm5972, %v5919, 0
    %v5983 = vsel %vm5972, %v5920, 0
    %5985 = vmatprep.subr.bf16.mxu0 %v5898
    %5986 = vmatpush1.bf16.msra.mxu0 %v5897
    %5987 = vmatprep.subr.bf16.mxu0 %v5894
    %5988 = vmatpush1.bf16.msra.mxu0 %v5893
    %5989 = vmatprep.subr.bf16.mxu0 %v5890
    %5990 = vmatpush1.bf16.msra.mxu0 %v5889
    %5991 = vmatprep.subr.bf16.mxu0 %v5886
    %5992 = vmatpush1.bf16.msra.mxu0 %v5885
    %5993 = vmatprep.subr.bf16.mxu0 %v5882
    %5994 = vmatpush1.bf16.msra.mxu0 %v5881
    %5995 = vmatprep.subr.bf16.mxu0 %v5878
    %5996 = vmatpush1.bf16.msra.mxu0 %v5877
    %5997 = vmatprep.subr.bf16.mxu0 %v5874
    %5998 = vmatpush1.bf16.msra.mxu0 %v5873
    %5999 = vmatprep.subr.bf16.mxu0 %v5870
    %6000 = vmatpush1.bf16.msra.mxu0 %v5869
    %6001 = vmatprep.subr.bf16.mxu0 0
    %6002 = vmatpush2.bf16.msra.mxu0 0
    %6003 = vmatprep.subr.bf16.mxu0 0
    %6004 = vmatpush2.bf16.msra.mxu0 0
    %6005 = vmatprep.subr.bf16.mxu0 0
    %6006 = vmatpush2.bf16.msra.mxu0 0
    %6007 = vmatprep.subr.bf16.mxu0 %v5977
    %6008 = vmatpush2.bf16.msra.mxu0 %v5974
    %6009 = vmatprep.subr.bf16.mxu0 %v5914
    %6010 = vmatpush2.bf16.msra.mxu0 %v5913
    %6011 = vmatprep.subr.bf16.mxu0 %v5910
    %6012 = vmatpush2.bf16.msra.mxu0 %v5909
    %6013 = vmatprep.subr.bf16.mxu0 %v5906
    %6014 = vmatpush2.bf16.msra.mxu0 %v5905
    %6015 = vmatprep.subr.bf16.mxu0 %v5902
    %6016 = vmatpush2.bf16.msra.mxu0 %v5901
    %6017 = vmatprep.mubr.bf16.mxu0 %v5970
    %6018 = vmatmul.mubr.bf16.gmra.mxu0 %v5645
    %v6019 = vpop.f32.mrf.mxu0
    %v6020 = vadd.f32 %v5702, %v6019
    %v6021 = vpop.f32.mrf.mxu0
    %v6022 = vadd.f32 %v5706, %v6021
    %v6023 = vpop.f32.mrf.mxu0
    %v6024 = vpop.f32.mrf.mxu0
    %6025 = vdwg.mxu0
    %6026 = vmatprep.subr.bf16.mxu0 %v5900
    %6027 = vmatpush1.bf16.msra.mxu0 %v5899
    %6028 = vmatprep.subr.bf16.mxu0 %v5896
    %6029 = vmatpush1.bf16.msra.mxu0 %v5895
    %6030 = vmatprep.subr.bf16.mxu0 %v5892
    %6031 = vmatpush1.bf16.msra.mxu0 %v5891
    %6032 = vmatprep.subr.bf16.mxu0 %v5888
    %6033 = vmatpush1.bf16.msra.mxu0 %v5887
    %6034 = vmatprep.subr.bf16.mxu0 %v5884
    %6035 = vmatpush1.bf16.msra.mxu0 %v5883
    %6036 = vmatprep.subr.bf16.mxu0 %v5880
    %6037 = vmatpush1.bf16.msra.mxu0 %v5879
    %6038 = vmatprep.subr.bf16.mxu0 %v5876
    %6039 = vmatpush1.bf16.msra.mxu0 %v5875
    %6040 = vmatprep.subr.bf16.mxu0 %v5872
    %6041 = vmatpush1.bf16.msra.mxu0 %v5871
    %6042 = vmatprep.subr.bf16.mxu0 0
    %6043 = vmatpush2.bf16.msra.mxu0 0
    %6044 = vmatprep.subr.bf16.mxu0 0
    %6045 = vmatpush2.bf16.msra.mxu0 0
    %6046 = vmatprep.subr.bf16.mxu0 0
    %6047 = vmatpush2.bf16.msra.mxu0 0
    %6048 = vmatprep.subr.bf16.mxu0 %v5983
    %6049 = vmatpush2.bf16.msra.mxu0 %v5980
    %6050 = vmatprep.subr.bf16.mxu0 %v5916
    %6051 = vmatpush2.bf16.msra.mxu0 %v5915
    %6052 = vmatprep.subr.bf16.mxu0 %v5912
    %6053 = vmatpush2.bf16.msra.mxu0 %v5911
    %6054 = vmatprep.subr.bf16.mxu0 %v5908
    %6055 = vmatpush2.bf16.msra.mxu0 %v5907
    %6056 = vmatprep.subr.bf16.mxu0 %v5904
    %6057 = vmatpush2.bf16.msra.mxu0 %v5903
    %6058 = vmatprep.mubr.bf16.mxu0 %v5970
    %6059 = vmatmul.mubr.bf16.gmra.mxu0 %v5645
    %v6060 = vpop.f32.mrf.mxu0
    %v6061 = vadd.f32 %v5710, %v6060
    %v6062 = vpop.f32.mrf.mxu0
    %v6063 = vadd.f32 %v5714, %v6062
    %v6064 = vpop.f32.mrf.mxu0
    %v6065 = vpop.f32.mrf.mxu0
    %6066 = vdwg.mxu0
    %v6067 = vsub.f32 0.0, %v6020
    %v6068 = vsub.f32 0.0, %v6022
    %v6069 = vsub.f32 0.0, %v6061
    %v6070 = vsub.f32 0.0, %v6063
    %v6071 = vmul.f32 %v6067, 1.442695
    %v6072 = vpow.pop %v6071
    %v6073 = vmul.f32 %v6068, 1.442695
    %v6074 = vpow.pop %v6073
    %v6075 = vmul.f32 %v6069, 1.442695
    %v6076 = vpow.pop %v6075
    %v6077 = vmul.f32 %v6070, 1.442695
    %v6078 = vpow.pop %v6077
    %v6079 = vadd.f32 %v6072, 1.0
    %v6080 = vadd.f32 %v6074, 1.0
    %v6081 = vadd.f32 %v6076, 1.0
    %v6082 = vadd.f32 %v6078, 1.0
    %v6083 = vrcp.pop %v6079
    %v6084 = vrcp.pop %v6080
    %v6085 = vrcp.pop %v6081
    %v6086 = vrcp.pop %v6082
    %v6087 = vmul.f32 %v6020, %v6083
    %v6088 = vmul.f32 %v6022, %v6084
    %v6089 = vmul.f32 %v6061, %v6085
    %v6090 = vmul.f32 %v6063, %v6086
    %v6091 = vpack.c.bf16 %v6087, %v6087
    %v6092 = vpack.c.bf16 %v6088, %v6088
    %v6093 = vpack.c.bf16 %v6089, %v6089
    %v6094 = vpack.c.bf16 %v6090, %v6090
    %v6095 = vld [vmem:[#allocation7] sm:$0xff]
    %v6096 = vld [vmem:[#allocation7 + $0x8] sm:$0xff]
    %v6097 = vld [vmem:[#allocation7 + $0x10] sm:$0xff]
    %v6098 = vld [vmem:[#allocation7 + $0x18] sm:$0xff]
    %v6099 = vld [vmem:[#allocation7 + $0x20] sm:$0xff]
    %v6100 = vld [vmem:[#allocation7 + $0x28] sm:$0xff]
    %v6101 = vld [vmem:[#allocation7 + $0x30] sm:$0xff]
    %v6102 = vld [vmem:[#allocation7 + $0x38] sm:$0xff]
    %v6103 = vld [vmem:[#allocation7 + $0x40] sm:$0xff]
    %v6104 = vld [vmem:[#allocation7 + $0x48] sm:$0xff]
    %v6105 = vld [vmem:[#allocation7 + $0x50] sm:$0xff]
    %v6106 = vld [vmem:[#allocation7 + $0x58] sm:$0xff]
    %v6107 = vld [vmem:[#allocation7 + $0x60] sm:$0xff]
    %v6108 = vld [vmem:[#allocation7 + $0x68] sm:$0xff]
    %v6109 = vld [vmem:[#allocation7 + $0x70] sm:$0xff]
    %v6110 = vld [vmem:[#allocation7 + $0x78] sm:$0xff]
    %v6111 = vld [vmem:[#allocation7 + $0x80] sm:$0xff]
    %v6112 = vld [vmem:[#allocation7 + $0x88] sm:$0xff]
    %v6113 = vld [vmem:[#allocation7 + $0x90] sm:$0xff]
    %v6114 = vld [vmem:[#allocation7 + $0x98] sm:$0xff]
    %v6115 = vld [vmem:[#allocation7 + $0xa0] sm:$0xff]
    %v6116 = vld [vmem:[#allocation7 + $0xa8] sm:$0xff]
    %v6117 = vld [vmem:[#allocation7 + $0xb0] sm:$0xff]
    %v6118 = vld [vmem:[#allocation7 + $0xb8] sm:$0xff]
    %v6119 = vld [vmem:[#allocation7 + $0xc0] sm:$0xff]
    %v6120 = vld [vmem:[#allocation7 + $0xc8] sm:$0xff]
    %v6121 = vld [vmem:[#allocation7 + $0xd0] sm:$0xff]
    %v6122 = vld [vmem:[#allocation7 + $0xd8] sm:$0xff]
    %v6123 = vld [vmem:[#allocation7 + $0xe0] sm:$0xff]
    %v6124 = vld [vmem:[#allocation7 + $0xe8] sm:$0xff]
    %v6125 = vld [vmem:[#allocation7 + $0xf0] sm:$0xff]
    %v6126 = vld [vmem:[#allocation7 + $0xf8] sm:$0xff]
    %v6127 = vld [vmem:[#allocation7 + $0x100] sm:$0xff]
    %v6128 = vld [vmem:[#allocation7 + $0x108] sm:$0xff]
    %v6129 = vld [vmem:[#allocation7 + $0x110] sm:$0xff]
    %v6130 = vld [vmem:[#allocation7 + $0x118] sm:$0xff]
    %v6131 = vld [vmem:[#allocation7 + $0x120] sm:$0xff]
    %v6132 = vld [vmem:[#allocation7 + $0x128] sm:$0xff]
    %v6133 = vld [vmem:[#allocation7 + $0x130] sm:$0xff]
    %v6134 = vld [vmem:[#allocation7 + $0x138] sm:$0xff]
    %v6135 = vld [vmem:[#allocation7 + $0x140] sm:$0xff]
    %v6136 = vld [vmem:[#allocation7 + $0x148] sm:$0xff]
    %v6137 = vld [vmem:[#allocation7 + $0x150] sm:$0xff]
    %v6138 = vld [vmem:[#allocation7 + $0x158] sm:$0xff]
    %v6139 = vld [vmem:[#allocation7 + $0x160] sm:$0xff]
    %v6140 = vld [vmem:[#allocation7 + $0x168] sm:$0xff]
    %v6141 = vld [vmem:[#allocation7 + $0x170] sm:$0xff]
    %v6142 = vld [vmem:[#allocation7 + $0x178] sm:$0xff]
    %v6143 = vld [vmem:[#allocation7 + $0x180] sm:$0xff]
    %v6144 = vld [vmem:[#allocation7 + $0x188] sm:$0xff]
    %v6145 = vld [vmem:[#allocation7 + $0x190] sm:$0xff]
    %v6146 = vld [vmem:[#allocation7 + $0x198] sm:$0xff]
    %v6147 = vld [vmem:[#allocation7 + $0x1a0] sm:$0xff]
    %v6148 = vld [vmem:[#allocation7 + $0x1a8] sm:$0xff]
    %v6149 = vld [vmem:[#allocation7 + $0x1b0] sm:$0xff]
    %v6150 = vld [vmem:[#allocation7 + $0x1b8] sm:$0xff]
    %v6151 = vld [vmem:[#allocation7 + $0x1c0] sm:$0xff]
    %v6152 = vld [vmem:[#allocation7 + $0x1c8] sm:$0xff]
    %v6153 = vld [vmem:[#allocation7 + $0x1d0] sm:$0xff]
    %v6154 = vld [vmem:[#allocation7 + $0x1d8] sm:$0xff]
    %v6155 = vld [vmem:[#allocation7 + $0x1e0] sm:$0xff]
    %v6156 = vld [vmem:[#allocation7 + $0x1e8] sm:$0xff]
    %v6157 = vld [vmem:[#allocation7 + $0x1f0] sm:$0xff]
    %v6158 = vld [vmem:[#allocation7 + $0x1f8] sm:$0xff]
    %v6159 = vld [vmem:[#allocation7 + $0x200] sm:$0xff]
    %v6160 = vld [vmem:[#allocation7 + $0x208] sm:$0xff]
    %v6161 = vld [vmem:[#allocation7 + $0x210] sm:$0xff]
    %v6162 = vld [vmem:[#allocation7 + $0x218] sm:$0xff]
    %v6163 = vld [vmem:[#allocation7 + $0x220] sm:$0xff]
    %v6164 = vld [vmem:[#allocation7 + $0x228] sm:$0xff]
    %v6165 = vld [vmem:[#allocation7 + $0x230] sm:$0xff]
    %v6166 = vld [vmem:[#allocation7 + $0x238] sm:$0xff]
    %v6167 = vld [vmem:[#allocation7 + $0x240] sm:$0xff]
    %v6168 = vld [vmem:[#allocation7 + $0x248] sm:$0xff]
    %v6169 = vld [vmem:[#allocation7 + $0x250] sm:$0xff]
    %v6170 = vld [vmem:[#allocation7 + $0x258] sm:$0xff]
    %v6171 = vld [vmem:[#allocation7 + $0x260] sm:$0xff]
    %v6172 = vld [vmem:[#allocation7 + $0x268] sm:$0xff]
    %v6173 = vld [vmem:[#allocation7 + $0x270] sm:$0xff]
    %v6174 = vld [vmem:[#allocation7 + $0x278] sm:$0xff]
    %v6175 = vld [vmem:[#allocation7 + $0x280] sm:$0xff]
    %v6176 = vld [vmem:[#allocation7 + $0x288] sm:$0xff]
    %v6177 = vld [vmem:[#allocation7 + $0x290] sm:$0xff]
    %v6178 = vld [vmem:[#allocation7 + $0x298] sm:$0xff]
    %v6179 = vld [vmem:[#allocation7 + $0x2a0] sm:$0xff]
    %v6180 = vld [vmem:[#allocation7 + $0x2a8] sm:$0xff]
    %v6181 = vld [vmem:[#allocation7 + $0x2b0] sm:$0xff]
    %v6182 = vld [vmem:[#allocation7 + $0x2b8] sm:$0xff]
    %v6183 = vld [vmem:[#allocation7 + $0x2c0] sm:$0xff]
    %v6184 = vld [vmem:[#allocation7 + $0x2c8] sm:$0xff]
    %v6185 = vld [vmem:[#allocation7 + $0x2d0] sm:$0xff]
    %v6186 = vld [vmem:[#allocation7 + $0x2d8] sm:$0xff]
    %v6187 = vld [vmem:[#allocation7 + $0x2e0] sm:$0xff]
    %v6188 = vld [vmem:[#allocation7 + $0x2e8] sm:$0xff]
    %v6189 = vld [vmem:[#allocation7 + $0x2f0] sm:$0xff]
    %v6190 = vld [vmem:[#allocation7 + $0x2f8] sm:$0xff]
    %v6191 = vld [vmem:[#allocation7 + $0x300] sm:$0xff]
    %v6192 = vld [vmem:[#allocation7 + $0x308] sm:$0xff]
    %v6193 = vld [vmem:[#allocation7 + $0x310] sm:$0xff]
    %v6194 = vld [vmem:[#allocation7 + $0x318] sm:$0xff]
    %v6195 = vld [vmem:[#allocation7 + $0x320] sm:$0xff]
    %v6196 = vld [vmem:[#allocation7 + $0x328] sm:$0xff]
    %v6197 = vld [vmem:[#allocation7 + $0x330] sm:$0xff]
    %v6198 = vld [vmem:[#allocation7 + $0x338] sm:$0xff]
    %v6199 = vld [vmem:[#allocation7 + $0x340] sm:$0xff]
    %v6200 = vld [vmem:[#allocation7 + $0x348] sm:$0xff]
    %v6201 = vld [vmem:[#allocation7 + $0x350] sm:$0xff]
    %v6202 = vld [vmem:[#allocation7 + $0x358] sm:$0xff]
    %v6203 = vld [vmem:[#allocation7 + $0x360] sm:$0xff]
    %v6204 = vld [vmem:[#allocation7 + $0x368] sm:$0xff]
    %v6205 = vld [vmem:[#allocation7 + $0x370] sm:$0xff]
    %v6206 = vld [vmem:[#allocation7 + $0x378] sm:$0xff]
    %v6207 = vld [vmem:[#allocation7 + $0x380] sm:$0xff]
    %v6208 = vld [vmem:[#allocation7 + $0x388] sm:$0xff]
    %v6209 = vld [vmem:[#allocation7 + $0x390] sm:$0xff]
    %v6210 = vld [vmem:[#allocation7 + $0x398] sm:$0xff]
    %v6211 = vld [vmem:[#allocation7 + $0x3a0] sm:$0xff]
    %v6212 = vld [vmem:[#allocation7 + $0x3a8] sm:$0xff]
    %v6213 = vld [vmem:[#allocation7 + $0x3b0] sm:$0xff]
    %v6214 = vld [vmem:[#allocation7 + $0x3b8] sm:$0xff]
    %v6215 = vld [vmem:[#allocation7 + $0x3c0] sm:$0xff]
    %v6216 = vld [vmem:[#allocation7 + $0x3c8] sm:$0xff]
    %v6217 = vld [vmem:[#allocation7 + $0x3d0] sm:$0xff]
    %v6218 = vld [vmem:[#allocation7 + $0x3d8] sm:$0xff]
    %v6219 = vld [vmem:[#allocation7 + $0x3e0] sm:$0xff]
    %v6220 = vld [vmem:[#allocation7 + $0x3e8] sm:$0xff]
    %v6221 = vld [vmem:[#allocation7 + $0x3f0] sm:$0xff]
    %v6222 = vld [vmem:[#allocation7 + $0x3f8] sm:$0xff]
    %v6223 = vld [vmem:[%s19] sm:$0xf]
    %v6225 = vlaneseq
    %v6226 = vshrl.u32 %v6225, 7
    %v6227 = vsub.s32 0, %v6226
    %v6228 = vrot.slane %v6223, %v6227
    %v6229 = vlaneseq
    %v6230 = vshrl.u32 %v6229, 7
    %v6231 = vsub.s32 1, %v6230
    %v6232 = vrot.slane %v6223, %v6231
    %v6233 = vlaneseq
    %v6234 = vshrl.u32 %v6233, 7
    %v6235 = vsub.s32 2, %v6234
    %v6236 = vrot.slane %v6223, %v6235
    %v6237 = vlaneseq
    %v6238 = vshrl.u32 %v6237, 7
    %v6239 = vsub.s32 3, %v6238
    %v6240 = vrot.slane %v6223, %v6239
    %v6373 = vunpack.c.l.b16 %v6095
    %v6374 = vunpack.c.h.b16 %v6095
    %v6375 = vunpack.c.l.b16 %v6096
    %v6376 = vunpack.c.h.b16 %v6096
    %v6377 = vunpack.c.l.b16 %v6097
    %v6378 = vunpack.c.h.b16 %v6097
    %v6379 = vunpack.c.l.b16 %v6098
    %v6380 = vunpack.c.h.b16 %v6098
    %v6381 = vunpack.c.l.b16 %v6099
    %v6382 = vunpack.c.h.b16 %v6099
    %v6383 = vunpack.c.l.b16 %v6100
    %v6384 = vunpack.c.h.b16 %v6100
    %v6385 = vunpack.c.l.b16 %v6101
    %v6386 = vunpack.c.h.b16 %v6101
    %v6387 = vunpack.c.l.b16 %v6102
    %v6388 = vunpack.c.h.b16 %v6102
    %v6389 = vunpack.c.l.b16 %v6103
    %v6390 = vunpack.c.h.b16 %v6103
    %v6391 = vunpack.c.l.b16 %v6104
    %v6392 = vunpack.c.h.b16 %v6104
    %v6393 = vunpack.c.l.b16 %v6105
    %v6394 = vunpack.c.h.b16 %v6105
    %v6395 = vunpack.c.l.b16 %v6106
    %v6396 = vunpack.c.h.b16 %v6106
    %v6397 = vunpack.c.l.b16 %v6107
    %v6398 = vunpack.c.h.b16 %v6107
    %v6399 = vunpack.c.l.b16 %v6108
    %v6400 = vunpack.c.h.b16 %v6108
    %v6401 = vunpack.c.l.b16 %v6109
    %v6402 = vunpack.c.h.b16 %v6109
    %v6403 = vunpack.c.l.b16 %v6110
    %v6404 = vunpack.c.h.b16 %v6110
    %v6405 = vunpack.c.l.b16 %v6111
    %v6406 = vunpack.c.h.b16 %v6111
    %v6407 = vunpack.c.l.b16 %v6112
    %v6408 = vunpack.c.h.b16 %v6112
    %v6409 = vunpack.c.l.b16 %v6113
    %v6410 = vunpack.c.h.b16 %v6113
    %v6411 = vunpack.c.l.b16 %v6114
    %v6412 = vunpack.c.h.b16 %v6114
    %v6413 = vunpack.c.l.b16 %v6115
    %v6414 = vunpack.c.h.b16 %v6115
    %v6415 = vunpack.c.l.b16 %v6116
    %v6416 = vunpack.c.h.b16 %v6116
    %v6417 = vunpack.c.l.b16 %v6117
    %v6418 = vunpack.c.h.b16 %v6117
    %v6419 = vunpack.c.l.b16 %v6118
    %v6420 = vunpack.c.h.b16 %v6118
    %v6421 = vunpack.c.l.b16 %v6119
    %v6422 = vunpack.c.h.b16 %v6119
    %v6423 = vunpack.c.l.b16 %v6120
    %v6424 = vunpack.c.h.b16 %v6120
    %v6425 = vunpack.c.l.b16 %v6121
    %v6426 = vunpack.c.h.b16 %v6121
    %v6427 = vunpack.c.l.b16 %v6122
    %v6428 = vunpack.c.h.b16 %v6122
    %v6429 = vunpack.c.l.b16 %v6123
    %v6430 = vunpack.c.h.b16 %v6123
    %v6431 = vunpack.c.l.b16 %v6124
    %v6432 = vunpack.c.h.b16 %v6124
    %v6433 = vunpack.c.l.b16 %v6125
    %v6434 = vunpack.c.h.b16 %v6125
    %v6435 = vunpack.c.l.b16 %v6126
    %v6436 = vunpack.c.h.b16 %v6126
    %v6437 = vunpack.c.l.b16 %v6127
    %v6438 = vunpack.c.h.b16 %v6127
    %v6439 = vunpack.c.l.b16 %v6128
    %v6440 = vunpack.c.h.b16 %v6128
    %v6441 = vunpack.c.l.b16 %v6129
    %v6442 = vunpack.c.h.b16 %v6129
    %v6443 = vunpack.c.l.b16 %v6130
    %v6444 = vunpack.c.h.b16 %v6130
    %v6445 = vunpack.c.l.b16 %v6131
    %v6446 = vunpack.c.h.b16 %v6131
    %v6447 = vunpack.c.l.b16 %v6132
    %v6448 = vunpack.c.h.b16 %v6132
    %v6449 = vunpack.c.l.b16 %v6133
    %v6450 = vunpack.c.h.b16 %v6133
    %v6451 = vunpack.c.l.b16 %v6134
    %v6452 = vunpack.c.h.b16 %v6134
    %v6453 = vunpack.c.l.b16 %v6135
    %v6454 = vunpack.c.h.b16 %v6135
    %v6455 = vunpack.c.l.b16 %v6136
    %v6456 = vunpack.c.h.b16 %v6136
    %v6457 = vunpack.c.l.b16 %v6137
    %v6458 = vunpack.c.h.b16 %v6137
    %v6459 = vunpack.c.l.b16 %v6138
    %v6460 = vunpack.c.h.b16 %v6138
    %v6461 = vunpack.c.l.b16 %v6139
    %v6462 = vunpack.c.h.b16 %v6139
    %v6463 = vunpack.c.l.b16 %v6140
    %v6464 = vunpack.c.h.b16 %v6140
    %v6465 = vunpack.c.l.b16 %v6141
    %v6466 = vunpack.c.h.b16 %v6141
    %v6467 = vunpack.c.l.b16 %v6142
    %v6468 = vunpack.c.h.b16 %v6142
    %v6469 = vunpack.c.l.b16 %v6143
    %v6470 = vunpack.c.h.b16 %v6143
    %v6471 = vunpack.c.l.b16 %v6144
    %v6472 = vunpack.c.h.b16 %v6144
    %v6473 = vunpack.c.l.b16 %v6145
    %v6474 = vunpack.c.h.b16 %v6145
    %v6475 = vunpack.c.l.b16 %v6146
    %v6476 = vunpack.c.h.b16 %v6146
    %v6477 = vunpack.c.l.b16 %v6147
    %v6478 = vunpack.c.h.b16 %v6147
    %v6479 = vunpack.c.l.b16 %v6148
    %v6480 = vunpack.c.h.b16 %v6148
    %v6481 = vunpack.c.l.b16 %v6149
    %v6482 = vunpack.c.h.b16 %v6149
    %v6483 = vunpack.c.l.b16 %v6150
    %v6484 = vunpack.c.h.b16 %v6150
    %v6485 = vunpack.c.l.b16 %v6151
    %v6486 = vunpack.c.h.b16 %v6151
    %v6487 = vunpack.c.l.b16 %v6152
    %v6488 = vunpack.c.h.b16 %v6152
    %v6489 = vunpack.c.l.b16 %v6153
    %v6490 = vunpack.c.h.b16 %v6153
    %v6491 = vunpack.c.l.b16 %v6154
    %v6492 = vunpack.c.h.b16 %v6154
    %v6493 = vunpack.c.l.b16 %v6155
    %v6494 = vunpack.c.h.b16 %v6155
    %v6495 = vunpack.c.l.b16 %v6156
    %v6496 = vunpack.c.h.b16 %v6156
    %v6497 = vunpack.c.l.b16 %v6157
    %v6498 = vunpack.c.h.b16 %v6157
    %v6499 = vunpack.c.l.b16 %v6158
    %v6500 = vunpack.c.h.b16 %v6158
    %v6501 = vunpack.c.l.b16 %v6159
    %v6502 = vunpack.c.h.b16 %v6159
    %v6503 = vunpack.c.l.b16 %v6160
    %v6504 = vunpack.c.h.b16 %v6160
    %v6505 = vunpack.c.l.b16 %v6161
    %v6506 = vunpack.c.h.b16 %v6161
    %v6507 = vunpack.c.l.b16 %v6162
    %v6508 = vunpack.c.h.b16 %v6162
    %v6509 = vunpack.c.l.b16 %v6163
    %v6510 = vunpack.c.h.b16 %v6163
    %v6511 = vunpack.c.l.b16 %v6164
    %v6512 = vunpack.c.h.b16 %v6164
    %v6513 = vunpack.c.l.b16 %v6165
    %v6514 = vunpack.c.h.b16 %v6165
    %v6515 = vunpack.c.l.b16 %v6166
    %v6516 = vunpack.c.h.b16 %v6166
    %v6517 = vunpack.c.l.b16 %v6167
    %v6518 = vunpack.c.h.b16 %v6167
    %v6519 = vunpack.c.l.b16 %v6168
    %v6520 = vunpack.c.h.b16 %v6168
    %v6521 = vunpack.c.l.b16 %v6169
    %v6522 = vunpack.c.h.b16 %v6169
    %v6523 = vunpack.c.l.b16 %v6170
    %v6524 = vunpack.c.h.b16 %v6170
    %v6525 = vunpack.c.l.b16 %v6171
    %v6526 = vunpack.c.h.b16 %v6171
    %v6527 = vunpack.c.l.b16 %v6172
    %v6528 = vunpack.c.h.b16 %v6172
    %v6529 = vunpack.c.l.b16 %v6173
    %v6530 = vunpack.c.h.b16 %v6173
    %v6531 = vunpack.c.l.b16 %v6174
    %v6532 = vunpack.c.h.b16 %v6174
    %v6533 = vunpack.c.l.b16 %v6175
    %v6534 = vunpack.c.h.b16 %v6175
    %v6535 = vunpack.c.l.b16 %v6176
    %v6536 = vunpack.c.h.b16 %v6176
    %v6537 = vunpack.c.l.b16 %v6177
    %v6538 = vunpack.c.h.b16 %v6177
    %v6539 = vunpack.c.l.b16 %v6178
    %v6540 = vunpack.c.h.b16 %v6178
    %v6541 = vunpack.c.l.b16 %v6179
    %v6542 = vunpack.c.h.b16 %v6179
    %v6543 = vunpack.c.l.b16 %v6180
    %v6544 = vunpack.c.h.b16 %v6180
    %v6545 = vunpack.c.l.b16 %v6181
    %v6546 = vunpack.c.h.b16 %v6181
    %v6547 = vunpack.c.l.b16 %v6182
    %v6548 = vunpack.c.h.b16 %v6182
    %v6549 = vunpack.c.l.b16 %v6183
    %v6550 = vunpack.c.h.b16 %v6183
    %v6551 = vunpack.c.l.b16 %v6184
    %v6552 = vunpack.c.h.b16 %v6184
    %v6553 = vunpack.c.l.b16 %v6185
    %v6554 = vunpack.c.h.b16 %v6185
    %v6555 = vunpack.c.l.b16 %v6186
    %v6556 = vunpack.c.h.b16 %v6186
    %v6557 = vunpack.c.l.b16 %v6187
    %v6558 = vunpack.c.h.b16 %v6187
    %v6559 = vunpack.c.l.b16 %v6188
    %v6560 = vunpack.c.h.b16 %v6188
    %v6561 = vunpack.c.l.b16 %v6189
    %v6562 = vunpack.c.h.b16 %v6189
    %v6563 = vunpack.c.l.b16 %v6190
    %v6564 = vunpack.c.h.b16 %v6190
    %v6565 = vunpack.c.l.b16 %v6191
    %v6566 = vunpack.c.h.b16 %v6191
    %v6567 = vunpack.c.l.b16 %v6192
    %v6568 = vunpack.c.h.b16 %v6192
    %v6569 = vunpack.c.l.b16 %v6193
    %v6570 = vunpack.c.h.b16 %v6193
    %v6571 = vunpack.c.l.b16 %v6194
    %v6572 = vunpack.c.h.b16 %v6194
    %v6573 = vunpack.c.l.b16 %v6195
    %v6574 = vunpack.c.h.b16 %v6195
    %v6575 = vunpack.c.l.b16 %v6196
    %v6576 = vunpack.c.h.b16 %v6196
    %v6577 = vunpack.c.l.b16 %v6197
    %v6578 = vunpack.c.h.b16 %v6197
    %v6579 = vunpack.c.l.b16 %v6198
    %v6580 = vunpack.c.h.b16 %v6198
    %v6581 = vunpack.c.l.b16 %v6199
    %v6582 = vunpack.c.h.b16 %v6199
    %v6583 = vunpack.c.l.b16 %v6200
    %v6584 = vunpack.c.h.b16 %v6200
    %v6585 = vunpack.c.l.b16 %v6201
    %v6586 = vunpack.c.h.b16 %v6201
    %v6587 = vunpack.c.l.b16 %v6202
    %v6588 = vunpack.c.h.b16 %v6202
    %v6589 = vunpack.c.l.b16 %v6203
    %v6590 = vunpack.c.h.b16 %v6203
    %v6591 = vunpack.c.l.b16 %v6204
    %v6592 = vunpack.c.h.b16 %v6204
    %v6593 = vunpack.c.l.b16 %v6205
    %v6594 = vunpack.c.h.b16 %v6205
    %v6595 = vunpack.c.l.b16 %v6206
    %v6596 = vunpack.c.h.b16 %v6206
    %v6597 = vunpack.c.l.b16 %v6207
    %v6598 = vunpack.c.h.b16 %v6207
    %v6599 = vunpack.c.l.b16 %v6208
    %v6600 = vunpack.c.h.b16 %v6208
    %v6601 = vunpack.c.l.b16 %v6209
    %v6602 = vunpack.c.h.b16 %v6209
    %v6603 = vunpack.c.l.b16 %v6210
    %v6604 = vunpack.c.h.b16 %v6210
    %v6605 = vunpack.c.l.b16 %v6211
    %v6606 = vunpack.c.h.b16 %v6211
    %v6607 = vunpack.c.l.b16 %v6212
    %v6608 = vunpack.c.h.b16 %v6212
    %v6609 = vunpack.c.l.b16 %v6213
    %v6610 = vunpack.c.h.b16 %v6213
    %v6611 = vunpack.c.l.b16 %v6214
    %v6612 = vunpack.c.h.b16 %v6214
    %v6613 = vunpack.c.l.b16 %v6215
    %v6614 = vunpack.c.h.b16 %v6215
    %v6615 = vunpack.c.l.b16 %v6216
    %v6616 = vunpack.c.h.b16 %v6216
    %v6617 = vunpack.c.l.b16 %v6217
    %v6618 = vunpack.c.h.b16 %v6217
    %v6619 = vunpack.c.l.b16 %v6218
    %v6620 = vunpack.c.h.b16 %v6218
    %v6621 = vunpack.c.l.b16 %v6219
    %v6622 = vunpack.c.h.b16 %v6219
    %v6623 = vunpack.c.l.b16 %v6220
    %v6624 = vunpack.c.h.b16 %v6220
    %v6625 = vunpack.c.l.b16 %v6221
    %v6626 = vunpack.c.h.b16 %v6221
    %v6627 = vunpack.c.l.b16 %v6222
    %v6628 = vunpack.c.h.b16 %v6222
    %v6629 = vpack.c.b16 %v6377, %v6373
    %v6630 = vpack.c.b16 %v6378, %v6374
    %v6631 = vpack.c.b16 %v6379, %v6375
    %v6632 = vpack.c.b16 %v6380, %v6376
    %v6633 = vpack.c.b16 %v6385, %v6381
    %v6634 = vpack.c.b16 %v6386, %v6382
    %v6635 = vpack.c.b16 %v6387, %v6383
    %v6636 = vpack.c.b16 %v6388, %v6384
    %v6637 = vpack.c.b16 %v6393, %v6389
    %v6638 = vpack.c.b16 %v6394, %v6390
    %v6639 = vpack.c.b16 %v6395, %v6391
    %v6640 = vpack.c.b16 %v6396, %v6392
    %v6641 = vpack.c.b16 %v6401, %v6397
    %v6642 = vpack.c.b16 %v6402, %v6398
    %v6643 = vpack.c.b16 %v6403, %v6399
    %v6644 = vpack.c.b16 %v6404, %v6400
    %v6645 = vpack.c.b16 %v6409, %v6405
    %v6646 = vpack.c.b16 %v6410, %v6406
    %v6647 = vpack.c.b16 %v6411, %v6407
    %v6648 = vpack.c.b16 %v6412, %v6408
    %v6649 = vpack.c.b16 %v6417, %v6413
    %v6650 = vpack.c.b16 %v6418, %v6414
    %v6651 = vpack.c.b16 %v6419, %v6415
    %v6652 = vpack.c.b16 %v6420, %v6416
    %v6653 = vpack.c.b16 %v6425, %v6421
    %v6654 = vpack.c.b16 %v6426, %v6422
    %v6655 = vpack.c.b16 %v6427, %v6423
    %v6656 = vpack.c.b16 %v6428, %v6424
    %v6657 = vpack.c.b16 %v6433, %v6429
    %v6658 = vpack.c.b16 %v6434, %v6430
    %v6659 = vpack.c.b16 %v6435, %v6431
    %v6660 = vpack.c.b16 %v6436, %v6432
    %v6661 = vpack.c.b16 %v6441, %v6437
    %v6662 = vpack.c.b16 %v6442, %v6438
    %v6663 = vpack.c.b16 %v6443, %v6439
    %v6664 = vpack.c.b16 %v6444, %v6440
    %v6665 = vpack.c.b16 %v6449, %v6445
    %v6666 = vpack.c.b16 %v6450, %v6446
    %v6667 = vpack.c.b16 %v6451, %v6447
    %v6668 = vpack.c.b16 %v6452, %v6448
    %v6669 = vpack.c.b16 %v6457, %v6453
    %v6670 = vpack.c.b16 %v6458, %v6454
    %v6671 = vpack.c.b16 %v6459, %v6455
    %v6672 = vpack.c.b16 %v6460, %v6456
    %v6673 = vpack.c.b16 %v6465, %v6461
    %v6674 = vpack.c.b16 %v6466, %v6462
    %v6675 = vpack.c.b16 %v6467, %v6463
    %v6676 = vpack.c.b16 %v6468, %v6464
    %v6677 = vpack.c.b16 %v6473, %v6469
    %v6678 = vpack.c.b16 %v6474, %v6470
    %v6679 = vpack.c.b16 %v6475, %v6471
    %v6680 = vpack.c.b16 %v6476, %v6472
    %v6681 = vpack.c.b16 %v6481, %v6477
    %v6682 = vpack.c.b16 %v6482, %v6478
    %v6683 = vpack.c.b16 %v6483, %v6479
    %v6684 = vpack.c.b16 %v6484, %v6480
    %v6685 = vpack.c.b16 %v6489, %v6485
    %v6686 = vpack.c.b16 %v6490, %v6486
    %v6687 = vpack.c.b16 %v6491, %v6487
    %v6688 = vpack.c.b16 %v6492, %v6488
    %v6689 = vpack.c.b16 %v6497, %v6493
    %v6690 = vpack.c.b16 %v6498, %v6494
    %v6691 = vpack.c.b16 %v6499, %v6495
    %v6692 = vpack.c.b16 %v6500, %v6496
    %v6693 = vpack.c.b16 %v6505, %v6501
    %v6694 = vpack.c.b16 %v6506, %v6502
    %v6695 = vpack.c.b16 %v6507, %v6503
    %v6696 = vpack.c.b16 %v6508, %v6504
    %v6697 = vpack.c.b16 %v6513, %v6509
    %v6698 = vpack.c.b16 %v6514, %v6510
    %v6699 = vpack.c.b16 %v6515, %v6511
    %v6700 = vpack.c.b16 %v6516, %v6512
    %v6701 = vpack.c.b16 %v6521, %v6517
    %v6702 = vpack.c.b16 %v6522, %v6518
    %v6703 = vpack.c.b16 %v6523, %v6519
    %v6704 = vpack.c.b16 %v6524, %v6520
    %v6705 = vpack.c.b16 %v6529, %v6525
    %v6706 = vpack.c.b16 %v6530, %v6526
    %v6707 = vpack.c.b16 %v6531, %v6527
    %v6708 = vpack.c.b16 %v6532, %v6528
    %v6709 = vpack.c.b16 %v6537, %v6533
    %v6710 = vpack.c.b16 %v6538, %v6534
    %v6711 = vpack.c.b16 %v6539, %v6535
    %v6712 = vpack.c.b16 %v6540, %v6536
    %v6713 = vpack.c.b16 %v6545, %v6541
    %v6714 = vpack.c.b16 %v6546, %v6542
    %v6715 = vpack.c.b16 %v6547, %v6543
    %v6716 = vpack.c.b16 %v6548, %v6544
    %v6717 = vpack.c.b16 %v6553, %v6549
    %v6718 = vpack.c.b16 %v6554, %v6550
    %v6719 = vpack.c.b16 %v6555, %v6551
    %v6720 = vpack.c.b16 %v6556, %v6552
    %v6721 = vpack.c.b16 %v6561, %v6557
    %v6722 = vpack.c.b16 %v6562, %v6558
    %v6723 = vpack.c.b16 %v6563, %v6559
    %v6724 = vpack.c.b16 %v6564, %v6560
    %v6725 = vpack.c.b16 %v6569, %v6565
    %v6726 = vpack.c.b16 %v6570, %v6566
    %v6727 = vpack.c.b16 %v6571, %v6567
    %v6728 = vpack.c.b16 %v6572, %v6568
    %v6729 = vpack.c.b16 %v6577, %v6573
    %v6730 = vpack.c.b16 %v6578, %v6574
    %v6731 = vpack.c.b16 %v6579, %v6575
    %v6732 = vpack.c.b16 %v6580, %v6576
    %v6733 = vpack.c.b16 %v6585, %v6581
    %v6734 = vpack.c.b16 %v6586, %v6582
    %v6735 = vpack.c.b16 %v6587, %v6583
    %v6736 = vpack.c.b16 %v6588, %v6584
    %v6737 = vpack.c.b16 %v6593, %v6589
    %v6738 = vpack.c.b16 %v6594, %v6590
    %v6739 = vpack.c.b16 %v6595, %v6591
    %v6740 = vpack.c.b16 %v6596, %v6592
    %v6741 = vpack.c.b16 %v6601, %v6597
    %v6742 = vpack.c.b16 %v6602, %v6598
    %v6743 = vpack.c.b16 %v6603, %v6599
    %v6744 = vpack.c.b16 %v6604, %v6600
    %v6745 = vpack.c.b16 %v6609, %v6605
    %v6746 = vpack.c.b16 %v6610, %v6606
    %v6747 = vpack.c.b16 %v6611, %v6607
    %v6748 = vpack.c.b16 %v6612, %v6608
    %v6749 = vpack.c.b16 %v6617, %v6613
    %v6750 = vpack.c.b16 %v6618, %v6614
    %v6751 = vpack.c.b16 %v6619, %v6615
    %v6752 = vpack.c.b16 %v6620, %v6616
    %v6753 = vpack.c.b16 %v6625, %v6621
    %v6754 = vpack.c.b16 %v6626, %v6622
    %v6755 = vpack.c.b16 %v6627, %v6623
    %v6756 = vpack.c.b16 %v6628, %v6624
    %6885 = vmatprep.subr.bf16.mxu0 %v6658
    %6886 = vmatpush1.bf16.msra.mxu0 %v6657
    %6887 = vmatprep.subr.bf16.mxu0 %v6654
    %6888 = vmatpush1.bf16.msra.mxu0 %v6653
    %6889 = vmatprep.subr.bf16.mxu0 %v6650
    %6890 = vmatpush1.bf16.msra.mxu0 %v6649
    %6891 = vmatprep.subr.bf16.mxu0 %v6646
    %6892 = vmatpush1.bf16.msra.mxu0 %v6645
    %6893 = vmatprep.subr.bf16.mxu0 %v6642
    %6894 = vmatpush1.bf16.msra.mxu0 %v6641
    %6895 = vmatprep.subr.bf16.mxu0 %v6638
    %6896 = vmatpush1.bf16.msra.mxu0 %v6637
    %6897 = vmatprep.subr.bf16.mxu0 %v6634
    %6898 = vmatpush1.bf16.msra.mxu0 %v6633
    %6899 = vmatprep.subr.bf16.mxu0 %v6630
    %6900 = vmatpush1.bf16.msra.mxu0 %v6629
    %6901 = vmatprep.subr.bf16.mxu0 %v6690
    %6902 = vmatpush2.bf16.msra.mxu0 %v6689
    %6903 = vmatprep.subr.bf16.mxu0 %v6686
    %6904 = vmatpush2.bf16.msra.mxu0 %v6685
    %6905 = vmatprep.subr.bf16.mxu0 %v6682
    %6906 = vmatpush2.bf16.msra.mxu0 %v6681
    %6907 = vmatprep.subr.bf16.mxu0 %v6678
    %6908 = vmatpush2.bf16.msra.mxu0 %v6677
    %6909 = vmatprep.subr.bf16.mxu0 %v6674
    %6910 = vmatpush2.bf16.msra.mxu0 %v6673
    %6911 = vmatprep.subr.bf16.mxu0 %v6670
    %6912 = vmatpush2.bf16.msra.mxu0 %v6669
    %6913 = vmatprep.subr.bf16.mxu0 %v6666
    %6914 = vmatpush2.bf16.msra.mxu0 %v6665
    %6915 = vmatprep.subr.bf16.mxu0 %v6662
    %6916 = vmatpush2.bf16.msra.mxu0 %v6661
    %6917 = vmatprep.mubr.bf16.mxu0 %v6092
    %6918 = vmatmul.mubr.bf16.gmra.mxu0 %v6091
    %v6919 = vpop.f32.mrf.mxu0
    %v6920 = vadd.f32 %v6228, %v6919
    %v6921 = vpop.f32.mrf.mxu0
    %v6922 = vadd.f32 %v6232, %v6921
    %v6923 = vpop.f32.mrf.mxu0
    %v6924 = vpop.f32.mrf.mxu0
    %6925 = vdwg.mxu0
    %6926 = vmatprep.subr.bf16.mxu0 %v6722
    %6927 = vmatpush1.bf16.msra.mxu0 %v6721
    %6928 = vmatprep.subr.bf16.mxu0 %v6718
    %6929 = vmatpush1.bf16.msra.mxu0 %v6717
    %6930 = vmatprep.subr.bf16.mxu0 %v6714
    %6931 = vmatpush1.bf16.msra.mxu0 %v6713
    %6932 = vmatprep.subr.bf16.mxu0 %v6710
    %6933 = vmatpush1.bf16.msra.mxu0 %v6709
    %6934 = vmatprep.subr.bf16.mxu0 %v6706
    %6935 = vmatpush1.bf16.msra.mxu0 %v6705
    %6936 = vmatprep.subr.bf16.mxu0 %v6702
    %6937 = vmatpush1.bf16.msra.mxu0 %v6701
    %6938 = vmatprep.subr.bf16.mxu0 %v6698
    %6939 = vmatpush1.bf16.msra.mxu0 %v6697
    %6940 = vmatprep.subr.bf16.mxu0 %v6694
    %6941 = vmatpush1.bf16.msra.mxu0 %v6693
    %6942 = vmatprep.subr.bf16.mxu0 %v6754
    %6943 = vmatpush2.bf16.msra.mxu0 %v6753
    %6944 = vmatprep.subr.bf16.mxu0 %v6750
    %6945 = vmatpush2.bf16.msra.mxu0 %v6749
    %6946 = vmatprep.subr.bf16.mxu0 %v6746
    %6947 = vmatpush2.bf16.msra.mxu0 %v6745
    %6948 = vmatprep.subr.bf16.mxu0 %v6742
    %6949 = vmatpush2.bf16.msra.mxu0 %v6741
    %6950 = vmatprep.subr.bf16.mxu0 %v6738
    %6951 = vmatpush2.bf16.msra.mxu0 %v6737
    %6952 = vmatprep.subr.bf16.mxu0 %v6734
    %6953 = vmatpush2.bf16.msra.mxu0 %v6733
    %6954 = vmatprep.subr.bf16.mxu0 %v6730
    %6955 = vmatpush2.bf16.msra.mxu0 %v6729
    %6956 = vmatprep.subr.bf16.mxu0 %v6726
    %6957 = vmatpush2.bf16.msra.mxu0 %v6725
    %6958 = vmatprep.mubr.bf16.mxu0 %v6094
    %6959 = vmatmul.mubr.bf16.gmra.mxu0 %v6093
    %v6960 = vpop.f32.mrf.mxu0
    %v6961 = vadd.f32 %v6920, %v6960
    %v6962 = vpop.f32.mrf.mxu0
    %v6963 = vadd.f32 %v6922, %v6962
    %v6964 = vpop.f32.mrf.mxu0
    %v6965 = vpop.f32.mrf.mxu0
    %6966 = vdwg.mxu0
    %6967 = vmatprep.subr.bf16.mxu0 %v6660
    %6968 = vmatpush1.bf16.msra.mxu0 %v6659
    %6969 = vmatprep.subr.bf16.mxu0 %v6656
    %6970 = vmatpush1.bf16.msra.mxu0 %v6655
    %6971 = vmatprep.subr.bf16.mxu0 %v6652
    %6972 = vmatpush1.bf16.msra.mxu0 %v6651
    %6973 = vmatprep.subr.bf16.mxu0 %v6648
    %6974 = vmatpush1.bf16.msra.mxu0 %v6647
    %6975 = vmatprep.subr.bf16.mxu0 %v6644
    %6976 = vmatpush1.bf16.msra.mxu0 %v6643
    %6977 = vmatprep.subr.bf16.mxu0 %v6640
    %6978 = vmatpush1.bf16.msra.mxu0 %v6639
    %6979 = vmatprep.subr.bf16.mxu0 %v6636
    %6980 = vmatpush1.bf16.msra.mxu0 %v6635
    %6981 = vmatprep.subr.bf16.mxu0 %v6632
    %6982 = vmatpush1.bf16.msra.mxu0 %v6631
    %6983 = vmatprep.subr.bf16.mxu0 %v6692
    %6984 = vmatpush2.bf16.msra.mxu0 %v6691
    %6985 = vmatprep.subr.bf16.mxu0 %v6688
    %6986 = vmatpush2.bf16.msra.mxu0 %v6687
    %6987 = vmatprep.subr.bf16.mxu0 %v6684
    %6988 = vmatpush2.bf16.msra.mxu0 %v6683
    %6989 = vmatprep.subr.bf16.mxu0 %v6680
    %6990 = vmatpush2.bf16.msra.mxu0 %v6679
    %6991 = vmatprep.subr.bf16.mxu0 %v6676
    %6992 = vmatpush2.bf16.msra.mxu0 %v6675
    %6993 = vmatprep.subr.bf16.mxu0 %v6672
    %6994 = vmatpush2.bf16.msra.mxu0 %v6671
    %6995 = vmatprep.subr.bf16.mxu0 %v6668
    %6996 = vmatpush2.bf16.msra.mxu0 %v6667
    %6997 = vmatprep.subr.bf16.mxu0 %v6664
    %6998 = vmatpush2.bf16.msra.mxu0 %v6663
    %6999 = vmatprep.mubr.bf16.mxu0 %v6092
    %7000 = vmatmul.mubr.bf16.gmra.mxu0 %v6091
    %v7001 = vpop.f32.mrf.mxu0
    %v7002 = vadd.f32 %v6236, %v7001
    %v7003 = vpop.f32.mrf.mxu0
    %v7004 = vadd.f32 %v6240, %v7003
    %v7005 = vpop.f32.mrf.mxu0
    %v7006 = vpop.f32.mrf.mxu0
    %7007 = vdwg.mxu0
    %7008 = vmatprep.subr.bf16.mxu0 %v6724
    %7009 = vmatpush1.bf16.msra.mxu0 %v6723
    %7010 = vmatprep.subr.bf16.mxu0 %v6720
    %7011 = vmatpush1.bf16.msra.mxu0 %v6719
    %7012 = vmatprep.subr.bf16.mxu0 %v6716
    %7013 = vmatpush1.bf16.msra.mxu0 %v6715
    %7014 = vmatprep.subr.bf16.mxu0 %v6712
    %7015 = vmatpush1.bf16.msra.mxu0 %v6711
    %7016 = vmatprep.subr.bf16.mxu0 %v6708
    %7017 = vmatpush1.bf16.msra.mxu0 %v6707
    %7018 = vmatprep.subr.bf16.mxu0 %v6704
    %7019 = vmatpush1.bf16.msra.mxu0 %v6703
    %7020 = vmatprep.subr.bf16.mxu0 %v6700
    %7021 = vmatpush1.bf16.msra.mxu0 %v6699
    %7022 = vmatprep.subr.bf16.mxu0 %v6696
    %7023 = vmatpush1.bf16.msra.mxu0 %v6695
    %7024 = vmatprep.subr.bf16.mxu0 %v6756
    %7025 = vmatpush2.bf16.msra.mxu0 %v6755
    %7026 = vmatprep.subr.bf16.mxu0 %v6752
    %7027 = vmatpush2.bf16.msra.mxu0 %v6751
    %7028 = vmatprep.subr.bf16.mxu0 %v6748
    %7029 = vmatpush2.bf16.msra.mxu0 %v6747
    %7030 = vmatprep.subr.bf16.mxu0 %v6744
    %7031 = vmatpush2.bf16.msra.mxu0 %v6743
    %7032 = vmatprep.subr.bf16.mxu0 %v6740
    %7033 = vmatpush2.bf16.msra.mxu0 %v6739
    %7034 = vmatprep.subr.bf16.mxu0 %v6736
    %7035 = vmatpush2.bf16.msra.mxu0 %v6735
    %7036 = vmatprep.subr.bf16.mxu0 %v6732
    %7037 = vmatpush2.bf16.msra.mxu0 %v6731
    %7038 = vmatprep.subr.bf16.mxu0 %v6728
    %7039 = vmatpush2.bf16.msra.mxu0 %v6727
    %7040 = vmatprep.mubr.bf16.mxu0 %v6094
    %7041 = vmatmul.mubr.bf16.gmra.mxu0 %v6093
    %v7042 = vpop.f32.mrf.mxu0
    %v7043 = vadd.f32 %v7002, %v7042
    %v7044 = vpop.f32.mrf.mxu0
    %v7045 = vadd.f32 %v7004, %v7044
    %v7046 = vpop.f32.mrf.mxu0
    %v7047 = vpop.f32.mrf.mxu0
    %7048 = vdwg.mxu0
    %v7049 = vsub.f32 0.0, %v6961
    %v7050 = vsub.f32 0.0, %v6963
    %v7051 = vsub.f32 0.0, %v7043
    %v7052 = vsub.f32 0.0, %v7045
    %v7053 = vmul.f32 %v7049, 1.442695
    %v7054 = vpow.pop %v7053
    %v7055 = vmul.f32 %v7050, 1.442695
    %v7056 = vpow.pop %v7055
    %v7057 = vmul.f32 %v7051, 1.442695
    %v7058 = vpow.pop %v7057
    %v7059 = vmul.f32 %v7052, 1.442695
    %v7060 = vpow.pop %v7059
    %v7061 = vadd.f32 %v7054, 1.0
    %v7062 = vadd.f32 %v7056, 1.0
    %v7063 = vadd.f32 %v7058, 1.0
    %v7064 = vadd.f32 %v7060, 1.0
    %v7065 = vrcp.pop %v7061
    %v7066 = vrcp.pop %v7062
    %v7067 = vrcp.pop %v7063
    %v7068 = vrcp.pop %v7064
    %v7069 = vmul.f32 %v6961, %v7065
    %v7070 = vmul.f32 %v6963, %v7066
    %v7071 = vmul.f32 %v7043, %v7067
    %v7072 = vmul.f32 %v7045, %v7068
    %v7073 = vpack.c.bf16 %v7069, %v7069
    %v7074 = vpack.c.bf16 %v7070, %v7070
    %v7075 = vpack.c.bf16 %v7071, %v7071
    %v7076 = vpack.c.bf16 %v7072, %v7072
    %v7077 = vld [vmem:[%s20] sm:$0xf]
    %v7078 = vld [vmem:[%s20 + $0x4] sm:$0xf]
    %v7079 = vld [vmem:[%s20 + $0x8] sm:$0xf]
    %v7080 = vld [vmem:[%s20 + $0xc] sm:$0xf]
    %v7081 = vld [vmem:[%s20 + $0x10] sm:$0xf]
    %v7082 = vld [vmem:[%s20 + $0x14] sm:$0xf]
    %v7083 = vld [vmem:[%s20 + $0x18] sm:$0xf]
    %v7084 = vld [vmem:[%s20 + $0x1c] sm:$0xf]
    %v7085 = vld [vmem:[%s20 + $0x20] sm:$0xf]
    %v7086 = vld [vmem:[%s20 + $0x24] sm:$0xf]
    %v7087 = vld [vmem:[%s20 + $0x28] sm:$0xf]
    %v7088 = vld [vmem:[%s20 + $0x2c] sm:$0xf]
    %v7089 = vld [vmem:[%s20 + $0x30] sm:$0xf]
    %v7090 = vld [vmem:[%s20 + $0x34] sm:$0xf]
    %v7091 = vld [vmem:[%s20 + $0x38] sm:$0xf]
    %v7092 = vld [vmem:[%s20 + $0x3c] sm:$0xf]
    %v7093 = vld [vmem:[%s20 + $0x40] sm:$0xf]
    %v7094 = vld [vmem:[%s20 + $0x44] sm:$0xf]
    %v7095 = vld [vmem:[%s20 + $0x48] sm:$0xf]
    %v7096 = vld [vmem:[%s20 + $0x4c] sm:$0xf]
    %v7097 = vld [vmem:[%s20 + $0x50] sm:$0xf]
    %v7098 = vld [vmem:[%s20 + $0x54] sm:$0xf]
    %v7099 = vld [vmem:[%s20 + $0x58] sm:$0xf]
    %v7100 = vld [vmem:[%s20 + $0x5c] sm:$0xf]
    %v7101 = vld [vmem:[%s20 + $0x60] sm:$0xf]
    %v7102 = vld [vmem:[%s20 + $0x64] sm:$0xf]
    %v7103 = vld [vmem:[%s20 + $0x68] sm:$0xf]
    %v7104 = vld [vmem:[%s20 + $0x6c] sm:$0xf]
    %v7105 = vld [vmem:[%s20 + $0x70] sm:$0xf]
    %v7106 = vld [vmem:[%s20 + $0x74] sm:$0xf]
    %v7107 = vld [vmem:[%s20 + $0x78] sm:$0xf]
    %v7108 = vld [vmem:[%s20 + $0x7c] sm:$0xf]
    %v7109 = vld [vmem:[%s20 + $0x80] sm:$0xf]
    %v7110 = vld [vmem:[%s20 + $0x84] sm:$0xf]
    %v7111 = vld [vmem:[%s20 + $0x88] sm:$0xf]
    %v7112 = vld [vmem:[%s20 + $0x8c] sm:$0xf]
    %v7113 = vld [vmem:[%s20 + $0x90] sm:$0xf]
    %v7114 = vld [vmem:[%s20 + $0x94] sm:$0xf]
    %v7115 = vld [vmem:[%s20 + $0x98] sm:$0xf]
    %v7116 = vld [vmem:[%s20 + $0x9c] sm:$0xf]
    %v7117 = vld [vmem:[%s20 + $0xa0] sm:$0xf]
    %v7118 = vld [vmem:[%s20 + $0xa4] sm:$0xf]
    %v7119 = vld [vmem:[%s20 + $0xa8] sm:$0xf]
    %v7120 = vld [vmem:[%s20 + $0xac] sm:$0xf]
    %v7121 = vld [vmem:[%s20 + $0xb0] sm:$0xf]
    %v7122 = vld [vmem:[%s20 + $0xb4] sm:$0xf]
    %v7123 = vld [vmem:[%s20 + $0xb8] sm:$0xf]
    %v7124 = vld [vmem:[%s20 + $0xbc] sm:$0xf]
    %v7125 = vld [vmem:[%s20 + $0xc0] sm:$0xf]
    %v7126 = vld [vmem:[%s20 + $0xc4] sm:$0xf]
    %v7127 = vld [vmem:[%s20 + $0xc8] sm:$0xf]
    %v7128 = vld [vmem:[%s20 + $0xcc] sm:$0xf]
    %v7129 = vld [vmem:[%s20 + $0xd0] sm:$0xf]
    %v7130 = vld [vmem:[%s20 + $0xd4] sm:$0xf]
    %v7131 = vld [vmem:[%s20 + $0xd8] sm:$0xf]
    %v7132 = vld [vmem:[%s20 + $0xdc] sm:$0xf]
    %v7133 = vld [vmem:[%s20 + $0xe0] sm:$0xf]
    %v7134 = vld [vmem:[%s20 + $0xe4] sm:$0xf]
    %v7135 = vld [vmem:[%s20 + $0xe8] sm:$0xf]
    %v7136 = vld [vmem:[%s20 + $0xec] sm:$0xf]
    %v7137 = vld [vmem:[%s20 + $0xf0] sm:$0xf]
    %v7138 = vld [vmem:[%s20 + $0xf4] sm:$0xf]
    %v7139 = vld [vmem:[%s20 + $0xf8] sm:$0xf]
    %v7140 = vld [vmem:[%s20 + $0xfc] sm:$0xf]
    %v7141 = vld [vmem:[%s21] sm:$0x1]
    %v7143 = vlaneseq
    %v7144 = vshrl.u32 %v7143, 7
    %v7145 = vsub.s32 0, %v7144
    %v7146 = vrot.slane %v7141, %v7145
    %v7212 = vunpack.c.l.b16 %v7077
    %v7213 = vunpack.c.l.b16 %v7078
    %v7214 = vunpack.c.l.b16 %v7079
    %v7215 = vunpack.c.l.b16 %v7080
    %v7216 = vunpack.c.l.b16 %v7081
    %v7217 = vunpack.c.l.b16 %v7082
    %v7218 = vunpack.c.l.b16 %v7083
    %v7219 = vunpack.c.l.b16 %v7084
    %v7220 = vunpack.c.l.b16 %v7085
    %v7221 = vunpack.c.l.b16 %v7086
    %v7222 = vunpack.c.l.b16 %v7087
    %v7223 = vunpack.c.l.b16 %v7088
    %v7224 = vunpack.c.l.b16 %v7089
    %v7225 = vunpack.c.l.b16 %v7090
    %v7226 = vunpack.c.l.b16 %v7091
    %v7227 = vunpack.c.l.b16 %v7092
    %v7228 = vunpack.c.l.b16 %v7093
    %v7229 = vunpack.c.l.b16 %v7094
    %v7230 = vunpack.c.l.b16 %v7095
    %v7231 = vunpack.c.l.b16 %v7096
    %v7232 = vunpack.c.l.b16 %v7097
    %v7233 = vunpack.c.l.b16 %v7098
    %v7234 = vunpack.c.l.b16 %v7099
    %v7235 = vunpack.c.l.b16 %v7100
    %v7236 = vunpack.c.l.b16 %v7101
    %v7237 = vunpack.c.l.b16 %v7102
    %v7238 = vunpack.c.l.b16 %v7103
    %v7239 = vunpack.c.l.b16 %v7104
    %v7240 = vunpack.c.l.b16 %v7105
    %v7241 = vunpack.c.l.b16 %v7106
    %v7242 = vunpack.c.l.b16 %v7107
    %v7243 = vunpack.c.l.b16 %v7108
    %v7244 = vunpack.c.l.b16 %v7109
    %v7245 = vunpack.c.l.b16 %v7110
    %v7246 = vunpack.c.l.b16 %v7111
    %v7247 = vunpack.c.l.b16 %v7112
    %v7248 = vunpack.c.l.b16 %v7113
    %v7249 = vunpack.c.l.b16 %v7114
    %v7250 = vunpack.c.l.b16 %v7115
    %v7251 = vunpack.c.l.b16 %v7116
    %v7252 = vunpack.c.l.b16 %v7117
    %v7253 = vunpack.c.l.b16 %v7118
    %v7254 = vunpack.c.l.b16 %v7119
    %v7255 = vunpack.c.l.b16 %v7120
    %v7256 = vunpack.c.l.b16 %v7121
    %v7257 = vunpack.c.l.b16 %v7122
    %v7258 = vunpack.c.l.b16 %v7123
    %v7259 = vunpack.c.l.b16 %v7124
    %v7260 = vunpack.c.l.b16 %v7125
    %v7261 = vunpack.c.l.b16 %v7126
    %v7262 = vunpack.c.l.b16 %v7127
    %v7263 = vunpack.c.l.b16 %v7128
    %v7264 = vunpack.c.l.b16 %v7129
    %v7265 = vunpack.c.l.b16 %v7130
    %v7266 = vunpack.c.l.b16 %v7131
    %v7267 = vunpack.c.l.b16 %v7132
    %v7268 = vunpack.c.l.b16 %v7133
    %v7269 = vunpack.c.l.b16 %v7134
    %v7270 = vunpack.c.l.b16 %v7135
    %v7271 = vunpack.c.l.b16 %v7136
    %v7272 = vunpack.c.l.b16 %v7137
    %v7273 = vunpack.c.l.b16 %v7138
    %v7274 = vunpack.c.l.b16 %v7139
    %v7275 = vunpack.c.l.b16 %v7140
    %v7276 = vpack.c.b16 %v7213, %v7212
    %v7277 = vpack.c.b16 %v7215, %v7214
    %v7278 = vpack.c.b16 %v7217, %v7216
    %v7279 = vpack.c.b16 %v7219, %v7218
    %v7280 = vpack.c.b16 %v7221, %v7220
    %v7281 = vpack.c.b16 %v7223, %v7222
    %v7282 = vpack.c.b16 %v7225, %v7224
    %v7283 = vpack.c.b16 %v7227, %v7226
    %v7284 = vpack.c.b16 %v7229, %v7228
    %v7285 = vpack.c.b16 %v7231, %v7230
    %v7286 = vpack.c.b16 %v7233, %v7232
    %v7287 = vpack.c.b16 %v7235, %v7234
    %v7288 = vpack.c.b16 %v7237, %v7236
    %v7289 = vpack.c.b16 %v7239, %v7238
    %v7290 = vpack.c.b16 %v7241, %v7240
    %v7291 = vpack.c.b16 %v7243, %v7242
    %v7292 = vpack.c.b16 %v7245, %v7244
    %v7293 = vpack.c.b16 %v7247, %v7246
    %v7294 = vpack.c.b16 %v7249, %v7248
    %v7295 = vpack.c.b16 %v7251, %v7250
    %v7296 = vpack.c.b16 %v7253, %v7252
    %v7297 = vpack.c.b16 %v7255, %v7254
    %v7298 = vpack.c.b16 %v7257, %v7256
    %v7299 = vpack.c.b16 %v7259, %v7258
    %v7300 = vpack.c.b16 %v7261, %v7260
    %v7301 = vpack.c.b16 %v7263, %v7262
    %v7302 = vpack.c.b16 %v7265, %v7264
    %v7303 = vpack.c.b16 %v7267, %v7266
    %v7304 = vpack.c.b16 %v7269, %v7268
    %v7305 = vpack.c.b16 %v7271, %v7270
    %v7306 = vpack.c.b16 %v7273, %v7272
    %v7307 = vpack.c.b16 %v7275, %v7274
    %7340 = vmatprep.subr.bf16.mxu0 0
    %7341 = vmatpush1.bf16.msra.mxu0 %v7283
    %7342 = vmatprep.subr.bf16.mxu0 0
    %7343 = vmatpush1.bf16.msra.mxu0 %v7282
    %7344 = vmatprep.subr.bf16.mxu0 0
    %7345 = vmatpush1.bf16.msra.mxu0 %v7281
    %7346 = vmatprep.subr.bf16.mxu0 0
    %7347 = vmatpush1.bf16.msra.mxu0 %v7280
    %7348 = vmatprep.subr.bf16.mxu0 0
    %7349 = vmatpush1.bf16.msra.mxu0 %v7279
    %7350 = vmatprep.subr.bf16.mxu0 0
    %7351 = vmatpush1.bf16.msra.mxu0 %v7278
    %7352 = vmatprep.subr.bf16.mxu0 0
    %7353 = vmatpush1.bf16.msra.mxu0 %v7277
    %7354 = vmatprep.subr.bf16.mxu0 0
    %7355 = vmatpush1.bf16.msra.mxu0 %v7276
    %7356 = vmatprep.subr.bf16.mxu0 0
    %7357 = vmatpush2.bf16.msra.mxu0 %v7291
    %7358 = vmatprep.subr.bf16.mxu0 0
    %7359 = vmatpush2.bf16.msra.mxu0 %v7290
    %7360 = vmatprep.subr.bf16.mxu0 0
    %7361 = vmatpush2.bf16.msra.mxu0 %v7289
    %7362 = vmatprep.subr.bf16.mxu0 0
    %7363 = vmatpush2.bf16.msra.mxu0 %v7288
    %7364 = vmatprep.subr.bf16.mxu0 0
    %7365 = vmatpush2.bf16.msra.mxu0 %v7287
    %7366 = vmatprep.subr.bf16.mxu0 0
    %7367 = vmatpush2.bf16.msra.mxu0 %v7286
    %7368 = vmatprep.subr.bf16.mxu0 0
    %7369 = vmatpush2.bf16.msra.mxu0 %v7285
    %7370 = vmatprep.subr.bf16.mxu0 0
    %7371 = vmatpush2.bf16.msra.mxu0 %v7284
    %7372 = vmatprep.mubr.bf16.mxu0 %v7074
    %7373 = vmatmul.mubr.bf16.gmra.mxu0 %v7073
    %v7374 = vpop.f32.mrf.mxu0
    %v7375 = vadd.f32 %v7146, %v7374
    %v7376 = vpop.f32.mrf.mxu0
    %v7377 = vpop.f32.mrf.mxu0
    %v7378 = vpop.f32.mrf.mxu0
    %7379 = vdwg.mxu0
    %7380 = vmatprep.subr.bf16.mxu0 0
    %7381 = vmatpush1.bf16.msra.mxu0 %v7299
    %7382 = vmatprep.subr.bf16.mxu0 0
    %7383 = vmatpush1.bf16.msra.mxu0 %v7298
    %7384 = vmatprep.subr.bf16.mxu0 0
    %7385 = vmatpush1.bf16.msra.mxu0 %v7297
    %7386 = vmatprep.subr.bf16.mxu0 0
    %7387 = vmatpush1.bf16.msra.mxu0 %v7296
    %7388 = vmatprep.subr.bf16.mxu0 0
    %7389 = vmatpush1.bf16.msra.mxu0 %v7295
    %7390 = vmatprep.subr.bf16.mxu0 0
    %7391 = vmatpush1.bf16.msra.mxu0 %v7294
    %7392 = vmatprep.subr.bf16.mxu0 0
    %7393 = vmatpush1.bf16.msra.mxu0 %v7293
    %7394 = vmatprep.subr.bf16.mxu0 0
    %7395 = vmatpush1.bf16.msra.mxu0 %v7292
    %7396 = vmatprep.subr.bf16.mxu0 0
    %7397 = vmatpush2.bf16.msra.mxu0 %v7307
    %7398 = vmatprep.subr.bf16.mxu0 0
    %7399 = vmatpush2.bf16.msra.mxu0 %v7306
    %7400 = vmatprep.subr.bf16.mxu0 0
    %7401 = vmatpush2.bf16.msra.mxu0 %v7305
    %7402 = vmatprep.subr.bf16.mxu0 0
    %7403 = vmatpush2.bf16.msra.mxu0 %v7304
    %7404 = vmatprep.subr.bf16.mxu0 0
    %7405 = vmatpush2.bf16.msra.mxu0 %v7303
    %7406 = vmatprep.subr.bf16.mxu0 0
    %7407 = vmatpush2.bf16.msra.mxu0 %v7302
    %7408 = vmatprep.subr.bf16.mxu0 0
    %7409 = vmatpush2.bf16.msra.mxu0 %v7301
    %7410 = vmatprep.subr.bf16.mxu0 0
    %7411 = vmatpush2.bf16.msra.mxu0 %v7300
    %7412 = vmatprep.mubr.bf16.mxu0 %v7076
    %7413 = vmatmul.mubr.bf16.gmra.mxu0 %v7075
    %v7414 = vpop.f32.mrf.mxu0
    %v7415 = vadd.f32 %v7375, %v7414
    %v7416 = vpop.f32.mrf.mxu0
    %v7417 = vpop.f32.mrf.mxu0
    %v7418 = vpop.f32.mrf.mxu0
    %7419 = vdwg.mxu0
    %v7420 = vsub.f32 %v7415, %v5629
    %v7421 = vld [vmem:[%s6] sm:$0xff]
    %v7422 = vmul.f32 %v7420, %v7421
    %v7423 = vmul.f32 %v7422, %v7422
    %v7424 = vsel %vm5641, %v7423, 0.0
    %7425 = vadd.xlane.f32.xlu0 %v7424
    %v7426 = vpop.xlane.xlu0 %7425
    %v7427 = vrot.slane %v7426, 4
    %v7428 = vadd.f32 %v7426, %v7427
    %v7429 = vrot.slane %v7428, 2
    %v7430 = vadd.f32 %v7428, %v7429
    %v7431 = vrot.slane %v7430, 1
    %v7432 = vadd.f32 %v7430, %v7431
    %s7433 = vtos %v7432
    %v7434 = vstv %s7433
    %vm7435 = vcmask 0
    %7436 = vst.msk [vmem:[#allocation8] sm:$0x1] %vm7435, %v7434
    // Predicated region
    $region102: #{diffusion_policy_forward.1} parent=1 // pred_check
      _
    $region103: #{diffusion_policy_forward.1} parent=1 // pred_check_branch
      %7438 = sbr.rel (0) target = $region105
    $region104: #{diffusion_policy_forward.1} parent=1 // pred_region
      %s7440 = ssub.s32 16, 16
      %7441 = vsyncadd [#allocation4], %s7440
      %s7443 = sshll.u32 [#allocation8], 4
      %s7444 = int_to_ptr.vmem [resolvable:$true] %s7443
      %7446 = dma.vmem_to_hbm [thread:$0]  %s7444, 16, %s22, [#allocation4]
    $region105: #{diffusion_policy_forward.1} parent=1 // pred_fallthru
      _
    // Predicated region
    $region106: #{diffusion_policy_forward.1} parent=1 // pred_check
      _
    $region107: #{diffusion_policy_forward.1} parent=1 // pred_check_branch
      %7448 = sbr.rel (0) target = $region109
    $region108: #{diffusion_policy_forward.1} parent=1 // pred_region
      %7449 = dma.done [#allocation4], 16
    $region109: #{diffusion_policy_forward.1} parent=1 // pred_fallthru
      _
    %7450 = vsyncpa [#allocation3], 1
    %7451 = vsyncpa [#allocation6], 1
    %7452 = vsyncpa [#allocation4], 1

</llo_original>
